<compile_context>
chip_gen: v6e
topology: v6e:2x2x1
jax: 0.10.0
libtpu: 0.0.40
codegen_flags: <defaults>
</compile_context>

<pallas_src>
import jax
import jax.numpy as jnp
from jax import lax
from jax.experimental import pallas as pl
from jax.experimental.pallas import tpu as pltpu

KH = KW = 3
PAD = KH // 2          # conv padding = 1
HALO = 2 * PAD         # input halo (2) so the conv1 halo row can be recomputed
LANES = 128


def _resblock_kernel(x_ref, m_ref, w1_ref, b1_ref, a1_ref, w2_ref, b2_ref, a2_ref,
                     o_ref):
    # x_ref : (1, 1, TH+4, W+4, C) f32   zero-padded input band (2-row/col halo)
    # m_ref : (1, (TH+2)*(W+2), 1) f32   1.0 inside the image, 0.0 at conv2 padding
    # w*_ref: (9*C, C) bf16              conv taps flattened along the K axis
    # b*_ref: (1, C) f32                 conv bias
    # a*_ref: (1,)  f32 in SMEM          shared PReLU slope (nn.PReLU default)
    # o_ref : (1, TH, W, C)
    _, TH, W, C = o_ref.shape
    He, We = TH + 2 * PAD, W + 2 * PAD          # extended conv1 output grid
    M1 = He * We
    M2 = TH * W

    xp = x_ref[0, 0]                            # (TH+4, W+4, C) f32

    # ---- conv1: K-fused im2col, one (M1, 9C) x (9C, C) bf16 MXU matmul ----
    cols = []
    for dy in range(KH):
        for dx in range(KW):
            p = xp[dy:dy + He, dx:dx + We, :].reshape(M1, C)
            cols.append(p.astype(jnp.bfloat16))
    col1 = jnp.concatenate(cols, axis=1)                          # (M1, 9C)
    h1 = jnp.dot(col1, w1_ref[...], preferred_element_type=jnp.float32)
    h1 = h1 + b1_ref[...]
    a1 = a1_ref[0]
    h1 = jnp.where(h1 > 0, h1, a1 * h1)                           # PReLU 1 (f32)
    h1 = h1 * m_ref[0]                                            # zero conv2's padding
    h1_3d = h1.reshape(He, We, C)

    # ---- conv2: K-fused im2col, one (M2, 9C) x (9C, C) bf16 MXU matmul ----
    cols2 = []
    for dy in range(KH):
        for dx in range(KW):
            p = h1_3d[dy:dy + TH, dx:dx + W, :].reshape(M2, C)
            cols2.append(p.astype(jnp.bfloat16))
    col2 = jnp.concatenate(cols2, axis=1)                         # (M2, 9C)
    h2 = jnp.dot(col2, w2_ref[...], preferred_element_type=jnp.float32)
    h2 = h2 + b2_ref[...]
    a2 = a2_ref[0]
    h2 = jnp.where(h2 > 0, h2, a2 * h2)                           # PReLU 2 (f32)

    # ---- residual add (f32) and store ----
    x_c = xp[HALO:HALO + TH, HALO:HALO + W, :].reshape(M2, C)
    o_ref[0] = (x_c + h2).reshape(TH, W, C).astype(o_ref.dtype)


def _pick_row_block(H, max_rows=32):
    if H <= max_rows:
        return H
    for th in range(max_rows, 0, -1):
        if H % th == 0:
            return th
    return H


def residual_block_pallas(x_nchw, params, *, row_block=None):
    """x_nchw: (B, C, H, W) float32.  Returns (B, C, H, W) = x + block(x)."""
    w1, b1, a1, w2, b2, a2 = params
    B, C, H, W = x_nchw.shape
    TH = _pick_row_block(H) if row_block is None else row_block
    assert H % TH == 0, "row_block must divide H"
    n_bands = H // TH
    He, We = TH + 2 * PAD, W + 2 * PAD
    Cp = ((C + LANES - 1) // LANES) * LANES       # lane-dense channel padding

    # ---- wrapper glue (layout only): NCHW->NHWC, pad channels & spatial, cut bands
    x_nhwc = jnp.transpose(x_nchw, (0, 2, 3, 1))                     # (B, H, W, C)
    x_pad = jnp.pad(x_nhwc, ((0, 0), (HALO, HALO), (HALO, HALO), (0, Cp - C)))
    x_bands = jnp.stack(
        [x_pad[:, r * TH: r * TH + TH + 2 * HALO] for r in range(n_bands)], axis=1)
    # (B, n_bands, TH+4, W+4, Cp)

    # mask over the extended conv1 grid: 1 where the position is inside the image,
    # 0 where conv2 must see zero padding (image border / outside the band's image)
    e = jnp.arange(He)[None, :]
    rr = jnp.arange(n_bands)[:, None]
    grow = rr * TH - PAD + e                                         # global row
    row_ok = (grow >= 0) & (grow < H)                                # (n_bands, He)
    gcol = jnp.arange(We) - PAD                                      # global col
    col_ok = (gcol >= 0) & (gcol < W)                                # (We,)
    mask = (row_ok[:, :, None] & col_ok[None, None, :]).astype(jnp.float32)
    mask = mask.reshape(n_bands, He * We, 1)

    # weights/biases: pad channels to Cp, flatten taps to the contraction axis, bf16
    def prep_w(w):
        wp = jnp.pad(w, ((0, 0), (0, 0), (0, Cp - C), (0, Cp - C)))
        return wp.reshape(KH * KW * Cp, Cp).astype(jnp.bfloat16)

    def prep_b(b):
        return jnp.pad(b.reshape(1, C), ((0, 0), (0, Cp - C))).astype(jnp.float32)

    w1f, w2f = prep_w(w1), prep_w(w2)
    b1f, b2f = prep_b(b1), prep_b(b2)

    flops = int(B * 2 * 2 * KH * KW * H * W * Cp * Cp)
    bytes_accessed = int(x_bands.size * 4 + B * H * W * Cp * 4
                         + w1f.size * 2 + w2f.size * 2 + mask.size * 4 + 4 * Cp * 2)

    out_nhwc = pl.pallas_call(
        _resblock_kernel,
        out_shape=jax.ShapeDtypeStruct((B, H, W, Cp), x_nchw.dtype),
        grid_spec=pltpu.PrefetchScalarGridSpec(
            num_scalar_prefetch=0,
            grid=(B, n_bands),
            in_specs=[
                pl.BlockSpec((1, 1, TH + 2 * HALO, W + 2 * HALO, Cp),
                             lambda b, r: (b, r, 0, 0, 0)),
                pl.BlockSpec((1, He * We, 1), lambda b, r: (r, 0, 0)),
                pl.BlockSpec((KH * KW * Cp, Cp), lambda b, r: (0, 0)),
                pl.BlockSpec((1, Cp), lambda b, r: (0, 0)),
                pl.BlockSpec(memory_space=pltpu.SMEM),
                pl.BlockSpec((KH * KW * Cp, Cp), lambda b, r: (0, 0)),
                pl.BlockSpec((1, Cp), lambda b, r: (0, 0)),
                pl.BlockSpec(memory_space=pltpu.SMEM),
            ],
            out_specs=pl.BlockSpec((1, TH, W, Cp), lambda b, r: (b, r, 0, 0)),
        ),
        compiler_params=pltpu.CompilerParams(
            dimension_semantics=("parallel", "parallel"),
            vmem_limit_bytes=48 * 1024 * 1024),
        cost_estimate=pl.CostEstimate(flops=flops, transcendentals=0,
                                      bytes_accessed=bytes_accessed),
    )(x_bands, mask, w1f, b1f, a1, w2f, b2f, a2)

    out_nhwc = out_nhwc[..., :C]                  # drop channel padding (glue)
    return jnp.transpose(out_nhwc, (0, 3, 1, 2))  # NHWC -> NCHW


def residual_block_ref(x_nchw, params):
    """Pure-JAX reference.  Conv inputs are cast to bf16 (f32 accumulation) to match
    the TPU MXU precision used inside the kernel; everything else stays f32."""
    w1, b1, a1, w2, b2, a2 = params
    x = jnp.transpose(x_nchw, (0, 2, 3, 1))
    dn = ('NHWC', 'HWIO', 'NHWC')

    def conv(h, w):
        return lax.conv_general_dilated(
            h.astype(jnp.bfloat16), w.astype(jnp.bfloat16), (1, 1), 'SAME',
            dimension_numbers=dn, preferred_element_type=jnp.float32)

    h = conv(x, w1) + b1
    h = jnp.where(h > 0, h, a1[0] * h)
    h = conv(h, w2) + b2
    h = jnp.where(h > 0, h, a2[0] * h)
    return jnp.transpose(x + h, (0, 3, 1, 2))


def init_params(key, channel_size):
    """Synthetic init mirroring the module's parameter shapes.
    Conv weights kept in HWIO = (kH, kW, Cin, Cout) layout for NHWC convs."""
    k1, k2, k3, k4 = jax.random.split(key, 4)
    C = channel_size
    scale = 1.0 / jnp.sqrt(C * KH * KW)
    w1 = jax.random.normal(k1, (KH, KW, C, C), jnp.float32) * scale
    b1 = jax.random.normal(k2, (1, C), jnp.float32) * 0.1
    w2 = jax.random.normal(k3, (KH, KW, C, C), jnp.float32) * scale
    b2 = jax.random.normal(k4, (1, C), jnp.float32) * 0.1
    a1 = jnp.full((1,), 0.25, jnp.float32)  # nn.PReLU() default: one shared 0.25
    a2 = jnp.full((1,), 0.25, jnp.float32)
    return (w1, b1, a1, w2, b2, a2)


if __name__ == "__main__":
    B, C, H, W = 2, 64, 16, 16      # channel_size=64 is the module default
    key = jax.random.PRNGKey(0)
    kx, kp = jax.random.split(key)
    x = jax.random.normal(kx, (B, C, H, W), jnp.float32)
    params = init_params(kp, C)

    # row_block=8 -> 2 row bands per image -> grid (2, 2): exercises the banded path
    out = jax.block_until_ready(residual_block_pallas(x, params, row_block=8))
    ref = jax.block_until_ready(residual_block_ref(x, params))

    assert out.shape == x.shape and out.dtype == x.dtype
    err = jnp.max(jnp.abs(out - ref))
    assert jnp.allclose(out, ref, atol=1e-2, rtol=1e-2), f"max abs err = {err}"
    print("KERNEL_OK")
</pallas_src>

<mosaic_0001>
module attributes {stable_mosaic.version = 11 : i64} {
  func.func @_resblock_kernel(%arg0: i32, %arg1: i32, %arg2: memref<1x1x12x20x128xf32, #tpu.memory_space<vmem>>, %arg3: memref<1x180x1xf32, #tpu.memory_space<vmem>>, %arg4: memref<1152x128xbf16, #tpu.memory_space<vmem>>, %arg5: memref<1x128xf32, #tpu.memory_space<vmem>>, %arg6: memref<1xf32, #tpu.memory_space<smem>>, %arg7: memref<1152x128xbf16, #tpu.memory_space<vmem>>, %arg8: memref<1x128xf32, #tpu.memory_space<vmem>>, %arg9: memref<1xf32, #tpu.memory_space<smem>>, %arg10: memref<1x8x16x128xf32, #tpu.memory_space<vmem>>) attributes {dimension_semantics = [#tpu.dimension_semantics<parallel>, #tpu.dimension_semantics<parallel>], iteration_bounds = array<i64: 2, 2>, scalar_prefetch = 0 : i64, scratch_operands = 0 : i64, tpu.core_type = #tpu.core_type<tc>, window_params = [{transform_indices = @transform_0, window_bounds = array<i64: 1, 1, 12, 20, 128>}, {transform_indices = @transform_1, window_bounds = array<i64: 1, 180, 1>}, {pipeline_mode = #tpu.pipeline_mode<synchronous>, transform_indices = @transform_2, window_bounds = array<i64: 1152, 128>}, {pipeline_mode = #tpu.pipeline_mode<synchronous>, transform_indices = @transform_3, window_bounds = array<i64: 1, 128>}, {transform_indices = @transform_4, window_bounds = array<i64: 1>}, {pipeline_mode = #tpu.pipeline_mode<synchronous>, transform_indices = @transform_5, window_bounds = array<i64: 1152, 128>}, {pipeline_mode = #tpu.pipeline_mode<synchronous>, transform_indices = @transform_6, window_bounds = array<i64: 1, 128>}, {transform_indices = @transform_7, window_bounds = array<i64: 1>}, {transform_indices = @transform_8, window_bounds = array<i64: 1, 8, 16, 128>}]} {
    %c0 = arith.constant 0 : index
    %c0_0 = arith.constant 0 : index
    %c0_1 = arith.constant 0 : index
    %c0_2 = arith.constant 0 : index
    %c0_3 = arith.constant 0 : index
    %0 = vector.load %arg2[%c0, %c0_0, %c0_1, %c0_2, %c0_3] : memref<1x1x12x20x128xf32, #tpu.memory_space<vmem>>, vector<1x1x12x20x128xf32>
    %1 = vector.shape_cast %0 : vector<1x1x12x20x128xf32> to vector<12x20x128xf32>
    %2 = vector.extract_strided_slice %1 {offsets = [0, 0, 0], sizes = [10, 18, 128], strides = [1, 1, 1]} : vector<12x20x128xf32> to vector<10x18x128xf32>
    %3 = vector.shape_cast %2 : vector<10x18x128xf32> to vector<180x128xf32>
    %4 = arith.truncf %3 : vector<180x128xf32> to vector<180x128xbf16>
    %5 = vector.extract_strided_slice %1 {offsets = [0, 1, 0], sizes = [10, 18, 128], strides = [1, 1, 1]} : vector<12x20x128xf32> to vector<10x18x128xf32>
    %6 = vector.shape_cast %5 : vector<10x18x128xf32> to vector<180x128xf32>
    %7 = arith.truncf %6 : vector<180x128xf32> to vector<180x128xbf16>
    %8 = vector.extract_strided_slice %1 {offsets = [0, 2, 0], sizes = [10, 18, 128], strides = [1, 1, 1]} : vector<12x20x128xf32> to vector<10x18x128xf32>
    %9 = vector.shape_cast %8 : vector<10x18x128xf32> to vector<180x128xf32>
    %10 = arith.truncf %9 : vector<180x128xf32> to vector<180x128xbf16>
    %11 = vector.extract_strided_slice %1 {offsets = [1, 0, 0], sizes = [10, 18, 128], strides = [1, 1, 1]} : vector<12x20x128xf32> to vector<10x18x128xf32>
    %12 = vector.shape_cast %11 : vector<10x18x128xf32> to vector<180x128xf32>
    %13 = arith.truncf %12 : vector<180x128xf32> to vector<180x128xbf16>
    %14 = vector.extract_strided_slice %1 {offsets = [1, 1, 0], sizes = [10, 18, 128], strides = [1, 1, 1]} : vector<12x20x128xf32> to vector<10x18x128xf32>
    %15 = vector.shape_cast %14 : vector<10x18x128xf32> to vector<180x128xf32>
    %16 = arith.truncf %15 : vector<180x128xf32> to vector<180x128xbf16>
    %17 = vector.extract_strided_slice %1 {offsets = [1, 2, 0], sizes = [10, 18, 128], strides = [1, 1, 1]} : vector<12x20x128xf32> to vector<10x18x128xf32>
    %18 = vector.shape_cast %17 : vector<10x18x128xf32> to vector<180x128xf32>
    %19 = arith.truncf %18 : vector<180x128xf32> to vector<180x128xbf16>
    %20 = vector.extract_strided_slice %1 {offsets = [2, 0, 0], sizes = [10, 18, 128], strides = [1, 1, 1]} : vector<12x20x128xf32> to vector<10x18x128xf32>
    %21 = vector.shape_cast %20 : vector<10x18x128xf32> to vector<180x128xf32>
    %22 = arith.truncf %21 : vector<180x128xf32> to vector<180x128xbf16>
    %23 = vector.extract_strided_slice %1 {offsets = [2, 1, 0], sizes = [10, 18, 128], strides = [1, 1, 1]} : vector<12x20x128xf32> to vector<10x18x128xf32>
    %24 = vector.shape_cast %23 : vector<10x18x128xf32> to vector<180x128xf32>
    %25 = arith.truncf %24 : vector<180x128xf32> to vector<180x128xbf16>
    %26 = vector.extract_strided_slice %1 {offsets = [2, 2, 0], sizes = [10, 18, 128], strides = [1, 1, 1]} : vector<12x20x128xf32> to vector<10x18x128xf32>
    %27 = vector.shape_cast %26 : vector<10x18x128xf32> to vector<180x128xf32>
    %28 = arith.truncf %27 : vector<180x128xf32> to vector<180x128xbf16>
    %29 = tpu.concatenate %4, %7, %10, %13, %16, %19, %22, %25, %28 in 1 : vector<180x128xbf16>, vector<180x128xbf16>, vector<180x128xbf16>, vector<180x128xbf16>, vector<180x128xbf16>, vector<180x128xbf16>, vector<180x128xbf16>, vector<180x128xbf16>, vector<180x128xbf16> -> vector<180x1152xbf16>
    %c0_4 = arith.constant 0 : index
    %c0_5 = arith.constant 0 : index
    %30 = vector.load %arg4[%c0_4, %c0_5] : memref<1152x128xbf16, #tpu.memory_space<vmem>>, vector<1152x128xbf16>
    %cst = arith.constant dense<0.000000e+00> : vector<180x128xf32>
    %31 = tpu.matmul %29, %30, %cst {dimension_numbers = #tpu.dot_dimension_numbers<[1], [0], [0], [1], [0, 0, 1, 1], [], []>} : vector<180x1152xbf16>, vector<1152x128xbf16>, vector<180x128xf32> -> vector<180x128xf32>
    %c0_6 = arith.constant 0 : index
    %c0_7 = arith.constant 0 : index
    %32 = vector.load %arg5[%c0_6, %c0_7] : memref<1x128xf32, #tpu.memory_space<vmem>>, vector<1x128xf32>
    %33 = vector.broadcast %32 : vector<1x128xf32> to vector<180x128xf32>
    %34 = arith.addf %31, %33 : vector<180x128xf32>
    %c0_8 = arith.constant 0 : index
    %35 = memref.load %arg6[%c0_8] : memref<1xf32, #tpu.memory_space<smem>>
    %cst_9 = arith.constant 0.000000e+00 : f32
    %36 = vector.broadcast %cst_9 : f32 to vector<180x128xf32>
    %37 = arith.cmpf ogt, %34, %36 : vector<180x128xf32>
    %38 = vector.broadcast %35 : f32 to vector<180x128xf32>
    %39 = arith.mulf %38, %34 : vector<180x128xf32>
    %40 = arith.select %37, %34, %39 : vector<180x128xi1>, vector<180x128xf32>
    %c0_10 = arith.constant 0 : index
    %c0_11 = arith.constant 0 : index
    %c0_12 = arith.constant 0 : index
    %41 = vector.load %arg3[%c0_10, %c0_11, %c0_12] : memref<1x180x1xf32, #tpu.memory_space<vmem>>, vector<1x180x1xf32>
    %42 = vector.shape_cast %41 : vector<1x180x1xf32> to vector<180x1xf32>
    %43 = vector.broadcast %42 : vector<180x1xf32> to vector<180x128xf32>
    %44 = arith.mulf %40, %43 : vector<180x128xf32>
    %45 = vector.shape_cast %44 : vector<180x128xf32> to vector<10x18x128xf32>
    %46 = vector.extract_strided_slice %45 {offsets = [0, 0, 0], sizes = [8, 16, 128], strides = [1, 1, 1]} : vector<10x18x128xf32> to vector<8x16x128xf32>
    %47 = vector.shape_cast %46 : vector<8x16x128xf32> to vector<128x128xf32>
    %48 = arith.truncf %47 : vector<128x128xf32> to vector<128x128xbf16>
    %49 = vector.extract_strided_slice %45 {offsets = [0, 1, 0], sizes = [8, 16, 128], strides = [1, 1, 1]} : vector<10x18x128xf32> to vector<8x16x128xf32>
    %50 = vector.shape_cast %49 : vector<8x16x128xf32> to vector<128x128xf32>
    %51 = arith.truncf %50 : vector<128x128xf32> to vector<128x128xbf16>
    %52 = vector.extract_strided_slice %45 {offsets = [0, 2, 0], sizes = [8, 16, 128], strides = [1, 1, 1]} : vector<10x18x128xf32> to vector<8x16x128xf32>
    %53 = vector.shape_cast %52 : vector<8x16x128xf32> to vector<128x128xf32>
    %54 = arith.truncf %53 : vector<128x128xf32> to vector<128x128xbf16>
    %55 = vector.extract_strided_slice %45 {offsets = [1, 0, 0], sizes = [8, 16, 128], strides = [1, 1, 1]} : vector<10x18x128xf32> to vector<8x16x128xf32>
    %56 = vector.shape_cast %55 : vector<8x16x128xf32> to vector<128x128xf32>
    %57 = arith.truncf %56 : vector<128x128xf32> to vector<128x128xbf16>
    %58 = vector.extract_strided_slice %45 {offsets = [1, 1, 0], sizes = [8, 16, 128], strides = [1, 1, 1]} : vector<10x18x128xf32> to vector<8x16x128xf32>
    %59 = vector.shape_cast %58 : vector<8x16x128xf32> to vector<128x128xf32>
    %60 = arith.truncf %59 : vector<128x128xf32> to vector<128x128xbf16>
    %61 = vector.extract_strided_slice %45 {offsets = [1, 2, 0], sizes = [8, 16, 128], strides = [1, 1, 1]} : vector<10x18x128xf32> to vector<8x16x128xf32>
    %62 = vector.shape_cast %61 : vector<8x16x128xf32> to vector<128x128xf32>
    %63 = arith.truncf %62 : vector<128x128xf32> to vector<128x128xbf16>
    %64 = vector.extract_strided_slice %45 {offsets = [2, 0, 0], sizes = [8, 16, 128], strides = [1, 1, 1]} : vector<10x18x128xf32> to vector<8x16x128xf32>
    %65 = vector.shape_cast %64 : vector<8x16x128xf32> to vector<128x128xf32>
    %66 = arith.truncf %65 : vector<128x128xf32> to vector<128x128xbf16>
    %67 = vector.extract_strided_slice %45 {offsets = [2, 1, 0], sizes = [8, 16, 128], strides = [1, 1, 1]} : vector<10x18x128xf32> to vector<8x16x128xf32>
    %68 = vector.shape_cast %67 : vector<8x16x128xf32> to vector<128x128xf32>
    %69 = arith.truncf %68 : vector<128x128xf32> to vector<128x128xbf16>
    %70 = vector.extract_strided_slice %45 {offsets = [2, 2, 0], sizes = [8, 16, 128], strides = [1, 1, 1]} : vector<10x18x128xf32> to vector<8x16x128xf32>
    %71 = vector.shape_cast %70 : vector<8x16x128xf32> to vector<128x128xf32>
    %72 = arith.truncf %71 : vector<128x128xf32> to vector<128x128xbf16>
    %73 = tpu.concatenate %48, %51, %54, %57, %60, %63, %66, %69, %72 in 1 : vector<128x128xbf16>, vector<128x128xbf16>, vector<128x128xbf16>, vector<128x128xbf16>, vector<128x128xbf16>, vector<128x128xbf16>, vector<128x128xbf16>, vector<128x128xbf16>, vector<128x128xbf16> -> vector<128x1152xbf16>
    %c0_13 = arith.constant 0 : index
    %c0_14 = arith.constant 0 : index
    %74 = vector.load %arg7[%c0_13, %c0_14] : memref<1152x128xbf16, #tpu.memory_space<vmem>>, vector<1152x128xbf16>
    %cst_15 = arith.constant dense<0.000000e+00> : vector<128x128xf32>
    %75 = tpu.matmul %73, %74, %cst_15 {dimension_numbers = #tpu.dot_dimension_numbers<[1], [0], [0], [1], [0, 0, 1, 1], [], []>} : vector<128x1152xbf16>, vector<1152x128xbf16>, vector<128x128xf32> -> vector<128x128xf32>
    %c0_16 = arith.constant 0 : index
    %c0_17 = arith.constant 0 : index
    %76 = vector.load %arg8[%c0_16, %c0_17] : memref<1x128xf32, #tpu.memory_space<vmem>>, vector<1x128xf32>
    %77 = vector.broadcast %76 : vector<1x128xf32> to vector<128x128xf32>
    %78 = arith.addf %75, %77 : vector<128x128xf32>
    %c0_18 = arith.constant 0 : index
    %79 = memref.load %arg9[%c0_18] : memref<1xf32, #tpu.memory_space<smem>>
    %cst_19 = arith.constant 0.000000e+00 : f32
    %80 = vector.broadcast %cst_19 : f32 to vector<128x128xf32>
    %81 = arith.cmpf ogt, %78, %80 : vector<128x128xf32>
    %82 = vector.broadcast %79 : f32 to vector<128x128xf32>
    %83 = arith.mulf %82, %78 : vector<128x128xf32>
    %84 = arith.select %81, %78, %83 : vector<128x128xi1>, vector<128x128xf32>
    %85 = vector.extract_strided_slice %1 {offsets = [2, 2, 0], sizes = [8, 16, 128], strides = [1, 1, 1]} : vector<12x20x128xf32> to vector<8x16x128xf32>
    %86 = vector.shape_cast %85 : vector<8x16x128xf32> to vector<128x128xf32>
    %87 = arith.addf %86, %84 : vector<128x128xf32>
    %88 = vector.shape_cast %87 : vector<128x128xf32> to vector<8x16x128xf32>
    %c0_20 = arith.constant 0 : index
    %c0_21 = arith.constant 0 : index
    %c0_22 = arith.constant 0 : index
    %c0_23 = arith.constant 0 : index
    %89 = vector.load %arg10[%c0_20, %c0_21, %c0_22, %c0_23] : memref<1x8x16x128xf32, #tpu.memory_space<vmem>>, vector<1x8x16x128xf32>
    %90 = vector.shape_cast %89 : vector<1x8x16x128xf32> to vector<8x16x128xf32>
    %91 = vector.shape_cast %88 : vector<8x16x128xf32> to vector<1x8x16x128xf32>
    tpu.vector_store %arg10[%c0_20, %c0_21, %c0_22, %c0_23], %91 {strides = array<i32>} : memref<1x8x16x128xf32, #tpu.memory_space<vmem>>, vector<1x8x16x128xf32>,
    return
  }
  func.func @transform_0(%arg0: i32, %arg1: i32) -> (i32, i32, i32, i32, i32) {
    %c0_i32 = arith.constant 0 : i32
    %c0_i32_0 = arith.constant 0 : i32
    %c0_i32_1 = arith.constant 0 : i32
    %c0_i32_2 = arith.constant 0 : i32
    return %arg0, %arg1, %c0_i32, %c0_i32_0, %c0_i32_1 : i32, i32, i32, i32, i32
  }
  func.func @transform_1(%arg0: i32, %arg1: i32) -> (i32, i32, i32) {
    %c0_i32 = arith.constant 0 : i32
    %c0_i32_0 = arith.constant 0 : i32
    %c0_i32_1 = arith.constant 0 : i32
    return %arg1, %c0_i32, %c0_i32_0 : i32, i32, i32
  }
  func.func @transform_2(%arg0: i32, %arg1: i32) -> (i32, i32) {
    %c0_i32 = arith.constant 0 : i32
    %c0_i32_0 = arith.constant 0 : i32
    %c0_i32_1 = arith.constant 0 : i32
    return %c0_i32, %c0_i32_0 : i32, i32
  }
  func.func @transform_3(%arg0: i32, %arg1: i32) -> (i32, i32) {
    %c0_i32 = arith.constant 0 : i32
    %c0_i32_0 = arith.constant 0 : i32
    %c0_i32_1 = arith.constant 0 : i32
    return %c0_i32, %c0_i32_0 : i32, i32
  }
  func.func @transform_4(%arg0: i32, %arg1: i32) -> i32 {
    %c0_i32 = arith.constant 0 : i32
    %c0_i32_0 = arith.constant 0 : i32
    return %c0_i32 : i32
  }
  func.func @transform_5(%arg0: i32, %arg1: i32) -> (i32, i32) {
    %c0_i32 = arith.constant 0 : i32
    %c0_i32_0 = arith.constant 0 : i32
    %c0_i32_1 = arith.constant 0 : i32
    return %c0_i32, %c0_i32_0 : i32, i32
  }
  func.func @transform_6(%arg0: i32, %arg1: i32) -> (i32, i32) {
    %c0_i32 = arith.constant 0 : i32
    %c0_i32_0 = arith.constant 0 : i32
    %c0_i32_1 = arith.constant 0 : i32
    return %c0_i32, %c0_i32_0 : i32, i32
  }
  func.func @transform_7(%arg0: i32, %arg1: i32) -> i32 {
    %c0_i32 = arith.constant 0 : i32
    %c0_i32_0 = arith.constant 0 : i32
    return %c0_i32 : i32
  }
  func.func @transform_8(%arg0: i32, %arg1: i32) -> (i32, i32, i32, i32) {
    %c0_i32 = arith.constant 0 : i32
    %c0_i32_0 = arith.constant 0 : i32
    %c0_i32_1 = arith.constant 0 : i32
    return %arg0, %arg1, %c0_i32, %c0_i32_0 : i32, i32, i32, i32
  }
}

</mosaic_0001>

<llo_original>
// kernel: tpu_custom_call.1
$region0: #{tpu_custom_call.1}
  #allocation0 [shape = 'u32[]', space=smem, size = 0x4, offset = 0x4, fixed_abs, tag = 'smem constant byte address 0x4 - core index']
  #allocation1 [shape = 'u32[144,128]{1,0:T(1,128)}', space=vmem, size = 0x12000, scoped, tag = 'internal scratch']
  #allocation2 [shape = 'f32[1]{0:T(128)S(6)}', space=smem, size = 0x200, scoped, tag = 'scoped memory for tpu_custom_call.1']
  #allocation3 [shape = 'f32[1]{0:T(128)S(6)}', space=smem, size = 0x200, scoped, tag = 'scoped memory for tpu_custom_call.1']
  %s0 = inlined_call_operand.vmem [shape: f32[2,2,12,20,128], index: 0, kind: input, shape index: {}]
  %s1 = inlined_call_operand.vmem [shape: f32[2,180,1], index: 1, kind: input, shape index: {}]
  %s2 = inlined_call_operand.vmem [shape: bf16[1152,128], index: 2, kind: input, shape index: {}]
  %s3 = inlined_call_operand.vmem [shape: f32[1,128], index: 3, kind: input, shape index: {}]
  %s4 = inlined_call_operand.<no memory space> [shape: f32[1], index: 4, kind: input, shape index: {}]
  %s5 = inlined_call_operand.vmem [shape: bf16[1152,128], index: 5, kind: input, shape index: {}]
  %s6 = inlined_call_operand.vmem [shape: f32[1,128], index: 6, kind: input, shape index: {}]
  %s7 = inlined_call_operand.<no memory space> [shape: f32[1], index: 7, kind: input, shape index: {}]
  %s8 = inlined_call_operand.hbm [shape: f32[2,16,16,128], index: 8, kind: output, shape index: {}]
  %s9 = sld [smem:[#allocation0]]
  $region65: #{tpu_custom_call.1} parent=0
    _
  %s11 = ssub.s32 1, %s9
  %s12 = scalar_select 0, %s11, %s9
  %13 = sst [smem:[#allocation2]] %s4
  %14 = sst [smem:[#allocation3]] %s7
  $region1: #{tpu_custom_call.1} parent=0
    #allocation4 [shape = 'u8[131072]{0}', space=vmem, size = 0x20000, scoped, tag = 'output window, operand 0']
    #allocation5 [shape = 's32[2]{0}', space=sflag, size = 0x8, scoped, tag = 'scoped memory for tpu_custom_call.1']
    %15 = vsyncpa [#allocation5], 0
    %s16 = scalar_lea.sflag [#allocation5], 1
    %17 = vsyncpa %s16, 0
    loop: start=0, step=1, limit=6
    $region2: #{tpu_custom_call.1} parent=1 // loop_pre_header
      _
    $region3: #{tpu_custom_call.1} parent=1 // loop_header
      %s19 = sphi 0, %s23
      %p20 = scmp.ge.s32.totalorder %s19, 6
      %s26 = sphi 0, %s38
      %s27 = sphi 0, %s34
      %s28 = sphi 0, %s26
      %s29 = sphi 0, %s27
      %s30 = sphi 0, %s28
      %s31 = sphi 0, %s29
      %s43 = sphi 0, %s45
      %s46 = sphi 0, %s43
      %s47 = sphi 0, %s46
      %s63 = sphi 0, %s47
      %s69 = sphi 0, %s71
      %s72 = sphi 0, %s69
      %s73 = sphi 0, %s72
      %s89 = sphi 0, %s73
      %s93 = sphi 0, %s93
      %s95 = sphi 0, %s93
      %s96 = sphi 0, %s95
      %s110 = sphi 0, %s96
      %s114 = sphi 0, %s114
      %s116 = sphi 0, %s114
      %s117 = sphi 0, %s116
      %s131 = sphi 0, %s117
      %s135 = sphi 0, %s135
      %s137 = sphi 0, %s135
      %s138 = sphi 0, %s137
      %s152 = sphi 0, %s138
      %s156 = sphi 0, %s156
      %s158 = sphi 0, %s156
      %s159 = sphi 0, %s158
      %s173 = sphi 0, %s159
      %s177 = sphi 0, %s177
      %s179 = sphi 0, %s177
      %s180 = sphi 0, %s179
      %s194 = sphi 0, %s180
      %s198 = sphi 0, %s198
      %s200 = sphi 0, %s198
      %s201 = sphi 0, %s200
      %s215 = sphi 0, %s201
      %s223 = sphi 0, %s225
      %s226 = sphi 0, %s223
      %s227 = sphi 0, %s226
      %s243 = sphi 0, %s227
    $region4: #{tpu_custom_call.1} parent=1 // loop_header_branch
      %22 = sbr.rel (%p20) target = $region8
    $region5: #{tpu_custom_call.1} parent=1 // loop_body
      %s24 = ssub.s32 %s19, 1
      %s25 = ssub.s32 %s19, 2
      %s32 = sadd.s32 1, %s27
      %p33 = scmp.ge.s32.totalorder %s32, 2
      %s34 = scalar_select %p33, 0, %s32
      %s35 = sadd.s32 1, %s26
      %s36 = scalar_select %p33, %s35, %s26
      %p37 = scmp.ge.s32.totalorder %s36, 2
      %s38 = scalar_select %p37, 0, %s36
      %s39 = ssub.s32 %s26, %s38
      %s40 = ssub.s32 %s27, %s34
      %s41 = sor.u32 %s39, %s40
      %p42 = scmp.eq.s32.totalorder %s41, 0
      %s44 = sadd.s32 %s43, 1
      %s45 = scalar_select %p42, %s43, %s44
      %p48 = pneg %p42
      %p49 = scmp.eq.s32.totalorder %s19, 3
      %p50 = por %p48, %p49
      %p51 = scmp.ne.s32.totalorder %s43, %s46
      %p52 = scmp.eq.s32.totalorder %s19, 0
      %p53 = por %p51, %p52
      %p54 = scmp.ne.s32.totalorder %s43, %s46
      %p55 = scmp.eq.s32.totalorder %s24, 3
      %p56 = por %p54, %p55
      %p57 = scmp.ne.s32.totalorder %s46, %s47
      %p58 = scmp.eq.s32.totalorder %s24, 0
      %p59 = por %p57, %p58
      %p60 = scmp.ne.s32.totalorder %s46, %s47
      %p61 = scmp.eq.s32.totalorder %s25, 3
      %p62 = por %p60, %p61
      %p64 = scmp.ne.s32.totalorder %s47, %s63
      %p65 = scmp.eq.s32.totalorder %s25, 0
      %p66 = por %p64, %p65
      %s67 = ssub.s32 %s27, %s34
      %p68 = scmp.eq.s32.totalorder %s67, 0
      %s70 = sadd.s32 %s69, 1
      %s71 = scalar_select %p68, %s69, %s70
      %p74 = pneg %p68
      %p75 = scmp.eq.s32.totalorder %s19, 3
      %p76 = por %p74, %p75
      %p77 = scmp.ne.s32.totalorder %s69, %s72
      %p78 = scmp.eq.s32.totalorder %s19, 0
      %p79 = por %p77, %p78
      %p80 = scmp.ne.s32.totalorder %s69, %s72
      %p81 = scmp.eq.s32.totalorder %s24, 3
      %p82 = por %p80, %p81
      %p83 = scmp.ne.s32.totalorder %s72, %s73
      %p84 = scmp.eq.s32.totalorder %s24, 0
      %p85 = por %p83, %p84
      %p86 = scmp.ne.s32.totalorder %s72, %s73
      %p87 = scmp.eq.s32.totalorder %s25, 3
      %p88 = por %p86, %p87
      %p90 = scmp.ne.s32.totalorder %s73, %s89
      %p91 = scmp.eq.s32.totalorder %s25, 0
      %p92 = por %p90, %p91
      %s94 = sadd.s32 %s93, 1
      %p97 = scmp.eq.s32.totalorder %s19, 3
      %p98 = scmp.ne.s32.totalorder %s93, %s95
      %p99 = scmp.eq.s32.totalorder %s19, 0
      %p100 = por %p98, %p99
      %p101 = scmp.ne.s32.totalorder %s93, %s95
      %p102 = scmp.eq.s32.totalorder %s24, 3
      %p103 = por %p101, %p102
      %p104 = scmp.ne.s32.totalorder %s95, %s96
      %p105 = scmp.eq.s32.totalorder %s24, 0
      %p106 = por %p104, %p105
      %p107 = scmp.ne.s32.totalorder %s95, %s96
      %p108 = scmp.eq.s32.totalorder %s25, 3
      %p109 = por %p107, %p108
      %p111 = scmp.ne.s32.totalorder %s96, %s110
      %p112 = scmp.eq.s32.totalorder %s25, 0
      %p113 = por %p111, %p112
      %s115 = sadd.s32 %s114, 1
      %p118 = scmp.eq.s32.totalorder %s19, 3
      %p119 = scmp.ne.s32.totalorder %s114, %s116
      %p120 = scmp.eq.s32.totalorder %s19, 0
      %p121 = por %p119, %p120
      %p122 = scmp.ne.s32.totalorder %s114, %s116
      %p123 = scmp.eq.s32.totalorder %s24, 3
      %p124 = por %p122, %p123
      %p125 = scmp.ne.s32.totalorder %s116, %s117
      %p126 = scmp.eq.s32.totalorder %s24, 0
      %p127 = por %p125, %p126
      %p128 = scmp.ne.s32.totalorder %s116, %s117
      %p129 = scmp.eq.s32.totalorder %s25, 3
      %p130 = por %p128, %p129
      %p132 = scmp.ne.s32.totalorder %s117, %s131
      %p133 = scmp.eq.s32.totalorder %s25, 0
      %p134 = por %p132, %p133
      %s136 = sadd.s32 %s135, 1
      %p139 = scmp.eq.s32.totalorder %s19, 3
      %p140 = scmp.ne.s32.totalorder %s135, %s137
      %p141 = scmp.eq.s32.totalorder %s19, 0
      %p142 = por %p140, %p141
      %p143 = scmp.ne.s32.totalorder %s135, %s137
      %p144 = scmp.eq.s32.totalorder %s24, 3
      %p145 = por %p143, %p144
      %p146 = scmp.ne.s32.totalorder %s137, %s138
      %p147 = scmp.eq.s32.totalorder %s24, 0
      %p148 = por %p146, %p147
      %p149 = scmp.ne.s32.totalorder %s137, %s138
      %p150 = scmp.eq.s32.totalorder %s25, 3
      %p151 = por %p149, %p150
      %p153 = scmp.ne.s32.totalorder %s138, %s152
      %p154 = scmp.eq.s32.totalorder %s25, 0
      %p155 = por %p153, %p154
      %s157 = sadd.s32 %s156, 1
      %p160 = scmp.eq.s32.totalorder %s19, 3
      %p161 = scmp.ne.s32.totalorder %s156, %s158
      %p162 = scmp.eq.s32.totalorder %s19, 0
      %p163 = por %p161, %p162
      %p164 = scmp.ne.s32.totalorder %s156, %s158
      %p165 = scmp.eq.s32.totalorder %s24, 3
      %p166 = por %p164, %p165
      %p167 = scmp.ne.s32.totalorder %s158, %s159
      %p168 = scmp.eq.s32.totalorder %s24, 0
      %p169 = por %p167, %p168
      %p170 = scmp.ne.s32.totalorder %s158, %s159
      %p171 = scmp.eq.s32.totalorder %s25, 3
      %p172 = por %p170, %p171
      %p174 = scmp.ne.s32.totalorder %s159, %s173
      %p175 = scmp.eq.s32.totalorder %s25, 0
      %p176 = por %p174, %p175
      %s178 = sadd.s32 %s177, 1
      %p181 = scmp.eq.s32.totalorder %s19, 3
      %p182 = scmp.ne.s32.totalorder %s177, %s179
      %p183 = scmp.eq.s32.totalorder %s19, 0
      %p184 = por %p182, %p183
      %p185 = scmp.ne.s32.totalorder %s177, %s179
      %p186 = scmp.eq.s32.totalorder %s24, 3
      %p187 = por %p185, %p186
      %p188 = scmp.ne.s32.totalorder %s179, %s180
      %p189 = scmp.eq.s32.totalorder %s24, 0
      %p190 = por %p188, %p189
      %p191 = scmp.ne.s32.totalorder %s179, %s180
      %p192 = scmp.eq.s32.totalorder %s25, 3
      %p193 = por %p191, %p192
      %p195 = scmp.ne.s32.totalorder %s180, %s194
      %p196 = scmp.eq.s32.totalorder %s25, 0
      %p197 = por %p195, %p196
      %s199 = sadd.s32 %s198, 1
      %p202 = scmp.eq.s32.totalorder %s19, 3
      %p203 = scmp.ne.s32.totalorder %s198, %s200
      %p204 = scmp.eq.s32.totalorder %s19, 0
      %p205 = por %p203, %p204
      %p206 = scmp.ne.s32.totalorder %s198, %s200
      %p207 = scmp.eq.s32.totalorder %s24, 3
      %p208 = por %p206, %p207
      %p209 = scmp.ne.s32.totalorder %s200, %s201
      %p210 = scmp.eq.s32.totalorder %s24, 0
      %p211 = por %p209, %p210
      %p212 = scmp.ne.s32.totalorder %s200, %s201
      %p213 = scmp.eq.s32.totalorder %s25, 3
      %p214 = por %p212, %p213
      %p216 = scmp.ne.s32.totalorder %s201, %s215
      %p217 = scmp.eq.s32.totalorder %s25, 0
      %p218 = por %p216, %p217
      %s219 = ssub.s32 %s26, %s38
      %s220 = ssub.s32 %s27, %s34
      %s221 = sor.u32 %s219, %s220
      %p222 = scmp.eq.s32.totalorder %s221, 0
      %s224 = sadd.s32 %s223, 1
      %s225 = scalar_select %p222, %s223, %s224
      %p228 = pneg %p222
      %p229 = scmp.eq.s32.totalorder %s19, 3
      %p230 = por %p228, %p229
      %p231 = scmp.ne.s32.totalorder %s223, %s226
      %p232 = scmp.eq.s32.totalorder %s19, 0
      %p233 = por %p231, %p232
      %p234 = scmp.ne.s32.totalorder %s223, %s226
      %p235 = scmp.eq.s32.totalorder %s24, 3
      %p236 = por %p234, %p235
      %p237 = scmp.ne.s32.totalorder %s226, %s227
      %p238 = scmp.eq.s32.totalorder %s24, 0
      %p239 = por %p237, %p238
      %p240 = scmp.ne.s32.totalorder %s226, %s227
      %p241 = scmp.eq.s32.totalorder %s25, 3
      %p242 = por %p240, %p241
      %p244 = scmp.ne.s32.totalorder %s227, %s243
      %p245 = scmp.eq.s32.totalorder %s25, 0
      %p246 = por %p244, %p245
      %p247 = scmp.le.s32.totalorder 1, %s19
      %p248 = scmp.lt.s32.totalorder %s19, 5
      %p249 = pnand %p247, %p248
      %p250 = pneg %p249
      // Predicated region
      $region9: #{tpu_custom_call.1} parent=5 // pred_check
        _
      $region10: #{tpu_custom_call.1} parent=5 // pred_check_branch
        %252 = sbr.rel (%p249) target = $region12
      $region11: #{tpu_custom_call.1} parent=5 // pred_region
        %s253 = ssub.s32 %s19, 1
        // Predicated region
        $region13: #{tpu_custom_call.1} parent=11 // pred_check
          %p254 = pneg %p106
        $region14: #{tpu_custom_call.1} parent=11 // pred_check_branch
          %256 = sbr.rel (%p254) target = $region16
        $region15: #{tpu_custom_call.1} parent=11 // pred_region
          _
        $region16: #{tpu_custom_call.1} parent=11 // pred_fallthru
          _
        // Predicated region
        $region17: #{tpu_custom_call.1} parent=11 // pred_check
          %p257 = pneg %p127
        $region18: #{tpu_custom_call.1} parent=11 // pred_check_branch
          %259 = sbr.rel (%p257) target = $region20
        $region19: #{tpu_custom_call.1} parent=11 // pred_region
          _
        $region20: #{tpu_custom_call.1} parent=11 // pred_fallthru
          _
        // Predicated region
        $region21: #{tpu_custom_call.1} parent=11 // pred_check
          %p260 = pneg %p148
        $region22: #{tpu_custom_call.1} parent=11 // pred_check_branch
          %262 = sbr.rel (%p260) target = $region24
        $region23: #{tpu_custom_call.1} parent=11 // pred_region
          _
        $region24: #{tpu_custom_call.1} parent=11 // pred_fallthru
          _
        // Predicated region
        $region25: #{tpu_custom_call.1} parent=11 // pred_check
          %p263 = pneg %p169
        $region26: #{tpu_custom_call.1} parent=11 // pred_check_branch
          %265 = sbr.rel (%p263) target = $region28
        $region27: #{tpu_custom_call.1} parent=11 // pred_region
          _
        $region28: #{tpu_custom_call.1} parent=11 // pred_fallthru
          _
        // Predicated region
        $region29: #{tpu_custom_call.1} parent=11 // pred_check
          %p266 = pneg %p190
        $region30: #{tpu_custom_call.1} parent=11 // pred_check_branch
          %268 = sbr.rel (%p266) target = $region32
        $region31: #{tpu_custom_call.1} parent=11 // pred_region
          _
        $region32: #{tpu_custom_call.1} parent=11 // pred_fallthru
          _
        // Predicated region
        $region33: #{tpu_custom_call.1} parent=11 // pred_check
          %p269 = pneg %p211
        $region34: #{tpu_custom_call.1} parent=11 // pred_check_branch
          %271 = sbr.rel (%p269) target = $region36
        $region35: #{tpu_custom_call.1} parent=11 // pred_region
          _
        $region36: #{tpu_custom_call.1} parent=11 // pred_fallthru
          _
      $region12: #{tpu_custom_call.1} parent=5 // pred_fallthru
        _
      %p272 = scmp.lt.s32.totalorder %s19, 4
      // Predicated region
      $region37: #{tpu_custom_call.1} parent=5 // pred_check
        %p273 = pneg %p272
      $region38: #{tpu_custom_call.1} parent=5 // pred_check_branch
        %275 = sbr.rel (%p273) target = $region40
      $region39: #{tpu_custom_call.1} parent=5 // pred_region
        // Predicated region
        $region41: #{tpu_custom_call.1} parent=39 // pred_check
          %p276 = pneg %p53
        $region42: #{tpu_custom_call.1} parent=39 // pred_check_branch
          %278 = sbr.rel (%p276) target = $region44
        $region43: #{tpu_custom_call.1} parent=39 // pred_region
          %p279 = scmp.lt.s32.totalorder %s26, 1
          %s280 = scalar_select %p279, %s26, 1
          %p281 = scmp.lt.s32.totalorder %s27, 1
          %s282 = scalar_select %p281, %s27, 1
          %s283 = smul.addr %s282, 36
          %s284 = smul.addr %s280, 72
          %s285 = sadd.s32 %s283, %s284
          %s286 = smul.addr %s285, 8
          %s287 = scalar_lea.vmem %s0, %s286
        $region44: #{tpu_custom_call.1} parent=39 // pred_fallthru
          _
        // Predicated region
        $region45: #{tpu_custom_call.1} parent=39 // pred_check
          %p288 = pneg %p79
        $region46: #{tpu_custom_call.1} parent=39 // pred_check_branch
          %290 = sbr.rel (%p288) target = $region48
        $region47: #{tpu_custom_call.1} parent=39 // pred_region
          %p291 = scmp.lt.s32.totalorder %s27, 1
          %s292 = scalar_select %p291, %s27, 1
          %s293 = smul.addr %s292, 23
          %s294 = smul.addr %s293, 8
          %s295 = scalar_lea.vmem %s1, %s294
        $region48: #{tpu_custom_call.1} parent=39 // pred_fallthru
          _
      $region40: #{tpu_custom_call.1} parent=5 // pred_fallthru
        _
      %p296 = scmp.le.s32.totalorder 1, %s19
      %p297 = scmp.lt.s32.totalorder %s19, 5
      %p298 = pnand %p296, %p297
      %p299 = pneg %p298
      // Predicated region
      $region49: #{tpu_custom_call.1} parent=5 // pred_check
        _
      $region50: #{tpu_custom_call.1} parent=5 // pred_check_branch
        %301 = sbr.rel (%p298) target = $region52
      $region51: #{tpu_custom_call.1} parent=5 // pred_region
        %s302 = ssub.s32 %s19, 1
        %p303 = scmp.lt.s32.totalorder %s28, 1
        %s304 = scalar_select %p303, %s28, 1
        %p305 = scmp.lt.s32.totalorder %s29, 1
        %s306 = scalar_select %p305, %s29, 1
        %s307 = smul.addr %s306, 36
        %s308 = smul.addr %s304, 72
        %s309 = sadd.s32 %s307, %s308
        %s310 = smul.addr %s309, 8
        %s311 = scalar_lea.vmem %s0, %s310
        %p312 = pneg %p59
        %p313 = pneg %p56
        %p314 = scmp.lt.s32.totalorder %s29, 1
        %s315 = scalar_select %p314, %s29, 1
        %s316 = smul.addr %s315, 23
        %s317 = smul.addr %s316, 8
        %s318 = scalar_lea.vmem %s1, %s317
        %p319 = pneg %p85
        %p320 = pneg %p82
        %p321 = pneg %p106
        %p322 = pneg %p103
        %p323 = pneg %p127
        %p324 = pneg %p124
        %p325 = pneg %p148
        %p326 = pneg %p145
        %p327 = pneg %p169
        %p328 = pneg %p166
        %p329 = pneg %p190
        %p330 = pneg %p187
        %p331 = pneg %p211
        %p332 = pneg %p208
        %p333 = pneg %p239
        %p334 = pneg %p236
        %s335 = sand.u32 %s226, 1
        %s336 = scalar_lea.sflag [#allocation5], %s335
        %s337 = sand.u32 %s226, 1
        %s338 = smul.addr %s337, 128
        %s339 = scalar_lea.vmem [#allocation4], %s338
        %p340 = scmp.lt.s32.totalorder %s28, 1
        %s341 = scalar_select %p340, %s28, 1
        %p342 = scmp.lt.s32.totalorder %s29, 1
        %s343 = scalar_select %p342, %s29, 1
        %s344 = smul.addr %s343, 36
        %s345 = smul.addr %s341, 72
        %s346 = sadd.s32 %s344, %s345
        %s347 = smul.addr %s346, 8
        %s348 = scalar_lea.vmem %s0, %s347
        %p349 = scmp.lt.s32.totalorder %s29, 1
        %s350 = scalar_select %p349, %s29, 1
        %s351 = smul.addr %s350, 23
        %s352 = smul.addr %s351, 8
        %s353 = scalar_lea.vmem %s1, %s352
        %s354 = smul.u32 8, %s29
        %v356 = vld [vmem:[%s348] sm:$0xff]
        %v357 = vld [vmem:[%s348 + $0x8] sm:$0xff]
        %v358 = vld [vmem:[%s348 + $0x10] sm:$0xf]
        %v359 = vld [vmem:[%s348 + $0x18] sm:$0xff]
        %v360 = vld [vmem:[%s348 + $0x20] sm:$0xff]
        %v361 = vld [vmem:[%s348 + $0x28] sm:$0xf]
        %v362 = vld [vmem:[%s348 + $0x30] sm:$0xff]
        %v363 = vld [vmem:[%s348 + $0x38] sm:$0xff]
        %v364 = vld [vmem:[%s348 + $0x40] sm:$0xf]
        %v365 = vld [vmem:[%s348 + $0x48] sm:$0xff]
        %v366 = vld [vmem:[%s348 + $0x50] sm:$0xff]
        %v367 = vld [vmem:[%s348 + $0x58] sm:$0xf]
        %v368 = vld [vmem:[%s348 + $0x60] sm:$0xff]
        %v369 = vld [vmem:[%s348 + $0x68] sm:$0xff]
        %v370 = vld [vmem:[%s348 + $0x70] sm:$0xf]
        %v371 = vld [vmem:[%s348 + $0x78] sm:$0xff]
        %v372 = vld [vmem:[%s348 + $0x80] sm:$0xff]
        %v373 = vld [vmem:[%s348 + $0x88] sm:$0xf]
        %v374 = vld [vmem:[%s348 + $0x90] sm:$0xff]
        %v375 = vld [vmem:[%s348 + $0x98] sm:$0xff]
        %v376 = vld [vmem:[%s348 + $0xa0] sm:$0xf]
        %v377 = vld [vmem:[%s348 + $0xa8] sm:$0xff]
        %v378 = vld [vmem:[%s348 + $0xb0] sm:$0xff]
        %v379 = vld [vmem:[%s348 + $0xb8] sm:$0xf]
        %v380 = vld [vmem:[%s348 + $0xc0] sm:$0xff]
        %v381 = vld [vmem:[%s348 + $0xc8] sm:$0xff]
        %v382 = vld [vmem:[%s348 + $0xd0] sm:$0xf]
        %v383 = vld [vmem:[%s348 + $0xd8] sm:$0xff]
        %v384 = vld [vmem:[%s348 + $0xe0] sm:$0xff]
        %v385 = vld [vmem:[%s348 + $0xe8] sm:$0xf]
        %v386 = vld [vmem:[%s348 + $0xf0] sm:$0xff]
        %v387 = vld [vmem:[%s348 + $0xf8] sm:$0xff]
        %v388 = vld [vmem:[%s348 + $0x100] sm:$0xf]
        %v389 = vld [vmem:[%s348 + $0x108] sm:$0xff]
        %v390 = vld [vmem:[%s348 + $0x110] sm:$0xff]
        %v391 = vld [vmem:[%s348 + $0x118] sm:$0xf]
        %v422 = vcombine.high %v356, %v356
        %v424 = vunpack.c.l.s4 1983009808
        %v425 = vunpack.c.0.s8 %v424
        %v426 = vlaneseq
        %v427 = vshrl.u32 %v426, 7
        %v428 = vsub.s32 %v425, %v427
        %v429 = vrot.slane %v356, %v428
        %v431 = vunpack.c.l.s4 1983009808
        %v432 = vunpack.c.0.s8 %v431
        %v433 = vlaneseq
        %v434 = vshrl.u32 %v433, 7
        %v435 = vsub.s32 %v432, %v434
        %v436 = vrot.slane %v422, %v435
        %v437 = vcombine.high %v429, %v429
        %v438 = vcombine.high %v436, %v436
        %v439 = vcombine.high %v357, %v357
        %v441 = vunpack.c.l.s4 1983009808
        %v442 = vunpack.c.0.s8 %v441
        %v443 = vlaneseq
        %v444 = vshrl.u32 %v443, 7
        %v445 = vsub.s32 %v442, %v444
        %v446 = vrot.slane %v357, %v445
        %v448 = vunpack.c.l.s4 1983009808
        %v449 = vunpack.c.0.s8 %v448
        %v450 = vlaneseq
        %v451 = vshrl.u32 %v450, 7
        %v452 = vsub.s32 %v449, %v451
        %v453 = vrot.slane %v439, %v452
        %v454 = vcombine.high %v446, %v446
        %v455 = vcombine.high %v453, %v453
        %v457 = vunpack.c.l.s4 1983009808
        %v458 = vunpack.c.0.s8 %v457
        %v459 = vlaneseq
        %v460 = vshrl.u32 %v459, 7
        %v461 = vsub.s32 %v458, %v460
        %v462 = vrot.slane %v358, %v461
        %v463 = vcombine.high %v359, %v359
        %v465 = vunpack.c.l.s4 1983009808
        %v466 = vunpack.c.0.s8 %v465
        %v467 = vlaneseq
        %v468 = vshrl.u32 %v467, 7
        %v469 = vsub.s32 %v466, %v468
        %v470 = vrot.slane %v359, %v469
        %v472 = vunpack.c.l.s4 1983009808
        %v473 = vunpack.c.0.s8 %v472
        %v474 = vlaneseq
        %v475 = vshrl.u32 %v474, 7
        %v476 = vsub.s32 %v473, %v475
        %v477 = vrot.slane %v463, %v476
        %v478 = vcombine.high %v470, %v470
        %v479 = vcombine.high %v477, %v477
        %v480 = vcombine.high %v360, %v360
        %v482 = vunpack.c.l.s4 1983009808
        %v483 = vunpack.c.0.s8 %v482
        %v484 = vlaneseq
        %v485 = vshrl.u32 %v484, 7
        %v486 = vsub.s32 %v483, %v485
        %v487 = vrot.slane %v360, %v486
        %v489 = vunpack.c.l.s4 1983009808
        %v490 = vunpack.c.0.s8 %v489
        %v491 = vlaneseq
        %v492 = vshrl.u32 %v491, 7
        %v493 = vsub.s32 %v490, %v492
        %v494 = vrot.slane %v480, %v493
        %v495 = vcombine.high %v487, %v487
        %v496 = vcombine.high %v494, %v494
        %v498 = vunpack.c.l.s4 1983009808
        %v499 = vunpack.c.0.s8 %v498
        %v500 = vlaneseq
        %v501 = vshrl.u32 %v500, 7
        %v502 = vsub.s32 %v499, %v501
        %v503 = vrot.slane %v361, %v502
        %v504 = vcombine.high %v362, %v362
        %v506 = vunpack.c.l.s4 1983009808
        %v507 = vunpack.c.0.s8 %v506
        %v508 = vlaneseq
        %v509 = vshrl.u32 %v508, 7
        %v510 = vsub.s32 %v507, %v509
        %v511 = vrot.slane %v362, %v510
        %v513 = vunpack.c.l.s4 1983009808
        %v514 = vunpack.c.0.s8 %v513
        %v515 = vlaneseq
        %v516 = vshrl.u32 %v515, 7
        %v517 = vsub.s32 %v514, %v516
        %v518 = vrot.slane %v504, %v517
        %v519 = vcombine.high %v511, %v511
        %v520 = vcombine.high %v518, %v518
        %v521 = vcombine.high %v363, %v363
        %v523 = vunpack.c.l.s4 1983009808
        %v524 = vunpack.c.0.s8 %v523
        %v525 = vlaneseq
        %v526 = vshrl.u32 %v525, 7
        %v527 = vsub.s32 %v524, %v526
        %v528 = vrot.slane %v363, %v527
        %v530 = vunpack.c.l.s4 1983009808
        %v531 = vunpack.c.0.s8 %v530
        %v532 = vlaneseq
        %v533 = vshrl.u32 %v532, 7
        %v534 = vsub.s32 %v531, %v533
        %v535 = vrot.slane %v521, %v534
        %v536 = vcombine.high %v528, %v528
        %v537 = vcombine.high %v535, %v535
        %v539 = vunpack.c.l.s4 1983009808
        %v540 = vunpack.c.0.s8 %v539
        %v541 = vlaneseq
        %v542 = vshrl.u32 %v541, 7
        %v543 = vsub.s32 %v540, %v542
        %v544 = vrot.slane %v364, %v543
        %v545 = vcombine.high %v365, %v365
        %v547 = vunpack.c.l.s4 1983009808
        %v548 = vunpack.c.0.s8 %v547
        %v549 = vlaneseq
        %v550 = vshrl.u32 %v549, 7
        %v551 = vsub.s32 %v548, %v550
        %v552 = vrot.slane %v365, %v551
        %v554 = vunpack.c.l.s4 1983009808
        %v555 = vunpack.c.0.s8 %v554
        %v556 = vlaneseq
        %v557 = vshrl.u32 %v556, 7
        %v558 = vsub.s32 %v555, %v557
        %v559 = vrot.slane %v545, %v558
        %v560 = vcombine.high %v552, %v552
        %v561 = vcombine.high %v559, %v559
        %v562 = vcombine.high %v366, %v366
        %v564 = vunpack.c.l.s4 1983009808
        %v565 = vunpack.c.0.s8 %v564
        %v566 = vlaneseq
        %v567 = vshrl.u32 %v566, 7
        %v568 = vsub.s32 %v565, %v567
        %v569 = vrot.slane %v366, %v568
        %v571 = vunpack.c.l.s4 1983009808
        %v572 = vunpack.c.0.s8 %v571
        %v573 = vlaneseq
        %v574 = vshrl.u32 %v573, 7
        %v575 = vsub.s32 %v572, %v574
        %v576 = vrot.slane %v562, %v575
        %v577 = vcombine.high %v569, %v569
        %v578 = vcombine.high %v576, %v576
        %v580 = vunpack.c.l.s4 1983009808
        %v581 = vunpack.c.0.s8 %v580
        %v582 = vlaneseq
        %v583 = vshrl.u32 %v582, 7
        %v584 = vsub.s32 %v581, %v583
        %v585 = vrot.slane %v367, %v584
        %v586 = vcombine.high %v368, %v368
        %v588 = vunpack.c.l.s4 1983009808
        %v589 = vunpack.c.0.s8 %v588
        %v590 = vlaneseq
        %v591 = vshrl.u32 %v590, 7
        %v592 = vsub.s32 %v589, %v591
        %v593 = vrot.slane %v368, %v592
        %v595 = vunpack.c.l.s4 1983009808
        %v596 = vunpack.c.0.s8 %v595
        %v597 = vlaneseq
        %v598 = vshrl.u32 %v597, 7
        %v599 = vsub.s32 %v596, %v598
        %v600 = vrot.slane %v586, %v599
        %v601 = vcombine.high %v593, %v593
        %v602 = vcombine.high %v600, %v600
        %v603 = vcombine.high %v369, %v369
        %v605 = vunpack.c.l.s4 1983009808
        %v606 = vunpack.c.0.s8 %v605
        %v607 = vlaneseq
        %v608 = vshrl.u32 %v607, 7
        %v609 = vsub.s32 %v606, %v608
        %v610 = vrot.slane %v369, %v609
        %v612 = vunpack.c.l.s4 1983009808
        %v613 = vunpack.c.0.s8 %v612
        %v614 = vlaneseq
        %v615 = vshrl.u32 %v614, 7
        %v616 = vsub.s32 %v613, %v615
        %v617 = vrot.slane %v603, %v616
        %v618 = vcombine.high %v610, %v610
        %v619 = vcombine.high %v617, %v617
        %v621 = vunpack.c.l.s4 1983009808
        %v622 = vunpack.c.0.s8 %v621
        %v623 = vlaneseq
        %v624 = vshrl.u32 %v623, 7
        %v625 = vsub.s32 %v622, %v624
        %v626 = vrot.slane %v370, %v625
        %v627 = vcombine.high %v371, %v371
        %v629 = vunpack.c.l.s4 1983009808
        %v630 = vunpack.c.0.s8 %v629
        %v631 = vlaneseq
        %v632 = vshrl.u32 %v631, 7
        %v633 = vsub.s32 %v630, %v632
        %v634 = vrot.slane %v371, %v633
        %v636 = vunpack.c.l.s4 1983009808
        %v637 = vunpack.c.0.s8 %v636
        %v638 = vlaneseq
        %v639 = vshrl.u32 %v638, 7
        %v640 = vsub.s32 %v637, %v639
        %v641 = vrot.slane %v627, %v640
        %v642 = vcombine.high %v634, %v634
        %v643 = vcombine.high %v641, %v641
        %v644 = vcombine.high %v372, %v372
        %v646 = vunpack.c.l.s4 1983009808
        %v647 = vunpack.c.0.s8 %v646
        %v648 = vlaneseq
        %v649 = vshrl.u32 %v648, 7
        %v650 = vsub.s32 %v647, %v649
        %v651 = vrot.slane %v372, %v650
        %v653 = vunpack.c.l.s4 1983009808
        %v654 = vunpack.c.0.s8 %v653
        %v655 = vlaneseq
        %v656 = vshrl.u32 %v655, 7
        %v657 = vsub.s32 %v654, %v656
        %v658 = vrot.slane %v644, %v657
        %v659 = vcombine.high %v651, %v651
        %v660 = vcombine.high %v658, %v658
        %v662 = vunpack.c.l.s4 1983009808
        %v663 = vunpack.c.0.s8 %v662
        %v664 = vlaneseq
        %v665 = vshrl.u32 %v664, 7
        %v666 = vsub.s32 %v663, %v665
        %v667 = vrot.slane %v373, %v666
        %v668 = vcombine.high %v374, %v374
        %v670 = vunpack.c.l.s4 1983009808
        %v671 = vunpack.c.0.s8 %v670
        %v672 = vlaneseq
        %v673 = vshrl.u32 %v672, 7
        %v674 = vsub.s32 %v671, %v673
        %v675 = vrot.slane %v374, %v674
        %v677 = vunpack.c.l.s4 1983009808
        %v678 = vunpack.c.0.s8 %v677
        %v679 = vlaneseq
        %v680 = vshrl.u32 %v679, 7
        %v681 = vsub.s32 %v678, %v680
        %v682 = vrot.slane %v668, %v681
        %v683 = vcombine.high %v675, %v675
        %v684 = vcombine.high %v682, %v682
        %v685 = vcombine.high %v375, %v375
        %v687 = vunpack.c.l.s4 1983009808
        %v688 = vunpack.c.0.s8 %v687
        %v689 = vlaneseq
        %v690 = vshrl.u32 %v689, 7
        %v691 = vsub.s32 %v688, %v690
        %v692 = vrot.slane %v375, %v691
        %v694 = vunpack.c.l.s4 1983009808
        %v695 = vunpack.c.0.s8 %v694
        %v696 = vlaneseq
        %v697 = vshrl.u32 %v696, 7
        %v698 = vsub.s32 %v695, %v697
        %v699 = vrot.slane %v685, %v698
        %v700 = vcombine.high %v692, %v692
        %v701 = vcombine.high %v699, %v699
        %v703 = vunpack.c.l.s4 1983009808
        %v704 = vunpack.c.0.s8 %v703
        %v705 = vlaneseq
        %v706 = vshrl.u32 %v705, 7
        %v707 = vsub.s32 %v704, %v706
        %v708 = vrot.slane %v376, %v707
        %v709 = vcombine.high %v377, %v377
        %v711 = vunpack.c.l.s4 1983009808
        %v712 = vunpack.c.0.s8 %v711
        %v713 = vlaneseq
        %v714 = vshrl.u32 %v713, 7
        %v715 = vsub.s32 %v712, %v714
        %v716 = vrot.slane %v377, %v715
        %v718 = vunpack.c.l.s4 1983009808
        %v719 = vunpack.c.0.s8 %v718
        %v720 = vlaneseq
        %v721 = vshrl.u32 %v720, 7
        %v722 = vsub.s32 %v719, %v721
        %v723 = vrot.slane %v709, %v722
        %v724 = vcombine.high %v716, %v716
        %v725 = vcombine.high %v723, %v723
        %v726 = vcombine.high %v378, %v378
        %v728 = vunpack.c.l.s4 1983009808
        %v729 = vunpack.c.0.s8 %v728
        %v730 = vlaneseq
        %v731 = vshrl.u32 %v730, 7
        %v732 = vsub.s32 %v729, %v731
        %v733 = vrot.slane %v378, %v732
        %v735 = vunpack.c.l.s4 1983009808
        %v736 = vunpack.c.0.s8 %v735
        %v737 = vlaneseq
        %v738 = vshrl.u32 %v737, 7
        %v739 = vsub.s32 %v736, %v738
        %v740 = vrot.slane %v726, %v739
        %v741 = vcombine.high %v733, %v733
        %v742 = vcombine.high %v740, %v740
        %v744 = vunpack.c.l.s4 1983009808
        %v745 = vunpack.c.0.s8 %v744
        %v746 = vlaneseq
        %v747 = vshrl.u32 %v746, 7
        %v748 = vsub.s32 %v745, %v747
        %v749 = vrot.slane %v379, %v748
        %v750 = vcombine.high %v380, %v380
        %v752 = vunpack.c.l.s4 1983009808
        %v753 = vunpack.c.0.s8 %v752
        %v754 = vlaneseq
        %v755 = vshrl.u32 %v754, 7
        %v756 = vsub.s32 %v753, %v755
        %v757 = vrot.slane %v380, %v756
        %v759 = vunpack.c.l.s4 1983009808
        %v760 = vunpack.c.0.s8 %v759
        %v761 = vlaneseq
        %v762 = vshrl.u32 %v761, 7
        %v763 = vsub.s32 %v760, %v762
        %v764 = vrot.slane %v750, %v763
        %v765 = vcombine.high %v757, %v757
        %v766 = vcombine.high %v764, %v764
        %v767 = vcombine.high %v381, %v381
        %v769 = vunpack.c.l.s4 1983009808
        %v770 = vunpack.c.0.s8 %v769
        %v771 = vlaneseq
        %v772 = vshrl.u32 %v771, 7
        %v773 = vsub.s32 %v770, %v772
        %v774 = vrot.slane %v381, %v773
        %v776 = vunpack.c.l.s4 1983009808
        %v777 = vunpack.c.0.s8 %v776
        %v778 = vlaneseq
        %v779 = vshrl.u32 %v778, 7
        %v780 = vsub.s32 %v777, %v779
        %v781 = vrot.slane %v767, %v780
        %v782 = vcombine.high %v774, %v774
        %v783 = vcombine.high %v781, %v781
        %v785 = vunpack.c.l.s4 1983009808
        %v786 = vunpack.c.0.s8 %v785
        %v787 = vlaneseq
        %v788 = vshrl.u32 %v787, 7
        %v789 = vsub.s32 %v786, %v788
        %v790 = vrot.slane %v382, %v789
        %v791 = vcombine.high %v383, %v383
        %v793 = vunpack.c.l.s4 1983009808
        %v794 = vunpack.c.0.s8 %v793
        %v795 = vlaneseq
        %v796 = vshrl.u32 %v795, 7
        %v797 = vsub.s32 %v794, %v796
        %v798 = vrot.slane %v383, %v797
        %v800 = vunpack.c.l.s4 1983009808
        %v801 = vunpack.c.0.s8 %v800
        %v802 = vlaneseq
        %v803 = vshrl.u32 %v802, 7
        %v804 = vsub.s32 %v801, %v803
        %v805 = vrot.slane %v791, %v804
        %v806 = vcombine.high %v798, %v798
        %v807 = vcombine.high %v805, %v805
        %v808 = vcombine.high %v384, %v384
        %v810 = vunpack.c.l.s4 1983009808
        %v811 = vunpack.c.0.s8 %v810
        %v812 = vlaneseq
        %v813 = vshrl.u32 %v812, 7
        %v814 = vsub.s32 %v811, %v813
        %v815 = vrot.slane %v384, %v814
        %v817 = vunpack.c.l.s4 1983009808
        %v818 = vunpack.c.0.s8 %v817
        %v819 = vlaneseq
        %v820 = vshrl.u32 %v819, 7
        %v821 = vsub.s32 %v818, %v820
        %v822 = vrot.slane %v808, %v821
        %v823 = vcombine.high %v815, %v815
        %v824 = vcombine.high %v822, %v822
        %v826 = vunpack.c.l.s4 1983009808
        %v827 = vunpack.c.0.s8 %v826
        %v828 = vlaneseq
        %v829 = vshrl.u32 %v828, 7
        %v830 = vsub.s32 %v827, %v829
        %v831 = vrot.slane %v385, %v830
        %v832 = vcombine.low %v429, %v437
        %v833 = vcombine.low %v436, %v438
        %v835 = vunpack.c.l.s4 1983009808
        %v836 = vunpack.c.0.s8 %v835
        %v837 = vlaneseq
        %v838 = vshrl.u32 %v837, 7
        %v839 = vsub.s32 %v836, %v838
        %v840 = vrot.slane %v832, %v839
        %v842 = vunpack.c.l.s4 1983009808
        %v843 = vunpack.c.0.s8 %v842
        %v844 = vlaneseq
        %v845 = vshrl.u32 %v844, 7
        %v846 = vsub.s32 %v843, %v845
        %v847 = vrot.slane %v833, %v846
        %v848 = vcombine.low %v840, %v847
        %v849 = vcombine.low %v446, %v454
        %v850 = vcombine.low %v453, %v455
        %v852 = vunpack.c.l.s4 1983009808
        %v853 = vunpack.c.0.s8 %v852
        %v854 = vlaneseq
        %v855 = vshrl.u32 %v854, 7
        %v856 = vsub.s32 %v853, %v855
        %v857 = vrot.slane %v849, %v856
        %v859 = vunpack.c.l.s4 1983009808
        %v860 = vunpack.c.0.s8 %v859
        %v861 = vlaneseq
        %v862 = vshrl.u32 %v861, 7
        %v863 = vsub.s32 %v860, %v862
        %v864 = vrot.slane %v850, %v863
        %v865 = vcombine.low %v857, %v864
        %v866 = vcombine.low %v462, %v470
        %v867 = vcombine.low %v478, %v477
        %v869 = vunpack.c.l.s4 1983009808
        %v870 = vunpack.c.0.s8 %v869
        %v871 = vlaneseq
        %v872 = vshrl.u32 %v871, 7
        %v873 = vsub.s32 %v870, %v872
        %v874 = vrot.slane %v866, %v873
        %v876 = vunpack.c.l.s4 1983009808
        %v877 = vunpack.c.0.s8 %v876
        %v878 = vlaneseq
        %v879 = vshrl.u32 %v878, 7
        %v880 = vsub.s32 %v877, %v879
        %v881 = vrot.slane %v867, %v880
        %v882 = vcombine.low %v874, %v881
        %v883 = vcombine.low %v479, %v487
        %v884 = vcombine.low %v495, %v494
        %v886 = vunpack.c.l.s4 1983009808
        %v887 = vunpack.c.0.s8 %v886
        %v888 = vlaneseq
        %v889 = vshrl.u32 %v888, 7
        %v890 = vsub.s32 %v887, %v889
        %v891 = vrot.slane %v883, %v890
        %v893 = vunpack.c.l.s4 1983009808
        %v894 = vunpack.c.0.s8 %v893
        %v895 = vlaneseq
        %v896 = vshrl.u32 %v895, 7
        %v897 = vsub.s32 %v894, %v896
        %v898 = vrot.slane %v884, %v897
        %v899 = vcombine.low %v891, %v898
        %v900 = vcombine.low %v496, %v503
        %v901 = vcombine.low %v511, %v519
        %v903 = vunpack.c.l.s4 1983009808
        %v904 = vunpack.c.0.s8 %v903
        %v905 = vlaneseq
        %v906 = vshrl.u32 %v905, 7
        %v907 = vsub.s32 %v904, %v906
        %v908 = vrot.slane %v900, %v907
        %v910 = vunpack.c.l.s4 1983009808
        %v911 = vunpack.c.0.s8 %v910
        %v912 = vlaneseq
        %v913 = vshrl.u32 %v912, 7
        %v914 = vsub.s32 %v911, %v913
        %v915 = vrot.slane %v901, %v914
        %v916 = vcombine.low %v908, %v915
        %v917 = vcombine.low %v518, %v520
        %v918 = vcombine.low %v528, %v536
        %v920 = vunpack.c.l.s4 1983009808
        %v921 = vunpack.c.0.s8 %v920
        %v922 = vlaneseq
        %v923 = vshrl.u32 %v922, 7
        %v924 = vsub.s32 %v921, %v923
        %v925 = vrot.slane %v917, %v924
        %v927 = vunpack.c.l.s4 1983009808
        %v928 = vunpack.c.0.s8 %v927
        %v929 = vlaneseq
        %v930 = vshrl.u32 %v929, 7
        %v931 = vsub.s32 %v928, %v930
        %v932 = vrot.slane %v918, %v931
        %v933 = vcombine.low %v925, %v932
        %v934 = vcombine.low %v535, %v537
        %v935 = vcombine.low %v544, %v552
        %v937 = vunpack.c.l.s4 1983009808
        %v938 = vunpack.c.0.s8 %v937
        %v939 = vlaneseq
        %v940 = vshrl.u32 %v939, 7
        %v941 = vsub.s32 %v938, %v940
        %v942 = vrot.slane %v934, %v941
        %v944 = vunpack.c.l.s4 1983009808
        %v945 = vunpack.c.0.s8 %v944
        %v946 = vlaneseq
        %v947 = vshrl.u32 %v946, 7
        %v948 = vsub.s32 %v945, %v947
        %v949 = vrot.slane %v935, %v948
        %v950 = vcombine.low %v942, %v949
        %v951 = vcombine.low %v560, %v559
        %v952 = vcombine.low %v561, %v569
        %v954 = vunpack.c.l.s4 1983009808
        %v955 = vunpack.c.0.s8 %v954
        %v956 = vlaneseq
        %v957 = vshrl.u32 %v956, 7
        %v958 = vsub.s32 %v955, %v957
        %v959 = vrot.slane %v951, %v958
        %v961 = vunpack.c.l.s4 1983009808
        %v962 = vunpack.c.0.s8 %v961
        %v963 = vlaneseq
        %v964 = vshrl.u32 %v963, 7
        %v965 = vsub.s32 %v962, %v964
        %v966 = vrot.slane %v952, %v965
        %v967 = vcombine.low %v959, %v966
        %v968 = vcombine.low %v577, %v576
        %v969 = vcombine.low %v578, %v585
        %v971 = vunpack.c.l.s4 1983009808
        %v972 = vunpack.c.0.s8 %v971
        %v973 = vlaneseq
        %v974 = vshrl.u32 %v973, 7
        %v975 = vsub.s32 %v972, %v974
        %v976 = vrot.slane %v968, %v975
        %v978 = vunpack.c.l.s4 1983009808
        %v979 = vunpack.c.0.s8 %v978
        %v980 = vlaneseq
        %v981 = vshrl.u32 %v980, 7
        %v982 = vsub.s32 %v979, %v981
        %v983 = vrot.slane %v969, %v982
        %v984 = vcombine.low %v976, %v983
        %v985 = vcombine.low %v593, %v601
        %v986 = vcombine.low %v600, %v602
        %v988 = vunpack.c.l.s4 1983009808
        %v989 = vunpack.c.0.s8 %v988
        %v990 = vlaneseq
        %v991 = vshrl.u32 %v990, 7
        %v992 = vsub.s32 %v989, %v991
        %v993 = vrot.slane %v985, %v992
        %v995 = vunpack.c.l.s4 1983009808
        %v996 = vunpack.c.0.s8 %v995
        %v997 = vlaneseq
        %v998 = vshrl.u32 %v997, 7
        %v999 = vsub.s32 %v996, %v998
        %v1000 = vrot.slane %v986, %v999
        %v1001 = vcombine.low %v993, %v1000
        %v1002 = vcombine.low %v610, %v618
        %v1003 = vcombine.low %v617, %v619
        %v1005 = vunpack.c.l.s4 1983009808
        %v1006 = vunpack.c.0.s8 %v1005
        %v1007 = vlaneseq
        %v1008 = vshrl.u32 %v1007, 7
        %v1009 = vsub.s32 %v1006, %v1008
        %v1010 = vrot.slane %v1002, %v1009
        %v1012 = vunpack.c.l.s4 1983009808
        %v1013 = vunpack.c.0.s8 %v1012
        %v1014 = vlaneseq
        %v1015 = vshrl.u32 %v1014, 7
        %v1016 = vsub.s32 %v1013, %v1015
        %v1017 = vrot.slane %v1003, %v1016
        %v1018 = vcombine.low %v1010, %v1017
        %v1019 = vcombine.low %v626, %v634
        %v1020 = vcombine.low %v642, %v641
        %v1022 = vunpack.c.l.s4 1983009808
        %v1023 = vunpack.c.0.s8 %v1022
        %v1024 = vlaneseq
        %v1025 = vshrl.u32 %v1024, 7
        %v1026 = vsub.s32 %v1023, %v1025
        %v1027 = vrot.slane %v1019, %v1026
        %v1029 = vunpack.c.l.s4 1983009808
        %v1030 = vunpack.c.0.s8 %v1029
        %v1031 = vlaneseq
        %v1032 = vshrl.u32 %v1031, 7
        %v1033 = vsub.s32 %v1030, %v1032
        %v1034 = vrot.slane %v1020, %v1033
        %v1035 = vcombine.low %v1027, %v1034
        %v1036 = vcombine.low %v643, %v651
        %v1037 = vcombine.low %v659, %v658
        %v1039 = vunpack.c.l.s4 1983009808
        %v1040 = vunpack.c.0.s8 %v1039
        %v1041 = vlaneseq
        %v1042 = vshrl.u32 %v1041, 7
        %v1043 = vsub.s32 %v1040, %v1042
        %v1044 = vrot.slane %v1036, %v1043
        %v1046 = vunpack.c.l.s4 1983009808
        %v1047 = vunpack.c.0.s8 %v1046
        %v1048 = vlaneseq
        %v1049 = vshrl.u32 %v1048, 7
        %v1050 = vsub.s32 %v1047, %v1049
        %v1051 = vrot.slane %v1037, %v1050
        %v1052 = vcombine.low %v1044, %v1051
        %v1053 = vcombine.low %v660, %v667
        %v1054 = vcombine.low %v675, %v683
        %v1056 = vunpack.c.l.s4 1983009808
        %v1057 = vunpack.c.0.s8 %v1056
        %v1058 = vlaneseq
        %v1059 = vshrl.u32 %v1058, 7
        %v1060 = vsub.s32 %v1057, %v1059
        %v1061 = vrot.slane %v1053, %v1060
        %v1063 = vunpack.c.l.s4 1983009808
        %v1064 = vunpack.c.0.s8 %v1063
        %v1065 = vlaneseq
        %v1066 = vshrl.u32 %v1065, 7
        %v1067 = vsub.s32 %v1064, %v1066
        %v1068 = vrot.slane %v1054, %v1067
        %v1069 = vcombine.low %v1061, %v1068
        %v1070 = vcombine.low %v682, %v684
        %v1071 = vcombine.low %v692, %v700
        %v1073 = vunpack.c.l.s4 1983009808
        %v1074 = vunpack.c.0.s8 %v1073
        %v1075 = vlaneseq
        %v1076 = vshrl.u32 %v1075, 7
        %v1077 = vsub.s32 %v1074, %v1076
        %v1078 = vrot.slane %v1070, %v1077
        %v1080 = vunpack.c.l.s4 1983009808
        %v1081 = vunpack.c.0.s8 %v1080
        %v1082 = vlaneseq
        %v1083 = vshrl.u32 %v1082, 7
        %v1084 = vsub.s32 %v1081, %v1083
        %v1085 = vrot.slane %v1071, %v1084
        %v1086 = vcombine.low %v1078, %v1085
        %v1087 = vcombine.low %v699, %v701
        %v1088 = vcombine.low %v708, %v716
        %v1090 = vunpack.c.l.s4 1983009808
        %v1091 = vunpack.c.0.s8 %v1090
        %v1092 = vlaneseq
        %v1093 = vshrl.u32 %v1092, 7
        %v1094 = vsub.s32 %v1091, %v1093
        %v1095 = vrot.slane %v1087, %v1094
        %v1097 = vunpack.c.l.s4 1983009808
        %v1098 = vunpack.c.0.s8 %v1097
        %v1099 = vlaneseq
        %v1100 = vshrl.u32 %v1099, 7
        %v1101 = vsub.s32 %v1098, %v1100
        %v1102 = vrot.slane %v1088, %v1101
        %v1103 = vcombine.low %v1095, %v1102
        %v1104 = vcombine.low %v724, %v723
        %v1105 = vcombine.low %v725, %v733
        %v1107 = vunpack.c.l.s4 1983009808
        %v1108 = vunpack.c.0.s8 %v1107
        %v1109 = vlaneseq
        %v1110 = vshrl.u32 %v1109, 7
        %v1111 = vsub.s32 %v1108, %v1110
        %v1112 = vrot.slane %v1104, %v1111
        %v1114 = vunpack.c.l.s4 1983009808
        %v1115 = vunpack.c.0.s8 %v1114
        %v1116 = vlaneseq
        %v1117 = vshrl.u32 %v1116, 7
        %v1118 = vsub.s32 %v1115, %v1117
        %v1119 = vrot.slane %v1105, %v1118
        %v1120 = vcombine.low %v1112, %v1119
        %v1121 = vcombine.low %v741, %v740
        %v1122 = vcombine.low %v742, %v749
        %v1124 = vunpack.c.l.s4 1983009808
        %v1125 = vunpack.c.0.s8 %v1124
        %v1126 = vlaneseq
        %v1127 = vshrl.u32 %v1126, 7
        %v1128 = vsub.s32 %v1125, %v1127
        %v1129 = vrot.slane %v1121, %v1128
        %v1131 = vunpack.c.l.s4 1983009808
        %v1132 = vunpack.c.0.s8 %v1131
        %v1133 = vlaneseq
        %v1134 = vshrl.u32 %v1133, 7
        %v1135 = vsub.s32 %v1132, %v1134
        %v1136 = vrot.slane %v1122, %v1135
        %v1137 = vcombine.low %v1129, %v1136
        %v1138 = vcombine.low %v757, %v765
        %v1139 = vcombine.low %v764, %v766
        %v1141 = vunpack.c.l.s4 1983009808
        %v1142 = vunpack.c.0.s8 %v1141
        %v1143 = vlaneseq
        %v1144 = vshrl.u32 %v1143, 7
        %v1145 = vsub.s32 %v1142, %v1144
        %v1146 = vrot.slane %v1138, %v1145
        %v1148 = vunpack.c.l.s4 1983009808
        %v1149 = vunpack.c.0.s8 %v1148
        %v1150 = vlaneseq
        %v1151 = vshrl.u32 %v1150, 7
        %v1152 = vsub.s32 %v1149, %v1151
        %v1153 = vrot.slane %v1139, %v1152
        %v1154 = vcombine.low %v1146, %v1153
        %v1155 = vcombine.low %v774, %v782
        %v1156 = vcombine.low %v781, %v783
        %v1158 = vunpack.c.l.s4 1983009808
        %v1159 = vunpack.c.0.s8 %v1158
        %v1160 = vlaneseq
        %v1161 = vshrl.u32 %v1160, 7
        %v1162 = vsub.s32 %v1159, %v1161
        %v1163 = vrot.slane %v1155, %v1162
        %v1165 = vunpack.c.l.s4 1983009808
        %v1166 = vunpack.c.0.s8 %v1165
        %v1167 = vlaneseq
        %v1168 = vshrl.u32 %v1167, 7
        %v1169 = vsub.s32 %v1166, %v1168
        %v1170 = vrot.slane %v1156, %v1169
        %v1171 = vcombine.low %v1163, %v1170
        %v1172 = vcombine.low %v790, %v798
        %v1173 = vcombine.low %v806, %v805
        %v1175 = vunpack.c.l.s4 1983009808
        %v1176 = vunpack.c.0.s8 %v1175
        %v1177 = vlaneseq
        %v1178 = vshrl.u32 %v1177, 7
        %v1179 = vsub.s32 %v1176, %v1178
        %v1180 = vrot.slane %v1172, %v1179
        %v1182 = vunpack.c.l.s4 1983009808
        %v1183 = vunpack.c.0.s8 %v1182
        %v1184 = vlaneseq
        %v1185 = vshrl.u32 %v1184, 7
        %v1186 = vsub.s32 %v1183, %v1185
        %v1187 = vrot.slane %v1173, %v1186
        %v1188 = vcombine.low %v1180, %v1187
        %v1189 = vcombine.low %v807, %v815
        %v1190 = vcombine.low %v823, %v822
        %v1192 = vunpack.c.l.s4 1983009808
        %v1193 = vunpack.c.0.s8 %v1192
        %v1194 = vlaneseq
        %v1195 = vshrl.u32 %v1194, 7
        %v1196 = vsub.s32 %v1193, %v1195
        %v1197 = vrot.slane %v1189, %v1196
        %v1199 = vunpack.c.l.s4 1983009808
        %v1200 = vunpack.c.0.s8 %v1199
        %v1201 = vlaneseq
        %v1202 = vshrl.u32 %v1201, 7
        %v1203 = vsub.s32 %v1200, %v1202
        %v1204 = vrot.slane %v1190, %v1203
        %v1205 = vcombine.low %v1197, %v1204
        %v1206 = vcombine.low %v824, %v831
        %v1208 = vunpack.c.l.s4 1983009808
        %v1209 = vunpack.c.0.s8 %v1208
        %v1210 = vlaneseq
        %v1211 = vshrl.u32 %v1210, 7
        %v1212 = vsub.s32 %v1209, %v1211
        %v1213 = vrot.slane %v1206, %v1212
        %v1237 = vpack.c.bf16 %v865, %v848
        %v1238 = vpack.c.bf16 %v899, %v882
        %v1239 = vpack.c.bf16 %v933, %v916
        %v1240 = vpack.c.bf16 %v967, %v950
        %v1241 = vpack.c.bf16 %v1001, %v984
        %v1242 = vpack.c.bf16 %v1035, %v1018
        %v1243 = vpack.c.bf16 %v1069, %v1052
        %v1244 = vpack.c.bf16 %v1103, %v1086
        %v1245 = vpack.c.bf16 %v1137, %v1120
        %v1246 = vpack.c.bf16 %v1171, %v1154
        %v1247 = vpack.c.bf16 %v1205, %v1188
        %v1248 = vpack.c.bf16 %v1213, %v1213
        %v1249 = vcombine.high %v462, %v462
        %v1250 = vcombine.high %v503, %v503
        %v1251 = vcombine.high %v544, %v544
        %v1252 = vcombine.high %v585, %v585
        %v1253 = vcombine.high %v626, %v626
        %v1254 = vcombine.high %v667, %v667
        %v1255 = vcombine.high %v708, %v708
        %v1256 = vcombine.high %v749, %v749
        %v1257 = vcombine.high %v790, %v790
        %v1258 = vcombine.high %v831, %v831
        %vm1259 = vcmask 1040384
        %vm1260 = vcmask 1042434
        %vm1261 = vmor %vm1259, %vm1260
        %vm1262 = vcmask 1044484
        %vm1263 = vmor %vm1261, %vm1262
        %vm1264 = vcmask 1046534
        %vm1265 = vmor %vm1263, %vm1264
        %v1266 = vrot.slane %v429, 7
        %v1267 = vrot.slane %v1266, 2
        %v1268 = vrot.slane %v437, 7
        %v1269 = vsel %vm1265, %v1267, %v1268
        %v1270 = vrot.slane %v1268, 2
        %v1271 = vrot.slane %v436, 7
        %v1272 = vsel %vm1265, %v1270, %v1271
        %v1273 = vrot.slane %v1271, 2
        %v1274 = vrot.slane %v438, 7
        %v1275 = vsel %vm1265, %v1273, %v1274
        %v1276 = vrot.slane %v1274, 2
        %v1277 = vrot.slane %v446, 7
        %v1278 = vsel %vm1265, %v1276, %v1277
        %v1279 = vrot.slane %v1277, 2
        %v1280 = vrot.slane %v454, 7
        %v1281 = vsel %vm1265, %v1279, %v1280
        %v1282 = vrot.slane %v1280, 2
        %v1283 = vrot.slane %v453, 7
        %v1284 = vsel %vm1265, %v1282, %v1283
        %v1285 = vrot.slane %v1283, 2
        %v1286 = vrot.slane %v455, 7
        %v1287 = vsel %vm1265, %v1285, %v1286
        %v1288 = vrot.slane %v1286, 2
        %v1289 = vrot.slane %v462, 7
        %v1290 = vsel %vm1265, %v1288, %v1289
        %v1291 = vrot.slane %v1289, 2
        %v1292 = vrot.slane %v1249, 7
        %v1293 = vsel %vm1265, %v1291, %v1292
        %v1294 = vrot.slane %v470, 7
        %v1295 = vrot.slane %v1294, 2
        %v1296 = vrot.slane %v478, 7
        %v1297 = vsel %vm1265, %v1295, %v1296
        %v1298 = vrot.slane %v1296, 2
        %v1299 = vrot.slane %v477, 7
        %v1300 = vsel %vm1265, %v1298, %v1299
        %v1301 = vrot.slane %v1299, 2
        %v1302 = vrot.slane %v479, 7
        %v1303 = vsel %vm1265, %v1301, %v1302
        %v1304 = vrot.slane %v1302, 2
        %v1305 = vrot.slane %v487, 7
        %v1306 = vsel %vm1265, %v1304, %v1305
        %v1307 = vrot.slane %v1305, 2
        %v1308 = vrot.slane %v495, 7
        %v1309 = vsel %vm1265, %v1307, %v1308
        %v1310 = vrot.slane %v1308, 2
        %v1311 = vrot.slane %v494, 7
        %v1312 = vsel %vm1265, %v1310, %v1311
        %v1313 = vrot.slane %v1311, 2
        %v1314 = vrot.slane %v496, 7
        %v1315 = vsel %vm1265, %v1313, %v1314
        %v1316 = vrot.slane %v1314, 2
        %v1317 = vrot.slane %v503, 7
        %v1318 = vsel %vm1265, %v1316, %v1317
        %v1319 = vrot.slane %v1317, 2
        %v1320 = vrot.slane %v1250, 7
        %v1321 = vsel %vm1265, %v1319, %v1320
        %v1322 = vrot.slane %v511, 7
        %v1323 = vrot.slane %v1322, 2
        %v1324 = vrot.slane %v519, 7
        %v1325 = vsel %vm1265, %v1323, %v1324
        %v1326 = vrot.slane %v1324, 2
        %v1327 = vrot.slane %v518, 7
        %v1328 = vsel %vm1265, %v1326, %v1327
        %v1329 = vrot.slane %v1327, 2
        %v1330 = vrot.slane %v520, 7
        %v1331 = vsel %vm1265, %v1329, %v1330
        %v1332 = vrot.slane %v1330, 2
        %v1333 = vrot.slane %v528, 7
        %v1334 = vsel %vm1265, %v1332, %v1333
        %v1335 = vrot.slane %v1333, 2
        %v1336 = vrot.slane %v536, 7
        %v1337 = vsel %vm1265, %v1335, %v1336
        %v1338 = vrot.slane %v1336, 2
        %v1339 = vrot.slane %v535, 7
        %v1340 = vsel %vm1265, %v1338, %v1339
        %v1341 = vrot.slane %v1339, 2
        %v1342 = vrot.slane %v537, 7
        %v1343 = vsel %vm1265, %v1341, %v1342
        %v1344 = vrot.slane %v1342, 2
        %v1345 = vrot.slane %v544, 7
        %v1346 = vsel %vm1265, %v1344, %v1345
        %v1347 = vrot.slane %v1345, 2
        %v1348 = vrot.slane %v1251, 7
        %v1349 = vsel %vm1265, %v1347, %v1348
        %v1350 = vrot.slane %v552, 7
        %v1351 = vrot.slane %v1350, 2
        %v1352 = vrot.slane %v560, 7
        %v1353 = vsel %vm1265, %v1351, %v1352
        %v1354 = vrot.slane %v1352, 2
        %v1355 = vrot.slane %v559, 7
        %v1356 = vsel %vm1265, %v1354, %v1355
        %v1357 = vrot.slane %v1355, 2
        %v1358 = vrot.slane %v561, 7
        %v1359 = vsel %vm1265, %v1357, %v1358
        %v1360 = vrot.slane %v1358, 2
        %v1361 = vrot.slane %v569, 7
        %v1362 = vsel %vm1265, %v1360, %v1361
        %v1363 = vrot.slane %v1361, 2
        %v1364 = vrot.slane %v577, 7
        %v1365 = vsel %vm1265, %v1363, %v1364
        %v1366 = vrot.slane %v1364, 2
        %v1367 = vrot.slane %v576, 7
        %v1368 = vsel %vm1265, %v1366, %v1367
        %v1369 = vrot.slane %v1367, 2
        %v1370 = vrot.slane %v578, 7
        %v1371 = vsel %vm1265, %v1369, %v1370
        %v1372 = vrot.slane %v1370, 2
        %v1373 = vrot.slane %v585, 7
        %v1374 = vsel %vm1265, %v1372, %v1373
        %v1375 = vrot.slane %v1373, 2
        %v1376 = vrot.slane %v1252, 7
        %v1377 = vsel %vm1265, %v1375, %v1376
        %v1378 = vrot.slane %v593, 7
        %v1379 = vrot.slane %v1378, 2
        %v1380 = vrot.slane %v601, 7
        %v1381 = vsel %vm1265, %v1379, %v1380
        %v1382 = vrot.slane %v1380, 2
        %v1383 = vrot.slane %v600, 7
        %v1384 = vsel %vm1265, %v1382, %v1383
        %v1385 = vrot.slane %v1383, 2
        %v1386 = vrot.slane %v602, 7
        %v1387 = vsel %vm1265, %v1385, %v1386
        %v1388 = vrot.slane %v1386, 2
        %v1389 = vrot.slane %v610, 7
        %v1390 = vsel %vm1265, %v1388, %v1389
        %v1391 = vrot.slane %v1389, 2
        %v1392 = vrot.slane %v618, 7
        %v1393 = vsel %vm1265, %v1391, %v1392
        %v1394 = vrot.slane %v1392, 2
        %v1395 = vrot.slane %v617, 7
        %v1396 = vsel %vm1265, %v1394, %v1395
        %v1397 = vrot.slane %v1395, 2
        %v1398 = vrot.slane %v619, 7
        %v1399 = vsel %vm1265, %v1397, %v1398
        %v1400 = vrot.slane %v1398, 2
        %v1401 = vrot.slane %v626, 7
        %v1402 = vsel %vm1265, %v1400, %v1401
        %v1403 = vrot.slane %v1401, 2
        %v1404 = vrot.slane %v1253, 7
        %v1405 = vsel %vm1265, %v1403, %v1404
        %v1406 = vrot.slane %v634, 7
        %v1407 = vrot.slane %v1406, 2
        %v1408 = vrot.slane %v642, 7
        %v1409 = vsel %vm1265, %v1407, %v1408
        %v1410 = vrot.slane %v1408, 2
        %v1411 = vrot.slane %v641, 7
        %v1412 = vsel %vm1265, %v1410, %v1411
        %v1413 = vrot.slane %v1411, 2
        %v1414 = vrot.slane %v643, 7
        %v1415 = vsel %vm1265, %v1413, %v1414
        %v1416 = vrot.slane %v1414, 2
        %v1417 = vrot.slane %v651, 7
        %v1418 = vsel %vm1265, %v1416, %v1417
        %v1419 = vrot.slane %v1417, 2
        %v1420 = vrot.slane %v659, 7
        %v1421 = vsel %vm1265, %v1419, %v1420
        %v1422 = vrot.slane %v1420, 2
        %v1423 = vrot.slane %v658, 7
        %v1424 = vsel %vm1265, %v1422, %v1423
        %v1425 = vrot.slane %v1423, 2
        %v1426 = vrot.slane %v660, 7
        %v1427 = vsel %vm1265, %v1425, %v1426
        %v1428 = vrot.slane %v1426, 2
        %v1429 = vrot.slane %v667, 7
        %v1430 = vsel %vm1265, %v1428, %v1429
        %v1431 = vrot.slane %v1429, 2
        %v1432 = vrot.slane %v1254, 7
        %v1433 = vsel %vm1265, %v1431, %v1432
        %v1434 = vrot.slane %v675, 7
        %v1435 = vrot.slane %v1434, 2
        %v1436 = vrot.slane %v683, 7
        %v1437 = vsel %vm1265, %v1435, %v1436
        %v1438 = vrot.slane %v1436, 2
        %v1439 = vrot.slane %v682, 7
        %v1440 = vsel %vm1265, %v1438, %v1439
        %v1441 = vrot.slane %v1439, 2
        %v1442 = vrot.slane %v684, 7
        %v1443 = vsel %vm1265, %v1441, %v1442
        %v1444 = vrot.slane %v1442, 2
        %v1445 = vrot.slane %v692, 7
        %v1446 = vsel %vm1265, %v1444, %v1445
        %v1447 = vrot.slane %v1445, 2
        %v1448 = vrot.slane %v700, 7
        %v1449 = vsel %vm1265, %v1447, %v1448
        %v1450 = vrot.slane %v1448, 2
        %v1451 = vrot.slane %v699, 7
        %v1452 = vsel %vm1265, %v1450, %v1451
        %v1453 = vrot.slane %v1451, 2
        %v1454 = vrot.slane %v701, 7
        %v1455 = vsel %vm1265, %v1453, %v1454
        %v1456 = vrot.slane %v1454, 2
        %v1457 = vrot.slane %v708, 7
        %v1458 = vsel %vm1265, %v1456, %v1457
        %v1459 = vrot.slane %v1457, 2
        %v1460 = vrot.slane %v1255, 7
        %v1461 = vsel %vm1265, %v1459, %v1460
        %v1462 = vrot.slane %v716, 7
        %v1463 = vrot.slane %v1462, 2
        %v1464 = vrot.slane %v724, 7
        %v1465 = vsel %vm1265, %v1463, %v1464
        %v1466 = vrot.slane %v1464, 2
        %v1467 = vrot.slane %v723, 7
        %v1468 = vsel %vm1265, %v1466, %v1467
        %v1469 = vrot.slane %v1467, 2
        %v1470 = vrot.slane %v725, 7
        %v1471 = vsel %vm1265, %v1469, %v1470
        %v1472 = vrot.slane %v1470, 2
        %v1473 = vrot.slane %v733, 7
        %v1474 = vsel %vm1265, %v1472, %v1473
        %v1475 = vrot.slane %v1473, 2
        %v1476 = vrot.slane %v741, 7
        %v1477 = vsel %vm1265, %v1475, %v1476
        %v1478 = vrot.slane %v1476, 2
        %v1479 = vrot.slane %v740, 7
        %v1480 = vsel %vm1265, %v1478, %v1479
        %v1481 = vrot.slane %v1479, 2
        %v1482 = vrot.slane %v742, 7
        %v1483 = vsel %vm1265, %v1481, %v1482
        %v1484 = vrot.slane %v1482, 2
        %v1485 = vrot.slane %v749, 7
        %v1486 = vsel %vm1265, %v1484, %v1485
        %v1487 = vrot.slane %v1485, 2
        %v1488 = vrot.slane %v1256, 7
        %v1489 = vsel %vm1265, %v1487, %v1488
        %v1490 = vrot.slane %v757, 7
        %v1491 = vrot.slane %v1490, 2
        %v1492 = vrot.slane %v765, 7
        %v1493 = vsel %vm1265, %v1491, %v1492
        %v1494 = vrot.slane %v1492, 2
        %v1495 = vrot.slane %v764, 7
        %v1496 = vsel %vm1265, %v1494, %v1495
        %v1497 = vrot.slane %v1495, 2
        %v1498 = vrot.slane %v766, 7
        %v1499 = vsel %vm1265, %v1497, %v1498
        %v1500 = vrot.slane %v1498, 2
        %v1501 = vrot.slane %v774, 7
        %v1502 = vsel %vm1265, %v1500, %v1501
        %v1503 = vrot.slane %v1501, 2
        %v1504 = vrot.slane %v782, 7
        %v1505 = vsel %vm1265, %v1503, %v1504
        %v1506 = vrot.slane %v1504, 2
        %v1507 = vrot.slane %v781, 7
        %v1508 = vsel %vm1265, %v1506, %v1507
        %v1509 = vrot.slane %v1507, 2
        %v1510 = vrot.slane %v783, 7
        %v1511 = vsel %vm1265, %v1509, %v1510
        %v1512 = vrot.slane %v1510, 2
        %v1513 = vrot.slane %v790, 7
        %v1514 = vsel %vm1265, %v1512, %v1513
        %v1515 = vrot.slane %v1513, 2
        %v1516 = vrot.slane %v1257, 7
        %v1517 = vsel %vm1265, %v1515, %v1516
        %v1518 = vrot.slane %v798, 7
        %v1519 = vrot.slane %v1518, 2
        %v1520 = vrot.slane %v806, 7
        %v1521 = vsel %vm1265, %v1519, %v1520
        %v1522 = vrot.slane %v1520, 2
        %v1523 = vrot.slane %v805, 7
        %v1524 = vsel %vm1265, %v1522, %v1523
        %v1525 = vrot.slane %v1523, 2
        %v1526 = vrot.slane %v807, 7
        %v1527 = vsel %vm1265, %v1525, %v1526
        %v1528 = vrot.slane %v1526, 2
        %v1529 = vrot.slane %v815, 7
        %v1530 = vsel %vm1265, %v1528, %v1529
        %v1531 = vrot.slane %v1529, 2
        %v1532 = vrot.slane %v823, 7
        %v1533 = vsel %vm1265, %v1531, %v1532
        %v1534 = vrot.slane %v1532, 2
        %v1535 = vrot.slane %v822, 7
        %v1536 = vsel %vm1265, %v1534, %v1535
        %v1537 = vrot.slane %v1535, 2
        %v1538 = vrot.slane %v824, 7
        %v1539 = vsel %vm1265, %v1537, %v1538
        %v1540 = vrot.slane %v1538, 2
        %v1541 = vrot.slane %v831, 7
        %v1542 = vsel %vm1265, %v1540, %v1541
        %v1543 = vrot.slane %v1541, 2
        %v1544 = vrot.slane %v1258, 7
        %v1545 = vsel %vm1265, %v1543, %v1544
        %v1546 = vcombine.low %v1269, %v1272
        %v1547 = vcombine.low %v1275, %v1278
        %v1549 = vunpack.c.l.s4 1983009808
        %v1550 = vunpack.c.0.s8 %v1549
        %v1551 = vlaneseq
        %v1552 = vshrl.u32 %v1551, 7
        %v1553 = vsub.s32 %v1550, %v1552
        %v1554 = vrot.slane %v1546, %v1553
        %v1556 = vunpack.c.l.s4 1983009808
        %v1557 = vunpack.c.0.s8 %v1556
        %v1558 = vlaneseq
        %v1559 = vshrl.u32 %v1558, 7
        %v1560 = vsub.s32 %v1557, %v1559
        %v1561 = vrot.slane %v1547, %v1560
        %v1562 = vcombine.low %v1554, %v1561
        %v1563 = vcombine.low %v1281, %v1284
        %v1564 = vcombine.low %v1287, %v1290
        %v1566 = vunpack.c.l.s4 1983009808
        %v1567 = vunpack.c.0.s8 %v1566
        %v1568 = vlaneseq
        %v1569 = vshrl.u32 %v1568, 7
        %v1570 = vsub.s32 %v1567, %v1569
        %v1571 = vrot.slane %v1563, %v1570
        %v1573 = vunpack.c.l.s4 1983009808
        %v1574 = vunpack.c.0.s8 %v1573
        %v1575 = vlaneseq
        %v1576 = vshrl.u32 %v1575, 7
        %v1577 = vsub.s32 %v1574, %v1576
        %v1578 = vrot.slane %v1564, %v1577
        %v1579 = vcombine.low %v1571, %v1578
        %v1580 = vcombine.low %v1293, %v1297
        %v1581 = vcombine.low %v1300, %v1303
        %v1583 = vunpack.c.l.s4 1983009808
        %v1584 = vunpack.c.0.s8 %v1583
        %v1585 = vlaneseq
        %v1586 = vshrl.u32 %v1585, 7
        %v1587 = vsub.s32 %v1584, %v1586
        %v1588 = vrot.slane %v1580, %v1587
        %v1590 = vunpack.c.l.s4 1983009808
        %v1591 = vunpack.c.0.s8 %v1590
        %v1592 = vlaneseq
        %v1593 = vshrl.u32 %v1592, 7
        %v1594 = vsub.s32 %v1591, %v1593
        %v1595 = vrot.slane %v1581, %v1594
        %v1596 = vcombine.low %v1588, %v1595
        %v1597 = vcombine.low %v1306, %v1309
        %v1598 = vcombine.low %v1312, %v1315
        %v1600 = vunpack.c.l.s4 1983009808
        %v1601 = vunpack.c.0.s8 %v1600
        %v1602 = vlaneseq
        %v1603 = vshrl.u32 %v1602, 7
        %v1604 = vsub.s32 %v1601, %v1603
        %v1605 = vrot.slane %v1597, %v1604
        %v1607 = vunpack.c.l.s4 1983009808
        %v1608 = vunpack.c.0.s8 %v1607
        %v1609 = vlaneseq
        %v1610 = vshrl.u32 %v1609, 7
        %v1611 = vsub.s32 %v1608, %v1610
        %v1612 = vrot.slane %v1598, %v1611
        %v1613 = vcombine.low %v1605, %v1612
        %v1614 = vcombine.low %v1318, %v1321
        %v1615 = vcombine.low %v1325, %v1328
        %v1617 = vunpack.c.l.s4 1983009808
        %v1618 = vunpack.c.0.s8 %v1617
        %v1619 = vlaneseq
        %v1620 = vshrl.u32 %v1619, 7
        %v1621 = vsub.s32 %v1618, %v1620
        %v1622 = vrot.slane %v1614, %v1621
        %v1624 = vunpack.c.l.s4 1983009808
        %v1625 = vunpack.c.0.s8 %v1624
        %v1626 = vlaneseq
        %v1627 = vshrl.u32 %v1626, 7
        %v1628 = vsub.s32 %v1625, %v1627
        %v1629 = vrot.slane %v1615, %v1628
        %v1630 = vcombine.low %v1622, %v1629
        %v1631 = vcombine.low %v1331, %v1334
        %v1632 = vcombine.low %v1337, %v1340
        %v1634 = vunpack.c.l.s4 1983009808
        %v1635 = vunpack.c.0.s8 %v1634
        %v1636 = vlaneseq
        %v1637 = vshrl.u32 %v1636, 7
        %v1638 = vsub.s32 %v1635, %v1637
        %v1639 = vrot.slane %v1631, %v1638
        %v1641 = vunpack.c.l.s4 1983009808
        %v1642 = vunpack.c.0.s8 %v1641
        %v1643 = vlaneseq
        %v1644 = vshrl.u32 %v1643, 7
        %v1645 = vsub.s32 %v1642, %v1644
        %v1646 = vrot.slane %v1632, %v1645
        %v1647 = vcombine.low %v1639, %v1646
        %v1648 = vcombine.low %v1343, %v1346
        %v1649 = vcombine.low %v1349, %v1353
        %v1651 = vunpack.c.l.s4 1983009808
        %v1652 = vunpack.c.0.s8 %v1651
        %v1653 = vlaneseq
        %v1654 = vshrl.u32 %v1653, 7
        %v1655 = vsub.s32 %v1652, %v1654
        %v1656 = vrot.slane %v1648, %v1655
        %v1658 = vunpack.c.l.s4 1983009808
        %v1659 = vunpack.c.0.s8 %v1658
        %v1660 = vlaneseq
        %v1661 = vshrl.u32 %v1660, 7
        %v1662 = vsub.s32 %v1659, %v1661
        %v1663 = vrot.slane %v1649, %v1662
        %v1664 = vcombine.low %v1656, %v1663
        %v1665 = vcombine.low %v1356, %v1359
        %v1666 = vcombine.low %v1362, %v1365
        %v1668 = vunpack.c.l.s4 1983009808
        %v1669 = vunpack.c.0.s8 %v1668
        %v1670 = vlaneseq
        %v1671 = vshrl.u32 %v1670, 7
        %v1672 = vsub.s32 %v1669, %v1671
        %v1673 = vrot.slane %v1665, %v1672
        %v1675 = vunpack.c.l.s4 1983009808
        %v1676 = vunpack.c.0.s8 %v1675
        %v1677 = vlaneseq
        %v1678 = vshrl.u32 %v1677, 7
        %v1679 = vsub.s32 %v1676, %v1678
        %v1680 = vrot.slane %v1666, %v1679
        %v1681 = vcombine.low %v1673, %v1680
        %v1682 = vcombine.low %v1368, %v1371
        %v1683 = vcombine.low %v1374, %v1377
        %v1685 = vunpack.c.l.s4 1983009808
        %v1686 = vunpack.c.0.s8 %v1685
        %v1687 = vlaneseq
        %v1688 = vshrl.u32 %v1687, 7
        %v1689 = vsub.s32 %v1686, %v1688
        %v1690 = vrot.slane %v1682, %v1689
        %v1692 = vunpack.c.l.s4 1983009808
        %v1693 = vunpack.c.0.s8 %v1692
        %v1694 = vlaneseq
        %v1695 = vshrl.u32 %v1694, 7
        %v1696 = vsub.s32 %v1693, %v1695
        %v1697 = vrot.slane %v1683, %v1696
        %v1698 = vcombine.low %v1690, %v1697
        %v1699 = vcombine.low %v1381, %v1384
        %v1700 = vcombine.low %v1387, %v1390
        %v1702 = vunpack.c.l.s4 1983009808
        %v1703 = vunpack.c.0.s8 %v1702
        %v1704 = vlaneseq
        %v1705 = vshrl.u32 %v1704, 7
        %v1706 = vsub.s32 %v1703, %v1705
        %v1707 = vrot.slane %v1699, %v1706
        %v1709 = vunpack.c.l.s4 1983009808
        %v1710 = vunpack.c.0.s8 %v1709
        %v1711 = vlaneseq
        %v1712 = vshrl.u32 %v1711, 7
        %v1713 = vsub.s32 %v1710, %v1712
        %v1714 = vrot.slane %v1700, %v1713
        %v1715 = vcombine.low %v1707, %v1714
        %v1716 = vcombine.low %v1393, %v1396
        %v1717 = vcombine.low %v1399, %v1402
        %v1719 = vunpack.c.l.s4 1983009808
        %v1720 = vunpack.c.0.s8 %v1719
        %v1721 = vlaneseq
        %v1722 = vshrl.u32 %v1721, 7
        %v1723 = vsub.s32 %v1720, %v1722
        %v1724 = vrot.slane %v1716, %v1723
        %v1726 = vunpack.c.l.s4 1983009808
        %v1727 = vunpack.c.0.s8 %v1726
        %v1728 = vlaneseq
        %v1729 = vshrl.u32 %v1728, 7
        %v1730 = vsub.s32 %v1727, %v1729
        %v1731 = vrot.slane %v1717, %v1730
        %v1732 = vcombine.low %v1724, %v1731
        %v1733 = vcombine.low %v1405, %v1409
        %v1734 = vcombine.low %v1412, %v1415
        %v1736 = vunpack.c.l.s4 1983009808
        %v1737 = vunpack.c.0.s8 %v1736
        %v1738 = vlaneseq
        %v1739 = vshrl.u32 %v1738, 7
        %v1740 = vsub.s32 %v1737, %v1739
        %v1741 = vrot.slane %v1733, %v1740
        %v1743 = vunpack.c.l.s4 1983009808
        %v1744 = vunpack.c.0.s8 %v1743
        %v1745 = vlaneseq
        %v1746 = vshrl.u32 %v1745, 7
        %v1747 = vsub.s32 %v1744, %v1746
        %v1748 = vrot.slane %v1734, %v1747
        %v1749 = vcombine.low %v1741, %v1748
        %v1750 = vcombine.low %v1418, %v1421
        %v1751 = vcombine.low %v1424, %v1427
        %v1753 = vunpack.c.l.s4 1983009808
        %v1754 = vunpack.c.0.s8 %v1753
        %v1755 = vlaneseq
        %v1756 = vshrl.u32 %v1755, 7
        %v1757 = vsub.s32 %v1754, %v1756
        %v1758 = vrot.slane %v1750, %v1757
        %v1760 = vunpack.c.l.s4 1983009808
        %v1761 = vunpack.c.0.s8 %v1760
        %v1762 = vlaneseq
        %v1763 = vshrl.u32 %v1762, 7
        %v1764 = vsub.s32 %v1761, %v1763
        %v1765 = vrot.slane %v1751, %v1764
        %v1766 = vcombine.low %v1758, %v1765
        %v1767 = vcombine.low %v1430, %v1433
        %v1768 = vcombine.low %v1437, %v1440
        %v1770 = vunpack.c.l.s4 1983009808
        %v1771 = vunpack.c.0.s8 %v1770
        %v1772 = vlaneseq
        %v1773 = vshrl.u32 %v1772, 7
        %v1774 = vsub.s32 %v1771, %v1773
        %v1775 = vrot.slane %v1767, %v1774
        %v1777 = vunpack.c.l.s4 1983009808
        %v1778 = vunpack.c.0.s8 %v1777
        %v1779 = vlaneseq
        %v1780 = vshrl.u32 %v1779, 7
        %v1781 = vsub.s32 %v1778, %v1780
        %v1782 = vrot.slane %v1768, %v1781
        %v1783 = vcombine.low %v1775, %v1782
        %v1784 = vcombine.low %v1443, %v1446
        %v1785 = vcombine.low %v1449, %v1452
        %v1787 = vunpack.c.l.s4 1983009808
        %v1788 = vunpack.c.0.s8 %v1787
        %v1789 = vlaneseq
        %v1790 = vshrl.u32 %v1789, 7
        %v1791 = vsub.s32 %v1788, %v1790
        %v1792 = vrot.slane %v1784, %v1791
        %v1794 = vunpack.c.l.s4 1983009808
        %v1795 = vunpack.c.0.s8 %v1794
        %v1796 = vlaneseq
        %v1797 = vshrl.u32 %v1796, 7
        %v1798 = vsub.s32 %v1795, %v1797
        %v1799 = vrot.slane %v1785, %v1798
        %v1800 = vcombine.low %v1792, %v1799
        %v1801 = vcombine.low %v1455, %v1458
        %v1802 = vcombine.low %v1461, %v1465
        %v1804 = vunpack.c.l.s4 1983009808
        %v1805 = vunpack.c.0.s8 %v1804
        %v1806 = vlaneseq
        %v1807 = vshrl.u32 %v1806, 7
        %v1808 = vsub.s32 %v1805, %v1807
        %v1809 = vrot.slane %v1801, %v1808
        %v1811 = vunpack.c.l.s4 1983009808
        %v1812 = vunpack.c.0.s8 %v1811
        %v1813 = vlaneseq
        %v1814 = vshrl.u32 %v1813, 7
        %v1815 = vsub.s32 %v1812, %v1814
        %v1816 = vrot.slane %v1802, %v1815
        %v1817 = vcombine.low %v1809, %v1816
        %v1818 = vcombine.low %v1468, %v1471
        %v1819 = vcombine.low %v1474, %v1477
        %v1821 = vunpack.c.l.s4 1983009808
        %v1822 = vunpack.c.0.s8 %v1821
        %v1823 = vlaneseq
        %v1824 = vshrl.u32 %v1823, 7
        %v1825 = vsub.s32 %v1822, %v1824
        %v1826 = vrot.slane %v1818, %v1825
        %v1828 = vunpack.c.l.s4 1983009808
        %v1829 = vunpack.c.0.s8 %v1828
        %v1830 = vlaneseq
        %v1831 = vshrl.u32 %v1830, 7
        %v1832 = vsub.s32 %v1829, %v1831
        %v1833 = vrot.slane %v1819, %v1832
        %v1834 = vcombine.low %v1826, %v1833
        %v1835 = vcombine.low %v1480, %v1483
        %v1836 = vcombine.low %v1486, %v1489
        %v1838 = vunpack.c.l.s4 1983009808
        %v1839 = vunpack.c.0.s8 %v1838
        %v1840 = vlaneseq
        %v1841 = vshrl.u32 %v1840, 7
        %v1842 = vsub.s32 %v1839, %v1841
        %v1843 = vrot.slane %v1835, %v1842
        %v1845 = vunpack.c.l.s4 1983009808
        %v1846 = vunpack.c.0.s8 %v1845
        %v1847 = vlaneseq
        %v1848 = vshrl.u32 %v1847, 7
        %v1849 = vsub.s32 %v1846, %v1848
        %v1850 = vrot.slane %v1836, %v1849
        %v1851 = vcombine.low %v1843, %v1850
        %v1852 = vcombine.low %v1493, %v1496
        %v1853 = vcombine.low %v1499, %v1502
        %v1855 = vunpack.c.l.s4 1983009808
        %v1856 = vunpack.c.0.s8 %v1855
        %v1857 = vlaneseq
        %v1858 = vshrl.u32 %v1857, 7
        %v1859 = vsub.s32 %v1856, %v1858
        %v1860 = vrot.slane %v1852, %v1859
        %v1862 = vunpack.c.l.s4 1983009808
        %v1863 = vunpack.c.0.s8 %v1862
        %v1864 = vlaneseq
        %v1865 = vshrl.u32 %v1864, 7
        %v1866 = vsub.s32 %v1863, %v1865
        %v1867 = vrot.slane %v1853, %v1866
        %v1868 = vcombine.low %v1860, %v1867
        %v1869 = vcombine.low %v1505, %v1508
        %v1870 = vcombine.low %v1511, %v1514
        %v1872 = vunpack.c.l.s4 1983009808
        %v1873 = vunpack.c.0.s8 %v1872
        %v1874 = vlaneseq
        %v1875 = vshrl.u32 %v1874, 7
        %v1876 = vsub.s32 %v1873, %v1875
        %v1877 = vrot.slane %v1869, %v1876
        %v1879 = vunpack.c.l.s4 1983009808
        %v1880 = vunpack.c.0.s8 %v1879
        %v1881 = vlaneseq
        %v1882 = vshrl.u32 %v1881, 7
        %v1883 = vsub.s32 %v1880, %v1882
        %v1884 = vrot.slane %v1870, %v1883
        %v1885 = vcombine.low %v1877, %v1884
        %v1886 = vcombine.low %v1517, %v1521
        %v1887 = vcombine.low %v1524, %v1527
        %v1889 = vunpack.c.l.s4 1983009808
        %v1890 = vunpack.c.0.s8 %v1889
        %v1891 = vlaneseq
        %v1892 = vshrl.u32 %v1891, 7
        %v1893 = vsub.s32 %v1890, %v1892
        %v1894 = vrot.slane %v1886, %v1893
        %v1896 = vunpack.c.l.s4 1983009808
        %v1897 = vunpack.c.0.s8 %v1896
        %v1898 = vlaneseq
        %v1899 = vshrl.u32 %v1898, 7
        %v1900 = vsub.s32 %v1897, %v1899
        %v1901 = vrot.slane %v1887, %v1900
        %v1902 = vcombine.low %v1894, %v1901
        %v1903 = vcombine.low %v1530, %v1533
        %v1904 = vcombine.low %v1536, %v1539
        %v1906 = vunpack.c.l.s4 1983009808
        %v1907 = vunpack.c.0.s8 %v1906
        %v1908 = vlaneseq
        %v1909 = vshrl.u32 %v1908, 7
        %v1910 = vsub.s32 %v1907, %v1909
        %v1911 = vrot.slane %v1903, %v1910
        %v1913 = vunpack.c.l.s4 1983009808
        %v1914 = vunpack.c.0.s8 %v1913
        %v1915 = vlaneseq
        %v1916 = vshrl.u32 %v1915, 7
        %v1917 = vsub.s32 %v1914, %v1916
        %v1918 = vrot.slane %v1904, %v1917
        %v1919 = vcombine.low %v1911, %v1918
        %v1920 = vcombine.low %v1542, %v1545
        %v1922 = vunpack.c.l.s4 1983009808
        %v1923 = vunpack.c.0.s8 %v1922
        %v1924 = vlaneseq
        %v1925 = vshrl.u32 %v1924, 7
        %v1926 = vsub.s32 %v1923, %v1925
        %v1927 = vrot.slane %v1920, %v1926
        %v1951 = vpack.c.bf16 %v1579, %v1562
        %v1952 = vpack.c.bf16 %v1613, %v1596
        %v1953 = vpack.c.bf16 %v1647, %v1630
        %v1954 = vpack.c.bf16 %v1681, %v1664
        %v1955 = vpack.c.bf16 %v1715, %v1698
        %v1956 = vpack.c.bf16 %v1749, %v1732
        %v1957 = vpack.c.bf16 %v1783, %v1766
        %v1958 = vpack.c.bf16 %v1817, %v1800
        %v1959 = vpack.c.bf16 %v1851, %v1834
        %v1960 = vpack.c.bf16 %v1885, %v1868
        %v1961 = vpack.c.bf16 %v1919, %v1902
        %v1962 = vpack.c.bf16 %v1927, %v1927
        %v1963 = vcombine.low %v437, %v436
        %v1964 = vcombine.low %v438, %v446
        %v1966 = vunpack.c.l.s4 1983009808
        %v1967 = vunpack.c.0.s8 %v1966
        %v1968 = vlaneseq
        %v1969 = vshrl.u32 %v1968, 7
        %v1970 = vsub.s32 %v1967, %v1969
        %v1971 = vrot.slane %v1963, %v1970
        %v1973 = vunpack.c.l.s4 1983009808
        %v1974 = vunpack.c.0.s8 %v1973
        %v1975 = vlaneseq
        %v1976 = vshrl.u32 %v1975, 7
        %v1977 = vsub.s32 %v1974, %v1976
        %v1978 = vrot.slane %v1964, %v1977
        %v1979 = vcombine.low %v1971, %v1978
        %v1980 = vcombine.low %v454, %v453
        %v1981 = vcombine.low %v455, %v462
        %v1983 = vunpack.c.l.s4 1983009808
        %v1984 = vunpack.c.0.s8 %v1983
        %v1985 = vlaneseq
        %v1986 = vshrl.u32 %v1985, 7
        %v1987 = vsub.s32 %v1984, %v1986
        %v1988 = vrot.slane %v1980, %v1987
        %v1990 = vunpack.c.l.s4 1983009808
        %v1991 = vunpack.c.0.s8 %v1990
        %v1992 = vlaneseq
        %v1993 = vshrl.u32 %v1992, 7
        %v1994 = vsub.s32 %v1991, %v1993
        %v1995 = vrot.slane %v1981, %v1994
        %v1996 = vcombine.low %v1988, %v1995
        %v1997 = vcombine.low %v1249, %v478
        %v1998 = vcombine.low %v477, %v479
        %v2000 = vunpack.c.l.s4 1983009808
        %v2001 = vunpack.c.0.s8 %v2000
        %v2002 = vlaneseq
        %v2003 = vshrl.u32 %v2002, 7
        %v2004 = vsub.s32 %v2001, %v2003
        %v2005 = vrot.slane %v1997, %v2004
        %v2007 = vunpack.c.l.s4 1983009808
        %v2008 = vunpack.c.0.s8 %v2007
        %v2009 = vlaneseq
        %v2010 = vshrl.u32 %v2009, 7
        %v2011 = vsub.s32 %v2008, %v2010
        %v2012 = vrot.slane %v1998, %v2011
        %v2013 = vcombine.low %v2005, %v2012
        %v2014 = vcombine.low %v487, %v495
        %v2015 = vcombine.low %v494, %v496
        %v2017 = vunpack.c.l.s4 1983009808
        %v2018 = vunpack.c.0.s8 %v2017
        %v2019 = vlaneseq
        %v2020 = vshrl.u32 %v2019, 7
        %v2021 = vsub.s32 %v2018, %v2020
        %v2022 = vrot.slane %v2014, %v2021
        %v2024 = vunpack.c.l.s4 1983009808
        %v2025 = vunpack.c.0.s8 %v2024
        %v2026 = vlaneseq
        %v2027 = vshrl.u32 %v2026, 7
        %v2028 = vsub.s32 %v2025, %v2027
        %v2029 = vrot.slane %v2015, %v2028
        %v2030 = vcombine.low %v2022, %v2029
        %v2031 = vcombine.low %v503, %v1250
        %v2032 = vcombine.low %v519, %v518
        %v2034 = vunpack.c.l.s4 1983009808
        %v2035 = vunpack.c.0.s8 %v2034
        %v2036 = vlaneseq
        %v2037 = vshrl.u32 %v2036, 7
        %v2038 = vsub.s32 %v2035, %v2037
        %v2039 = vrot.slane %v2031, %v2038
        %v2041 = vunpack.c.l.s4 1983009808
        %v2042 = vunpack.c.0.s8 %v2041
        %v2043 = vlaneseq
        %v2044 = vshrl.u32 %v2043, 7
        %v2045 = vsub.s32 %v2042, %v2044
        %v2046 = vrot.slane %v2032, %v2045
        %v2047 = vcombine.low %v2039, %v2046
        %v2048 = vcombine.low %v520, %v528
        %v2049 = vcombine.low %v536, %v535
        %v2051 = vunpack.c.l.s4 1983009808
        %v2052 = vunpack.c.0.s8 %v2051
        %v2053 = vlaneseq
        %v2054 = vshrl.u32 %v2053, 7
        %v2055 = vsub.s32 %v2052, %v2054
        %v2056 = vrot.slane %v2048, %v2055
        %v2058 = vunpack.c.l.s4 1983009808
        %v2059 = vunpack.c.0.s8 %v2058
        %v2060 = vlaneseq
        %v2061 = vshrl.u32 %v2060, 7
        %v2062 = vsub.s32 %v2059, %v2061
        %v2063 = vrot.slane %v2049, %v2062
        %v2064 = vcombine.low %v2056, %v2063
        %v2065 = vcombine.low %v537, %v544
        %v2066 = vcombine.low %v1251, %v560
        %v2068 = vunpack.c.l.s4 1983009808
        %v2069 = vunpack.c.0.s8 %v2068
        %v2070 = vlaneseq
        %v2071 = vshrl.u32 %v2070, 7
        %v2072 = vsub.s32 %v2069, %v2071
        %v2073 = vrot.slane %v2065, %v2072
        %v2075 = vunpack.c.l.s4 1983009808
        %v2076 = vunpack.c.0.s8 %v2075
        %v2077 = vlaneseq
        %v2078 = vshrl.u32 %v2077, 7
        %v2079 = vsub.s32 %v2076, %v2078
        %v2080 = vrot.slane %v2066, %v2079
        %v2081 = vcombine.low %v2073, %v2080
        %v2082 = vcombine.low %v559, %v561
        %v2083 = vcombine.low %v569, %v577
        %v2085 = vunpack.c.l.s4 1983009808
        %v2086 = vunpack.c.0.s8 %v2085
        %v2087 = vlaneseq
        %v2088 = vshrl.u32 %v2087, 7
        %v2089 = vsub.s32 %v2086, %v2088
        %v2090 = vrot.slane %v2082, %v2089
        %v2092 = vunpack.c.l.s4 1983009808
        %v2093 = vunpack.c.0.s8 %v2092
        %v2094 = vlaneseq
        %v2095 = vshrl.u32 %v2094, 7
        %v2096 = vsub.s32 %v2093, %v2095
        %v2097 = vrot.slane %v2083, %v2096
        %v2098 = vcombine.low %v2090, %v2097
        %v2099 = vcombine.low %v576, %v578
        %v2100 = vcombine.low %v585, %v1252
        %v2102 = vunpack.c.l.s4 1983009808
        %v2103 = vunpack.c.0.s8 %v2102
        %v2104 = vlaneseq
        %v2105 = vshrl.u32 %v2104, 7
        %v2106 = vsub.s32 %v2103, %v2105
        %v2107 = vrot.slane %v2099, %v2106
        %v2109 = vunpack.c.l.s4 1983009808
        %v2110 = vunpack.c.0.s8 %v2109
        %v2111 = vlaneseq
        %v2112 = vshrl.u32 %v2111, 7
        %v2113 = vsub.s32 %v2110, %v2112
        %v2114 = vrot.slane %v2100, %v2113
        %v2115 = vcombine.low %v2107, %v2114
        %v2116 = vcombine.low %v601, %v600
        %v2117 = vcombine.low %v602, %v610
        %v2119 = vunpack.c.l.s4 1983009808
        %v2120 = vunpack.c.0.s8 %v2119
        %v2121 = vlaneseq
        %v2122 = vshrl.u32 %v2121, 7
        %v2123 = vsub.s32 %v2120, %v2122
        %v2124 = vrot.slane %v2116, %v2123
        %v2126 = vunpack.c.l.s4 1983009808
        %v2127 = vunpack.c.0.s8 %v2126
        %v2128 = vlaneseq
        %v2129 = vshrl.u32 %v2128, 7
        %v2130 = vsub.s32 %v2127, %v2129
        %v2131 = vrot.slane %v2117, %v2130
        %v2132 = vcombine.low %v2124, %v2131
        %v2133 = vcombine.low %v618, %v617
        %v2134 = vcombine.low %v619, %v626
        %v2136 = vunpack.c.l.s4 1983009808
        %v2137 = vunpack.c.0.s8 %v2136
        %v2138 = vlaneseq
        %v2139 = vshrl.u32 %v2138, 7
        %v2140 = vsub.s32 %v2137, %v2139
        %v2141 = vrot.slane %v2133, %v2140
        %v2143 = vunpack.c.l.s4 1983009808
        %v2144 = vunpack.c.0.s8 %v2143
        %v2145 = vlaneseq
        %v2146 = vshrl.u32 %v2145, 7
        %v2147 = vsub.s32 %v2144, %v2146
        %v2148 = vrot.slane %v2134, %v2147
        %v2149 = vcombine.low %v2141, %v2148
        %v2150 = vcombine.low %v1253, %v642
        %v2151 = vcombine.low %v641, %v643
        %v2153 = vunpack.c.l.s4 1983009808
        %v2154 = vunpack.c.0.s8 %v2153
        %v2155 = vlaneseq
        %v2156 = vshrl.u32 %v2155, 7
        %v2157 = vsub.s32 %v2154, %v2156
        %v2158 = vrot.slane %v2150, %v2157
        %v2160 = vunpack.c.l.s4 1983009808
        %v2161 = vunpack.c.0.s8 %v2160
        %v2162 = vlaneseq
        %v2163 = vshrl.u32 %v2162, 7
        %v2164 = vsub.s32 %v2161, %v2163
        %v2165 = vrot.slane %v2151, %v2164
        %v2166 = vcombine.low %v2158, %v2165
        %v2167 = vcombine.low %v651, %v659
        %v2168 = vcombine.low %v658, %v660
        %v2170 = vunpack.c.l.s4 1983009808
        %v2171 = vunpack.c.0.s8 %v2170
        %v2172 = vlaneseq
        %v2173 = vshrl.u32 %v2172, 7
        %v2174 = vsub.s32 %v2171, %v2173
        %v2175 = vrot.slane %v2167, %v2174
        %v2177 = vunpack.c.l.s4 1983009808
        %v2178 = vunpack.c.0.s8 %v2177
        %v2179 = vlaneseq
        %v2180 = vshrl.u32 %v2179, 7
        %v2181 = vsub.s32 %v2178, %v2180
        %v2182 = vrot.slane %v2168, %v2181
        %v2183 = vcombine.low %v2175, %v2182
        %v2184 = vcombine.low %v667, %v1254
        %v2185 = vcombine.low %v683, %v682
        %v2187 = vunpack.c.l.s4 1983009808
        %v2188 = vunpack.c.0.s8 %v2187
        %v2189 = vlaneseq
        %v2190 = vshrl.u32 %v2189, 7
        %v2191 = vsub.s32 %v2188, %v2190
        %v2192 = vrot.slane %v2184, %v2191
        %v2194 = vunpack.c.l.s4 1983009808
        %v2195 = vunpack.c.0.s8 %v2194
        %v2196 = vlaneseq
        %v2197 = vshrl.u32 %v2196, 7
        %v2198 = vsub.s32 %v2195, %v2197
        %v2199 = vrot.slane %v2185, %v2198
        %v2200 = vcombine.low %v2192, %v2199
        %v2201 = vcombine.low %v684, %v692
        %v2202 = vcombine.low %v700, %v699
        %v2204 = vunpack.c.l.s4 1983009808
        %v2205 = vunpack.c.0.s8 %v2204
        %v2206 = vlaneseq
        %v2207 = vshrl.u32 %v2206, 7
        %v2208 = vsub.s32 %v2205, %v2207
        %v2209 = vrot.slane %v2201, %v2208
        %v2211 = vunpack.c.l.s4 1983009808
        %v2212 = vunpack.c.0.s8 %v2211
        %v2213 = vlaneseq
        %v2214 = vshrl.u32 %v2213, 7
        %v2215 = vsub.s32 %v2212, %v2214
        %v2216 = vrot.slane %v2202, %v2215
        %v2217 = vcombine.low %v2209, %v2216
        %v2218 = vcombine.low %v701, %v708
        %v2219 = vcombine.low %v1255, %v724
        %v2221 = vunpack.c.l.s4 1983009808
        %v2222 = vunpack.c.0.s8 %v2221
        %v2223 = vlaneseq
        %v2224 = vshrl.u32 %v2223, 7
        %v2225 = vsub.s32 %v2222, %v2224
        %v2226 = vrot.slane %v2218, %v2225
        %v2228 = vunpack.c.l.s4 1983009808
        %v2229 = vunpack.c.0.s8 %v2228
        %v2230 = vlaneseq
        %v2231 = vshrl.u32 %v2230, 7
        %v2232 = vsub.s32 %v2229, %v2231
        %v2233 = vrot.slane %v2219, %v2232
        %v2234 = vcombine.low %v2226, %v2233
        %v2235 = vcombine.low %v723, %v725
        %v2236 = vcombine.low %v733, %v741
        %v2238 = vunpack.c.l.s4 1983009808
        %v2239 = vunpack.c.0.s8 %v2238
        %v2240 = vlaneseq
        %v2241 = vshrl.u32 %v2240, 7
        %v2242 = vsub.s32 %v2239, %v2241
        %v2243 = vrot.slane %v2235, %v2242
        %v2245 = vunpack.c.l.s4 1983009808
        %v2246 = vunpack.c.0.s8 %v2245
        %v2247 = vlaneseq
        %v2248 = vshrl.u32 %v2247, 7
        %v2249 = vsub.s32 %v2246, %v2248
        %v2250 = vrot.slane %v2236, %v2249
        %v2251 = vcombine.low %v2243, %v2250
        %v2252 = vcombine.low %v740, %v742
        %v2253 = vcombine.low %v749, %v1256
        %v2255 = vunpack.c.l.s4 1983009808
        %v2256 = vunpack.c.0.s8 %v2255
        %v2257 = vlaneseq
        %v2258 = vshrl.u32 %v2257, 7
        %v2259 = vsub.s32 %v2256, %v2258
        %v2260 = vrot.slane %v2252, %v2259
        %v2262 = vunpack.c.l.s4 1983009808
        %v2263 = vunpack.c.0.s8 %v2262
        %v2264 = vlaneseq
        %v2265 = vshrl.u32 %v2264, 7
        %v2266 = vsub.s32 %v2263, %v2265
        %v2267 = vrot.slane %v2253, %v2266
        %v2268 = vcombine.low %v2260, %v2267
        %v2269 = vcombine.low %v765, %v764
        %v2270 = vcombine.low %v766, %v774
        %v2272 = vunpack.c.l.s4 1983009808
        %v2273 = vunpack.c.0.s8 %v2272
        %v2274 = vlaneseq
        %v2275 = vshrl.u32 %v2274, 7
        %v2276 = vsub.s32 %v2273, %v2275
        %v2277 = vrot.slane %v2269, %v2276
        %v2279 = vunpack.c.l.s4 1983009808
        %v2280 = vunpack.c.0.s8 %v2279
        %v2281 = vlaneseq
        %v2282 = vshrl.u32 %v2281, 7
        %v2283 = vsub.s32 %v2280, %v2282
        %v2284 = vrot.slane %v2270, %v2283
        %v2285 = vcombine.low %v2277, %v2284
        %v2286 = vcombine.low %v782, %v781
        %v2287 = vcombine.low %v783, %v790
        %v2289 = vunpack.c.l.s4 1983009808
        %v2290 = vunpack.c.0.s8 %v2289
        %v2291 = vlaneseq
        %v2292 = vshrl.u32 %v2291, 7
        %v2293 = vsub.s32 %v2290, %v2292
        %v2294 = vrot.slane %v2286, %v2293
        %v2296 = vunpack.c.l.s4 1983009808
        %v2297 = vunpack.c.0.s8 %v2296
        %v2298 = vlaneseq
        %v2299 = vshrl.u32 %v2298, 7
        %v2300 = vsub.s32 %v2297, %v2299
        %v2301 = vrot.slane %v2287, %v2300
        %v2302 = vcombine.low %v2294, %v2301
        %v2303 = vcombine.low %v1257, %v806
        %v2304 = vcombine.low %v805, %v807
        %v2306 = vunpack.c.l.s4 1983009808
        %v2307 = vunpack.c.0.s8 %v2306
        %v2308 = vlaneseq
        %v2309 = vshrl.u32 %v2308, 7
        %v2310 = vsub.s32 %v2307, %v2309
        %v2311 = vrot.slane %v2303, %v2310
        %v2313 = vunpack.c.l.s4 1983009808
        %v2314 = vunpack.c.0.s8 %v2313
        %v2315 = vlaneseq
        %v2316 = vshrl.u32 %v2315, 7
        %v2317 = vsub.s32 %v2314, %v2316
        %v2318 = vrot.slane %v2304, %v2317
        %v2319 = vcombine.low %v2311, %v2318
        %v2320 = vcombine.low %v815, %v823
        %v2321 = vcombine.low %v822, %v824
        %v2323 = vunpack.c.l.s4 1983009808
        %v2324 = vunpack.c.0.s8 %v2323
        %v2325 = vlaneseq
        %v2326 = vshrl.u32 %v2325, 7
        %v2327 = vsub.s32 %v2324, %v2326
        %v2328 = vrot.slane %v2320, %v2327
        %v2330 = vunpack.c.l.s4 1983009808
        %v2331 = vunpack.c.0.s8 %v2330
        %v2332 = vlaneseq
        %v2333 = vshrl.u32 %v2332, 7
        %v2334 = vsub.s32 %v2331, %v2333
        %v2335 = vrot.slane %v2321, %v2334
        %v2336 = vcombine.low %v2328, %v2335
        %v2337 = vcombine.low %v831, %v1258
        %v2339 = vunpack.c.l.s4 1983009808
        %v2340 = vunpack.c.0.s8 %v2339
        %v2341 = vlaneseq
        %v2342 = vshrl.u32 %v2341, 7
        %v2343 = vsub.s32 %v2340, %v2342
        %v2344 = vrot.slane %v2337, %v2343
        %v2368 = vpack.c.bf16 %v1996, %v1979
        %v2369 = vpack.c.bf16 %v2030, %v2013
        %v2370 = vpack.c.bf16 %v2064, %v2047
        %v2371 = vpack.c.bf16 %v2098, %v2081
        %v2372 = vpack.c.bf16 %v2132, %v2115
        %v2373 = vpack.c.bf16 %v2166, %v2149
        %v2374 = vpack.c.bf16 %v2200, %v2183
        %v2375 = vpack.c.bf16 %v2234, %v2217
        %v2376 = vpack.c.bf16 %v2268, %v2251
        %v2377 = vpack.c.bf16 %v2302, %v2285
        %v2378 = vpack.c.bf16 %v2336, %v2319
        %v2379 = vpack.c.bf16 %v2344, %v2344
        %v2383 = vcombine.high %v386, %v386
        %v2385 = vunpack.c.l.s4 1983009808
        %v2386 = vunpack.c.0.s8 %v2385
        %v2387 = vlaneseq
        %v2388 = vshrl.u32 %v2387, 7
        %v2389 = vsub.s32 %v2386, %v2388
        %v2390 = vrot.slane %v386, %v2389
        %v2392 = vunpack.c.l.s4 1983009808
        %v2393 = vunpack.c.0.s8 %v2392
        %v2394 = vlaneseq
        %v2395 = vshrl.u32 %v2394, 7
        %v2396 = vsub.s32 %v2393, %v2395
        %v2397 = vrot.slane %v2383, %v2396
        %v2398 = vcombine.high %v2390, %v2390
        %v2399 = vcombine.high %v2397, %v2397
        %v2400 = vcombine.high %v387, %v387
        %v2402 = vunpack.c.l.s4 1983009808
        %v2403 = vunpack.c.0.s8 %v2402
        %v2404 = vlaneseq
        %v2405 = vshrl.u32 %v2404, 7
        %v2406 = vsub.s32 %v2403, %v2405
        %v2407 = vrot.slane %v387, %v2406
        %v2409 = vunpack.c.l.s4 1983009808
        %v2410 = vunpack.c.0.s8 %v2409
        %v2411 = vlaneseq
        %v2412 = vshrl.u32 %v2411, 7
        %v2413 = vsub.s32 %v2410, %v2412
        %v2414 = vrot.slane %v2400, %v2413
        %v2415 = vcombine.high %v2407, %v2407
        %v2416 = vcombine.high %v2414, %v2414
        %v2418 = vunpack.c.l.s4 1983009808
        %v2419 = vunpack.c.0.s8 %v2418
        %v2420 = vlaneseq
        %v2421 = vshrl.u32 %v2420, 7
        %v2422 = vsub.s32 %v2419, %v2421
        %v2423 = vrot.slane %v388, %v2422
        %v2424 = vcombine.low %v470, %v478
        %v2426 = vunpack.c.l.s4 1983009808
        %v2427 = vunpack.c.0.s8 %v2426
        %v2428 = vlaneseq
        %v2429 = vshrl.u32 %v2428, 7
        %v2430 = vsub.s32 %v2427, %v2429
        %v2431 = vrot.slane %v2424, %v2430
        %v2432 = vcombine.low %v2431, %v2012
        %v2433 = vcombine.low %v503, %v511
        %v2435 = vunpack.c.l.s4 1983009808
        %v2436 = vunpack.c.0.s8 %v2435
        %v2437 = vlaneseq
        %v2438 = vshrl.u32 %v2437, 7
        %v2439 = vsub.s32 %v2436, %v2438
        %v2440 = vrot.slane %v2433, %v2439
        %v2441 = vcombine.low %v2440, %v2046
        %v2442 = vcombine.low %v552, %v560
        %v2444 = vunpack.c.l.s4 1983009808
        %v2445 = vunpack.c.0.s8 %v2444
        %v2446 = vlaneseq
        %v2447 = vshrl.u32 %v2446, 7
        %v2448 = vsub.s32 %v2445, %v2447
        %v2449 = vrot.slane %v2442, %v2448
        %v2450 = vcombine.low %v2073, %v2449
        %v2451 = vcombine.low %v585, %v593
        %v2453 = vunpack.c.l.s4 1983009808
        %v2454 = vunpack.c.0.s8 %v2453
        %v2455 = vlaneseq
        %v2456 = vshrl.u32 %v2455, 7
        %v2457 = vsub.s32 %v2454, %v2456
        %v2458 = vrot.slane %v2451, %v2457
        %v2459 = vcombine.low %v2107, %v2458
        %v2460 = vcombine.low %v634, %v642
        %v2462 = vunpack.c.l.s4 1983009808
        %v2463 = vunpack.c.0.s8 %v2462
        %v2464 = vlaneseq
        %v2465 = vshrl.u32 %v2464, 7
        %v2466 = vsub.s32 %v2463, %v2465
        %v2467 = vrot.slane %v2460, %v2466
        %v2468 = vcombine.low %v2467, %v2165
        %v2469 = vcombine.low %v667, %v675
        %v2471 = vunpack.c.l.s4 1983009808
        %v2472 = vunpack.c.0.s8 %v2471
        %v2473 = vlaneseq
        %v2474 = vshrl.u32 %v2473, 7
        %v2475 = vsub.s32 %v2472, %v2474
        %v2476 = vrot.slane %v2469, %v2475
        %v2477 = vcombine.low %v2476, %v2199
        %v2478 = vcombine.low %v716, %v724
        %v2480 = vunpack.c.l.s4 1983009808
        %v2481 = vunpack.c.0.s8 %v2480
        %v2482 = vlaneseq
        %v2483 = vshrl.u32 %v2482, 7
        %v2484 = vsub.s32 %v2481, %v2483
        %v2485 = vrot.slane %v2478, %v2484
        %v2486 = vcombine.low %v2226, %v2485
        %v2487 = vcombine.low %v749, %v757
        %v2489 = vunpack.c.l.s4 1983009808
        %v2490 = vunpack.c.0.s8 %v2489
        %v2491 = vlaneseq
        %v2492 = vshrl.u32 %v2491, 7
        %v2493 = vsub.s32 %v2490, %v2492
        %v2494 = vrot.slane %v2487, %v2493
        %v2495 = vcombine.low %v2260, %v2494
        %v2496 = vcombine.low %v798, %v806
        %v2498 = vunpack.c.l.s4 1983009808
        %v2499 = vunpack.c.0.s8 %v2498
        %v2500 = vlaneseq
        %v2501 = vshrl.u32 %v2500, 7
        %v2502 = vsub.s32 %v2499, %v2501
        %v2503 = vrot.slane %v2496, %v2502
        %v2504 = vcombine.low %v2503, %v2318
        %v2505 = vcombine.low %v831, %v2390
        %v2506 = vcombine.low %v2398, %v2397
        %v2508 = vunpack.c.l.s4 1983009808
        %v2509 = vunpack.c.0.s8 %v2508
        %v2510 = vlaneseq
        %v2511 = vshrl.u32 %v2510, 7
        %v2512 = vsub.s32 %v2509, %v2511
        %v2513 = vrot.slane %v2505, %v2512
        %v2515 = vunpack.c.l.s4 1983009808
        %v2516 = vunpack.c.0.s8 %v2515
        %v2517 = vlaneseq
        %v2518 = vshrl.u32 %v2517, 7
        %v2519 = vsub.s32 %v2516, %v2518
        %v2520 = vrot.slane %v2506, %v2519
        %v2521 = vcombine.low %v2513, %v2520
        %v2522 = vcombine.low %v2399, %v2407
        %v2523 = vcombine.low %v2415, %v2414
        %v2525 = vunpack.c.l.s4 1983009808
        %v2526 = vunpack.c.0.s8 %v2525
        %v2527 = vlaneseq
        %v2528 = vshrl.u32 %v2527, 7
        %v2529 = vsub.s32 %v2526, %v2528
        %v2530 = vrot.slane %v2522, %v2529
        %v2532 = vunpack.c.l.s4 1983009808
        %v2533 = vunpack.c.0.s8 %v2532
        %v2534 = vlaneseq
        %v2535 = vshrl.u32 %v2534, 7
        %v2536 = vsub.s32 %v2533, %v2535
        %v2537 = vrot.slane %v2523, %v2536
        %v2538 = vcombine.low %v2530, %v2537
        %v2539 = vcombine.low %v2416, %v2423
        %v2541 = vunpack.c.l.s4 1983009808
        %v2542 = vunpack.c.0.s8 %v2541
        %v2543 = vlaneseq
        %v2544 = vshrl.u32 %v2543, 7
        %v2545 = vsub.s32 %v2542, %v2544
        %v2546 = vrot.slane %v2539, %v2545
        %v2559 = vpack.c.bf16 %v2030, %v2432
        %v2560 = vpack.c.bf16 %v2064, %v2441
        %v2561 = vpack.c.bf16 %v2098, %v2450
        %v2562 = vpack.c.bf16 %v2132, %v2459
        %v2563 = vpack.c.bf16 %v2468, %v2149
        %v2564 = vpack.c.bf16 %v2477, %v2183
        %v2565 = vpack.c.bf16 %v2486, %v2217
        %v2566 = vpack.c.bf16 %v2495, %v2251
        %v2567 = vpack.c.bf16 %v2336, %v2504
        %v2568 = vpack.c.bf16 %v2538, %v2521
        %v2569 = vpack.c.bf16 %v2546, %v2546
        %v2570 = vcombine.high %v2423, %v2423
        %v2571 = vrot.slane %v2390, 7
        %v2572 = vrot.slane %v2571, 2
        %v2573 = vrot.slane %v2398, 7
        %v2574 = vsel %vm1265, %v2572, %v2573
        %v2575 = vrot.slane %v2573, 2
        %v2576 = vrot.slane %v2397, 7
        %v2577 = vsel %vm1265, %v2575, %v2576
        %v2578 = vrot.slane %v2576, 2
        %v2579 = vrot.slane %v2399, 7
        %v2580 = vsel %vm1265, %v2578, %v2579
        %v2581 = vrot.slane %v2579, 2
        %v2582 = vrot.slane %v2407, 7
        %v2583 = vsel %vm1265, %v2581, %v2582
        %v2584 = vrot.slane %v2582, 2
        %v2585 = vrot.slane %v2415, 7
        %v2586 = vsel %vm1265, %v2584, %v2585
        %v2587 = vrot.slane %v2585, 2
        %v2588 = vrot.slane %v2414, 7
        %v2589 = vsel %vm1265, %v2587, %v2588
        %v2590 = vrot.slane %v2588, 2
        %v2591 = vrot.slane %v2416, 7
        %v2592 = vsel %vm1265, %v2590, %v2591
        %v2593 = vrot.slane %v2591, 2
        %v2594 = vrot.slane %v2423, 7
        %v2595 = vsel %vm1265, %v2593, %v2594
        %v2596 = vrot.slane %v2594, 2
        %v2597 = vrot.slane %v2570, 7
        %v2598 = vsel %vm1265, %v2596, %v2597
        %v2599 = vcombine.low %v1297, %v1300
        %v2600 = vcombine.low %v1303, %v1306
        %v2602 = vunpack.c.l.s4 1983009808
        %v2603 = vunpack.c.0.s8 %v2602
        %v2604 = vlaneseq
        %v2605 = vshrl.u32 %v2604, 7
        %v2606 = vsub.s32 %v2603, %v2605
        %v2607 = vrot.slane %v2599, %v2606
        %v2609 = vunpack.c.l.s4 1983009808
        %v2610 = vunpack.c.0.s8 %v2609
        %v2611 = vlaneseq
        %v2612 = vshrl.u32 %v2611, 7
        %v2613 = vsub.s32 %v2610, %v2612
        %v2614 = vrot.slane %v2600, %v2613
        %v2615 = vcombine.low %v2607, %v2614
        %v2616 = vcombine.low %v1309, %v1312
        %v2617 = vcombine.low %v1315, %v1318
        %v2619 = vunpack.c.l.s4 1983009808
        %v2620 = vunpack.c.0.s8 %v2619
        %v2621 = vlaneseq
        %v2622 = vshrl.u32 %v2621, 7
        %v2623 = vsub.s32 %v2620, %v2622
        %v2624 = vrot.slane %v2616, %v2623
        %v2626 = vunpack.c.l.s4 1983009808
        %v2627 = vunpack.c.0.s8 %v2626
        %v2628 = vlaneseq
        %v2629 = vshrl.u32 %v2628, 7
        %v2630 = vsub.s32 %v2627, %v2629
        %v2631 = vrot.slane %v2617, %v2630
        %v2632 = vcombine.low %v2624, %v2631
        %v2633 = vcombine.low %v1321, %v1325
        %v2634 = vcombine.low %v1328, %v1331
        %v2636 = vunpack.c.l.s4 1983009808
        %v2637 = vunpack.c.0.s8 %v2636
        %v2638 = vlaneseq
        %v2639 = vshrl.u32 %v2638, 7
        %v2640 = vsub.s32 %v2637, %v2639
        %v2641 = vrot.slane %v2633, %v2640
        %v2643 = vunpack.c.l.s4 1983009808
        %v2644 = vunpack.c.0.s8 %v2643
        %v2645 = vlaneseq
        %v2646 = vshrl.u32 %v2645, 7
        %v2647 = vsub.s32 %v2644, %v2646
        %v2648 = vrot.slane %v2634, %v2647
        %v2649 = vcombine.low %v2641, %v2648
        %v2650 = vcombine.low %v1334, %v1337
        %v2651 = vcombine.low %v1340, %v1343
        %v2653 = vunpack.c.l.s4 1983009808
        %v2654 = vunpack.c.0.s8 %v2653
        %v2655 = vlaneseq
        %v2656 = vshrl.u32 %v2655, 7
        %v2657 = vsub.s32 %v2654, %v2656
        %v2658 = vrot.slane %v2650, %v2657
        %v2660 = vunpack.c.l.s4 1983009808
        %v2661 = vunpack.c.0.s8 %v2660
        %v2662 = vlaneseq
        %v2663 = vshrl.u32 %v2662, 7
        %v2664 = vsub.s32 %v2661, %v2663
        %v2665 = vrot.slane %v2651, %v2664
        %v2666 = vcombine.low %v2658, %v2665
        %v2667 = vcombine.low %v1346, %v1349
        %v2668 = vcombine.low %v1353, %v1356
        %v2670 = vunpack.c.l.s4 1983009808
        %v2671 = vunpack.c.0.s8 %v2670
        %v2672 = vlaneseq
        %v2673 = vshrl.u32 %v2672, 7
        %v2674 = vsub.s32 %v2671, %v2673
        %v2675 = vrot.slane %v2667, %v2674
        %v2677 = vunpack.c.l.s4 1983009808
        %v2678 = vunpack.c.0.s8 %v2677
        %v2679 = vlaneseq
        %v2680 = vshrl.u32 %v2679, 7
        %v2681 = vsub.s32 %v2678, %v2680
        %v2682 = vrot.slane %v2668, %v2681
        %v2683 = vcombine.low %v2675, %v2682
        %v2684 = vcombine.low %v1359, %v1362
        %v2685 = vcombine.low %v1365, %v1368
        %v2687 = vunpack.c.l.s4 1983009808
        %v2688 = vunpack.c.0.s8 %v2687
        %v2689 = vlaneseq
        %v2690 = vshrl.u32 %v2689, 7
        %v2691 = vsub.s32 %v2688, %v2690
        %v2692 = vrot.slane %v2684, %v2691
        %v2694 = vunpack.c.l.s4 1983009808
        %v2695 = vunpack.c.0.s8 %v2694
        %v2696 = vlaneseq
        %v2697 = vshrl.u32 %v2696, 7
        %v2698 = vsub.s32 %v2695, %v2697
        %v2699 = vrot.slane %v2685, %v2698
        %v2700 = vcombine.low %v2692, %v2699
        %v2701 = vcombine.low %v1371, %v1374
        %v2702 = vcombine.low %v1377, %v1381
        %v2704 = vunpack.c.l.s4 1983009808
        %v2705 = vunpack.c.0.s8 %v2704
        %v2706 = vlaneseq
        %v2707 = vshrl.u32 %v2706, 7
        %v2708 = vsub.s32 %v2705, %v2707
        %v2709 = vrot.slane %v2701, %v2708
        %v2711 = vunpack.c.l.s4 1983009808
        %v2712 = vunpack.c.0.s8 %v2711
        %v2713 = vlaneseq
        %v2714 = vshrl.u32 %v2713, 7
        %v2715 = vsub.s32 %v2712, %v2714
        %v2716 = vrot.slane %v2702, %v2715
        %v2717 = vcombine.low %v2709, %v2716
        %v2718 = vcombine.low %v1384, %v1387
        %v2719 = vcombine.low %v1390, %v1393
        %v2721 = vunpack.c.l.s4 1983009808
        %v2722 = vunpack.c.0.s8 %v2721
        %v2723 = vlaneseq
        %v2724 = vshrl.u32 %v2723, 7
        %v2725 = vsub.s32 %v2722, %v2724
        %v2726 = vrot.slane %v2718, %v2725
        %v2728 = vunpack.c.l.s4 1983009808
        %v2729 = vunpack.c.0.s8 %v2728
        %v2730 = vlaneseq
        %v2731 = vshrl.u32 %v2730, 7
        %v2732 = vsub.s32 %v2729, %v2731
        %v2733 = vrot.slane %v2719, %v2732
        %v2734 = vcombine.low %v2726, %v2733
        %v2735 = vcombine.low %v1396, %v1399
        %v2736 = vcombine.low %v1402, %v1405
        %v2738 = vunpack.c.l.s4 1983009808
        %v2739 = vunpack.c.0.s8 %v2738
        %v2740 = vlaneseq
        %v2741 = vshrl.u32 %v2740, 7
        %v2742 = vsub.s32 %v2739, %v2741
        %v2743 = vrot.slane %v2735, %v2742
        %v2745 = vunpack.c.l.s4 1983009808
        %v2746 = vunpack.c.0.s8 %v2745
        %v2747 = vlaneseq
        %v2748 = vshrl.u32 %v2747, 7
        %v2749 = vsub.s32 %v2746, %v2748
        %v2750 = vrot.slane %v2736, %v2749
        %v2751 = vcombine.low %v2743, %v2750
        %v2752 = vcombine.low %v1409, %v1412
        %v2753 = vcombine.low %v1415, %v1418
        %v2755 = vunpack.c.l.s4 1983009808
        %v2756 = vunpack.c.0.s8 %v2755
        %v2757 = vlaneseq
        %v2758 = vshrl.u32 %v2757, 7
        %v2759 = vsub.s32 %v2756, %v2758
        %v2760 = vrot.slane %v2752, %v2759
        %v2762 = vunpack.c.l.s4 1983009808
        %v2763 = vunpack.c.0.s8 %v2762
        %v2764 = vlaneseq
        %v2765 = vshrl.u32 %v2764, 7
        %v2766 = vsub.s32 %v2763, %v2765
        %v2767 = vrot.slane %v2753, %v2766
        %v2768 = vcombine.low %v2760, %v2767
        %v2769 = vcombine.low %v1421, %v1424
        %v2770 = vcombine.low %v1427, %v1430
        %v2772 = vunpack.c.l.s4 1983009808
        %v2773 = vunpack.c.0.s8 %v2772
        %v2774 = vlaneseq
        %v2775 = vshrl.u32 %v2774, 7
        %v2776 = vsub.s32 %v2773, %v2775
        %v2777 = vrot.slane %v2769, %v2776
        %v2779 = vunpack.c.l.s4 1983009808
        %v2780 = vunpack.c.0.s8 %v2779
        %v2781 = vlaneseq
        %v2782 = vshrl.u32 %v2781, 7
        %v2783 = vsub.s32 %v2780, %v2782
        %v2784 = vrot.slane %v2770, %v2783
        %v2785 = vcombine.low %v2777, %v2784
        %v2786 = vcombine.low %v1433, %v1437
        %v2787 = vcombine.low %v1440, %v1443
        %v2789 = vunpack.c.l.s4 1983009808
        %v2790 = vunpack.c.0.s8 %v2789
        %v2791 = vlaneseq
        %v2792 = vshrl.u32 %v2791, 7
        %v2793 = vsub.s32 %v2790, %v2792
        %v2794 = vrot.slane %v2786, %v2793
        %v2796 = vunpack.c.l.s4 1983009808
        %v2797 = vunpack.c.0.s8 %v2796
        %v2798 = vlaneseq
        %v2799 = vshrl.u32 %v2798, 7
        %v2800 = vsub.s32 %v2797, %v2799
        %v2801 = vrot.slane %v2787, %v2800
        %v2802 = vcombine.low %v2794, %v2801
        %v2803 = vcombine.low %v1446, %v1449
        %v2804 = vcombine.low %v1452, %v1455
        %v2806 = vunpack.c.l.s4 1983009808
        %v2807 = vunpack.c.0.s8 %v2806
        %v2808 = vlaneseq
        %v2809 = vshrl.u32 %v2808, 7
        %v2810 = vsub.s32 %v2807, %v2809
        %v2811 = vrot.slane %v2803, %v2810
        %v2813 = vunpack.c.l.s4 1983009808
        %v2814 = vunpack.c.0.s8 %v2813
        %v2815 = vlaneseq
        %v2816 = vshrl.u32 %v2815, 7
        %v2817 = vsub.s32 %v2814, %v2816
        %v2818 = vrot.slane %v2804, %v2817
        %v2819 = vcombine.low %v2811, %v2818
        %v2820 = vcombine.low %v1458, %v1461
        %v2821 = vcombine.low %v1465, %v1468
        %v2823 = vunpack.c.l.s4 1983009808
        %v2824 = vunpack.c.0.s8 %v2823
        %v2825 = vlaneseq
        %v2826 = vshrl.u32 %v2825, 7
        %v2827 = vsub.s32 %v2824, %v2826
        %v2828 = vrot.slane %v2820, %v2827
        %v2830 = vunpack.c.l.s4 1983009808
        %v2831 = vunpack.c.0.s8 %v2830
        %v2832 = vlaneseq
        %v2833 = vshrl.u32 %v2832, 7
        %v2834 = vsub.s32 %v2831, %v2833
        %v2835 = vrot.slane %v2821, %v2834
        %v2836 = vcombine.low %v2828, %v2835
        %v2837 = vcombine.low %v1471, %v1474
        %v2838 = vcombine.low %v1477, %v1480
        %v2840 = vunpack.c.l.s4 1983009808
        %v2841 = vunpack.c.0.s8 %v2840
        %v2842 = vlaneseq
        %v2843 = vshrl.u32 %v2842, 7
        %v2844 = vsub.s32 %v2841, %v2843
        %v2845 = vrot.slane %v2837, %v2844
        %v2847 = vunpack.c.l.s4 1983009808
        %v2848 = vunpack.c.0.s8 %v2847
        %v2849 = vlaneseq
        %v2850 = vshrl.u32 %v2849, 7
        %v2851 = vsub.s32 %v2848, %v2850
        %v2852 = vrot.slane %v2838, %v2851
        %v2853 = vcombine.low %v2845, %v2852
        %v2854 = vcombine.low %v1483, %v1486
        %v2855 = vcombine.low %v1489, %v1493
        %v2857 = vunpack.c.l.s4 1983009808
        %v2858 = vunpack.c.0.s8 %v2857
        %v2859 = vlaneseq
        %v2860 = vshrl.u32 %v2859, 7
        %v2861 = vsub.s32 %v2858, %v2860
        %v2862 = vrot.slane %v2854, %v2861
        %v2864 = vunpack.c.l.s4 1983009808
        %v2865 = vunpack.c.0.s8 %v2864
        %v2866 = vlaneseq
        %v2867 = vshrl.u32 %v2866, 7
        %v2868 = vsub.s32 %v2865, %v2867
        %v2869 = vrot.slane %v2855, %v2868
        %v2870 = vcombine.low %v2862, %v2869
        %v2871 = vcombine.low %v1496, %v1499
        %v2872 = vcombine.low %v1502, %v1505
        %v2874 = vunpack.c.l.s4 1983009808
        %v2875 = vunpack.c.0.s8 %v2874
        %v2876 = vlaneseq
        %v2877 = vshrl.u32 %v2876, 7
        %v2878 = vsub.s32 %v2875, %v2877
        %v2879 = vrot.slane %v2871, %v2878
        %v2881 = vunpack.c.l.s4 1983009808
        %v2882 = vunpack.c.0.s8 %v2881
        %v2883 = vlaneseq
        %v2884 = vshrl.u32 %v2883, 7
        %v2885 = vsub.s32 %v2882, %v2884
        %v2886 = vrot.slane %v2872, %v2885
        %v2887 = vcombine.low %v2879, %v2886
        %v2888 = vcombine.low %v1508, %v1511
        %v2889 = vcombine.low %v1514, %v1517
        %v2891 = vunpack.c.l.s4 1983009808
        %v2892 = vunpack.c.0.s8 %v2891
        %v2893 = vlaneseq
        %v2894 = vshrl.u32 %v2893, 7
        %v2895 = vsub.s32 %v2892, %v2894
        %v2896 = vrot.slane %v2888, %v2895
        %v2898 = vunpack.c.l.s4 1983009808
        %v2899 = vunpack.c.0.s8 %v2898
        %v2900 = vlaneseq
        %v2901 = vshrl.u32 %v2900, 7
        %v2902 = vsub.s32 %v2899, %v2901
        %v2903 = vrot.slane %v2889, %v2902
        %v2904 = vcombine.low %v2896, %v2903
        %v2905 = vcombine.low %v1521, %v1524
        %v2906 = vcombine.low %v1527, %v1530
        %v2908 = vunpack.c.l.s4 1983009808
        %v2909 = vunpack.c.0.s8 %v2908
        %v2910 = vlaneseq
        %v2911 = vshrl.u32 %v2910, 7
        %v2912 = vsub.s32 %v2909, %v2911
        %v2913 = vrot.slane %v2905, %v2912
        %v2915 = vunpack.c.l.s4 1983009808
        %v2916 = vunpack.c.0.s8 %v2915
        %v2917 = vlaneseq
        %v2918 = vshrl.u32 %v2917, 7
        %v2919 = vsub.s32 %v2916, %v2918
        %v2920 = vrot.slane %v2906, %v2919
        %v2921 = vcombine.low %v2913, %v2920
        %v2922 = vcombine.low %v1533, %v1536
        %v2923 = vcombine.low %v1539, %v1542
        %v2925 = vunpack.c.l.s4 1983009808
        %v2926 = vunpack.c.0.s8 %v2925
        %v2927 = vlaneseq
        %v2928 = vshrl.u32 %v2927, 7
        %v2929 = vsub.s32 %v2926, %v2928
        %v2930 = vrot.slane %v2922, %v2929
        %v2932 = vunpack.c.l.s4 1983009808
        %v2933 = vunpack.c.0.s8 %v2932
        %v2934 = vlaneseq
        %v2935 = vshrl.u32 %v2934, 7
        %v2936 = vsub.s32 %v2933, %v2935
        %v2937 = vrot.slane %v2923, %v2936
        %v2938 = vcombine.low %v2930, %v2937
        %v2939 = vcombine.low %v1545, %v2574
        %v2940 = vcombine.low %v2577, %v2580
        %v2942 = vunpack.c.l.s4 1983009808
        %v2943 = vunpack.c.0.s8 %v2942
        %v2944 = vlaneseq
        %v2945 = vshrl.u32 %v2944, 7
        %v2946 = vsub.s32 %v2943, %v2945
        %v2947 = vrot.slane %v2939, %v2946
        %v2949 = vunpack.c.l.s4 1983009808
        %v2950 = vunpack.c.0.s8 %v2949
        %v2951 = vlaneseq
        %v2952 = vshrl.u32 %v2951, 7
        %v2953 = vsub.s32 %v2950, %v2952
        %v2954 = vrot.slane %v2940, %v2953
        %v2955 = vcombine.low %v2947, %v2954
        %v2956 = vcombine.low %v2583, %v2586
        %v2957 = vcombine.low %v2589, %v2592
        %v2959 = vunpack.c.l.s4 1983009808
        %v2960 = vunpack.c.0.s8 %v2959
        %v2961 = vlaneseq
        %v2962 = vshrl.u32 %v2961, 7
        %v2963 = vsub.s32 %v2960, %v2962
        %v2964 = vrot.slane %v2956, %v2963
        %v2966 = vunpack.c.l.s4 1983009808
        %v2967 = vunpack.c.0.s8 %v2966
        %v2968 = vlaneseq
        %v2969 = vshrl.u32 %v2968, 7
        %v2970 = vsub.s32 %v2967, %v2969
        %v2971 = vrot.slane %v2957, %v2970
        %v2972 = vcombine.low %v2964, %v2971
        %v2973 = vcombine.low %v2595, %v2598
        %v2975 = vunpack.c.l.s4 1983009808
        %v2976 = vunpack.c.0.s8 %v2975
        %v2977 = vlaneseq
        %v2978 = vshrl.u32 %v2977, 7
        %v2979 = vsub.s32 %v2976, %v2978
        %v2980 = vrot.slane %v2973, %v2979
        %v3004 = vpack.c.bf16 %v2632, %v2615
        %v3005 = vpack.c.bf16 %v2666, %v2649
        %v3006 = vpack.c.bf16 %v2700, %v2683
        %v3007 = vpack.c.bf16 %v2734, %v2717
        %v3008 = vpack.c.bf16 %v2768, %v2751
        %v3009 = vpack.c.bf16 %v2802, %v2785
        %v3010 = vpack.c.bf16 %v2836, %v2819
        %v3011 = vpack.c.bf16 %v2870, %v2853
        %v3012 = vpack.c.bf16 %v2904, %v2887
        %v3013 = vpack.c.bf16 %v2938, %v2921
        %v3014 = vpack.c.bf16 %v2972, %v2955
        %v3015 = vpack.c.bf16 %v2980, %v2980
        %v3016 = vcombine.low %v881, %v891
        %v3017 = vcombine.low %v898, %v908
        %v3018 = vcombine.low %v1250, %v519
        %v3020 = vunpack.c.l.s4 1983009808
        %v3021 = vunpack.c.0.s8 %v3020
        %v3022 = vlaneseq
        %v3023 = vshrl.u32 %v3022, 7
        %v3024 = vsub.s32 %v3021, %v3023
        %v3025 = vrot.slane %v3018, %v3024
        %v3026 = vcombine.low %v3025, %v925
        %v3027 = vcombine.low %v932, %v942
        %v3028 = vcombine.low %v544, %v1251
        %v3030 = vunpack.c.l.s4 1983009808
        %v3031 = vunpack.c.0.s8 %v3030
        %v3032 = vlaneseq
        %v3033 = vshrl.u32 %v3032, 7
        %v3034 = vsub.s32 %v3031, %v3033
        %v3035 = vrot.slane %v3028, %v3034
        %v3036 = vcombine.low %v3035, %v959
        %v3037 = vcombine.low %v966, %v976
        %v3038 = vcombine.low %v1252, %v601
        %v3040 = vunpack.c.l.s4 1983009808
        %v3041 = vunpack.c.0.s8 %v3040
        %v3042 = vlaneseq
        %v3043 = vshrl.u32 %v3042, 7
        %v3044 = vsub.s32 %v3041, %v3043
        %v3045 = vrot.slane %v3038, %v3044
        %v3046 = vcombine.low %v983, %v3045
        %v3047 = vcombine.low %v1000, %v1010
        %v3048 = vcombine.low %v626, %v1253
        %v3050 = vunpack.c.l.s4 1983009808
        %v3051 = vunpack.c.0.s8 %v3050
        %v3052 = vlaneseq
        %v3053 = vshrl.u32 %v3052, 7
        %v3054 = vsub.s32 %v3051, %v3053
        %v3055 = vrot.slane %v3048, %v3054
        %v3056 = vcombine.low %v1017, %v3055
        %v3057 = vcombine.low %v1034, %v1044
        %v3058 = vcombine.low %v1051, %v1061
        %v3059 = vcombine.low %v1254, %v683
        %v3061 = vunpack.c.l.s4 1983009808
        %v3062 = vunpack.c.0.s8 %v3061
        %v3063 = vlaneseq
        %v3064 = vshrl.u32 %v3063, 7
        %v3065 = vsub.s32 %v3062, %v3064
        %v3066 = vrot.slane %v3059, %v3065
        %v3067 = vcombine.low %v3066, %v1078
        %v3068 = vcombine.low %v1085, %v1095
        %v3069 = vcombine.low %v708, %v1255
        %v3071 = vunpack.c.l.s4 1983009808
        %v3072 = vunpack.c.0.s8 %v3071
        %v3073 = vlaneseq
        %v3074 = vshrl.u32 %v3073, 7
        %v3075 = vsub.s32 %v3072, %v3074
        %v3076 = vrot.slane %v3069, %v3075
        %v3077 = vcombine.low %v3076, %v1112
        %v3078 = vcombine.low %v1119, %v1129
        %v3079 = vcombine.low %v1256, %v765
        %v3081 = vunpack.c.l.s4 1983009808
        %v3082 = vunpack.c.0.s8 %v3081
        %v3083 = vlaneseq
        %v3084 = vshrl.u32 %v3083, 7
        %v3085 = vsub.s32 %v3082, %v3084
        %v3086 = vrot.slane %v3079, %v3085
        %v3087 = vcombine.low %v1136, %v3086
        %v3088 = vcombine.low %v1153, %v1163
        %v3089 = vcombine.low %v790, %v1257
        %v3091 = vunpack.c.l.s4 1983009808
        %v3092 = vunpack.c.0.s8 %v3091
        %v3093 = vlaneseq
        %v3094 = vshrl.u32 %v3093, 7
        %v3095 = vsub.s32 %v3092, %v3094
        %v3096 = vrot.slane %v3089, %v3095
        %v3097 = vcombine.low %v1170, %v3096
        %v3098 = vcombine.low %v1187, %v1197
        %v3099 = vcombine.low %v1204, %v1213
        %v3100 = vcombine.low %v1258, %v2398
        %v3101 = vcombine.low %v2397, %v2399
        %v3103 = vunpack.c.l.s4 1983009808
        %v3104 = vunpack.c.0.s8 %v3103
        %v3105 = vlaneseq
        %v3106 = vshrl.u32 %v3105, 7
        %v3107 = vsub.s32 %v3104, %v3106
        %v3108 = vrot.slane %v3100, %v3107
        %v3110 = vunpack.c.l.s4 1983009808
        %v3111 = vunpack.c.0.s8 %v3110
        %v3112 = vlaneseq
        %v3113 = vshrl.u32 %v3112, 7
        %v3114 = vsub.s32 %v3111, %v3113
        %v3115 = vrot.slane %v3101, %v3114
        %v3116 = vcombine.low %v3108, %v3115
        %v3117 = vcombine.low %v2407, %v2415
        %v3118 = vcombine.low %v2414, %v2416
        %v3120 = vunpack.c.l.s4 1983009808
        %v3121 = vunpack.c.0.s8 %v3120
        %v3122 = vlaneseq
        %v3123 = vshrl.u32 %v3122, 7
        %v3124 = vsub.s32 %v3121, %v3123
        %v3125 = vrot.slane %v3117, %v3124
        %v3127 = vunpack.c.l.s4 1983009808
        %v3128 = vunpack.c.0.s8 %v3127
        %v3129 = vlaneseq
        %v3130 = vshrl.u32 %v3129, 7
        %v3131 = vsub.s32 %v3128, %v3130
        %v3132 = vrot.slane %v3118, %v3131
        %v3133 = vcombine.low %v3125, %v3132
        %v3134 = vcombine.low %v2423, %v2570
        %v3136 = vunpack.c.l.s4 1983009808
        %v3137 = vunpack.c.0.s8 %v3136
        %v3138 = vlaneseq
        %v3139 = vshrl.u32 %v3138, 7
        %v3140 = vsub.s32 %v3137, %v3139
        %v3141 = vrot.slane %v3134, %v3140
        %v3165 = vpack.c.bf16 %v3017, %v3016
        %v3166 = vpack.c.bf16 %v3027, %v3026
        %v3167 = vpack.c.bf16 %v3037, %v3036
        %v3168 = vpack.c.bf16 %v3047, %v3046
        %v3169 = vpack.c.bf16 %v3057, %v3056
        %v3170 = vpack.c.bf16 %v3067, %v3058
        %v3171 = vpack.c.bf16 %v3077, %v3068
        %v3172 = vpack.c.bf16 %v3087, %v3078
        %v3173 = vpack.c.bf16 %v3097, %v3088
        %v3174 = vpack.c.bf16 %v3099, %v3098
        %v3175 = vpack.c.bf16 %v3133, %v3116
        %v3176 = vpack.c.bf16 %v3141, %v3141
        %v3180 = vcombine.high %v389, %v389
        %v3182 = vunpack.c.l.s4 1983009808
        %v3183 = vunpack.c.0.s8 %v3182
        %v3184 = vlaneseq
        %v3185 = vshrl.u32 %v3184, 7
        %v3186 = vsub.s32 %v3183, %v3185
        %v3187 = vrot.slane %v389, %v3186
        %v3189 = vunpack.c.l.s4 1983009808
        %v3190 = vunpack.c.0.s8 %v3189
        %v3191 = vlaneseq
        %v3192 = vshrl.u32 %v3191, 7
        %v3193 = vsub.s32 %v3190, %v3192
        %v3194 = vrot.slane %v3180, %v3193
        %v3195 = vcombine.high %v3187, %v3187
        %v3196 = vcombine.high %v3194, %v3194
        %v3197 = vcombine.high %v390, %v390
        %v3199 = vunpack.c.l.s4 1983009808
        %v3200 = vunpack.c.0.s8 %v3199
        %v3201 = vlaneseq
        %v3202 = vshrl.u32 %v3201, 7
        %v3203 = vsub.s32 %v3200, %v3202
        %v3204 = vrot.slane %v390, %v3203
        %v3206 = vunpack.c.l.s4 1983009808
        %v3207 = vunpack.c.0.s8 %v3206
        %v3208 = vlaneseq
        %v3209 = vshrl.u32 %v3208, 7
        %v3210 = vsub.s32 %v3207, %v3209
        %v3211 = vrot.slane %v3197, %v3210
        %v3212 = vcombine.high %v3204, %v3204
        %v3213 = vcombine.high %v3211, %v3211
        %v3215 = vunpack.c.l.s4 1983009808
        %v3216 = vunpack.c.0.s8 %v3215
        %v3217 = vlaneseq
        %v3218 = vshrl.u32 %v3217, 7
        %v3219 = vsub.s32 %v3216, %v3218
        %v3220 = vrot.slane %v391, %v3219
        %v3221 = vcombine.low %v915, %v925
        %v3222 = vcombine.low %v949, %v959
        %v3223 = vcombine.low %v983, %v993
        %v3224 = vcombine.low %v1017, %v1027
        %v3225 = vcombine.low %v1068, %v1078
        %v3226 = vcombine.low %v1102, %v1112
        %v3227 = vcombine.low %v1136, %v1146
        %v3228 = vcombine.low %v1170, %v1180
        %v3229 = vcombine.low %v2390, %v2398
        %v3231 = vunpack.c.l.s4 1983009808
        %v3232 = vunpack.c.0.s8 %v3231
        %v3233 = vlaneseq
        %v3234 = vshrl.u32 %v3233, 7
        %v3235 = vsub.s32 %v3232, %v3234
        %v3236 = vrot.slane %v3229, %v3235
        %v3237 = vcombine.low %v3236, %v3115
        %v3238 = vcombine.low %v2423, %v3187
        %v3239 = vcombine.low %v3195, %v3194
        %v3241 = vunpack.c.l.s4 1983009808
        %v3242 = vunpack.c.0.s8 %v3241
        %v3243 = vlaneseq
        %v3244 = vshrl.u32 %v3243, 7
        %v3245 = vsub.s32 %v3242, %v3244
        %v3246 = vrot.slane %v3238, %v3245
        %v3248 = vunpack.c.l.s4 1983009808
        %v3249 = vunpack.c.0.s8 %v3248
        %v3250 = vlaneseq
        %v3251 = vshrl.u32 %v3250, 7
        %v3252 = vsub.s32 %v3249, %v3251
        %v3253 = vrot.slane %v3239, %v3252
        %v3254 = vcombine.low %v3246, %v3253
        %v3255 = vcombine.low %v3196, %v3204
        %v3256 = vcombine.low %v3212, %v3211
        %v3258 = vunpack.c.l.s4 1983009808
        %v3259 = vunpack.c.0.s8 %v3258
        %v3260 = vlaneseq
        %v3261 = vshrl.u32 %v3260, 7
        %v3262 = vsub.s32 %v3259, %v3261
        %v3263 = vrot.slane %v3255, %v3262
        %v3265 = vunpack.c.l.s4 1983009808
        %v3266 = vunpack.c.0.s8 %v3265
        %v3267 = vlaneseq
        %v3268 = vshrl.u32 %v3267, 7
        %v3269 = vsub.s32 %v3266, %v3268
        %v3270 = vrot.slane %v3256, %v3269
        %v3271 = vcombine.low %v3263, %v3270
        %v3272 = vcombine.low %v3213, %v3220
        %v3274 = vunpack.c.l.s4 1983009808
        %v3275 = vunpack.c.0.s8 %v3274
        %v3276 = vlaneseq
        %v3277 = vshrl.u32 %v3276, 7
        %v3278 = vsub.s32 %v3275, %v3277
        %v3279 = vrot.slane %v3272, %v3278
        %v3292 = vpack.c.bf16 %v3027, %v3221
        %v3293 = vpack.c.bf16 %v3037, %v3222
        %v3294 = vpack.c.bf16 %v3047, %v3223
        %v3295 = vpack.c.bf16 %v3057, %v3224
        %v3296 = vpack.c.bf16 %v3225, %v3058
        %v3297 = vpack.c.bf16 %v3226, %v3068
        %v3298 = vpack.c.bf16 %v3227, %v3078
        %v3299 = vpack.c.bf16 %v3228, %v3088
        %v3300 = vpack.c.bf16 %v3133, %v3237
        %v3301 = vpack.c.bf16 %v3271, %v3254
        %v3302 = vpack.c.bf16 %v3279, %v3279
        %v3303 = vcombine.high %v3220, %v3220
        %v3304 = vrot.slane %v3187, 7
        %v3305 = vrot.slane %v3304, 2
        %v3306 = vrot.slane %v3195, 7
        %v3307 = vsel %vm1265, %v3305, %v3306
        %v3308 = vrot.slane %v3306, 2
        %v3309 = vrot.slane %v3194, 7
        %v3310 = vsel %vm1265, %v3308, %v3309
        %v3311 = vrot.slane %v3309, 2
        %v3312 = vrot.slane %v3196, 7
        %v3313 = vsel %vm1265, %v3311, %v3312
        %v3314 = vrot.slane %v3312, 2
        %v3315 = vrot.slane %v3204, 7
        %v3316 = vsel %vm1265, %v3314, %v3315
        %v3317 = vrot.slane %v3315, 2
        %v3318 = vrot.slane %v3212, 7
        %v3319 = vsel %vm1265, %v3317, %v3318
        %v3320 = vrot.slane %v3318, 2
        %v3321 = vrot.slane %v3211, 7
        %v3322 = vsel %vm1265, %v3320, %v3321
        %v3323 = vrot.slane %v3321, 2
        %v3324 = vrot.slane %v3213, 7
        %v3325 = vsel %vm1265, %v3323, %v3324
        %v3326 = vrot.slane %v3324, 2
        %v3327 = vrot.slane %v3220, 7
        %v3328 = vsel %vm1265, %v3326, %v3327
        %v3329 = vrot.slane %v3327, 2
        %v3330 = vrot.slane %v3303, 7
        %v3331 = vsel %vm1265, %v3329, %v3330
        %v3332 = vcombine.low %v1629, %v1639
        %v3333 = vcombine.low %v1646, %v1656
        %v3334 = vcombine.low %v1663, %v1673
        %v3335 = vcombine.low %v1680, %v1690
        %v3336 = vcombine.low %v1697, %v1707
        %v3337 = vcombine.low %v1714, %v1724
        %v3338 = vcombine.low %v1731, %v1741
        %v3339 = vcombine.low %v1748, %v1758
        %v3340 = vcombine.low %v1765, %v1775
        %v3341 = vcombine.low %v1782, %v1792
        %v3342 = vcombine.low %v1799, %v1809
        %v3343 = vcombine.low %v1816, %v1826
        %v3344 = vcombine.low %v1833, %v1843
        %v3345 = vcombine.low %v1850, %v1860
        %v3346 = vcombine.low %v1867, %v1877
        %v3347 = vcombine.low %v1884, %v1894
        %v3348 = vcombine.low %v1901, %v1911
        %v3349 = vcombine.low %v1918, %v1927
        %v3350 = vcombine.low %v2574, %v2577
        %v3351 = vcombine.low %v2580, %v2583
        %v3353 = vunpack.c.l.s4 1983009808
        %v3354 = vunpack.c.0.s8 %v3353
        %v3355 = vlaneseq
        %v3356 = vshrl.u32 %v3355, 7
        %v3357 = vsub.s32 %v3354, %v3356
        %v3358 = vrot.slane %v3350, %v3357
        %v3360 = vunpack.c.l.s4 1983009808
        %v3361 = vunpack.c.0.s8 %v3360
        %v3362 = vlaneseq
        %v3363 = vshrl.u32 %v3362, 7
        %v3364 = vsub.s32 %v3361, %v3363
        %v3365 = vrot.slane %v3351, %v3364
        %v3366 = vcombine.low %v3358, %v3365
        %v3367 = vcombine.low %v2586, %v2589
        %v3368 = vcombine.low %v2592, %v2595
        %v3370 = vunpack.c.l.s4 1983009808
        %v3371 = vunpack.c.0.s8 %v3370
        %v3372 = vlaneseq
        %v3373 = vshrl.u32 %v3372, 7
        %v3374 = vsub.s32 %v3371, %v3373
        %v3375 = vrot.slane %v3367, %v3374
        %v3377 = vunpack.c.l.s4 1983009808
        %v3378 = vunpack.c.0.s8 %v3377
        %v3379 = vlaneseq
        %v3380 = vshrl.u32 %v3379, 7
        %v3381 = vsub.s32 %v3378, %v3380
        %v3382 = vrot.slane %v3368, %v3381
        %v3383 = vcombine.low %v3375, %v3382
        %v3384 = vcombine.low %v2598, %v3307
        %v3385 = vcombine.low %v3310, %v3313
        %v3387 = vunpack.c.l.s4 1983009808
        %v3388 = vunpack.c.0.s8 %v3387
        %v3389 = vlaneseq
        %v3390 = vshrl.u32 %v3389, 7
        %v3391 = vsub.s32 %v3388, %v3390
        %v3392 = vrot.slane %v3384, %v3391
        %v3394 = vunpack.c.l.s4 1983009808
        %v3395 = vunpack.c.0.s8 %v3394
        %v3396 = vlaneseq
        %v3397 = vshrl.u32 %v3396, 7
        %v3398 = vsub.s32 %v3395, %v3397
        %v3399 = vrot.slane %v3385, %v3398
        %v3400 = vcombine.low %v3392, %v3399
        %v3401 = vcombine.low %v3316, %v3319
        %v3402 = vcombine.low %v3322, %v3325
        %v3404 = vunpack.c.l.s4 1983009808
        %v3405 = vunpack.c.0.s8 %v3404
        %v3406 = vlaneseq
        %v3407 = vshrl.u32 %v3406, 7
        %v3408 = vsub.s32 %v3405, %v3407
        %v3409 = vrot.slane %v3401, %v3408
        %v3411 = vunpack.c.l.s4 1983009808
        %v3412 = vunpack.c.0.s8 %v3411
        %v3413 = vlaneseq
        %v3414 = vshrl.u32 %v3413, 7
        %v3415 = vsub.s32 %v3412, %v3414
        %v3416 = vrot.slane %v3402, %v3415
        %v3417 = vcombine.low %v3409, %v3416
        %v3418 = vcombine.low %v3328, %v3331
        %v3420 = vunpack.c.l.s4 1983009808
        %v3421 = vunpack.c.0.s8 %v3420
        %v3422 = vlaneseq
        %v3423 = vshrl.u32 %v3422, 7
        %v3424 = vsub.s32 %v3421, %v3423
        %v3425 = vrot.slane %v3418, %v3424
        %v3449 = vpack.c.bf16 %v3333, %v3332
        %v3450 = vpack.c.bf16 %v3335, %v3334
        %v3451 = vpack.c.bf16 %v3337, %v3336
        %v3452 = vpack.c.bf16 %v3339, %v3338
        %v3453 = vpack.c.bf16 %v3341, %v3340
        %v3454 = vpack.c.bf16 %v3343, %v3342
        %v3455 = vpack.c.bf16 %v3345, %v3344
        %v3456 = vpack.c.bf16 %v3347, %v3346
        %v3457 = vpack.c.bf16 %v3349, %v3348
        %v3458 = vpack.c.bf16 %v3383, %v3366
        %v3459 = vpack.c.bf16 %v3417, %v3400
        %v3460 = vpack.c.bf16 %v3425, %v3425
        %v3461 = vcombine.low %v2046, %v2056
        %v3462 = vcombine.low %v2063, %v2073
        %v3463 = vcombine.low %v2080, %v2090
        %v3464 = vcombine.low %v2097, %v2107
        %v3465 = vcombine.low %v2114, %v2124
        %v3466 = vcombine.low %v2131, %v2141
        %v3467 = vcombine.low %v2148, %v2158
        %v3468 = vcombine.low %v2165, %v2175
        %v3469 = vcombine.low %v2182, %v2192
        %v3470 = vcombine.low %v2199, %v2209
        %v3471 = vcombine.low %v2216, %v2226
        %v3472 = vcombine.low %v2233, %v2243
        %v3473 = vcombine.low %v2250, %v2260
        %v3474 = vcombine.low %v2267, %v2277
        %v3475 = vcombine.low %v2284, %v2294
        %v3476 = vcombine.low %v2301, %v2311
        %v3477 = vcombine.low %v2318, %v2328
        %v3478 = vcombine.low %v2335, %v2344
        %v3479 = vcombine.low %v2520, %v2530
        %v3480 = vcombine.low %v2537, %v2546
        %v3481 = vcombine.low %v2570, %v3195
        %v3482 = vcombine.low %v3194, %v3196
        %v3484 = vunpack.c.l.s4 1983009808
        %v3485 = vunpack.c.0.s8 %v3484
        %v3486 = vlaneseq
        %v3487 = vshrl.u32 %v3486, 7
        %v3488 = vsub.s32 %v3485, %v3487
        %v3489 = vrot.slane %v3481, %v3488
        %v3491 = vunpack.c.l.s4 1983009808
        %v3492 = vunpack.c.0.s8 %v3491
        %v3493 = vlaneseq
        %v3494 = vshrl.u32 %v3493, 7
        %v3495 = vsub.s32 %v3492, %v3494
        %v3496 = vrot.slane %v3482, %v3495
        %v3497 = vcombine.low %v3489, %v3496
        %v3498 = vcombine.low %v3204, %v3212
        %v3499 = vcombine.low %v3211, %v3213
        %v3501 = vunpack.c.l.s4 1983009808
        %v3502 = vunpack.c.0.s8 %v3501
        %v3503 = vlaneseq
        %v3504 = vshrl.u32 %v3503, 7
        %v3505 = vsub.s32 %v3502, %v3504
        %v3506 = vrot.slane %v3498, %v3505
        %v3508 = vunpack.c.l.s4 1983009808
        %v3509 = vunpack.c.0.s8 %v3508
        %v3510 = vlaneseq
        %v3511 = vshrl.u32 %v3510, 7
        %v3512 = vsub.s32 %v3509, %v3511
        %v3513 = vrot.slane %v3499, %v3512
        %v3514 = vcombine.low %v3506, %v3513
        %v3515 = vcombine.low %v3220, %v3303
        %v3517 = vunpack.c.l.s4 1983009808
        %v3518 = vunpack.c.0.s8 %v3517
        %v3519 = vlaneseq
        %v3520 = vshrl.u32 %v3519, 7
        %v3521 = vsub.s32 %v3518, %v3520
        %v3522 = vrot.slane %v3515, %v3521
        %v3546 = vpack.c.bf16 %v3462, %v3461
        %v3547 = vpack.c.bf16 %v3464, %v3463
        %v3548 = vpack.c.bf16 %v3466, %v3465
        %v3549 = vpack.c.bf16 %v3468, %v3467
        %v3550 = vpack.c.bf16 %v3470, %v3469
        %v3551 = vpack.c.bf16 %v3472, %v3471
        %v3552 = vpack.c.bf16 %v3474, %v3473
        %v3553 = vpack.c.bf16 %v3476, %v3475
        %v3554 = vpack.c.bf16 %v3478, %v3477
        %v3555 = vpack.c.bf16 %v3480, %v3479
        %v3556 = vpack.c.bf16 %v3514, %v3497
        %v3557 = vpack.c.bf16 %v3522, %v3522
        %v3558 = vld [vmem:[%s2] sm:$0xf]
        %v3559 = vld [vmem:[%s2 + $0x4] sm:$0xf]
        %v3560 = vld [vmem:[%s2 + $0x8] sm:$0xf]
        %v3561 = vld [vmem:[%s2 + $0xc] sm:$0xf]
        %v3562 = vld [vmem:[%s2 + $0x10] sm:$0xf]
        %v3563 = vld [vmem:[%s2 + $0x14] sm:$0xf]
        %v3564 = vld [vmem:[%s2 + $0x18] sm:$0xf]
        %v3565 = vld [vmem:[%s2 + $0x1c] sm:$0xf]
        %v3566 = vld [vmem:[%s2 + $0x20] sm:$0xf]
        %v3567 = vld [vmem:[%s2 + $0x24] sm:$0xf]
        %v3568 = vld [vmem:[%s2 + $0x28] sm:$0xf]
        %v3569 = vld [vmem:[%s2 + $0x2c] sm:$0xf]
        %v3570 = vld [vmem:[%s2 + $0x30] sm:$0xf]
        %v3571 = vld [vmem:[%s2 + $0x34] sm:$0xf]
        %v3572 = vld [vmem:[%s2 + $0x38] sm:$0xf]
        %v3573 = vld [vmem:[%s2 + $0x3c] sm:$0xf]
        %v3574 = vld [vmem:[%s2 + $0x40] sm:$0xf]
        %v3575 = vld [vmem:[%s2 + $0x44] sm:$0xf]
        %v3576 = vld [vmem:[%s2 + $0x48] sm:$0xf]
        %v3577 = vld [vmem:[%s2 + $0x4c] sm:$0xf]
        %v3578 = vld [vmem:[%s2 + $0x50] sm:$0xf]
        %v3579 = vld [vmem:[%s2 + $0x54] sm:$0xf]
        %v3580 = vld [vmem:[%s2 + $0x58] sm:$0xf]
        %v3581 = vld [vmem:[%s2 + $0x5c] sm:$0xf]
        %v3582 = vld [vmem:[%s2 + $0x60] sm:$0xf]
        %v3583 = vld [vmem:[%s2 + $0x64] sm:$0xf]
        %v3584 = vld [vmem:[%s2 + $0x68] sm:$0xf]
        %v3585 = vld [vmem:[%s2 + $0x6c] sm:$0xf]
        %v3586 = vld [vmem:[%s2 + $0x70] sm:$0xf]
        %v3587 = vld [vmem:[%s2 + $0x74] sm:$0xf]
        %v3588 = vld [vmem:[%s2 + $0x78] sm:$0xf]
        %v3589 = vld [vmem:[%s2 + $0x7c] sm:$0xf]
        %v3590 = vld [vmem:[%s2 + $0x80] sm:$0xf]
        %v3591 = vld [vmem:[%s2 + $0x84] sm:$0xf]
        %v3592 = vld [vmem:[%s2 + $0x88] sm:$0xf]
        %v3593 = vld [vmem:[%s2 + $0x8c] sm:$0xf]
        %v3594 = vld [vmem:[%s2 + $0x90] sm:$0xf]
        %v3595 = vld [vmem:[%s2 + $0x94] sm:$0xf]
        %v3596 = vld [vmem:[%s2 + $0x98] sm:$0xf]
        %v3597 = vld [vmem:[%s2 + $0x9c] sm:$0xf]
        %v3598 = vld [vmem:[%s2 + $0xa0] sm:$0xf]
        %v3599 = vld [vmem:[%s2 + $0xa4] sm:$0xf]
        %v3600 = vld [vmem:[%s2 + $0xa8] sm:$0xf]
        %v3601 = vld [vmem:[%s2 + $0xac] sm:$0xf]
        %v3602 = vld [vmem:[%s2 + $0xb0] sm:$0xf]
        %v3603 = vld [vmem:[%s2 + $0xb4] sm:$0xf]
        %v3604 = vld [vmem:[%s2 + $0xb8] sm:$0xf]
        %v3605 = vld [vmem:[%s2 + $0xbc] sm:$0xf]
        %v3606 = vld [vmem:[%s2 + $0xc0] sm:$0xf]
        %v3607 = vld [vmem:[%s2 + $0xc4] sm:$0xf]
        %v3608 = vld [vmem:[%s2 + $0xc8] sm:$0xf]
        %v3609 = vld [vmem:[%s2 + $0xcc] sm:$0xf]
        %v3610 = vld [vmem:[%s2 + $0xd0] sm:$0xf]
        %v3611 = vld [vmem:[%s2 + $0xd4] sm:$0xf]
        %v3612 = vld [vmem:[%s2 + $0xd8] sm:$0xf]
        %v3613 = vld [vmem:[%s2 + $0xdc] sm:$0xf]
        %v3614 = vld [vmem:[%s2 + $0xe0] sm:$0xf]
        %v3615 = vld [vmem:[%s2 + $0xe4] sm:$0xf]
        %v3616 = vld [vmem:[%s2 + $0xe8] sm:$0xf]
        %v3617 = vld [vmem:[%s2 + $0xec] sm:$0xf]
        %v3618 = vld [vmem:[%s2 + $0xf0] sm:$0xf]
        %v3619 = vld [vmem:[%s2 + $0xf4] sm:$0xf]
        %v3620 = vld [vmem:[%s2 + $0xf8] sm:$0xf]
        %v3621 = vld [vmem:[%s2 + $0xfc] sm:$0xf]
        %v3622 = vld [vmem:[%s2 + $0x100] sm:$0xf]
        %v3623 = vld [vmem:[%s2 + $0x104] sm:$0xf]
        %v3624 = vld [vmem:[%s2 + $0x108] sm:$0xf]
        %v3625 = vld [vmem:[%s2 + $0x10c] sm:$0xf]
        %v3626 = vld [vmem:[%s2 + $0x110] sm:$0xf]
        %v3627 = vld [vmem:[%s2 + $0x114] sm:$0xf]
        %v3628 = vld [vmem:[%s2 + $0x118] sm:$0xf]
        %v3629 = vld [vmem:[%s2 + $0x11c] sm:$0xf]
        %v3630 = vld [vmem:[%s2 + $0x120] sm:$0xf]
        %v3631 = vld [vmem:[%s2 + $0x124] sm:$0xf]
        %v3632 = vld [vmem:[%s2 + $0x128] sm:$0xf]
        %v3633 = vld [vmem:[%s2 + $0x12c] sm:$0xf]
        %v3634 = vld [vmem:[%s2 + $0x130] sm:$0xf]
        %v3635 = vld [vmem:[%s2 + $0x134] sm:$0xf]
        %v3636 = vld [vmem:[%s2 + $0x138] sm:$0xf]
        %v3637 = vld [vmem:[%s2 + $0x13c] sm:$0xf]
        %v3638 = vld [vmem:[%s2 + $0x140] sm:$0xf]
        %v3639 = vld [vmem:[%s2 + $0x144] sm:$0xf]
        %v3640 = vld [vmem:[%s2 + $0x148] sm:$0xf]
        %v3641 = vld [vmem:[%s2 + $0x14c] sm:$0xf]
        %v3642 = vld [vmem:[%s2 + $0x150] sm:$0xf]
        %v3643 = vld [vmem:[%s2 + $0x154] sm:$0xf]
        %v3644 = vld [vmem:[%s2 + $0x158] sm:$0xf]
        %v3645 = vld [vmem:[%s2 + $0x15c] sm:$0xf]
        %v3646 = vld [vmem:[%s2 + $0x160] sm:$0xf]
        %v3647 = vld [vmem:[%s2 + $0x164] sm:$0xf]
        %v3648 = vld [vmem:[%s2 + $0x168] sm:$0xf]
        %v3649 = vld [vmem:[%s2 + $0x16c] sm:$0xf]
        %v3650 = vld [vmem:[%s2 + $0x170] sm:$0xf]
        %v3651 = vld [vmem:[%s2 + $0x174] sm:$0xf]
        %v3652 = vld [vmem:[%s2 + $0x178] sm:$0xf]
        %v3653 = vld [vmem:[%s2 + $0x17c] sm:$0xf]
        %v3654 = vld [vmem:[%s2 + $0x180] sm:$0xf]
        %v3655 = vld [vmem:[%s2 + $0x184] sm:$0xf]
        %v3656 = vld [vmem:[%s2 + $0x188] sm:$0xf]
        %v3657 = vld [vmem:[%s2 + $0x18c] sm:$0xf]
        %v3658 = vld [vmem:[%s2 + $0x190] sm:$0xf]
        %v3659 = vld [vmem:[%s2 + $0x194] sm:$0xf]
        %v3660 = vld [vmem:[%s2 + $0x198] sm:$0xf]
        %v3661 = vld [vmem:[%s2 + $0x19c] sm:$0xf]
        %v3662 = vld [vmem:[%s2 + $0x1a0] sm:$0xf]
        %v3663 = vld [vmem:[%s2 + $0x1a4] sm:$0xf]
        %v3664 = vld [vmem:[%s2 + $0x1a8] sm:$0xf]
        %v3665 = vld [vmem:[%s2 + $0x1ac] sm:$0xf]
        %v3666 = vld [vmem:[%s2 + $0x1b0] sm:$0xf]
        %v3667 = vld [vmem:[%s2 + $0x1b4] sm:$0xf]
        %v3668 = vld [vmem:[%s2 + $0x1b8] sm:$0xf]
        %v3669 = vld [vmem:[%s2 + $0x1bc] sm:$0xf]
        %v3670 = vld [vmem:[%s2 + $0x1c0] sm:$0xf]
        %v3671 = vld [vmem:[%s2 + $0x1c4] sm:$0xf]
        %v3672 = vld [vmem:[%s2 + $0x1c8] sm:$0xf]
        %v3673 = vld [vmem:[%s2 + $0x1cc] sm:$0xf]
        %v3674 = vld [vmem:[%s2 + $0x1d0] sm:$0xf]
        %v3675 = vld [vmem:[%s2 + $0x1d4] sm:$0xf]
        %v3676 = vld [vmem:[%s2 + $0x1d8] sm:$0xf]
        %v3677 = vld [vmem:[%s2 + $0x1dc] sm:$0xf]
        %v3678 = vld [vmem:[%s2 + $0x1e0] sm:$0xf]
        %v3679 = vld [vmem:[%s2 + $0x1e4] sm:$0xf]
        %v3680 = vld [vmem:[%s2 + $0x1e8] sm:$0xf]
        %v3681 = vld [vmem:[%s2 + $0x1ec] sm:$0xf]
        %v3682 = vld [vmem:[%s2 + $0x1f0] sm:$0xf]
        %v3683 = vld [vmem:[%s2 + $0x1f4] sm:$0xf]
        %v3684 = vld [vmem:[%s2 + $0x1f8] sm:$0xf]
        %v3685 = vld [vmem:[%s2 + $0x1fc] sm:$0xf]
        %v3686 = vld [vmem:[%s2 + $0x200] sm:$0xf]
        %v3687 = vld [vmem:[%s2 + $0x204] sm:$0xf]
        %v3688 = vld [vmem:[%s2 + $0x208] sm:$0xf]
        %v3689 = vld [vmem:[%s2 + $0x20c] sm:$0xf]
        %v3690 = vld [vmem:[%s2 + $0x210] sm:$0xf]
        %v3691 = vld [vmem:[%s2 + $0x214] sm:$0xf]
        %v3692 = vld [vmem:[%s2 + $0x218] sm:$0xf]
        %v3693 = vld [vmem:[%s2 + $0x21c] sm:$0xf]
        %v3694 = vld [vmem:[%s2 + $0x220] sm:$0xf]
        %v3695 = vld [vmem:[%s2 + $0x224] sm:$0xf]
        %v3696 = vld [vmem:[%s2 + $0x228] sm:$0xf]
        %v3697 = vld [vmem:[%s2 + $0x22c] sm:$0xf]
        %v3698 = vld [vmem:[%s2 + $0x230] sm:$0xf]
        %v3699 = vld [vmem:[%s2 + $0x234] sm:$0xf]
        %v3700 = vld [vmem:[%s2 + $0x238] sm:$0xf]
        %v3701 = vld [vmem:[%s2 + $0x23c] sm:$0xf]
        %v3702 = vld [vmem:[%s3] sm:$0x1]
        %v3704 = vlaneseq
        %v3705 = vshrl.u32 %v3704, 7
        %v3706 = vsub.s32 0, %v3705
        %v3707 = vrot.slane %v3702, %v3706
        %v3853 = vunpack.c.l.b16 %v3558
        %v3854 = vunpack.c.l.b16 %v3559
        %v3855 = vunpack.c.l.b16 %v3560
        %v3856 = vunpack.c.l.b16 %v3561
        %v3857 = vunpack.c.l.b16 %v3562
        %v3858 = vunpack.c.l.b16 %v3563
        %v3859 = vunpack.c.l.b16 %v3564
        %v3860 = vunpack.c.l.b16 %v3565
        %v3861 = vunpack.c.l.b16 %v3566
        %v3862 = vunpack.c.l.b16 %v3567
        %v3863 = vunpack.c.l.b16 %v3568
        %v3864 = vunpack.c.l.b16 %v3569
        %v3865 = vunpack.c.l.b16 %v3570
        %v3866 = vunpack.c.l.b16 %v3571
        %v3867 = vunpack.c.l.b16 %v3572
        %v3868 = vunpack.c.l.b16 %v3573
        %v3869 = vunpack.c.l.b16 %v3574
        %v3870 = vunpack.c.l.b16 %v3575
        %v3871 = vunpack.c.l.b16 %v3576
        %v3872 = vunpack.c.l.b16 %v3577
        %v3873 = vunpack.c.l.b16 %v3578
        %v3874 = vunpack.c.l.b16 %v3579
        %v3875 = vunpack.c.l.b16 %v3580
        %v3876 = vunpack.c.l.b16 %v3581
        %v3877 = vunpack.c.l.b16 %v3582
        %v3878 = vunpack.c.l.b16 %v3583
        %v3879 = vunpack.c.l.b16 %v3584
        %v3880 = vunpack.c.l.b16 %v3585
        %v3881 = vunpack.c.l.b16 %v3586
        %v3882 = vunpack.c.l.b16 %v3587
        %v3883 = vunpack.c.l.b16 %v3588
        %v3884 = vunpack.c.l.b16 %v3589
        %v3885 = vunpack.c.l.b16 %v3590
        %v3886 = vunpack.c.l.b16 %v3591
        %v3887 = vunpack.c.l.b16 %v3592
        %v3888 = vunpack.c.l.b16 %v3593
        %v3889 = vunpack.c.l.b16 %v3594
        %v3890 = vunpack.c.l.b16 %v3595
        %v3891 = vunpack.c.l.b16 %v3596
        %v3892 = vunpack.c.l.b16 %v3597
        %v3893 = vunpack.c.l.b16 %v3598
        %v3894 = vunpack.c.l.b16 %v3599
        %v3895 = vunpack.c.l.b16 %v3600
        %v3896 = vunpack.c.l.b16 %v3601
        %v3897 = vunpack.c.l.b16 %v3602
        %v3898 = vunpack.c.l.b16 %v3603
        %v3899 = vunpack.c.l.b16 %v3604
        %v3900 = vunpack.c.l.b16 %v3605
        %v3901 = vunpack.c.l.b16 %v3606
        %v3902 = vunpack.c.l.b16 %v3607
        %v3903 = vunpack.c.l.b16 %v3608
        %v3904 = vunpack.c.l.b16 %v3609
        %v3905 = vunpack.c.l.b16 %v3610
        %v3906 = vunpack.c.l.b16 %v3611
        %v3907 = vunpack.c.l.b16 %v3612
        %v3908 = vunpack.c.l.b16 %v3613
        %v3909 = vunpack.c.l.b16 %v3614
        %v3910 = vunpack.c.l.b16 %v3615
        %v3911 = vunpack.c.l.b16 %v3616
        %v3912 = vunpack.c.l.b16 %v3617
        %v3913 = vunpack.c.l.b16 %v3618
        %v3914 = vunpack.c.l.b16 %v3619
        %v3915 = vunpack.c.l.b16 %v3620
        %v3916 = vunpack.c.l.b16 %v3621
        %v3917 = vunpack.c.l.b16 %v3622
        %v3918 = vunpack.c.l.b16 %v3623
        %v3919 = vunpack.c.l.b16 %v3624
        %v3920 = vunpack.c.l.b16 %v3625
        %v3921 = vunpack.c.l.b16 %v3626
        %v3922 = vunpack.c.l.b16 %v3627
        %v3923 = vunpack.c.l.b16 %v3628
        %v3924 = vunpack.c.l.b16 %v3629
        %v3925 = vunpack.c.l.b16 %v3630
        %v3926 = vunpack.c.l.b16 %v3631
        %v3927 = vunpack.c.l.b16 %v3632
        %v3928 = vunpack.c.l.b16 %v3633
        %v3929 = vunpack.c.l.b16 %v3634
        %v3930 = vunpack.c.l.b16 %v3635
        %v3931 = vunpack.c.l.b16 %v3636
        %v3932 = vunpack.c.l.b16 %v3637
        %v3933 = vunpack.c.l.b16 %v3638
        %v3934 = vunpack.c.l.b16 %v3639
        %v3935 = vunpack.c.l.b16 %v3640
        %v3936 = vunpack.c.l.b16 %v3641
        %v3937 = vunpack.c.l.b16 %v3642
        %v3938 = vunpack.c.l.b16 %v3643
        %v3939 = vunpack.c.l.b16 %v3644
        %v3940 = vunpack.c.l.b16 %v3645
        %v3941 = vunpack.c.l.b16 %v3646
        %v3942 = vunpack.c.l.b16 %v3647
        %v3943 = vunpack.c.l.b16 %v3648
        %v3944 = vunpack.c.l.b16 %v3649
        %v3945 = vunpack.c.l.b16 %v3650
        %v3946 = vunpack.c.l.b16 %v3651
        %v3947 = vunpack.c.l.b16 %v3652
        %v3948 = vunpack.c.l.b16 %v3653
        %v3949 = vunpack.c.l.b16 %v3654
        %v3950 = vunpack.c.l.b16 %v3655
        %v3951 = vunpack.c.l.b16 %v3656
        %v3952 = vunpack.c.l.b16 %v3657
        %v3953 = vunpack.c.l.b16 %v3658
        %v3954 = vunpack.c.l.b16 %v3659
        %v3955 = vunpack.c.l.b16 %v3660
        %v3956 = vunpack.c.l.b16 %v3661
        %v3957 = vunpack.c.l.b16 %v3662
        %v3958 = vunpack.c.l.b16 %v3663
        %v3959 = vunpack.c.l.b16 %v3664
        %v3960 = vunpack.c.l.b16 %v3665
        %v3961 = vunpack.c.l.b16 %v3666
        %v3962 = vunpack.c.l.b16 %v3667
        %v3963 = vunpack.c.l.b16 %v3668
        %v3964 = vunpack.c.l.b16 %v3669
        %v3965 = vunpack.c.l.b16 %v3670
        %v3966 = vunpack.c.l.b16 %v3671
        %v3967 = vunpack.c.l.b16 %v3672
        %v3968 = vunpack.c.l.b16 %v3673
        %v3969 = vunpack.c.l.b16 %v3674
        %v3970 = vunpack.c.l.b16 %v3675
        %v3971 = vunpack.c.l.b16 %v3676
        %v3972 = vunpack.c.l.b16 %v3677
        %v3973 = vunpack.c.l.b16 %v3678
        %v3974 = vunpack.c.l.b16 %v3679
        %v3975 = vunpack.c.l.b16 %v3680
        %v3976 = vunpack.c.l.b16 %v3681
        %v3977 = vunpack.c.l.b16 %v3682
        %v3978 = vunpack.c.l.b16 %v3683
        %v3979 = vunpack.c.l.b16 %v3684
        %v3980 = vunpack.c.l.b16 %v3685
        %v3981 = vunpack.c.l.b16 %v3686
        %v3982 = vunpack.c.l.b16 %v3687
        %v3983 = vunpack.c.l.b16 %v3688
        %v3984 = vunpack.c.l.b16 %v3689
        %v3985 = vunpack.c.l.b16 %v3690
        %v3986 = vunpack.c.l.b16 %v3691
        %v3987 = vunpack.c.l.b16 %v3692
        %v3988 = vunpack.c.l.b16 %v3693
        %v3989 = vunpack.c.l.b16 %v3694
        %v3990 = vunpack.c.l.b16 %v3695
        %v3991 = vunpack.c.l.b16 %v3696
        %v3992 = vunpack.c.l.b16 %v3697
        %v3993 = vunpack.c.l.b16 %v3698
        %v3994 = vunpack.c.l.b16 %v3699
        %v3995 = vunpack.c.l.b16 %v3700
        %v3996 = vunpack.c.l.b16 %v3701
        %v3997 = vpack.c.b16 %v3854, %v3853
        %v3998 = vpack.c.b16 %v3856, %v3855
        %v3999 = vpack.c.b16 %v3858, %v3857
        %v4000 = vpack.c.b16 %v3860, %v3859
        %v4001 = vpack.c.b16 %v3862, %v3861
        %v4002 = vpack.c.b16 %v3864, %v3863
        %v4003 = vpack.c.b16 %v3866, %v3865
        %v4004 = vpack.c.b16 %v3868, %v3867
        %v4005 = vpack.c.b16 %v3870, %v3869
        %v4006 = vpack.c.b16 %v3872, %v3871
        %v4007 = vpack.c.b16 %v3874, %v3873
        %v4008 = vpack.c.b16 %v3876, %v3875
        %v4009 = vpack.c.b16 %v3878, %v3877
        %v4010 = vpack.c.b16 %v3880, %v3879
        %v4011 = vpack.c.b16 %v3882, %v3881
        %v4012 = vpack.c.b16 %v3884, %v3883
        %v4013 = vpack.c.b16 %v3886, %v3885
        %v4014 = vpack.c.b16 %v3888, %v3887
        %v4015 = vpack.c.b16 %v3890, %v3889
        %v4016 = vpack.c.b16 %v3892, %v3891
        %v4017 = vpack.c.b16 %v3894, %v3893
        %v4018 = vpack.c.b16 %v3896, %v3895
        %v4019 = vpack.c.b16 %v3898, %v3897
        %v4020 = vpack.c.b16 %v3900, %v3899
        %v4021 = vpack.c.b16 %v3902, %v3901
        %v4022 = vpack.c.b16 %v3904, %v3903
        %v4023 = vpack.c.b16 %v3906, %v3905
        %v4024 = vpack.c.b16 %v3908, %v3907
        %v4025 = vpack.c.b16 %v3910, %v3909
        %v4026 = vpack.c.b16 %v3912, %v3911
        %v4027 = vpack.c.b16 %v3914, %v3913
        %v4028 = vpack.c.b16 %v3916, %v3915
        %v4029 = vpack.c.b16 %v3918, %v3917
        %v4030 = vpack.c.b16 %v3920, %v3919
        %v4031 = vpack.c.b16 %v3922, %v3921
        %v4032 = vpack.c.b16 %v3924, %v3923
        %v4033 = vpack.c.b16 %v3926, %v3925
        %v4034 = vpack.c.b16 %v3928, %v3927
        %v4035 = vpack.c.b16 %v3930, %v3929
        %v4036 = vpack.c.b16 %v3932, %v3931
        %v4037 = vpack.c.b16 %v3934, %v3933
        %v4038 = vpack.c.b16 %v3936, %v3935
        %v4039 = vpack.c.b16 %v3938, %v3937
        %v4040 = vpack.c.b16 %v3940, %v3939
        %v4041 = vpack.c.b16 %v3942, %v3941
        %v4042 = vpack.c.b16 %v3944, %v3943
        %v4043 = vpack.c.b16 %v3946, %v3945
        %v4044 = vpack.c.b16 %v3948, %v3947
        %v4045 = vpack.c.b16 %v3950, %v3949
        %v4046 = vpack.c.b16 %v3952, %v3951
        %v4047 = vpack.c.b16 %v3954, %v3953
        %v4048 = vpack.c.b16 %v3956, %v3955
        %v4049 = vpack.c.b16 %v3958, %v3957
        %v4050 = vpack.c.b16 %v3960, %v3959
        %v4051 = vpack.c.b16 %v3962, %v3961
        %v4052 = vpack.c.b16 %v3964, %v3963
        %v4053 = vpack.c.b16 %v3966, %v3965
        %v4054 = vpack.c.b16 %v3968, %v3967
        %v4055 = vpack.c.b16 %v3970, %v3969
        %v4056 = vpack.c.b16 %v3972, %v3971
        %v4057 = vpack.c.b16 %v3974, %v3973
        %v4058 = vpack.c.b16 %v3976, %v3975
        %v4059 = vpack.c.b16 %v3978, %v3977
        %v4060 = vpack.c.b16 %v3980, %v3979
        %v4061 = vpack.c.b16 %v3982, %v3981
        %v4062 = vpack.c.b16 %v3984, %v3983
        %v4063 = vpack.c.b16 %v3986, %v3985
        %v4064 = vpack.c.b16 %v3988, %v3987
        %v4065 = vpack.c.b16 %v3990, %v3989
        %v4066 = vpack.c.b16 %v3992, %v3991
        %v4067 = vpack.c.b16 %v3994, %v3993
        %v4068 = vpack.c.b16 %v3996, %v3995
        %4141 = vmatprep.subr.bf16.mxu0 0
        %4142 = vmatpush1.bf16.msra.mxu0 %v4004
        %4143 = vmatprep.subr.bf16.mxu0 0
        %4144 = vmatpush1.bf16.msra.mxu0 %v4003
        %4145 = vmatprep.subr.bf16.mxu0 0
        %4146 = vmatpush1.bf16.msra.mxu0 %v4002
        %4147 = vmatprep.subr.bf16.mxu0 0
        %4148 = vmatpush1.bf16.msra.mxu0 %v4001
        %4149 = vmatprep.subr.bf16.mxu0 0
        %4150 = vmatpush1.bf16.msra.mxu0 %v4000
        %4151 = vmatprep.subr.bf16.mxu0 0
        %4152 = vmatpush1.bf16.msra.mxu0 %v3999
        %4153 = vmatprep.subr.bf16.mxu0 0
        %4154 = vmatpush1.bf16.msra.mxu0 %v3998
        %4155 = vmatprep.subr.bf16.mxu0 0
        %4156 = vmatpush1.bf16.msra.mxu0 %v3997
        %4157 = vmatprep.subr.bf16.mxu0 0
        %4158 = vmatpush2.bf16.msra.mxu0 %v4012
        %4159 = vmatprep.subr.bf16.mxu0 0
        %4160 = vmatpush2.bf16.msra.mxu0 %v4011
        %4161 = vmatprep.subr.bf16.mxu0 0
        %4162 = vmatpush2.bf16.msra.mxu0 %v4010
        %4163 = vmatprep.subr.bf16.mxu0 0
        %4164 = vmatpush2.bf16.msra.mxu0 %v4009
        %4165 = vmatprep.subr.bf16.mxu0 0
        %4166 = vmatpush2.bf16.msra.mxu0 %v4008
        %4167 = vmatprep.subr.bf16.mxu0 0
        %4168 = vmatpush2.bf16.msra.mxu0 %v4007
        %4169 = vmatprep.subr.bf16.mxu0 0
        %4170 = vmatpush2.bf16.msra.mxu0 %v4006
        %4171 = vmatprep.subr.bf16.mxu0 0
        %4172 = vmatpush2.bf16.msra.mxu0 %v4005
        %4173 = vmatprep.mubr.bf16.mxu0 %v1951
        %4174 = vmatmul.mubr.bf16.gmra.mxu0 %v1237
        %v4175 = vpop.f32.mrf.mxu0
        %v4176 = vadd.f32 %v3707, %v4175
        %v4177 = vpop.f32.mrf.mxu0
        %v4178 = vpop.f32.mrf.mxu0
        %v4179 = vadd.f32 %v3707, %v4178
        %v4180 = vpop.f32.mrf.mxu0
        %4181 = vmatprep.mubr.bf16.mxu0 %v1952
        %4182 = vmatmul.mubr.bf16.gmra.mxu0 %v1238
        %v4183 = vpop.f32.mrf.mxu0
        %v4184 = vadd.f32 %v3707, %v4183
        %v4185 = vpop.f32.mrf.mxu0
        %v4186 = vpop.f32.mrf.mxu0
        %v4187 = vadd.f32 %v3707, %v4186
        %v4188 = vpop.f32.mrf.mxu0
        %4189 = vmatprep.mubr.bf16.mxu0 %v1953
        %4190 = vmatmul.mubr.bf16.gmra.mxu0 %v1239
        %v4191 = vpop.f32.mrf.mxu0
        %v4192 = vadd.f32 %v3707, %v4191
        %v4193 = vpop.f32.mrf.mxu0
        %v4194 = vpop.f32.mrf.mxu0
        %v4195 = vadd.f32 %v3707, %v4194
        %v4196 = vpop.f32.mrf.mxu0
        %4197 = vmatprep.mubr.bf16.mxu0 %v1954
        %4198 = vmatmul.mubr.bf16.gmra.mxu0 %v1240
        %v4199 = vpop.f32.mrf.mxu0
        %v4200 = vadd.f32 %v3707, %v4199
        %v4201 = vpop.f32.mrf.mxu0
        %v4202 = vpop.f32.mrf.mxu0
        %v4203 = vadd.f32 %v3707, %v4202
        %v4204 = vpop.f32.mrf.mxu0
        %4205 = vmatprep.mubr.bf16.mxu0 %v1955
        %4206 = vmatmul.mubr.bf16.gmra.mxu0 %v1241
        %v4207 = vpop.f32.mrf.mxu0
        %v4208 = vadd.f32 %v3707, %v4207
        %v4209 = vpop.f32.mrf.mxu0
        %v4210 = vpop.f32.mrf.mxu0
        %v4211 = vadd.f32 %v3707, %v4210
        %v4212 = vpop.f32.mrf.mxu0
        %4213 = vmatprep.mubr.bf16.mxu0 %v1956
        %4214 = vmatmul.mubr.bf16.gmra.mxu0 %v1242
        %v4215 = vpop.f32.mrf.mxu0
        %v4216 = vadd.f32 %v3707, %v4215
        %v4217 = vpop.f32.mrf.mxu0
        %v4218 = vpop.f32.mrf.mxu0
        %v4219 = vadd.f32 %v3707, %v4218
        %v4220 = vpop.f32.mrf.mxu0
        %4221 = vmatprep.mubr.bf16.mxu0 %v1957
        %4222 = vmatmul.mubr.bf16.gmra.mxu0 %v1243
        %v4223 = vpop.f32.mrf.mxu0
        %v4224 = vadd.f32 %v3707, %v4223
        %v4225 = vpop.f32.mrf.mxu0
        %v4226 = vpop.f32.mrf.mxu0
        %v4227 = vadd.f32 %v3707, %v4226
        %v4228 = vpop.f32.mrf.mxu0
        %4229 = vmatprep.mubr.bf16.mxu0 %v1958
        %4230 = vmatmul.mubr.bf16.gmra.mxu0 %v1244
        %v4231 = vpop.f32.mrf.mxu0
        %v4232 = vadd.f32 %v3707, %v4231
        %v4233 = vpop.f32.mrf.mxu0
        %v4234 = vpop.f32.mrf.mxu0
        %v4235 = vadd.f32 %v3707, %v4234
        %v4236 = vpop.f32.mrf.mxu0
        %4237 = vmatprep.mubr.bf16.mxu0 %v1959
        %4238 = vmatmul.mubr.bf16.gmra.mxu0 %v1245
        %v4239 = vpop.f32.mrf.mxu0
        %v4240 = vadd.f32 %v3707, %v4239
        %v4241 = vpop.f32.mrf.mxu0
        %v4242 = vpop.f32.mrf.mxu0
        %v4243 = vadd.f32 %v3707, %v4242
        %v4244 = vpop.f32.mrf.mxu0
        %4245 = vmatprep.mubr.bf16.mxu0 %v1960
        %4246 = vmatmul.mubr.bf16.gmra.mxu0 %v1246
        %v4247 = vpop.f32.mrf.mxu0
        %v4248 = vadd.f32 %v3707, %v4247
        %v4249 = vpop.f32.mrf.mxu0
        %v4250 = vpop.f32.mrf.mxu0
        %v4251 = vadd.f32 %v3707, %v4250
        %v4252 = vpop.f32.mrf.mxu0
        %4253 = vmatprep.mubr.bf16.mxu0 %v1961
        %4254 = vmatmul.mubr.bf16.gmra.mxu0 %v1247
        %v4255 = vpop.f32.mrf.mxu0
        %v4256 = vadd.f32 %v3707, %v4255
        %v4257 = vpop.f32.mrf.mxu0
        %v4258 = vpop.f32.mrf.mxu0
        %v4259 = vadd.f32 %v3707, %v4258
        %v4260 = vpop.f32.mrf.mxu0
        %4261 = vmatprep.mubr.bf16.mxu0 %v1962
        %4262 = vmatmul.mubr.bf16.gmra.mxu0 %v1248
        %v4263 = vpop.f32.mrf.mxu0
        %v4264 = vadd.f32 %v3707, %v4263
        %v4265 = vpop.f32.mrf.mxu0
        %v4266 = vpop.f32.mrf.mxu0
        %v4267 = vpop.f32.mrf.mxu0
        %4268 = vdwg.mxu0
        %4269 = vmatprep.subr.bf16.mxu0 0
        %4270 = vmatpush1.bf16.msra.mxu0 %v4020
        %4271 = vmatprep.subr.bf16.mxu0 0
        %4272 = vmatpush1.bf16.msra.mxu0 %v4019
        %4273 = vmatprep.subr.bf16.mxu0 0
        %4274 = vmatpush1.bf16.msra.mxu0 %v4018
        %4275 = vmatprep.subr.bf16.mxu0 0
        %4276 = vmatpush1.bf16.msra.mxu0 %v4017
        %4277 = vmatprep.subr.bf16.mxu0 0
        %4278 = vmatpush1.bf16.msra.mxu0 %v4016
        %4279 = vmatprep.subr.bf16.mxu0 0
        %4280 = vmatpush1.bf16.msra.mxu0 %v4015
        %4281 = vmatprep.subr.bf16.mxu0 0
        %4282 = vmatpush1.bf16.msra.mxu0 %v4014
        %4283 = vmatprep.subr.bf16.mxu0 0
        %4284 = vmatpush1.bf16.msra.mxu0 %v4013
        %4285 = vmatprep.subr.bf16.mxu0 0
        %4286 = vmatpush2.bf16.msra.mxu0 %v4028
        %4287 = vmatprep.subr.bf16.mxu0 0
        %4288 = vmatpush2.bf16.msra.mxu0 %v4027
        %4289 = vmatprep.subr.bf16.mxu0 0
        %4290 = vmatpush2.bf16.msra.mxu0 %v4026
        %4291 = vmatprep.subr.bf16.mxu0 0
        %4292 = vmatpush2.bf16.msra.mxu0 %v4025
        %4293 = vmatprep.subr.bf16.mxu0 0
        %4294 = vmatpush2.bf16.msra.mxu0 %v4024
        %4295 = vmatprep.subr.bf16.mxu0 0
        %4296 = vmatpush2.bf16.msra.mxu0 %v4023
        %4297 = vmatprep.subr.bf16.mxu0 0
        %4298 = vmatpush2.bf16.msra.mxu0 %v4022
        %4299 = vmatprep.subr.bf16.mxu0 0
        %4300 = vmatpush2.bf16.msra.mxu0 %v4021
        %4301 = vmatprep.mubr.bf16.mxu0 %v2559
        %4302 = vmatmul.mubr.bf16.gmra.mxu0 %v2368
        %v4303 = vpop.f32.mrf.mxu0
        %v4304 = vadd.f32 %v4176, %v4303
        %v4305 = vpop.f32.mrf.mxu0
        %v4306 = vpop.f32.mrf.mxu0
        %v4307 = vadd.f32 %v4179, %v4306
        %v4308 = vpop.f32.mrf.mxu0
        %4309 = vmatprep.mubr.bf16.mxu0 %v2560
        %4310 = vmatmul.mubr.bf16.gmra.mxu0 %v2369
        %v4311 = vpop.f32.mrf.mxu0
        %v4312 = vadd.f32 %v4184, %v4311
        %v4313 = vpop.f32.mrf.mxu0
        %v4314 = vpop.f32.mrf.mxu0
        %v4315 = vadd.f32 %v4187, %v4314
        %v4316 = vpop.f32.mrf.mxu0
        %4317 = vmatprep.mubr.bf16.mxu0 %v2561
        %4318 = vmatmul.mubr.bf16.gmra.mxu0 %v2370
        %v4319 = vpop.f32.mrf.mxu0
        %v4320 = vadd.f32 %v4192, %v4319
        %v4321 = vpop.f32.mrf.mxu0
        %v4322 = vpop.f32.mrf.mxu0
        %v4323 = vadd.f32 %v4195, %v4322
        %v4324 = vpop.f32.mrf.mxu0
        %4325 = vmatprep.mubr.bf16.mxu0 %v2562
        %4326 = vmatmul.mubr.bf16.gmra.mxu0 %v2371
        %v4327 = vpop.f32.mrf.mxu0
        %v4328 = vadd.f32 %v4200, %v4327
        %v4329 = vpop.f32.mrf.mxu0
        %v4330 = vpop.f32.mrf.mxu0
        %v4331 = vadd.f32 %v4203, %v4330
        %v4332 = vpop.f32.mrf.mxu0
        %4333 = vmatprep.mubr.bf16.mxu0 %v2563
        %4334 = vmatmul.mubr.bf16.gmra.mxu0 %v2372
        %v4335 = vpop.f32.mrf.mxu0
        %v4336 = vadd.f32 %v4208, %v4335
        %v4337 = vpop.f32.mrf.mxu0
        %v4338 = vpop.f32.mrf.mxu0
        %v4339 = vadd.f32 %v4211, %v4338
        %v4340 = vpop.f32.mrf.mxu0
        %4341 = vmatprep.mubr.bf16.mxu0 %v2564
        %4342 = vmatmul.mubr.bf16.gmra.mxu0 %v2373
        %v4343 = vpop.f32.mrf.mxu0
        %v4344 = vadd.f32 %v4216, %v4343
        %v4345 = vpop.f32.mrf.mxu0
        %v4346 = vpop.f32.mrf.mxu0
        %v4347 = vadd.f32 %v4219, %v4346
        %v4348 = vpop.f32.mrf.mxu0
        %4349 = vmatprep.mubr.bf16.mxu0 %v2565
        %4350 = vmatmul.mubr.bf16.gmra.mxu0 %v2374
        %v4351 = vpop.f32.mrf.mxu0
        %v4352 = vadd.f32 %v4224, %v4351
        %v4353 = vpop.f32.mrf.mxu0
        %v4354 = vpop.f32.mrf.mxu0
        %v4355 = vadd.f32 %v4227, %v4354
        %v4356 = vpop.f32.mrf.mxu0
        %4357 = vmatprep.mubr.bf16.mxu0 %v2566
        %4358 = vmatmul.mubr.bf16.gmra.mxu0 %v2375
        %v4359 = vpop.f32.mrf.mxu0
        %v4360 = vadd.f32 %v4232, %v4359
        %v4361 = vpop.f32.mrf.mxu0
        %v4362 = vpop.f32.mrf.mxu0
        %v4363 = vadd.f32 %v4235, %v4362
        %v4364 = vpop.f32.mrf.mxu0
        %4365 = vmatprep.mubr.bf16.mxu0 %v2377
        %4366 = vmatmul.mubr.bf16.gmra.mxu0 %v2376
        %v4367 = vpop.f32.mrf.mxu0
        %v4368 = vadd.f32 %v4240, %v4367
        %v4369 = vpop.f32.mrf.mxu0
        %v4370 = vpop.f32.mrf.mxu0
        %v4371 = vadd.f32 %v4243, %v4370
        %v4372 = vpop.f32.mrf.mxu0
        %4373 = vmatprep.mubr.bf16.mxu0 %v2567
        %4374 = vmatmul.mubr.bf16.gmra.mxu0 %v2377
        %v4375 = vpop.f32.mrf.mxu0
        %v4376 = vadd.f32 %v4248, %v4375
        %v4377 = vpop.f32.mrf.mxu0
        %v4378 = vpop.f32.mrf.mxu0
        %v4379 = vadd.f32 %v4251, %v4378
        %v4380 = vpop.f32.mrf.mxu0
        %4381 = vmatprep.mubr.bf16.mxu0 %v2568
        %4382 = vmatmul.mubr.bf16.gmra.mxu0 %v2378
        %v4383 = vpop.f32.mrf.mxu0
        %v4384 = vadd.f32 %v4256, %v4383
        %v4385 = vpop.f32.mrf.mxu0
        %v4386 = vpop.f32.mrf.mxu0
        %v4387 = vadd.f32 %v4259, %v4386
        %v4388 = vpop.f32.mrf.mxu0
        %4389 = vmatprep.mubr.bf16.mxu0 %v2569
        %4390 = vmatmul.mubr.bf16.gmra.mxu0 %v2379
        %v4391 = vpop.f32.mrf.mxu0
        %v4392 = vadd.f32 %v4264, %v4391
        %v4393 = vpop.f32.mrf.mxu0
        %v4394 = vpop.f32.mrf.mxu0
        %v4395 = vpop.f32.mrf.mxu0
        %4396 = vdwg.mxu0
        %4397 = vmatprep.subr.bf16.mxu0 0
        %4398 = vmatpush1.bf16.msra.mxu0 %v4036
        %4399 = vmatprep.subr.bf16.mxu0 0
        %4400 = vmatpush1.bf16.msra.mxu0 %v4035
        %4401 = vmatprep.subr.bf16.mxu0 0
        %4402 = vmatpush1.bf16.msra.mxu0 %v4034
        %4403 = vmatprep.subr.bf16.mxu0 0
        %4404 = vmatpush1.bf16.msra.mxu0 %v4033
        %4405 = vmatprep.subr.bf16.mxu0 0
        %4406 = vmatpush1.bf16.msra.mxu0 %v4032
        %4407 = vmatprep.subr.bf16.mxu0 0
        %4408 = vmatpush1.bf16.msra.mxu0 %v4031
        %4409 = vmatprep.subr.bf16.mxu0 0
        %4410 = vmatpush1.bf16.msra.mxu0 %v4030
        %4411 = vmatprep.subr.bf16.mxu0 0
        %4412 = vmatpush1.bf16.msra.mxu0 %v4029
        %4413 = vmatprep.subr.bf16.mxu0 0
        %4414 = vmatpush2.bf16.msra.mxu0 %v4044
        %4415 = vmatprep.subr.bf16.mxu0 0
        %4416 = vmatpush2.bf16.msra.mxu0 %v4043
        %4417 = vmatprep.subr.bf16.mxu0 0
        %4418 = vmatpush2.bf16.msra.mxu0 %v4042
        %4419 = vmatprep.subr.bf16.mxu0 0
        %4420 = vmatpush2.bf16.msra.mxu0 %v4041
        %4421 = vmatprep.subr.bf16.mxu0 0
        %4422 = vmatpush2.bf16.msra.mxu0 %v4040
        %4423 = vmatprep.subr.bf16.mxu0 0
        %4424 = vmatpush2.bf16.msra.mxu0 %v4039
        %4425 = vmatprep.subr.bf16.mxu0 0
        %4426 = vmatpush2.bf16.msra.mxu0 %v4038
        %4427 = vmatprep.subr.bf16.mxu0 0
        %4428 = vmatpush2.bf16.msra.mxu0 %v4037
        %4429 = vmatprep.mubr.bf16.mxu0 %v3165
        %4430 = vmatmul.mubr.bf16.gmra.mxu0 %v3004
        %v4431 = vpop.f32.mrf.mxu0
        %v4432 = vadd.f32 %v4304, %v4431
        %v4433 = vpop.f32.mrf.mxu0
        %v4434 = vpop.f32.mrf.mxu0
        %v4435 = vadd.f32 %v4307, %v4434
        %v4436 = vpop.f32.mrf.mxu0
        %4437 = vmatprep.mubr.bf16.mxu0 %v3166
        %4438 = vmatmul.mubr.bf16.gmra.mxu0 %v3005
        %v4439 = vpop.f32.mrf.mxu0
        %v4440 = vadd.f32 %v4312, %v4439
        %v4441 = vpop.f32.mrf.mxu0
        %v4442 = vpop.f32.mrf.mxu0
        %v4443 = vadd.f32 %v4315, %v4442
        %v4444 = vpop.f32.mrf.mxu0
        %4445 = vmatprep.mubr.bf16.mxu0 %v3167
        %4446 = vmatmul.mubr.bf16.gmra.mxu0 %v3006
        %v4447 = vpop.f32.mrf.mxu0
        %v4448 = vadd.f32 %v4320, %v4447
        %v4449 = vpop.f32.mrf.mxu0
        %v4450 = vpop.f32.mrf.mxu0
        %v4451 = vadd.f32 %v4323, %v4450
        %v4452 = vpop.f32.mrf.mxu0
        %4453 = vmatprep.mubr.bf16.mxu0 %v3168
        %4454 = vmatmul.mubr.bf16.gmra.mxu0 %v3007
        %v4455 = vpop.f32.mrf.mxu0
        %v4456 = vadd.f32 %v4328, %v4455
        %v4457 = vpop.f32.mrf.mxu0
        %v4458 = vpop.f32.mrf.mxu0
        %v4459 = vadd.f32 %v4331, %v4458
        %v4460 = vpop.f32.mrf.mxu0
        %4461 = vmatprep.mubr.bf16.mxu0 %v3169
        %4462 = vmatmul.mubr.bf16.gmra.mxu0 %v3008
        %v4463 = vpop.f32.mrf.mxu0
        %v4464 = vadd.f32 %v4336, %v4463
        %v4465 = vpop.f32.mrf.mxu0
        %v4466 = vpop.f32.mrf.mxu0
        %v4467 = vadd.f32 %v4339, %v4466
        %v4468 = vpop.f32.mrf.mxu0
        %4469 = vmatprep.mubr.bf16.mxu0 %v3170
        %4470 = vmatmul.mubr.bf16.gmra.mxu0 %v3009
        %v4471 = vpop.f32.mrf.mxu0
        %v4472 = vadd.f32 %v4344, %v4471
        %v4473 = vpop.f32.mrf.mxu0
        %v4474 = vpop.f32.mrf.mxu0
        %v4475 = vadd.f32 %v4347, %v4474
        %v4476 = vpop.f32.mrf.mxu0
        %4477 = vmatprep.mubr.bf16.mxu0 %v3171
        %4478 = vmatmul.mubr.bf16.gmra.mxu0 %v3010
        %v4479 = vpop.f32.mrf.mxu0
        %v4480 = vadd.f32 %v4352, %v4479
        %v4481 = vpop.f32.mrf.mxu0
        %v4482 = vpop.f32.mrf.mxu0
        %v4483 = vadd.f32 %v4355, %v4482
        %v4484 = vpop.f32.mrf.mxu0
        %4485 = vmatprep.mubr.bf16.mxu0 %v3172
        %4486 = vmatmul.mubr.bf16.gmra.mxu0 %v3011
        %v4487 = vpop.f32.mrf.mxu0
        %v4488 = vadd.f32 %v4360, %v4487
        %v4489 = vpop.f32.mrf.mxu0
        %v4490 = vpop.f32.mrf.mxu0
        %v4491 = vadd.f32 %v4363, %v4490
        %v4492 = vpop.f32.mrf.mxu0
        %4493 = vmatprep.mubr.bf16.mxu0 %v3173
        %4494 = vmatmul.mubr.bf16.gmra.mxu0 %v3012
        %v4495 = vpop.f32.mrf.mxu0
        %v4496 = vadd.f32 %v4368, %v4495
        %v4497 = vpop.f32.mrf.mxu0
        %v4498 = vpop.f32.mrf.mxu0
        %v4499 = vadd.f32 %v4371, %v4498
        %v4500 = vpop.f32.mrf.mxu0
        %4501 = vmatprep.mubr.bf16.mxu0 %v3174
        %4502 = vmatmul.mubr.bf16.gmra.mxu0 %v3013
        %v4503 = vpop.f32.mrf.mxu0
        %v4504 = vadd.f32 %v4376, %v4503
        %v4505 = vpop.f32.mrf.mxu0
        %v4506 = vpop.f32.mrf.mxu0
        %v4507 = vadd.f32 %v4379, %v4506
        %v4508 = vpop.f32.mrf.mxu0
        %4509 = vmatprep.mubr.bf16.mxu0 %v3175
        %4510 = vmatmul.mubr.bf16.gmra.mxu0 %v3014
        %v4511 = vpop.f32.mrf.mxu0
        %v4512 = vadd.f32 %v4384, %v4511
        %v4513 = vpop.f32.mrf.mxu0
        %v4514 = vpop.f32.mrf.mxu0
        %v4515 = vadd.f32 %v4387, %v4514
        %v4516 = vpop.f32.mrf.mxu0
        %4517 = vmatprep.mubr.bf16.mxu0 %v3176
        %4518 = vmatmul.mubr.bf16.gmra.mxu0 %v3015
        %v4519 = vpop.f32.mrf.mxu0
        %v4520 = vadd.f32 %v4392, %v4519
        %v4521 = vpop.f32.mrf.mxu0
        %v4522 = vpop.f32.mrf.mxu0
        %v4523 = vpop.f32.mrf.mxu0
        %4524 = vdwg.mxu0
        %4525 = vmatprep.subr.bf16.mxu0 0
        %4526 = vmatpush1.bf16.msra.mxu0 %v4052
        %4527 = vmatprep.subr.bf16.mxu0 0
        %4528 = vmatpush1.bf16.msra.mxu0 %v4051
        %4529 = vmatprep.subr.bf16.mxu0 0
        %4530 = vmatpush1.bf16.msra.mxu0 %v4050
        %4531 = vmatprep.subr.bf16.mxu0 0
        %4532 = vmatpush1.bf16.msra.mxu0 %v4049
        %4533 = vmatprep.subr.bf16.mxu0 0
        %4534 = vmatpush1.bf16.msra.mxu0 %v4048
        %4535 = vmatprep.subr.bf16.mxu0 0
        %4536 = vmatpush1.bf16.msra.mxu0 %v4047
        %4537 = vmatprep.subr.bf16.mxu0 0
        %4538 = vmatpush1.bf16.msra.mxu0 %v4046
        %4539 = vmatprep.subr.bf16.mxu0 0
        %4540 = vmatpush1.bf16.msra.mxu0 %v4045
        %4541 = vmatprep.subr.bf16.mxu0 0
        %4542 = vmatpush2.bf16.msra.mxu0 %v4060
        %4543 = vmatprep.subr.bf16.mxu0 0
        %4544 = vmatpush2.bf16.msra.mxu0 %v4059
        %4545 = vmatprep.subr.bf16.mxu0 0
        %4546 = vmatpush2.bf16.msra.mxu0 %v4058
        %4547 = vmatprep.subr.bf16.mxu0 0
        %4548 = vmatpush2.bf16.msra.mxu0 %v4057
        %4549 = vmatprep.subr.bf16.mxu0 0
        %4550 = vmatpush2.bf16.msra.mxu0 %v4056
        %4551 = vmatprep.subr.bf16.mxu0 0
        %4552 = vmatpush2.bf16.msra.mxu0 %v4055
        %4553 = vmatprep.subr.bf16.mxu0 0
        %4554 = vmatpush2.bf16.msra.mxu0 %v4054
        %4555 = vmatprep.subr.bf16.mxu0 0
        %4556 = vmatpush2.bf16.msra.mxu0 %v4053
        %4557 = vmatprep.mubr.bf16.mxu0 %v3449
        %4558 = vmatmul.mubr.bf16.gmra.mxu0 %v3292
        %v4559 = vpop.f32.mrf.mxu0
        %v4560 = vadd.f32 %v4432, %v4559
        %v4561 = vpop.f32.mrf.mxu0
        %v4562 = vpop.f32.mrf.mxu0
        %v4563 = vadd.f32 %v4435, %v4562
        %v4564 = vpop.f32.mrf.mxu0
        %4565 = vmatprep.mubr.bf16.mxu0 %v3450
        %4566 = vmatmul.mubr.bf16.gmra.mxu0 %v3293
        %v4567 = vpop.f32.mrf.mxu0
        %v4568 = vadd.f32 %v4440, %v4567
        %v4569 = vpop.f32.mrf.mxu0
        %v4570 = vpop.f32.mrf.mxu0
        %v4571 = vadd.f32 %v4443, %v4570
        %v4572 = vpop.f32.mrf.mxu0
        %4573 = vmatprep.mubr.bf16.mxu0 %v3451
        %4574 = vmatmul.mubr.bf16.gmra.mxu0 %v3294
        %v4575 = vpop.f32.mrf.mxu0
        %v4576 = vadd.f32 %v4448, %v4575
        %v4577 = vpop.f32.mrf.mxu0
        %v4578 = vpop.f32.mrf.mxu0
        %v4579 = vadd.f32 %v4451, %v4578
        %v4580 = vpop.f32.mrf.mxu0
        %4581 = vmatprep.mubr.bf16.mxu0 %v3452
        %4582 = vmatmul.mubr.bf16.gmra.mxu0 %v3295
        %v4583 = vpop.f32.mrf.mxu0
        %v4584 = vadd.f32 %v4456, %v4583
        %v4585 = vpop.f32.mrf.mxu0
        %v4586 = vpop.f32.mrf.mxu0
        %v4587 = vadd.f32 %v4459, %v4586
        %v4588 = vpop.f32.mrf.mxu0
        %4589 = vmatprep.mubr.bf16.mxu0 %v3453
        %4590 = vmatmul.mubr.bf16.gmra.mxu0 %v3296
        %v4591 = vpop.f32.mrf.mxu0
        %v4592 = vadd.f32 %v4464, %v4591
        %v4593 = vpop.f32.mrf.mxu0
        %v4594 = vpop.f32.mrf.mxu0
        %v4595 = vadd.f32 %v4467, %v4594
        %v4596 = vpop.f32.mrf.mxu0
        %4597 = vmatprep.mubr.bf16.mxu0 %v3454
        %4598 = vmatmul.mubr.bf16.gmra.mxu0 %v3297
        %v4599 = vpop.f32.mrf.mxu0
        %v4600 = vadd.f32 %v4472, %v4599
        %v4601 = vpop.f32.mrf.mxu0
        %v4602 = vpop.f32.mrf.mxu0
        %v4603 = vadd.f32 %v4475, %v4602
        %v4604 = vpop.f32.mrf.mxu0
        %4605 = vmatprep.mubr.bf16.mxu0 %v3455
        %4606 = vmatmul.mubr.bf16.gmra.mxu0 %v3298
        %v4607 = vpop.f32.mrf.mxu0
        %v4608 = vadd.f32 %v4480, %v4607
        %v4609 = vpop.f32.mrf.mxu0
        %v4610 = vpop.f32.mrf.mxu0
        %v4611 = vadd.f32 %v4483, %v4610
        %v4612 = vpop.f32.mrf.mxu0
        %4613 = vmatprep.mubr.bf16.mxu0 %v3456
        %4614 = vmatmul.mubr.bf16.gmra.mxu0 %v3299
        %v4615 = vpop.f32.mrf.mxu0
        %v4616 = vadd.f32 %v4488, %v4615
        %v4617 = vpop.f32.mrf.mxu0
        %v4618 = vpop.f32.mrf.mxu0
        %v4619 = vadd.f32 %v4491, %v4618
        %v4620 = vpop.f32.mrf.mxu0
        %4621 = vmatprep.mubr.bf16.mxu0 %v3457
        %4622 = vmatmul.mubr.bf16.gmra.mxu0 %v3174
        %v4623 = vpop.f32.mrf.mxu0
        %v4624 = vadd.f32 %v4496, %v4623
        %v4625 = vpop.f32.mrf.mxu0
        %v4626 = vpop.f32.mrf.mxu0
        %v4627 = vadd.f32 %v4499, %v4626
        %v4628 = vpop.f32.mrf.mxu0
        %4629 = vmatprep.mubr.bf16.mxu0 %v3458
        %4630 = vmatmul.mubr.bf16.gmra.mxu0 %v3300
        %v4631 = vpop.f32.mrf.mxu0
        %v4632 = vadd.f32 %v4504, %v4631
        %v4633 = vpop.f32.mrf.mxu0
        %v4634 = vpop.f32.mrf.mxu0
        %v4635 = vadd.f32 %v4507, %v4634
        %v4636 = vpop.f32.mrf.mxu0
        %4637 = vmatprep.mubr.bf16.mxu0 %v3459
        %4638 = vmatmul.mubr.bf16.gmra.mxu0 %v3301
        %v4639 = vpop.f32.mrf.mxu0
        %v4640 = vadd.f32 %v4512, %v4639
        %v4641 = vpop.f32.mrf.mxu0
        %v4642 = vpop.f32.mrf.mxu0
        %v4643 = vadd.f32 %v4515, %v4642
        %v4644 = vpop.f32.mrf.mxu0
        %4645 = vmatprep.mubr.bf16.mxu0 %v3460
        %4646 = vmatmul.mubr.bf16.gmra.mxu0 %v3302
        %v4647 = vpop.f32.mrf.mxu0
        %v4648 = vadd.f32 %v4520, %v4647
        %v4649 = vpop.f32.mrf.mxu0
        %v4650 = vpop.f32.mrf.mxu0
        %v4651 = vpop.f32.mrf.mxu0
        %4652 = vdwg.mxu0
        %4653 = vmatprep.subr.bf16.mxu0 0
        %4654 = vmatpush1.bf16.msra.mxu0 %v4068
        %4655 = vmatprep.subr.bf16.mxu0 0
        %4656 = vmatpush1.bf16.msra.mxu0 %v4067
        %4657 = vmatprep.subr.bf16.mxu0 0
        %4658 = vmatpush1.bf16.msra.mxu0 %v4066
        %4659 = vmatprep.subr.bf16.mxu0 0
        %4660 = vmatpush1.bf16.msra.mxu0 %v4065
        %4661 = vmatprep.subr.bf16.mxu0 0
        %4662 = vmatpush1.bf16.msra.mxu0 %v4064
        %4663 = vmatprep.subr.bf16.mxu0 0
        %4664 = vmatpush1.bf16.msra.mxu0 %v4063
        %4665 = vmatprep.subr.bf16.mxu0 0
        %4666 = vmatpush1.bf16.msra.mxu0 %v4062
        %4667 = vmatprep.subr.bf16.mxu0 0
        %4668 = vmatpush1.bf16.msra.mxu0 %v4061
        %4669 = vmatprep.subr.bf16.mxu0 0
        %4670 = vmatpush2.bf16.msra.mxu0 0
        %4671 = vmatprep.subr.bf16.mxu0 0
        %4672 = vmatpush2.bf16.msra.mxu0 0
        %4673 = vmatprep.subr.bf16.mxu0 0
        %4674 = vmatpush2.bf16.msra.mxu0 0
        %4675 = vmatprep.subr.bf16.mxu0 0
        %4676 = vmatpush2.bf16.msra.mxu0 0
        %4677 = vmatprep.subr.bf16.mxu0 0
        %4678 = vmatpush2.bf16.msra.mxu0 0
        %4679 = vmatprep.subr.bf16.mxu0 0
        %4680 = vmatpush2.bf16.msra.mxu0 0
        %4681 = vmatprep.subr.bf16.mxu0 0
        %4682 = vmatpush2.bf16.msra.mxu0 0
        %4683 = vmatprep.subr.bf16.mxu0 0
        %4684 = vmatpush2.bf16.msra.mxu0 0
        %4685 = vmatprep.mubr.bf16.mxu0 0
        %4686 = vmatmul.mubr.bf16.gmra.mxu0 %v3546
        %v4687 = vpop.f32.mrf.mxu0
        %v4688 = vadd.f32 %v4560, %v4687
        %v4689 = vpop.f32.mrf.mxu0
        %v4690 = vpop.f32.mrf.mxu0
        %v4691 = vadd.f32 %v4563, %v4690
        %v4692 = vpop.f32.mrf.mxu0
        %4693 = vmatprep.mubr.bf16.mxu0 0
        %4694 = vmatmul.mubr.bf16.gmra.mxu0 %v3547
        %v4695 = vpop.f32.mrf.mxu0
        %v4696 = vadd.f32 %v4568, %v4695
        %v4697 = vpop.f32.mrf.mxu0
        %v4698 = vpop.f32.mrf.mxu0
        %v4699 = vadd.f32 %v4571, %v4698
        %v4700 = vpop.f32.mrf.mxu0
        %4701 = vmatprep.mubr.bf16.mxu0 0
        %4702 = vmatmul.mubr.bf16.gmra.mxu0 %v3548
        %v4703 = vpop.f32.mrf.mxu0
        %v4704 = vadd.f32 %v4576, %v4703
        %v4705 = vpop.f32.mrf.mxu0
        %v4706 = vpop.f32.mrf.mxu0
        %v4707 = vadd.f32 %v4579, %v4706
        %v4708 = vpop.f32.mrf.mxu0
        %4709 = vmatprep.mubr.bf16.mxu0 0
        %4710 = vmatmul.mubr.bf16.gmra.mxu0 %v3549
        %v4711 = vpop.f32.mrf.mxu0
        %v4712 = vadd.f32 %v4584, %v4711
        %v4713 = vpop.f32.mrf.mxu0
        %v4714 = vpop.f32.mrf.mxu0
        %v4715 = vadd.f32 %v4587, %v4714
        %v4716 = vpop.f32.mrf.mxu0
        %4717 = vmatprep.mubr.bf16.mxu0 0
        %4718 = vmatmul.mubr.bf16.gmra.mxu0 %v3550
        %v4719 = vpop.f32.mrf.mxu0
        %v4720 = vadd.f32 %v4592, %v4719
        %v4721 = vpop.f32.mrf.mxu0
        %v4722 = vpop.f32.mrf.mxu0
        %v4723 = vadd.f32 %v4595, %v4722
        %v4724 = vpop.f32.mrf.mxu0
        %4725 = vmatprep.mubr.bf16.mxu0 0
        %4726 = vmatmul.mubr.bf16.gmra.mxu0 %v3551
        %v4727 = vpop.f32.mrf.mxu0
        %v4728 = vadd.f32 %v4600, %v4727
        %v4729 = vpop.f32.mrf.mxu0
        %v4730 = vpop.f32.mrf.mxu0
        %v4731 = vadd.f32 %v4603, %v4730
        %v4732 = vpop.f32.mrf.mxu0
        %4733 = vmatprep.mubr.bf16.mxu0 0
        %4734 = vmatmul.mubr.bf16.gmra.mxu0 %v3552
        %v4735 = vpop.f32.mrf.mxu0
        %v4736 = vadd.f32 %v4608, %v4735
        %v4737 = vpop.f32.mrf.mxu0
        %v4738 = vpop.f32.mrf.mxu0
        %v4739 = vadd.f32 %v4611, %v4738
        %v4740 = vpop.f32.mrf.mxu0
        %4741 = vmatprep.mubr.bf16.mxu0 0
        %4742 = vmatmul.mubr.bf16.gmra.mxu0 %v3553
        %v4743 = vpop.f32.mrf.mxu0
        %v4744 = vadd.f32 %v4616, %v4743
        %v4745 = vpop.f32.mrf.mxu0
        %v4746 = vpop.f32.mrf.mxu0
        %v4747 = vadd.f32 %v4619, %v4746
        %v4748 = vpop.f32.mrf.mxu0
        %4749 = vmatprep.mubr.bf16.mxu0 0
        %4750 = vmatmul.mubr.bf16.gmra.mxu0 %v3554
        %v4751 = vpop.f32.mrf.mxu0
        %v4752 = vadd.f32 %v4624, %v4751
        %v4753 = vpop.f32.mrf.mxu0
        %v4754 = vpop.f32.mrf.mxu0
        %v4755 = vadd.f32 %v4627, %v4754
        %v4756 = vpop.f32.mrf.mxu0
        %4757 = vmatprep.mubr.bf16.mxu0 0
        %4758 = vmatmul.mubr.bf16.gmra.mxu0 %v3555
        %v4759 = vpop.f32.mrf.mxu0
        %v4760 = vadd.f32 %v4632, %v4759
        %v4761 = vpop.f32.mrf.mxu0
        %v4762 = vpop.f32.mrf.mxu0
        %v4763 = vadd.f32 %v4635, %v4762
        %v4764 = vpop.f32.mrf.mxu0
        %4765 = vmatprep.mubr.bf16.mxu0 0
        %4766 = vmatmul.mubr.bf16.gmra.mxu0 %v3556
        %v4767 = vpop.f32.mrf.mxu0
        %v4768 = vadd.f32 %v4640, %v4767
        %v4769 = vpop.f32.mrf.mxu0
        %v4770 = vpop.f32.mrf.mxu0
        %v4771 = vadd.f32 %v4643, %v4770
        %v4772 = vpop.f32.mrf.mxu0
        %4773 = vmatprep.mubr.bf16.mxu0 0
        %4774 = vmatmul.mubr.bf16.gmra.mxu0 %v3557
        %v4775 = vpop.f32.mrf.mxu0
        %v4776 = vadd.f32 %v4648, %v4775
        %v4777 = vpop.f32.mrf.mxu0
        %v4778 = vpop.f32.mrf.mxu0
        %v4779 = vpop.f32.mrf.mxu0
        %4780 = vdwg.mxu0
        %s4781 = sld [smem:[#allocation2]]
        %vm4782 = vcmp.gt.f32.partialorder %v4688, 0.0
        %vm4783 = vcmp.gt.f32.partialorder %v4691, 0.0
        %vm4784 = vcmp.gt.f32.partialorder %v4696, 0.0
        %vm4785 = vcmp.gt.f32.partialorder %v4699, 0.0
        %vm4786 = vcmp.gt.f32.partialorder %v4704, 0.0
        %vm4787 = vcmp.gt.f32.partialorder %v4707, 0.0
        %vm4788 = vcmp.gt.f32.partialorder %v4712, 0.0
        %vm4789 = vcmp.gt.f32.partialorder %v4715, 0.0
        %vm4790 = vcmp.gt.f32.partialorder %v4720, 0.0
        %vm4791 = vcmp.gt.f32.partialorder %v4723, 0.0
        %vm4792 = vcmp.gt.f32.partialorder %v4728, 0.0
        %vm4793 = vcmp.gt.f32.partialorder %v4731, 0.0
        %vm4794 = vcmp.gt.f32.partialorder %v4736, 0.0
        %vm4795 = vcmp.gt.f32.partialorder %v4739, 0.0
        %vm4796 = vcmp.gt.f32.partialorder %v4744, 0.0
        %vm4797 = vcmp.gt.f32.partialorder %v4747, 0.0
        %vm4798 = vcmp.gt.f32.partialorder %v4752, 0.0
        %vm4799 = vcmp.gt.f32.partialorder %v4755, 0.0
        %vm4800 = vcmp.gt.f32.partialorder %v4760, 0.0
        %vm4801 = vcmp.gt.f32.partialorder %v4763, 0.0
        %vm4802 = vcmp.gt.f32.partialorder %v4768, 0.0
        %vm4803 = vcmp.gt.f32.partialorder %v4771, 0.0
        %vm4804 = vcmp.gt.f32.partialorder %v4776, 0.0
        %v4805 = vstv %s4781
        %v4806 = vmul.f32 %v4805, %v4688
        %v4807 = vmul.f32 %v4805, %v4691
        %v4808 = vmul.f32 %v4805, %v4696
        %v4809 = vmul.f32 %v4805, %v4699
        %v4810 = vmul.f32 %v4805, %v4704
        %v4811 = vmul.f32 %v4805, %v4707
        %v4812 = vmul.f32 %v4805, %v4712
        %v4813 = vmul.f32 %v4805, %v4715
        %v4814 = vmul.f32 %v4805, %v4720
        %v4815 = vmul.f32 %v4805, %v4723
        %v4816 = vmul.f32 %v4805, %v4728
        %v4817 = vmul.f32 %v4805, %v4731
        %v4818 = vmul.f32 %v4805, %v4736
        %v4819 = vmul.f32 %v4805, %v4739
        %v4820 = vmul.f32 %v4805, %v4744
        %v4821 = vmul.f32 %v4805, %v4747
        %v4822 = vmul.f32 %v4805, %v4752
        %v4823 = vmul.f32 %v4805, %v4755
        %v4824 = vmul.f32 %v4805, %v4760
        %v4825 = vmul.f32 %v4805, %v4763
        %v4826 = vmul.f32 %v4805, %v4768
        %v4827 = vmul.f32 %v4805, %v4771
        %v4828 = vmul.f32 %v4805, %v4776
        %v4829 = vsel %vm4782, %v4688, %v4806
        %v4830 = vsel %vm4783, %v4691, %v4807
        %v4831 = vsel %vm4784, %v4696, %v4808
        %v4832 = vsel %vm4785, %v4699, %v4809
        %v4833 = vsel %vm4786, %v4704, %v4810
        %v4834 = vsel %vm4787, %v4707, %v4811
        %v4835 = vsel %vm4788, %v4712, %v4812
        %v4836 = vsel %vm4789, %v4715, %v4813
        %v4837 = vsel %vm4790, %v4720, %v4814
        %v4838 = vsel %vm4791, %v4723, %v4815
        %v4839 = vsel %vm4792, %v4728, %v4816
        %v4840 = vsel %vm4793, %v4731, %v4817
        %v4841 = vsel %vm4794, %v4736, %v4818
        %v4842 = vsel %vm4795, %v4739, %v4819
        %v4843 = vsel %vm4796, %v4744, %v4820
        %v4844 = vsel %vm4797, %v4747, %v4821
        %v4845 = vsel %vm4798, %v4752, %v4822
        %v4846 = vsel %vm4799, %v4755, %v4823
        %v4847 = vsel %vm4800, %v4760, %v4824
        %v4848 = vsel %vm4801, %v4763, %v4825
        %v4849 = vsel %vm4802, %v4768, %v4826
        %v4850 = vsel %vm4803, %v4771, %v4827
        %v4851 = vsel %vm4804, %v4776, %v4828
        %v4852 = vld [vmem:[%s353] sm:$0xff]
        %v4853 = vld [vmem:[%s353 + $0x8] sm:$0xff]
        %v4854 = vld [vmem:[%s353 + $0x10] sm:$0xff]
        %v4855 = vld [vmem:[%s353 + $0x18] sm:$0xff]
        %v4856 = vld [vmem:[%s353 + $0x20] sm:$0xff]
        %v4857 = vld [vmem:[%s353 + $0x28] sm:$0xff]
        %v4858 = vld [vmem:[%s353 + $0x30] sm:$0xff]
        %v4859 = vld [vmem:[%s353 + $0x38] sm:$0xff]
        %v4860 = vld [vmem:[%s353 + $0x40] sm:$0xff]
        %v4861 = vld [vmem:[%s353 + $0x48] sm:$0xff]
        %v4862 = vld [vmem:[%s353 + $0x50] sm:$0xff]
        %v4863 = vld [vmem:[%s353 + $0x58] sm:$0xff]
        %v4864 = vld [vmem:[%s353 + $0x60] sm:$0xff]
        %v4865 = vld [vmem:[%s353 + $0x68] sm:$0xff]
        %v4866 = vld [vmem:[%s353 + $0x70] sm:$0xff]
        %v4867 = vld [vmem:[%s353 + $0x78] sm:$0xff]
        %v4868 = vld [vmem:[%s353 + $0x80] sm:$0xff]
        %v4869 = vld [vmem:[%s353 + $0x88] sm:$0xff]
        %v4870 = vld [vmem:[%s353 + $0x90] sm:$0xff]
        %v4871 = vld [vmem:[%s353 + $0x98] sm:$0xff]
        %v4872 = vld [vmem:[%s353 + $0xa0] sm:$0xff]
        %v4873 = vld [vmem:[%s353 + $0xa8] sm:$0xff]
        %v4874 = vld [vmem:[%s353 + $0xb0] sm:$0xf]
        %4876 = vset.pattern.permute.xlu0 0
        %4877 = vperm.xlu0 %4876, %v4852
        %v4878 = vpop.permute.xlu0 %4877
        %4881 = vset.pattern.permute.xlu0 0
        %4882 = vperm.xlu0 %4881, %v4853
        %v4883 = vpop.permute.xlu0 %4882
        %4886 = vset.pattern.permute.xlu0 0
        %4887 = vperm.xlu0 %4886, %v4854
        %v4888 = vpop.permute.xlu0 %4887
        %4891 = vset.pattern.permute.xlu0 0
        %4892 = vperm.xlu0 %4891, %v4855
        %v4893 = vpop.permute.xlu0 %4892
        %4896 = vset.pattern.permute.xlu0 0
        %4897 = vperm.xlu0 %4896, %v4856
        %v4898 = vpop.permute.xlu0 %4897
        %4901 = vset.pattern.permute.xlu0 0
        %4902 = vperm.xlu0 %4901, %v4857
        %v4903 = vpop.permute.xlu0 %4902
        %4906 = vset.pattern.permute.xlu0 0
        %4907 = vperm.xlu0 %4906, %v4858
        %v4908 = vpop.permute.xlu0 %4907
        %4911 = vset.pattern.permute.xlu0 0
        %4912 = vperm.xlu0 %4911, %v4859
        %v4913 = vpop.permute.xlu0 %4912
        %4916 = vset.pattern.permute.xlu0 0
        %4917 = vperm.xlu0 %4916, %v4860
        %v4918 = vpop.permute.xlu0 %4917
        %4921 = vset.pattern.permute.xlu0 0
        %4922 = vperm.xlu0 %4921, %v4861
        %v4923 = vpop.permute.xlu0 %4922
        %4926 = vset.pattern.permute.xlu0 0
        %4927 = vperm.xlu0 %4926, %v4862
        %v4928 = vpop.permute.xlu0 %4927
        %4931 = vset.pattern.permute.xlu0 0
        %4932 = vperm.xlu0 %4931, %v4863
        %v4933 = vpop.permute.xlu0 %4932
        %4936 = vset.pattern.permute.xlu0 0
        %4937 = vperm.xlu0 %4936, %v4864
        %v4938 = vpop.permute.xlu0 %4937
        %4941 = vset.pattern.permute.xlu0 0
        %4942 = vperm.xlu0 %4941, %v4865
        %v4943 = vpop.permute.xlu0 %4942
        %4946 = vset.pattern.permute.xlu0 0
        %4947 = vperm.xlu0 %4946, %v4866
        %v4948 = vpop.permute.xlu0 %4947
        %4951 = vset.pattern.permute.xlu0 0
        %4952 = vperm.xlu0 %4951, %v4867
        %v4953 = vpop.permute.xlu0 %4952
        %4956 = vset.pattern.permute.xlu0 0
        %4957 = vperm.xlu0 %4956, %v4868
        %v4958 = vpop.permute.xlu0 %4957
        %4961 = vset.pattern.permute.xlu0 0
        %4962 = vperm.xlu0 %4961, %v4869
        %v4963 = vpop.permute.xlu0 %4962
        %4966 = vset.pattern.permute.xlu0 0
        %4967 = vperm.xlu0 %4966, %v4870
        %v4968 = vpop.permute.xlu0 %4967
        %4971 = vset.pattern.permute.xlu0 0
        %4972 = vperm.xlu0 %4971, %v4871
        %v4973 = vpop.permute.xlu0 %4972
        %4976 = vset.pattern.permute.xlu0 0
        %4977 = vperm.xlu0 %4976, %v4872
        %v4978 = vpop.permute.xlu0 %4977
        %4981 = vset.pattern.permute.xlu0 0
        %4982 = vperm.xlu0 %4981, %v4873
        %v4983 = vpop.permute.xlu0 %4982
        %4986 = vset.pattern.permute.xlu0 0
        %4987 = vperm.xlu0 %4986, %v4874
        %v4988 = vpop.permute.xlu0 %4987
        %v4990 = vmul.f32 %v4829, %v4878
        %v4991 = vmul.f32 %v4830, %v4883
        %v4992 = vmul.f32 %v4831, %v4888
        %v4993 = vmul.f32 %v4832, %v4893
        %v4994 = vmul.f32 %v4833, %v4898
        %v4995 = vmul.f32 %v4834, %v4903
        %v4996 = vmul.f32 %v4835, %v4908
        %v4997 = vmul.f32 %v4836, %v4913
        %v4998 = vmul.f32 %v4837, %v4918
        %v4999 = vmul.f32 %v4838, %v4923
        %v5000 = vmul.f32 %v4839, %v4928
        %v5001 = vmul.f32 %v4840, %v4933
        %v5002 = vmul.f32 %v4841, %v4938
        %v5003 = vmul.f32 %v4842, %v4943
        %v5004 = vmul.f32 %v4843, %v4948
        %v5005 = vmul.f32 %v4844, %v4953
        %v5006 = vmul.f32 %v4845, %v4958
        %v5007 = vmul.f32 %v4846, %v4963
        %v5008 = vmul.f32 %v4847, %v4968
        %v5009 = vmul.f32 %v4848, %v4973
        %v5010 = vmul.f32 %v4849, %v4978
        %v5011 = vmul.f32 %v4850, %v4983
        %v5012 = vmul.f32 %v4851, %v4988
        %v5036 = vcombine.high %v4990, %v4990
        %v5038 = vunpack.c.l.s4 1983009808
        %v5039 = vunpack.c.0.s8 %v5038
        %v5040 = vlaneseq
        %v5041 = vshrl.u32 %v5040, 7
        %v5042 = vsub.s32 %v5039, %v5041
        %v5043 = vrot.slane %v4990, %v5042
        %v5045 = vunpack.c.l.s4 1983009808
        %v5046 = vunpack.c.0.s8 %v5045
        %v5047 = vlaneseq
        %v5048 = vshrl.u32 %v5047, 7
        %v5049 = vsub.s32 %v5046, %v5048
        %v5050 = vrot.slane %v5036, %v5049
        %v5051 = vcombine.high %v5043, %v5043
        %v5052 = vcombine.high %v5050, %v5050
        %v5053 = vcombine.high %v4991, %v4991
        %v5055 = vunpack.c.l.s4 1983009808
        %v5056 = vunpack.c.0.s8 %v5055
        %v5057 = vlaneseq
        %v5058 = vshrl.u32 %v5057, 7
        %v5059 = vsub.s32 %v5056, %v5058
        %v5060 = vrot.slane %v4991, %v5059
        %v5062 = vunpack.c.l.s4 1983009808
        %v5063 = vunpack.c.0.s8 %v5062
        %v5064 = vlaneseq
        %v5065 = vshrl.u32 %v5064, 7
        %v5066 = vsub.s32 %v5063, %v5065
        %v5067 = vrot.slane %v5053, %v5066
        %v5068 = vcombine.high %v5060, %v5060
        %v5069 = vcombine.high %v5067, %v5067
        %v5070 = vcombine.high %v4992, %v4992
        %v5072 = vunpack.c.l.s4 1983009808
        %v5073 = vunpack.c.0.s8 %v5072
        %v5074 = vlaneseq
        %v5075 = vshrl.u32 %v5074, 7
        %v5076 = vsub.s32 %v5073, %v5075
        %v5077 = vrot.slane %v4992, %v5076
        %v5079 = vunpack.c.l.s4 1983009808
        %v5080 = vunpack.c.0.s8 %v5079
        %v5081 = vlaneseq
        %v5082 = vshrl.u32 %v5081, 7
        %v5083 = vsub.s32 %v5080, %v5082
        %v5084 = vrot.slane %v5070, %v5083
        %v5085 = vcombine.high %v5077, %v5077
        %v5086 = vcombine.high %v5084, %v5084
        %v5087 = vcombine.high %v4993, %v4993
        %v5089 = vunpack.c.l.s4 1983009808
        %v5090 = vunpack.c.0.s8 %v5089
        %v5091 = vlaneseq
        %v5092 = vshrl.u32 %v5091, 7
        %v5093 = vsub.s32 %v5090, %v5092
        %v5094 = vrot.slane %v4993, %v5093
        %v5096 = vunpack.c.l.s4 1983009808
        %v5097 = vunpack.c.0.s8 %v5096
        %v5098 = vlaneseq
        %v5099 = vshrl.u32 %v5098, 7
        %v5100 = vsub.s32 %v5097, %v5099
        %v5101 = vrot.slane %v5087, %v5100
        %v5102 = vcombine.high %v5094, %v5094
        %v5103 = vcombine.high %v5101, %v5101
        %v5104 = vcombine.high %v4994, %v4994
        %v5106 = vunpack.c.l.s4 1983009808
        %v5107 = vunpack.c.0.s8 %v5106
        %v5108 = vlaneseq
        %v5109 = vshrl.u32 %v5108, 7
        %v5110 = vsub.s32 %v5107, %v5109
        %v5111 = vrot.slane %v4994, %v5110
        %v5113 = vunpack.c.l.s4 1983009808
        %v5114 = vunpack.c.0.s8 %v5113
        %v5115 = vlaneseq
        %v5116 = vshrl.u32 %v5115, 7
        %v5117 = vsub.s32 %v5114, %v5116
        %v5118 = vrot.slane %v5104, %v5117
        %v5119 = vcombine.high %v5111, %v5111
        %v5120 = vcombine.high %v5118, %v5118
        %v5121 = vcombine.high %v4995, %v4995
        %v5123 = vunpack.c.l.s4 1983009808
        %v5124 = vunpack.c.0.s8 %v5123
        %v5125 = vlaneseq
        %v5126 = vshrl.u32 %v5125, 7
        %v5127 = vsub.s32 %v5124, %v5126
        %v5128 = vrot.slane %v4995, %v5127
        %v5130 = vunpack.c.l.s4 1983009808
        %v5131 = vunpack.c.0.s8 %v5130
        %v5132 = vlaneseq
        %v5133 = vshrl.u32 %v5132, 7
        %v5134 = vsub.s32 %v5131, %v5133
        %v5135 = vrot.slane %v5121, %v5134
        %v5136 = vcombine.high %v5128, %v5128
        %v5137 = vcombine.high %v5135, %v5135
        %v5138 = vcombine.high %v4996, %v4996
        %v5140 = vunpack.c.l.s4 1983009808
        %v5141 = vunpack.c.0.s8 %v5140
        %v5142 = vlaneseq
        %v5143 = vshrl.u32 %v5142, 7
        %v5144 = vsub.s32 %v5141, %v5143
        %v5145 = vrot.slane %v4996, %v5144
        %v5147 = vunpack.c.l.s4 1983009808
        %v5148 = vunpack.c.0.s8 %v5147
        %v5149 = vlaneseq
        %v5150 = vshrl.u32 %v5149, 7
        %v5151 = vsub.s32 %v5148, %v5150
        %v5152 = vrot.slane %v5138, %v5151
        %v5153 = vcombine.high %v5145, %v5145
        %v5154 = vcombine.high %v5152, %v5152
        %v5155 = vcombine.high %v4997, %v4997
        %v5157 = vunpack.c.l.s4 1983009808
        %v5158 = vunpack.c.0.s8 %v5157
        %v5159 = vlaneseq
        %v5160 = vshrl.u32 %v5159, 7
        %v5161 = vsub.s32 %v5158, %v5160
        %v5162 = vrot.slane %v4997, %v5161
        %v5164 = vunpack.c.l.s4 1983009808
        %v5165 = vunpack.c.0.s8 %v5164
        %v5166 = vlaneseq
        %v5167 = vshrl.u32 %v5166, 7
        %v5168 = vsub.s32 %v5165, %v5167
        %v5169 = vrot.slane %v5155, %v5168
        %v5170 = vcombine.high %v5162, %v5162
        %v5171 = vcombine.high %v5169, %v5169
        %v5172 = vcombine.high %v4998, %v4998
        %v5174 = vunpack.c.l.s4 1983009808
        %v5175 = vunpack.c.0.s8 %v5174
        %v5176 = vlaneseq
        %v5177 = vshrl.u32 %v5176, 7
        %v5178 = vsub.s32 %v5175, %v5177
        %v5179 = vrot.slane %v4998, %v5178
        %v5181 = vunpack.c.l.s4 1983009808
        %v5182 = vunpack.c.0.s8 %v5181
        %v5183 = vlaneseq
        %v5184 = vshrl.u32 %v5183, 7
        %v5185 = vsub.s32 %v5182, %v5184
        %v5186 = vrot.slane %v5172, %v5185
        %v5187 = vcombine.high %v5179, %v5179
        %v5188 = vcombine.high %v5186, %v5186
        %v5189 = vcombine.high %v4999, %v4999
        %v5191 = vunpack.c.l.s4 1983009808
        %v5192 = vunpack.c.0.s8 %v5191
        %v5193 = vlaneseq
        %v5194 = vshrl.u32 %v5193, 7
        %v5195 = vsub.s32 %v5192, %v5194
        %v5196 = vrot.slane %v4999, %v5195
        %v5198 = vunpack.c.l.s4 1983009808
        %v5199 = vunpack.c.0.s8 %v5198
        %v5200 = vlaneseq
        %v5201 = vshrl.u32 %v5200, 7
        %v5202 = vsub.s32 %v5199, %v5201
        %v5203 = vrot.slane %v5189, %v5202
        %v5204 = vcombine.high %v5196, %v5196
        %v5205 = vcombine.high %v5203, %v5203
        %v5206 = vcombine.high %v5000, %v5000
        %v5208 = vunpack.c.l.s4 1983009808
        %v5209 = vunpack.c.0.s8 %v5208
        %v5210 = vlaneseq
        %v5211 = vshrl.u32 %v5210, 7
        %v5212 = vsub.s32 %v5209, %v5211
        %v5213 = vrot.slane %v5000, %v5212
        %v5215 = vunpack.c.l.s4 1983009808
        %v5216 = vunpack.c.0.s8 %v5215
        %v5217 = vlaneseq
        %v5218 = vshrl.u32 %v5217, 7
        %v5219 = vsub.s32 %v5216, %v5218
        %v5220 = vrot.slane %v5206, %v5219
        %v5221 = vcombine.high %v5213, %v5213
        %v5222 = vcombine.high %v5220, %v5220
        %v5223 = vcombine.high %v5001, %v5001
        %v5225 = vunpack.c.l.s4 1983009808
        %v5226 = vunpack.c.0.s8 %v5225
        %v5227 = vlaneseq
        %v5228 = vshrl.u32 %v5227, 7
        %v5229 = vsub.s32 %v5226, %v5228
        %v5230 = vrot.slane %v5001, %v5229
        %v5232 = vunpack.c.l.s4 1983009808
        %v5233 = vunpack.c.0.s8 %v5232
        %v5234 = vlaneseq
        %v5235 = vshrl.u32 %v5234, 7
        %v5236 = vsub.s32 %v5233, %v5235
        %v5237 = vrot.slane %v5223, %v5236
        %v5238 = vcombine.high %v5230, %v5230
        %v5239 = vcombine.high %v5237, %v5237
        %v5240 = vcombine.high %v5002, %v5002
        %v5242 = vunpack.c.l.s4 1983009808
        %v5243 = vunpack.c.0.s8 %v5242
        %v5244 = vlaneseq
        %v5245 = vshrl.u32 %v5244, 7
        %v5246 = vsub.s32 %v5243, %v5245
        %v5247 = vrot.slane %v5002, %v5246
        %v5249 = vunpack.c.l.s4 1983009808
        %v5250 = vunpack.c.0.s8 %v5249
        %v5251 = vlaneseq
        %v5252 = vshrl.u32 %v5251, 7
        %v5253 = vsub.s32 %v5250, %v5252
        %v5254 = vrot.slane %v5240, %v5253
        %v5255 = vcombine.high %v5247, %v5247
        %v5256 = vcombine.high %v5254, %v5254
        %v5257 = vcombine.high %v5003, %v5003
        %v5259 = vunpack.c.l.s4 1983009808
        %v5260 = vunpack.c.0.s8 %v5259
        %v5261 = vlaneseq
        %v5262 = vshrl.u32 %v5261, 7
        %v5263 = vsub.s32 %v5260, %v5262
        %v5264 = vrot.slane %v5003, %v5263
        %v5266 = vunpack.c.l.s4 1983009808
        %v5267 = vunpack.c.0.s8 %v5266
        %v5268 = vlaneseq
        %v5269 = vshrl.u32 %v5268, 7
        %v5270 = vsub.s32 %v5267, %v5269
        %v5271 = vrot.slane %v5257, %v5270
        %v5272 = vcombine.high %v5264, %v5264
        %v5273 = vcombine.high %v5271, %v5271
        %v5274 = vcombine.high %v5004, %v5004
        %v5276 = vunpack.c.l.s4 1983009808
        %v5277 = vunpack.c.0.s8 %v5276
        %v5278 = vlaneseq
        %v5279 = vshrl.u32 %v5278, 7
        %v5280 = vsub.s32 %v5277, %v5279
        %v5281 = vrot.slane %v5004, %v5280
        %v5283 = vunpack.c.l.s4 1983009808
        %v5284 = vunpack.c.0.s8 %v5283
        %v5285 = vlaneseq
        %v5286 = vshrl.u32 %v5285, 7
        %v5287 = vsub.s32 %v5284, %v5286
        %v5288 = vrot.slane %v5274, %v5287
        %v5289 = vcombine.high %v5281, %v5281
        %v5290 = vcombine.high %v5288, %v5288
        %v5291 = vcombine.high %v5005, %v5005
        %v5293 = vunpack.c.l.s4 1983009808
        %v5294 = vunpack.c.0.s8 %v5293
        %v5295 = vlaneseq
        %v5296 = vshrl.u32 %v5295, 7
        %v5297 = vsub.s32 %v5294, %v5296
        %v5298 = vrot.slane %v5005, %v5297
        %v5300 = vunpack.c.l.s4 1983009808
        %v5301 = vunpack.c.0.s8 %v5300
        %v5302 = vlaneseq
        %v5303 = vshrl.u32 %v5302, 7
        %v5304 = vsub.s32 %v5301, %v5303
        %v5305 = vrot.slane %v5291, %v5304
        %v5306 = vcombine.high %v5298, %v5298
        %v5307 = vcombine.high %v5305, %v5305
        %v5308 = vcombine.high %v5006, %v5006
        %v5310 = vunpack.c.l.s4 1983009808
        %v5311 = vunpack.c.0.s8 %v5310
        %v5312 = vlaneseq
        %v5313 = vshrl.u32 %v5312, 7
        %v5314 = vsub.s32 %v5311, %v5313
        %v5315 = vrot.slane %v5006, %v5314
        %v5317 = vunpack.c.l.s4 1983009808
        %v5318 = vunpack.c.0.s8 %v5317
        %v5319 = vlaneseq
        %v5320 = vshrl.u32 %v5319, 7
        %v5321 = vsub.s32 %v5318, %v5320
        %v5322 = vrot.slane %v5308, %v5321
        %v5323 = vcombine.high %v5315, %v5315
        %v5324 = vcombine.high %v5322, %v5322
        %v5325 = vcombine.high %v5007, %v5007
        %v5327 = vunpack.c.l.s4 1983009808
        %v5328 = vunpack.c.0.s8 %v5327
        %v5329 = vlaneseq
        %v5330 = vshrl.u32 %v5329, 7
        %v5331 = vsub.s32 %v5328, %v5330
        %v5332 = vrot.slane %v5007, %v5331
        %v5334 = vunpack.c.l.s4 1983009808
        %v5335 = vunpack.c.0.s8 %v5334
        %v5336 = vlaneseq
        %v5337 = vshrl.u32 %v5336, 7
        %v5338 = vsub.s32 %v5335, %v5337
        %v5339 = vrot.slane %v5325, %v5338
        %v5340 = vcombine.high %v5332, %v5332
        %v5341 = vcombine.high %v5339, %v5339
        %v5342 = vcombine.high %v5008, %v5008
        %v5344 = vunpack.c.l.s4 1983009808
        %v5345 = vunpack.c.0.s8 %v5344
        %v5346 = vlaneseq
        %v5347 = vshrl.u32 %v5346, 7
        %v5348 = vsub.s32 %v5345, %v5347
        %v5349 = vrot.slane %v5008, %v5348
        %v5351 = vunpack.c.l.s4 1983009808
        %v5352 = vunpack.c.0.s8 %v5351
        %v5353 = vlaneseq
        %v5354 = vshrl.u32 %v5353, 7
        %v5355 = vsub.s32 %v5352, %v5354
        %v5356 = vrot.slane %v5342, %v5355
        %v5357 = vcombine.high %v5349, %v5349
        %v5358 = vcombine.high %v5356, %v5356
        %v5359 = vcombine.high %v5009, %v5009
        %v5361 = vunpack.c.l.s4 1983009808
        %v5362 = vunpack.c.0.s8 %v5361
        %v5363 = vlaneseq
        %v5364 = vshrl.u32 %v5363, 7
        %v5365 = vsub.s32 %v5362, %v5364
        %v5366 = vrot.slane %v5009, %v5365
        %v5368 = vunpack.c.l.s4 1983009808
        %v5369 = vunpack.c.0.s8 %v5368
        %v5370 = vlaneseq
        %v5371 = vshrl.u32 %v5370, 7
        %v5372 = vsub.s32 %v5369, %v5371
        %v5373 = vrot.slane %v5359, %v5372
        %v5374 = vcombine.high %v5366, %v5366
        %v5375 = vcombine.high %v5373, %v5373
        %v5376 = vcombine.high %v5010, %v5010
        %v5378 = vunpack.c.l.s4 1983009808
        %v5379 = vunpack.c.0.s8 %v5378
        %v5380 = vlaneseq
        %v5381 = vshrl.u32 %v5380, 7
        %v5382 = vsub.s32 %v5379, %v5381
        %v5383 = vrot.slane %v5010, %v5382
        %v5385 = vunpack.c.l.s4 1983009808
        %v5386 = vunpack.c.0.s8 %v5385
        %v5387 = vlaneseq
        %v5388 = vshrl.u32 %v5387, 7
        %v5389 = vsub.s32 %v5386, %v5388
        %v5390 = vrot.slane %v5376, %v5389
        %v5391 = vcombine.high %v5383, %v5383
        %v5392 = vcombine.high %v5390, %v5390
        %v5393 = vcombine.high %v5011, %v5011
        %v5395 = vunpack.c.l.s4 1983009808
        %v5396 = vunpack.c.0.s8 %v5395
        %v5397 = vlaneseq
        %v5398 = vshrl.u32 %v5397, 7
        %v5399 = vsub.s32 %v5396, %v5398
        %v5400 = vrot.slane %v5011, %v5399
        %v5402 = vunpack.c.l.s4 1983009808
        %v5403 = vunpack.c.0.s8 %v5402
        %v5404 = vlaneseq
        %v5405 = vshrl.u32 %v5404, 7
        %v5406 = vsub.s32 %v5403, %v5405
        %v5407 = vrot.slane %v5393, %v5406
        %v5408 = vcombine.high %v5400, %v5400
        %v5409 = vcombine.high %v5407, %v5407
        %v5411 = vunpack.c.l.s4 1983009808
        %v5412 = vunpack.c.0.s8 %v5411
        %v5413 = vlaneseq
        %v5414 = vshrl.u32 %v5413, 7
        %v5415 = vsub.s32 %v5412, %v5414
        %v5416 = vrot.slane %v5012, %v5415
        %v5417 = vcombine.high %v5416, %v5416
        %v5418 = vcombine.low %v5043, %v5051
        %v5419 = vcombine.low %v5050, %v5052
        %v5421 = vunpack.c.l.s4 1983009808
        %v5422 = vunpack.c.0.s8 %v5421
        %v5423 = vlaneseq
        %v5424 = vshrl.u32 %v5423, 7
        %v5425 = vsub.s32 %v5422, %v5424
        %v5426 = vrot.slane %v5418, %v5425
        %v5428 = vunpack.c.l.s4 1983009808
        %v5429 = vunpack.c.0.s8 %v5428
        %v5430 = vlaneseq
        %v5431 = vshrl.u32 %v5430, 7
        %v5432 = vsub.s32 %v5429, %v5431
        %v5433 = vrot.slane %v5419, %v5432
        %v5434 = vcombine.low %v5426, %v5433
        %v5435 = vcombine.low %v5060, %v5068
        %v5436 = vcombine.low %v5067, %v5069
        %v5438 = vunpack.c.l.s4 1983009808
        %v5439 = vunpack.c.0.s8 %v5438
        %v5440 = vlaneseq
        %v5441 = vshrl.u32 %v5440, 7
        %v5442 = vsub.s32 %v5439, %v5441
        %v5443 = vrot.slane %v5435, %v5442
        %v5445 = vunpack.c.l.s4 1983009808
        %v5446 = vunpack.c.0.s8 %v5445
        %v5447 = vlaneseq
        %v5448 = vshrl.u32 %v5447, 7
        %v5449 = vsub.s32 %v5446, %v5448
        %v5450 = vrot.slane %v5436, %v5449
        %v5451 = vcombine.low %v5443, %v5450
        %v5452 = vcombine.low %v5085, %v5084
        %v5453 = vcombine.low %v5086, %v5094
        %v5455 = vunpack.c.l.s4 1983009808
        %v5456 = vunpack.c.0.s8 %v5455
        %v5457 = vlaneseq
        %v5458 = vshrl.u32 %v5457, 7
        %v5459 = vsub.s32 %v5456, %v5458
        %v5460 = vrot.slane %v5452, %v5459
        %v5462 = vunpack.c.l.s4 1983009808
        %v5463 = vunpack.c.0.s8 %v5462
        %v5464 = vlaneseq
        %v5465 = vshrl.u32 %v5464, 7
        %v5466 = vsub.s32 %v5463, %v5465
        %v5467 = vrot.slane %v5453, %v5466
        %v5468 = vcombine.low %v5460, %v5467
        %v5469 = vcombine.low %v5102, %v5101
        %v5470 = vcombine.low %v5103, %v5111
        %v5472 = vunpack.c.l.s4 1983009808
        %v5473 = vunpack.c.0.s8 %v5472
        %v5474 = vlaneseq
        %v5475 = vshrl.u32 %v5474, 7
        %v5476 = vsub.s32 %v5473, %v5475
        %v5477 = vrot.slane %v5469, %v5476
        %v5479 = vunpack.c.l.s4 1983009808
        %v5480 = vunpack.c.0.s8 %v5479
        %v5481 = vlaneseq
        %v5482 = vshrl.u32 %v5481, 7
        %v5483 = vsub.s32 %v5480, %v5482
        %v5484 = vrot.slane %v5470, %v5483
        %v5485 = vcombine.low %v5477, %v5484
        %v5486 = vcombine.low %v5118, %v5120
        %v5487 = vcombine.low %v5128, %v5136
        %v5489 = vunpack.c.l.s4 1983009808
        %v5490 = vunpack.c.0.s8 %v5489
        %v5491 = vlaneseq
        %v5492 = vshrl.u32 %v5491, 7
        %v5493 = vsub.s32 %v5490, %v5492
        %v5494 = vrot.slane %v5486, %v5493
        %v5496 = vunpack.c.l.s4 1983009808
        %v5497 = vunpack.c.0.s8 %v5496
        %v5498 = vlaneseq
        %v5499 = vshrl.u32 %v5498, 7
        %v5500 = vsub.s32 %v5497, %v5499
        %v5501 = vrot.slane %v5487, %v5500
        %v5502 = vcombine.low %v5494, %v5501
        %v5503 = vcombine.low %v5135, %v5137
        %v5504 = vcombine.low %v5145, %v5153
        %v5506 = vunpack.c.l.s4 1983009808
        %v5507 = vunpack.c.0.s8 %v5506
        %v5508 = vlaneseq
        %v5509 = vshrl.u32 %v5508, 7
        %v5510 = vsub.s32 %v5507, %v5509
        %v5511 = vrot.slane %v5503, %v5510
        %v5513 = vunpack.c.l.s4 1983009808
        %v5514 = vunpack.c.0.s8 %v5513
        %v5515 = vlaneseq
        %v5516 = vshrl.u32 %v5515, 7
        %v5517 = vsub.s32 %v5514, %v5516
        %v5518 = vrot.slane %v5504, %v5517
        %v5519 = vcombine.low %v5511, %v5518
        %v5520 = vcombine.low %v5154, %v5162
        %v5521 = vcombine.low %v5170, %v5169
        %v5523 = vunpack.c.l.s4 1983009808
        %v5524 = vunpack.c.0.s8 %v5523
        %v5525 = vlaneseq
        %v5526 = vshrl.u32 %v5525, 7
        %v5527 = vsub.s32 %v5524, %v5526
        %v5528 = vrot.slane %v5520, %v5527
        %v5530 = vunpack.c.l.s4 1983009808
        %v5531 = vunpack.c.0.s8 %v5530
        %v5532 = vlaneseq
        %v5533 = vshrl.u32 %v5532, 7
        %v5534 = vsub.s32 %v5531, %v5533
        %v5535 = vrot.slane %v5521, %v5534
        %v5536 = vcombine.low %v5528, %v5535
        %v5537 = vcombine.low %v5171, %v5179
        %v5538 = vcombine.low %v5187, %v5186
        %v5540 = vunpack.c.l.s4 1983009808
        %v5541 = vunpack.c.0.s8 %v5540
        %v5542 = vlaneseq
        %v5543 = vshrl.u32 %v5542, 7
        %v5544 = vsub.s32 %v5541, %v5543
        %v5545 = vrot.slane %v5537, %v5544
        %v5547 = vunpack.c.l.s4 1983009808
        %v5548 = vunpack.c.0.s8 %v5547
        %v5549 = vlaneseq
        %v5550 = vshrl.u32 %v5549, 7
        %v5551 = vsub.s32 %v5548, %v5550
        %v5552 = vrot.slane %v5538, %v5551
        %v5553 = vcombine.low %v5545, %v5552
        %v5554 = vcombine.low %v5196, %v5204
        %v5555 = vcombine.low %v5203, %v5205
        %v5557 = vunpack.c.l.s4 1983009808
        %v5558 = vunpack.c.0.s8 %v5557
        %v5559 = vlaneseq
        %v5560 = vshrl.u32 %v5559, 7
        %v5561 = vsub.s32 %v5558, %v5560
        %v5562 = vrot.slane %v5554, %v5561
        %v5564 = vunpack.c.l.s4 1983009808
        %v5565 = vunpack.c.0.s8 %v5564
        %v5566 = vlaneseq
        %v5567 = vshrl.u32 %v5566, 7
        %v5568 = vsub.s32 %v5565, %v5567
        %v5569 = vrot.slane %v5555, %v5568
        %v5570 = vcombine.low %v5562, %v5569
        %v5571 = vcombine.low %v5213, %v5221
        %v5572 = vcombine.low %v5220, %v5222
        %v5574 = vunpack.c.l.s4 1983009808
        %v5575 = vunpack.c.0.s8 %v5574
        %v5576 = vlaneseq
        %v5577 = vshrl.u32 %v5576, 7
        %v5578 = vsub.s32 %v5575, %v5577
        %v5579 = vrot.slane %v5571, %v5578
        %v5581 = vunpack.c.l.s4 1983009808
        %v5582 = vunpack.c.0.s8 %v5581
        %v5583 = vlaneseq
        %v5584 = vshrl.u32 %v5583, 7
        %v5585 = vsub.s32 %v5582, %v5584
        %v5586 = vrot.slane %v5572, %v5585
        %v5587 = vcombine.low %v5579, %v5586
        %v5588 = vcombine.low %v5238, %v5237
        %v5589 = vcombine.low %v5239, %v5247
        %v5591 = vunpack.c.l.s4 1983009808
        %v5592 = vunpack.c.0.s8 %v5591
        %v5593 = vlaneseq
        %v5594 = vshrl.u32 %v5593, 7
        %v5595 = vsub.s32 %v5592, %v5594
        %v5596 = vrot.slane %v5588, %v5595
        %v5598 = vunpack.c.l.s4 1983009808
        %v5599 = vunpack.c.0.s8 %v5598
        %v5600 = vlaneseq
        %v5601 = vshrl.u32 %v5600, 7
        %v5602 = vsub.s32 %v5599, %v5601
        %v5603 = vrot.slane %v5589, %v5602
        %v5604 = vcombine.low %v5596, %v5603
        %v5605 = vcombine.low %v5255, %v5254
        %v5606 = vcombine.low %v5256, %v5264
        %v5608 = vunpack.c.l.s4 1983009808
        %v5609 = vunpack.c.0.s8 %v5608
        %v5610 = vlaneseq
        %v5611 = vshrl.u32 %v5610, 7
        %v5612 = vsub.s32 %v5609, %v5611
        %v5613 = vrot.slane %v5605, %v5612
        %v5615 = vunpack.c.l.s4 1983009808
        %v5616 = vunpack.c.0.s8 %v5615
        %v5617 = vlaneseq
        %v5618 = vshrl.u32 %v5617, 7
        %v5619 = vsub.s32 %v5616, %v5618
        %v5620 = vrot.slane %v5606, %v5619
        %v5621 = vcombine.low %v5613, %v5620
        %v5622 = vcombine.low %v5271, %v5273
        %v5623 = vcombine.low %v5281, %v5289
        %v5625 = vunpack.c.l.s4 1983009808
        %v5626 = vunpack.c.0.s8 %v5625
        %v5627 = vlaneseq
        %v5628 = vshrl.u32 %v5627, 7
        %v5629 = vsub.s32 %v5626, %v5628
        %v5630 = vrot.slane %v5622, %v5629
        %v5632 = vunpack.c.l.s4 1983009808
        %v5633 = vunpack.c.0.s8 %v5632
        %v5634 = vlaneseq
        %v5635 = vshrl.u32 %v5634, 7
        %v5636 = vsub.s32 %v5633, %v5635
        %v5637 = vrot.slane %v5623, %v5636
        %v5638 = vcombine.low %v5630, %v5637
        %v5639 = vcombine.low %v5288, %v5290
        %v5640 = vcombine.low %v5298, %v5306
        %v5642 = vunpack.c.l.s4 1983009808
        %v5643 = vunpack.c.0.s8 %v5642
        %v5644 = vlaneseq
        %v5645 = vshrl.u32 %v5644, 7
        %v5646 = vsub.s32 %v5643, %v5645
        %v5647 = vrot.slane %v5639, %v5646
        %v5649 = vunpack.c.l.s4 1983009808
        %v5650 = vunpack.c.0.s8 %v5649
        %v5651 = vlaneseq
        %v5652 = vshrl.u32 %v5651, 7
        %v5653 = vsub.s32 %v5650, %v5652
        %v5654 = vrot.slane %v5640, %v5653
        %v5655 = vcombine.low %v5647, %v5654
        %v5656 = vcombine.low %v5307, %v5315
        %v5657 = vcombine.low %v5323, %v5322
        %v5659 = vunpack.c.l.s4 1983009808
        %v5660 = vunpack.c.0.s8 %v5659
        %v5661 = vlaneseq
        %v5662 = vshrl.u32 %v5661, 7
        %v5663 = vsub.s32 %v5660, %v5662
        %v5664 = vrot.slane %v5656, %v5663
        %v5666 = vunpack.c.l.s4 1983009808
        %v5667 = vunpack.c.0.s8 %v5666
        %v5668 = vlaneseq
        %v5669 = vshrl.u32 %v5668, 7
        %v5670 = vsub.s32 %v5667, %v5669
        %v5671 = vrot.slane %v5657, %v5670
        %v5672 = vcombine.low %v5664, %v5671
        %v5673 = vcombine.low %v5324, %v5332
        %v5674 = vcombine.low %v5340, %v5339
        %v5676 = vunpack.c.l.s4 1983009808
        %v5677 = vunpack.c.0.s8 %v5676
        %v5678 = vlaneseq
        %v5679 = vshrl.u32 %v5678, 7
        %v5680 = vsub.s32 %v5677, %v5679
        %v5681 = vrot.slane %v5673, %v5680
        %v5683 = vunpack.c.l.s4 1983009808
        %v5684 = vunpack.c.0.s8 %v5683
        %v5685 = vlaneseq
        %v5686 = vshrl.u32 %v5685, 7
        %v5687 = vsub.s32 %v5684, %v5686
        %v5688 = vrot.slane %v5674, %v5687
        %v5689 = vcombine.low %v5681, %v5688
        %v5706 = vpack.c.bf16 %v5451, %v5434
        %v5707 = vpack.c.bf16 %v5485, %v5468
        %v5708 = vpack.c.bf16 %v5519, %v5502
        %v5709 = vpack.c.bf16 %v5553, %v5536
        %v5710 = vpack.c.bf16 %v5587, %v5570
        %v5711 = vpack.c.bf16 %v5621, %v5604
        %v5712 = vpack.c.bf16 %v5655, %v5638
        %v5713 = vpack.c.bf16 %v5689, %v5672
        %v5714 = vrot.slane %v5043, 7
        %v5715 = vrot.slane %v5714, 2
        %v5716 = vrot.slane %v5051, 7
        %v5717 = vsel %vm1265, %v5715, %v5716
        %v5718 = vrot.slane %v5716, 2
        %v5719 = vrot.slane %v5050, 7
        %v5720 = vsel %vm1265, %v5718, %v5719
        %v5721 = vrot.slane %v5719, 2
        %v5722 = vrot.slane %v5052, 7
        %v5723 = vsel %vm1265, %v5721, %v5722
        %v5724 = vrot.slane %v5722, 2
        %v5725 = vrot.slane %v5060, 7
        %v5726 = vsel %vm1265, %v5724, %v5725
        %v5727 = vrot.slane %v5725, 2
        %v5728 = vrot.slane %v5068, 7
        %v5729 = vsel %vm1265, %v5727, %v5728
        %v5730 = vrot.slane %v5728, 2
        %v5731 = vrot.slane %v5067, 7
        %v5732 = vsel %vm1265, %v5730, %v5731
        %v5733 = vrot.slane %v5731, 2
        %v5734 = vrot.slane %v5069, 7
        %v5735 = vsel %vm1265, %v5733, %v5734
        %v5736 = vrot.slane %v5734, 2
        %v5737 = vrot.slane %v5077, 7
        %v5738 = vsel %vm1265, %v5736, %v5737
        %v5739 = vrot.slane %v5085, 7
        %v5740 = vrot.slane %v5739, 2
        %v5741 = vrot.slane %v5084, 7
        %v5742 = vsel %vm1265, %v5740, %v5741
        %v5743 = vrot.slane %v5741, 2
        %v5744 = vrot.slane %v5086, 7
        %v5745 = vsel %vm1265, %v5743, %v5744
        %v5746 = vrot.slane %v5744, 2
        %v5747 = vrot.slane %v5094, 7
        %v5748 = vsel %vm1265, %v5746, %v5747
        %v5749 = vrot.slane %v5747, 2
        %v5750 = vrot.slane %v5102, 7
        %v5751 = vsel %vm1265, %v5749, %v5750
        %v5752 = vrot.slane %v5750, 2
        %v5753 = vrot.slane %v5101, 7
        %v5754 = vsel %vm1265, %v5752, %v5753
        %v5755 = vrot.slane %v5753, 2
        %v5756 = vrot.slane %v5103, 7
        %v5757 = vsel %vm1265, %v5755, %v5756
        %v5758 = vrot.slane %v5756, 2
        %v5759 = vrot.slane %v5111, 7
        %v5760 = vsel %vm1265, %v5758, %v5759
        %v5761 = vrot.slane %v5759, 2
        %v5762 = vrot.slane %v5119, 7
        %v5763 = vsel %vm1265, %v5761, %v5762
        %v5764 = vrot.slane %v5118, 7
        %v5765 = vrot.slane %v5764, 2
        %v5766 = vrot.slane %v5120, 7
        %v5767 = vsel %vm1265, %v5765, %v5766
        %v5768 = vrot.slane %v5766, 2
        %v5769 = vrot.slane %v5128, 7
        %v5770 = vsel %vm1265, %v5768, %v5769
        %v5771 = vrot.slane %v5769, 2
        %v5772 = vrot.slane %v5136, 7
        %v5773 = vsel %vm1265, %v5771, %v5772
        %v5774 = vrot.slane %v5772, 2
        %v5775 = vrot.slane %v5135, 7
        %v5776 = vsel %vm1265, %v5774, %v5775
        %v5777 = vrot.slane %v5775, 2
        %v5778 = vrot.slane %v5137, 7
        %v5779 = vsel %vm1265, %v5777, %v5778
        %v5780 = vrot.slane %v5778, 2
        %v5781 = vrot.slane %v5145, 7
        %v5782 = vsel %vm1265, %v5780, %v5781
        %v5783 = vrot.slane %v5781, 2
        %v5784 = vrot.slane %v5153, 7
        %v5785 = vsel %vm1265, %v5783, %v5784
        %v5786 = vrot.slane %v5784, 2
        %v5787 = vrot.slane %v5152, 7
        %v5788 = vsel %vm1265, %v5786, %v5787
        %v5789 = vrot.slane %v5154, 7
        %v5790 = vrot.slane %v5789, 2
        %v5791 = vrot.slane %v5162, 7
        %v5792 = vsel %vm1265, %v5790, %v5791
        %v5793 = vrot.slane %v5791, 2
        %v5794 = vrot.slane %v5170, 7
        %v5795 = vsel %vm1265, %v5793, %v5794
        %v5796 = vrot.slane %v5794, 2
        %v5797 = vrot.slane %v5169, 7
        %v5798 = vsel %vm1265, %v5796, %v5797
        %v5799 = vrot.slane %v5797, 2
        %v5800 = vrot.slane %v5171, 7
        %v5801 = vsel %vm1265, %v5799, %v5800
        %v5802 = vrot.slane %v5800, 2
        %v5803 = vrot.slane %v5179, 7
        %v5804 = vsel %vm1265, %v5802, %v5803
        %v5805 = vrot.slane %v5803, 2
        %v5806 = vrot.slane %v5187, 7
        %v5807 = vsel %vm1265, %v5805, %v5806
        %v5808 = vrot.slane %v5806, 2
        %v5809 = vrot.slane %v5186, 7
        %v5810 = vsel %vm1265, %v5808, %v5809
        %v5811 = vrot.slane %v5809, 2
        %v5812 = vrot.slane %v5188, 7
        %v5813 = vsel %vm1265, %v5811, %v5812
        %v5814 = vrot.slane %v5196, 7
        %v5815 = vrot.slane %v5814, 2
        %v5816 = vrot.slane %v5204, 7
        %v5817 = vsel %vm1265, %v5815, %v5816
        %v5818 = vrot.slane %v5816, 2
        %v5819 = vrot.slane %v5203, 7
        %v5820 = vsel %vm1265, %v5818, %v5819
        %v5821 = vrot.slane %v5819, 2
        %v5822 = vrot.slane %v5205, 7
        %v5823 = vsel %vm1265, %v5821, %v5822
        %v5824 = vrot.slane %v5822, 2
        %v5825 = vrot.slane %v5213, 7
        %v5826 = vsel %vm1265, %v5824, %v5825
        %v5827 = vrot.slane %v5825, 2
        %v5828 = vrot.slane %v5221, 7
        %v5829 = vsel %vm1265, %v5827, %v5828
        %v5830 = vrot.slane %v5828, 2
        %v5831 = vrot.slane %v5220, 7
        %v5832 = vsel %vm1265, %v5830, %v5831
        %v5833 = vrot.slane %v5831, 2
        %v5834 = vrot.slane %v5222, 7
        %v5835 = vsel %vm1265, %v5833, %v5834
        %v5836 = vrot.slane %v5834, 2
        %v5837 = vrot.slane %v5230, 7
        %v5838 = vsel %vm1265, %v5836, %v5837
        %v5839 = vrot.slane %v5238, 7
        %v5840 = vrot.slane %v5839, 2
        %v5841 = vrot.slane %v5237, 7
        %v5842 = vsel %vm1265, %v5840, %v5841
        %v5843 = vrot.slane %v5841, 2
        %v5844 = vrot.slane %v5239, 7
        %v5845 = vsel %vm1265, %v5843, %v5844
        %v5846 = vrot.slane %v5844, 2
        %v5847 = vrot.slane %v5247, 7
        %v5848 = vsel %vm1265, %v5846, %v5847
        %v5849 = vrot.slane %v5847, 2
        %v5850 = vrot.slane %v5255, 7
        %v5851 = vsel %vm1265, %v5849, %v5850
        %v5852 = vrot.slane %v5850, 2
        %v5853 = vrot.slane %v5254, 7
        %v5854 = vsel %vm1265, %v5852, %v5853
        %v5855 = vrot.slane %v5853, 2
        %v5856 = vrot.slane %v5256, 7
        %v5857 = vsel %vm1265, %v5855, %v5856
        %v5858 = vrot.slane %v5856, 2
        %v5859 = vrot.slane %v5264, 7
        %v5860 = vsel %vm1265, %v5858, %v5859
        %v5861 = vrot.slane %v5859, 2
        %v5862 = vrot.slane %v5272, 7
        %v5863 = vsel %vm1265, %v5861, %v5862
        %v5864 = vrot.slane %v5271, 7
        %v5865 = vrot.slane %v5864, 2
        %v5866 = vrot.slane %v5273, 7
        %v5867 = vsel %vm1265, %v5865, %v5866
        %v5868 = vrot.slane %v5866, 2
        %v5869 = vrot.slane %v5281, 7
        %v5870 = vsel %vm1265, %v5868, %v5869
        %v5871 = vrot.slane %v5869, 2
        %v5872 = vrot.slane %v5289, 7
        %v5873 = vsel %vm1265, %v5871, %v5872
        %v5874 = vrot.slane %v5872, 2
        %v5875 = vrot.slane %v5288, 7
        %v5876 = vsel %vm1265, %v5874, %v5875
        %v5877 = vrot.slane %v5875, 2
        %v5878 = vrot.slane %v5290, 7
        %v5879 = vsel %vm1265, %v5877, %v5878
        %v5880 = vrot.slane %v5878, 2
        %v5881 = vrot.slane %v5298, 7
        %v5882 = vsel %vm1265, %v5880, %v5881
        %v5883 = vrot.slane %v5881, 2
        %v5884 = vrot.slane %v5306, 7
        %v5885 = vsel %vm1265, %v5883, %v5884
        %v5886 = vrot.slane %v5884, 2
        %v5887 = vrot.slane %v5305, 7
        %v5888 = vsel %vm1265, %v5886, %v5887
        %v5889 = vrot.slane %v5307, 7
        %v5890 = vrot.slane %v5889, 2
        %v5891 = vrot.slane %v5315, 7
        %v5892 = vsel %vm1265, %v5890, %v5891
        %v5893 = vrot.slane %v5891, 2
        %v5894 = vrot.slane %v5323, 7
        %v5895 = vsel %vm1265, %v5893, %v5894
        %v5896 = vrot.slane %v5894, 2
        %v5897 = vrot.slane %v5322, 7
        %v5898 = vsel %vm1265, %v5896, %v5897
        %v5899 = vrot.slane %v5897, 2
        %v5900 = vrot.slane %v5324, 7
        %v5901 = vsel %vm1265, %v5899, %v5900
        %v5902 = vrot.slane %v5900, 2
        %v5903 = vrot.slane %v5332, 7
        %v5904 = vsel %vm1265, %v5902, %v5903
        %v5905 = vrot.slane %v5903, 2
        %v5906 = vrot.slane %v5340, 7
        %v5907 = vsel %vm1265, %v5905, %v5906
        %v5908 = vrot.slane %v5906, 2
        %v5909 = vrot.slane %v5339, 7
        %v5910 = vsel %vm1265, %v5908, %v5909
        %v5911 = vrot.slane %v5909, 2
        %v5912 = vrot.slane %v5341, 7
        %v5913 = vsel %vm1265, %v5911, %v5912
        %v5914 = vcombine.low %v5717, %v5720
        %v5915 = vcombine.low %v5723, %v5726
        %v5917 = vunpack.c.l.s4 1983009808
        %v5918 = vunpack.c.0.s8 %v5917
        %v5919 = vlaneseq
        %v5920 = vshrl.u32 %v5919, 7
        %v5921 = vsub.s32 %v5918, %v5920
        %v5922 = vrot.slane %v5914, %v5921
        %v5924 = vunpack.c.l.s4 1983009808
        %v5925 = vunpack.c.0.s8 %v5924
        %v5926 = vlaneseq
        %v5927 = vshrl.u32 %v5926, 7
        %v5928 = vsub.s32 %v5925, %v5927
        %v5929 = vrot.slane %v5915, %v5928
        %v5930 = vcombine.low %v5922, %v5929
        %v5931 = vcombine.low %v5729, %v5732
        %v5932 = vcombine.low %v5735, %v5738
        %v5934 = vunpack.c.l.s4 1983009808
        %v5935 = vunpack.c.0.s8 %v5934
        %v5936 = vlaneseq
        %v5937 = vshrl.u32 %v5936, 7
        %v5938 = vsub.s32 %v5935, %v5937
        %v5939 = vrot.slane %v5931, %v5938
        %v5941 = vunpack.c.l.s4 1983009808
        %v5942 = vunpack.c.0.s8 %v5941
        %v5943 = vlaneseq
        %v5944 = vshrl.u32 %v5943, 7
        %v5945 = vsub.s32 %v5942, %v5944
        %v5946 = vrot.slane %v5932, %v5945
        %v5947 = vcombine.low %v5939, %v5946
        %v5948 = vcombine.low %v5742, %v5745
        %v5949 = vcombine.low %v5748, %v5751
        %v5951 = vunpack.c.l.s4 1983009808
        %v5952 = vunpack.c.0.s8 %v5951
        %v5953 = vlaneseq
        %v5954 = vshrl.u32 %v5953, 7
        %v5955 = vsub.s32 %v5952, %v5954
        %v5956 = vrot.slane %v5948, %v5955
        %v5958 = vunpack.c.l.s4 1983009808
        %v5959 = vunpack.c.0.s8 %v5958
        %v5960 = vlaneseq
        %v5961 = vshrl.u32 %v5960, 7
        %v5962 = vsub.s32 %v5959, %v5961
        %v5963 = vrot.slane %v5949, %v5962
        %v5964 = vcombine.low %v5956, %v5963
        %v5965 = vcombine.low %v5754, %v5757
        %v5966 = vcombine.low %v5760, %v5763
        %v5968 = vunpack.c.l.s4 1983009808
        %v5969 = vunpack.c.0.s8 %v5968
        %v5970 = vlaneseq
        %v5971 = vshrl.u32 %v5970, 7
        %v5972 = vsub.s32 %v5969, %v5971
        %v5973 = vrot.slane %v5965, %v5972
        %v5975 = vunpack.c.l.s4 1983009808
        %v5976 = vunpack.c.0.s8 %v5975
        %v5977 = vlaneseq
        %v5978 = vshrl.u32 %v5977, 7
        %v5979 = vsub.s32 %v5976, %v5978
        %v5980 = vrot.slane %v5966, %v5979
        %v5981 = vcombine.low %v5973, %v5980
        %v5982 = vcombine.low %v5767, %v5770
        %v5983 = vcombine.low %v5773, %v5776
        %v5985 = vunpack.c.l.s4 1983009808
        %v5986 = vunpack.c.0.s8 %v5985
        %v5987 = vlaneseq
        %v5988 = vshrl.u32 %v5987, 7
        %v5989 = vsub.s32 %v5986, %v5988
        %v5990 = vrot.slane %v5982, %v5989
        %v5992 = vunpack.c.l.s4 1983009808
        %v5993 = vunpack.c.0.s8 %v5992
        %v5994 = vlaneseq
        %v5995 = vshrl.u32 %v5994, 7
        %v5996 = vsub.s32 %v5993, %v5995
        %v5997 = vrot.slane %v5983, %v5996
        %v5998 = vcombine.low %v5990, %v5997
        %v5999 = vcombine.low %v5779, %v5782
        %v6000 = vcombine.low %v5785, %v5788
        %v6002 = vunpack.c.l.s4 1983009808
        %v6003 = vunpack.c.0.s8 %v6002
        %v6004 = vlaneseq
        %v6005 = vshrl.u32 %v6004, 7
        %v6006 = vsub.s32 %v6003, %v6005
        %v6007 = vrot.slane %v5999, %v6006
        %v6009 = vunpack.c.l.s4 1983009808
        %v6010 = vunpack.c.0.s8 %v6009
        %v6011 = vlaneseq
        %v6012 = vshrl.u32 %v6011, 7
        %v6013 = vsub.s32 %v6010, %v6012
        %v6014 = vrot.slane %v6000, %v6013
        %v6015 = vcombine.low %v6007, %v6014
        %v6016 = vcombine.low %v5792, %v5795
        %v6017 = vcombine.low %v5798, %v5801
        %v6019 = vunpack.c.l.s4 1983009808
        %v6020 = vunpack.c.0.s8 %v6019
        %v6021 = vlaneseq
        %v6022 = vshrl.u32 %v6021, 7
        %v6023 = vsub.s32 %v6020, %v6022
        %v6024 = vrot.slane %v6016, %v6023
        %v6026 = vunpack.c.l.s4 1983009808
        %v6027 = vunpack.c.0.s8 %v6026
        %v6028 = vlaneseq
        %v6029 = vshrl.u32 %v6028, 7
        %v6030 = vsub.s32 %v6027, %v6029
        %v6031 = vrot.slane %v6017, %v6030
        %v6032 = vcombine.low %v6024, %v6031
        %v6033 = vcombine.low %v5804, %v5807
        %v6034 = vcombine.low %v5810, %v5813
        %v6036 = vunpack.c.l.s4 1983009808
        %v6037 = vunpack.c.0.s8 %v6036
        %v6038 = vlaneseq
        %v6039 = vshrl.u32 %v6038, 7
        %v6040 = vsub.s32 %v6037, %v6039
        %v6041 = vrot.slane %v6033, %v6040
        %v6043 = vunpack.c.l.s4 1983009808
        %v6044 = vunpack.c.0.s8 %v6043
        %v6045 = vlaneseq
        %v6046 = vshrl.u32 %v6045, 7
        %v6047 = vsub.s32 %v6044, %v6046
        %v6048 = vrot.slane %v6034, %v6047
        %v6049 = vcombine.low %v6041, %v6048
        %v6050 = vcombine.low %v5817, %v5820
        %v6051 = vcombine.low %v5823, %v5826
        %v6053 = vunpack.c.l.s4 1983009808
        %v6054 = vunpack.c.0.s8 %v6053
        %v6055 = vlaneseq
        %v6056 = vshrl.u32 %v6055, 7
        %v6057 = vsub.s32 %v6054, %v6056
        %v6058 = vrot.slane %v6050, %v6057
        %v6060 = vunpack.c.l.s4 1983009808
        %v6061 = vunpack.c.0.s8 %v6060
        %v6062 = vlaneseq
        %v6063 = vshrl.u32 %v6062, 7
        %v6064 = vsub.s32 %v6061, %v6063
        %v6065 = vrot.slane %v6051, %v6064
        %v6066 = vcombine.low %v6058, %v6065
        %v6067 = vcombine.low %v5829, %v5832
        %v6068 = vcombine.low %v5835, %v5838
        %v6070 = vunpack.c.l.s4 1983009808
        %v6071 = vunpack.c.0.s8 %v6070
        %v6072 = vlaneseq
        %v6073 = vshrl.u32 %v6072, 7
        %v6074 = vsub.s32 %v6071, %v6073
        %v6075 = vrot.slane %v6067, %v6074
        %v6077 = vunpack.c.l.s4 1983009808
        %v6078 = vunpack.c.0.s8 %v6077
        %v6079 = vlaneseq
        %v6080 = vshrl.u32 %v6079, 7
        %v6081 = vsub.s32 %v6078, %v6080
        %v6082 = vrot.slane %v6068, %v6081
        %v6083 = vcombine.low %v6075, %v6082
        %v6084 = vcombine.low %v5842, %v5845
        %v6085 = vcombine.low %v5848, %v5851
        %v6087 = vunpack.c.l.s4 1983009808
        %v6088 = vunpack.c.0.s8 %v6087
        %v6089 = vlaneseq
        %v6090 = vshrl.u32 %v6089, 7
        %v6091 = vsub.s32 %v6088, %v6090
        %v6092 = vrot.slane %v6084, %v6091
        %v6094 = vunpack.c.l.s4 1983009808
        %v6095 = vunpack.c.0.s8 %v6094
        %v6096 = vlaneseq
        %v6097 = vshrl.u32 %v6096, 7
        %v6098 = vsub.s32 %v6095, %v6097
        %v6099 = vrot.slane %v6085, %v6098
        %v6100 = vcombine.low %v6092, %v6099
        %v6101 = vcombine.low %v5854, %v5857
        %v6102 = vcombine.low %v5860, %v5863
        %v6104 = vunpack.c.l.s4 1983009808
        %v6105 = vunpack.c.0.s8 %v6104
        %v6106 = vlaneseq
        %v6107 = vshrl.u32 %v6106, 7
        %v6108 = vsub.s32 %v6105, %v6107
        %v6109 = vrot.slane %v6101, %v6108
        %v6111 = vunpack.c.l.s4 1983009808
        %v6112 = vunpack.c.0.s8 %v6111
        %v6113 = vlaneseq
        %v6114 = vshrl.u32 %v6113, 7
        %v6115 = vsub.s32 %v6112, %v6114
        %v6116 = vrot.slane %v6102, %v6115
        %v6117 = vcombine.low %v6109, %v6116
        %v6118 = vcombine.low %v5867, %v5870
        %v6119 = vcombine.low %v5873, %v5876
        %v6121 = vunpack.c.l.s4 1983009808
        %v6122 = vunpack.c.0.s8 %v6121
        %v6123 = vlaneseq
        %v6124 = vshrl.u32 %v6123, 7
        %v6125 = vsub.s32 %v6122, %v6124
        %v6126 = vrot.slane %v6118, %v6125
        %v6128 = vunpack.c.l.s4 1983009808
        %v6129 = vunpack.c.0.s8 %v6128
        %v6130 = vlaneseq
        %v6131 = vshrl.u32 %v6130, 7
        %v6132 = vsub.s32 %v6129, %v6131
        %v6133 = vrot.slane %v6119, %v6132
        %v6134 = vcombine.low %v6126, %v6133
        %v6135 = vcombine.low %v5879, %v5882
        %v6136 = vcombine.low %v5885, %v5888
        %v6138 = vunpack.c.l.s4 1983009808
        %v6139 = vunpack.c.0.s8 %v6138
        %v6140 = vlaneseq
        %v6141 = vshrl.u32 %v6140, 7
        %v6142 = vsub.s32 %v6139, %v6141
        %v6143 = vrot.slane %v6135, %v6142
        %v6145 = vunpack.c.l.s4 1983009808
        %v6146 = vunpack.c.0.s8 %v6145
        %v6147 = vlaneseq
        %v6148 = vshrl.u32 %v6147, 7
        %v6149 = vsub.s32 %v6146, %v6148
        %v6150 = vrot.slane %v6136, %v6149
        %v6151 = vcombine.low %v6143, %v6150
        %v6152 = vcombine.low %v5892, %v5895
        %v6153 = vcombine.low %v5898, %v5901
        %v6155 = vunpack.c.l.s4 1983009808
        %v6156 = vunpack.c.0.s8 %v6155
        %v6157 = vlaneseq
        %v6158 = vshrl.u32 %v6157, 7
        %v6159 = vsub.s32 %v6156, %v6158
        %v6160 = vrot.slane %v6152, %v6159
        %v6162 = vunpack.c.l.s4 1983009808
        %v6163 = vunpack.c.0.s8 %v6162
        %v6164 = vlaneseq
        %v6165 = vshrl.u32 %v6164, 7
        %v6166 = vsub.s32 %v6163, %v6165
        %v6167 = vrot.slane %v6153, %v6166
        %v6168 = vcombine.low %v6160, %v6167
        %v6169 = vcombine.low %v5904, %v5907
        %v6170 = vcombine.low %v5910, %v5913
        %v6172 = vunpack.c.l.s4 1983009808
        %v6173 = vunpack.c.0.s8 %v6172
        %v6174 = vlaneseq
        %v6175 = vshrl.u32 %v6174, 7
        %v6176 = vsub.s32 %v6173, %v6175
        %v6177 = vrot.slane %v6169, %v6176
        %v6179 = vunpack.c.l.s4 1983009808
        %v6180 = vunpack.c.0.s8 %v6179
        %v6181 = vlaneseq
        %v6182 = vshrl.u32 %v6181, 7
        %v6183 = vsub.s32 %v6180, %v6182
        %v6184 = vrot.slane %v6170, %v6183
        %v6185 = vcombine.low %v6177, %v6184
        %v6202 = vpack.c.bf16 %v5947, %v5930
        %v6203 = vpack.c.bf16 %v5981, %v5964
        %v6204 = vpack.c.bf16 %v6015, %v5998
        %v6205 = vpack.c.bf16 %v6049, %v6032
        %v6206 = vpack.c.bf16 %v6083, %v6066
        %v6207 = vpack.c.bf16 %v6117, %v6100
        %v6208 = vpack.c.bf16 %v6151, %v6134
        %v6209 = vpack.c.bf16 %v6185, %v6168
        %v6210 = vcombine.low %v5051, %v5050
        %v6211 = vcombine.low %v5052, %v5060
        %v6213 = vunpack.c.l.s4 1983009808
        %v6214 = vunpack.c.0.s8 %v6213
        %v6215 = vlaneseq
        %v6216 = vshrl.u32 %v6215, 7
        %v6217 = vsub.s32 %v6214, %v6216
        %v6218 = vrot.slane %v6210, %v6217
        %v6220 = vunpack.c.l.s4 1983009808
        %v6221 = vunpack.c.0.s8 %v6220
        %v6222 = vlaneseq
        %v6223 = vshrl.u32 %v6222, 7
        %v6224 = vsub.s32 %v6221, %v6223
        %v6225 = vrot.slane %v6211, %v6224
        %v6226 = vcombine.low %v6218, %v6225
        %v6227 = vcombine.low %v5068, %v5067
        %v6228 = vcombine.low %v5069, %v5077
        %v6230 = vunpack.c.l.s4 1983009808
        %v6231 = vunpack.c.0.s8 %v6230
        %v6232 = vlaneseq
        %v6233 = vshrl.u32 %v6232, 7
        %v6234 = vsub.s32 %v6231, %v6233
        %v6235 = vrot.slane %v6227, %v6234
        %v6237 = vunpack.c.l.s4 1983009808
        %v6238 = vunpack.c.0.s8 %v6237
        %v6239 = vlaneseq
        %v6240 = vshrl.u32 %v6239, 7
        %v6241 = vsub.s32 %v6238, %v6240
        %v6242 = vrot.slane %v6228, %v6241
        %v6243 = vcombine.low %v6235, %v6242
        %v6244 = vcombine.low %v5084, %v5086
        %v6245 = vcombine.low %v5094, %v5102
        %v6247 = vunpack.c.l.s4 1983009808
        %v6248 = vunpack.c.0.s8 %v6247
        %v6249 = vlaneseq
        %v6250 = vshrl.u32 %v6249, 7
        %v6251 = vsub.s32 %v6248, %v6250
        %v6252 = vrot.slane %v6244, %v6251
        %v6254 = vunpack.c.l.s4 1983009808
        %v6255 = vunpack.c.0.s8 %v6254
        %v6256 = vlaneseq
        %v6257 = vshrl.u32 %v6256, 7
        %v6258 = vsub.s32 %v6255, %v6257
        %v6259 = vrot.slane %v6245, %v6258
        %v6260 = vcombine.low %v6252, %v6259
        %v6261 = vcombine.low %v5101, %v5103
        %v6262 = vcombine.low %v5111, %v5119
        %v6264 = vunpack.c.l.s4 1983009808
        %v6265 = vunpack.c.0.s8 %v6264
        %v6266 = vlaneseq
        %v6267 = vshrl.u32 %v6266, 7
        %v6268 = vsub.s32 %v6265, %v6267
        %v6269 = vrot.slane %v6261, %v6268
        %v6271 = vunpack.c.l.s4 1983009808
        %v6272 = vunpack.c.0.s8 %v6271
        %v6273 = vlaneseq
        %v6274 = vshrl.u32 %v6273, 7
        %v6275 = vsub.s32 %v6272, %v6274
        %v6276 = vrot.slane %v6262, %v6275
        %v6277 = vcombine.low %v6269, %v6276
        %v6278 = vcombine.low %v5120, %v5128
        %v6279 = vcombine.low %v5136, %v5135
        %v6281 = vunpack.c.l.s4 1983009808
        %v6282 = vunpack.c.0.s8 %v6281
        %v6283 = vlaneseq
        %v6284 = vshrl.u32 %v6283, 7
        %v6285 = vsub.s32 %v6282, %v6284
        %v6286 = vrot.slane %v6278, %v6285
        %v6288 = vunpack.c.l.s4 1983009808
        %v6289 = vunpack.c.0.s8 %v6288
        %v6290 = vlaneseq
        %v6291 = vshrl.u32 %v6290, 7
        %v6292 = vsub.s32 %v6289, %v6291
        %v6293 = vrot.slane %v6279, %v6292
        %v6294 = vcombine.low %v6286, %v6293
        %v6295 = vcombine.low %v5137, %v5145
        %v6296 = vcombine.low %v5153, %v5152
        %v6298 = vunpack.c.l.s4 1983009808
        %v6299 = vunpack.c.0.s8 %v6298
        %v6300 = vlaneseq
        %v6301 = vshrl.u32 %v6300, 7
        %v6302 = vsub.s32 %v6299, %v6301
        %v6303 = vrot.slane %v6295, %v6302
        %v6305 = vunpack.c.l.s4 1983009808
        %v6306 = vunpack.c.0.s8 %v6305
        %v6307 = vlaneseq
        %v6308 = vshrl.u32 %v6307, 7
        %v6309 = vsub.s32 %v6306, %v6308
        %v6310 = vrot.slane %v6296, %v6309
        %v6311 = vcombine.low %v6303, %v6310
        %v6312 = vcombine.low %v5162, %v5170
        %v6313 = vcombine.low %v5169, %v5171
        %v6315 = vunpack.c.l.s4 1983009808
        %v6316 = vunpack.c.0.s8 %v6315
        %v6317 = vlaneseq
        %v6318 = vshrl.u32 %v6317, 7
        %v6319 = vsub.s32 %v6316, %v6318
        %v6320 = vrot.slane %v6312, %v6319
        %v6322 = vunpack.c.l.s4 1983009808
        %v6323 = vunpack.c.0.s8 %v6322
        %v6324 = vlaneseq
        %v6325 = vshrl.u32 %v6324, 7
        %v6326 = vsub.s32 %v6323, %v6325
        %v6327 = vrot.slane %v6313, %v6326
        %v6328 = vcombine.low %v6320, %v6327
        %v6329 = vcombine.low %v5179, %v5187
        %v6330 = vcombine.low %v5186, %v5188
        %v6332 = vunpack.c.l.s4 1983009808
        %v6333 = vunpack.c.0.s8 %v6332
        %v6334 = vlaneseq
        %v6335 = vshrl.u32 %v6334, 7
        %v6336 = vsub.s32 %v6333, %v6335
        %v6337 = vrot.slane %v6329, %v6336
        %v6339 = vunpack.c.l.s4 1983009808
        %v6340 = vunpack.c.0.s8 %v6339
        %v6341 = vlaneseq
        %v6342 = vshrl.u32 %v6341, 7
        %v6343 = vsub.s32 %v6340, %v6342
        %v6344 = vrot.slane %v6330, %v6343
        %v6345 = vcombine.low %v6337, %v6344
        %v6346 = vcombine.low %v5204, %v5203
        %v6347 = vcombine.low %v5205, %v5213
        %v6349 = vunpack.c.l.s4 1983009808
        %v6350 = vunpack.c.0.s8 %v6349
        %v6351 = vlaneseq
        %v6352 = vshrl.u32 %v6351, 7
        %v6353 = vsub.s32 %v6350, %v6352
        %v6354 = vrot.slane %v6346, %v6353
        %v6356 = vunpack.c.l.s4 1983009808
        %v6357 = vunpack.c.0.s8 %v6356
        %v6358 = vlaneseq
        %v6359 = vshrl.u32 %v6358, 7
        %v6360 = vsub.s32 %v6357, %v6359
        %v6361 = vrot.slane %v6347, %v6360
        %v6362 = vcombine.low %v6354, %v6361
        %v6363 = vcombine.low %v5221, %v5220
        %v6364 = vcombine.low %v5222, %v5230
        %v6366 = vunpack.c.l.s4 1983009808
        %v6367 = vunpack.c.0.s8 %v6366
        %v6368 = vlaneseq
        %v6369 = vshrl.u32 %v6368, 7
        %v6370 = vsub.s32 %v6367, %v6369
        %v6371 = vrot.slane %v6363, %v6370
        %v6373 = vunpack.c.l.s4 1983009808
        %v6374 = vunpack.c.0.s8 %v6373
        %v6375 = vlaneseq
        %v6376 = vshrl.u32 %v6375, 7
        %v6377 = vsub.s32 %v6374, %v6376
        %v6378 = vrot.slane %v6364, %v6377
        %v6379 = vcombine.low %v6371, %v6378
        %v6380 = vcombine.low %v5237, %v5239
        %v6381 = vcombine.low %v5247, %v5255
        %v6383 = vunpack.c.l.s4 1983009808
        %v6384 = vunpack.c.0.s8 %v6383
        %v6385 = vlaneseq
        %v6386 = vshrl.u32 %v6385, 7
        %v6387 = vsub.s32 %v6384, %v6386
        %v6388 = vrot.slane %v6380, %v6387
        %v6390 = vunpack.c.l.s4 1983009808
        %v6391 = vunpack.c.0.s8 %v6390
        %v6392 = vlaneseq
        %v6393 = vshrl.u32 %v6392, 7
        %v6394 = vsub.s32 %v6391, %v6393
        %v6395 = vrot.slane %v6381, %v6394
        %v6396 = vcombine.low %v6388, %v6395
        %v6397 = vcombine.low %v5254, %v5256
        %v6398 = vcombine.low %v5264, %v5272
        %v6400 = vunpack.c.l.s4 1983009808
        %v6401 = vunpack.c.0.s8 %v6400
        %v6402 = vlaneseq
        %v6403 = vshrl.u32 %v6402, 7
        %v6404 = vsub.s32 %v6401, %v6403
        %v6405 = vrot.slane %v6397, %v6404
        %v6407 = vunpack.c.l.s4 1983009808
        %v6408 = vunpack.c.0.s8 %v6407
        %v6409 = vlaneseq
        %v6410 = vshrl.u32 %v6409, 7
        %v6411 = vsub.s32 %v6408, %v6410
        %v6412 = vrot.slane %v6398, %v6411
        %v6413 = vcombine.low %v6405, %v6412
        %v6414 = vcombine.low %v5273, %v5281
        %v6415 = vcombine.low %v5289, %v5288
        %v6417 = vunpack.c.l.s4 1983009808
        %v6418 = vunpack.c.0.s8 %v6417
        %v6419 = vlaneseq
        %v6420 = vshrl.u32 %v6419, 7
        %v6421 = vsub.s32 %v6418, %v6420
        %v6422 = vrot.slane %v6414, %v6421
        %v6424 = vunpack.c.l.s4 1983009808
        %v6425 = vunpack.c.0.s8 %v6424
        %v6426 = vlaneseq
        %v6427 = vshrl.u32 %v6426, 7
        %v6428 = vsub.s32 %v6425, %v6427
        %v6429 = vrot.slane %v6415, %v6428
        %v6430 = vcombine.low %v6422, %v6429
        %v6431 = vcombine.low %v5290, %v5298
        %v6432 = vcombine.low %v5306, %v5305
        %v6434 = vunpack.c.l.s4 1983009808
        %v6435 = vunpack.c.0.s8 %v6434
        %v6436 = vlaneseq
        %v6437 = vshrl.u32 %v6436, 7
        %v6438 = vsub.s32 %v6435, %v6437
        %v6439 = vrot.slane %v6431, %v6438
        %v6441 = vunpack.c.l.s4 1983009808
        %v6442 = vunpack.c.0.s8 %v6441
        %v6443 = vlaneseq
        %v6444 = vshrl.u32 %v6443, 7
        %v6445 = vsub.s32 %v6442, %v6444
        %v6446 = vrot.slane %v6432, %v6445
        %v6447 = vcombine.low %v6439, %v6446
        %v6448 = vcombine.low %v5315, %v5323
        %v6449 = vcombine.low %v5322, %v5324
        %v6451 = vunpack.c.l.s4 1983009808
        %v6452 = vunpack.c.0.s8 %v6451
        %v6453 = vlaneseq
        %v6454 = vshrl.u32 %v6453, 7
        %v6455 = vsub.s32 %v6452, %v6454
        %v6456 = vrot.slane %v6448, %v6455
        %v6458 = vunpack.c.l.s4 1983009808
        %v6459 = vunpack.c.0.s8 %v6458
        %v6460 = vlaneseq
        %v6461 = vshrl.u32 %v6460, 7
        %v6462 = vsub.s32 %v6459, %v6461
        %v6463 = vrot.slane %v6449, %v6462
        %v6464 = vcombine.low %v6456, %v6463
        %v6465 = vcombine.low %v5332, %v5340
        %v6466 = vcombine.low %v5339, %v5341
        %v6468 = vunpack.c.l.s4 1983009808
        %v6469 = vunpack.c.0.s8 %v6468
        %v6470 = vlaneseq
        %v6471 = vshrl.u32 %v6470, 7
        %v6472 = vsub.s32 %v6469, %v6471
        %v6473 = vrot.slane %v6465, %v6472
        %v6475 = vunpack.c.l.s4 1983009808
        %v6476 = vunpack.c.0.s8 %v6475
        %v6477 = vlaneseq
        %v6478 = vshrl.u32 %v6477, 7
        %v6479 = vsub.s32 %v6476, %v6478
        %v6480 = vrot.slane %v6466, %v6479
        %v6481 = vcombine.low %v6473, %v6480
        %v6498 = vpack.c.bf16 %v6243, %v6226
        %v6499 = vpack.c.bf16 %v6277, %v6260
        %v6500 = vpack.c.bf16 %v6311, %v6294
        %v6501 = vpack.c.bf16 %v6345, %v6328
        %v6502 = vpack.c.bf16 %v6379, %v6362
        %v6503 = vpack.c.bf16 %v6413, %v6396
        %v6504 = vpack.c.bf16 %v6447, %v6430
        %v6505 = vpack.c.bf16 %v6481, %v6464
        %v6506 = vcombine.low %v5349, %v5357
        %v6507 = vcombine.low %v5356, %v5358
        %v6509 = vunpack.c.l.s4 1983009808
        %v6510 = vunpack.c.0.s8 %v6509
        %v6511 = vlaneseq
        %v6512 = vshrl.u32 %v6511, 7
        %v6513 = vsub.s32 %v6510, %v6512
        %v6514 = vrot.slane %v6506, %v6513
        %v6516 = vunpack.c.l.s4 1983009808
        %v6517 = vunpack.c.0.s8 %v6516
        %v6518 = vlaneseq
        %v6519 = vshrl.u32 %v6518, 7
        %v6520 = vsub.s32 %v6517, %v6519
        %v6521 = vrot.slane %v6507, %v6520
        %v6522 = vcombine.low %v6514, %v6521
        %v6523 = vcombine.low %v5366, %v5374
        %v6524 = vcombine.low %v5373, %v5375
        %v6526 = vunpack.c.l.s4 1983009808
        %v6527 = vunpack.c.0.s8 %v6526
        %v6528 = vlaneseq
        %v6529 = vshrl.u32 %v6528, 7
        %v6530 = vsub.s32 %v6527, %v6529
        %v6531 = vrot.slane %v6523, %v6530
        %v6533 = vunpack.c.l.s4 1983009808
        %v6534 = vunpack.c.0.s8 %v6533
        %v6535 = vlaneseq
        %v6536 = vshrl.u32 %v6535, 7
        %v6537 = vsub.s32 %v6534, %v6536
        %v6538 = vrot.slane %v6524, %v6537
        %v6539 = vcombine.low %v6531, %v6538
        %v6542 = vpack.c.bf16 %v6539, %v6522
        %v6543 = vrot.slane %v5349, 7
        %v6544 = vrot.slane %v6543, 2
        %v6545 = vrot.slane %v5357, 7
        %v6546 = vsel %vm1265, %v6544, %v6545
        %v6547 = vrot.slane %v6545, 2
        %v6548 = vrot.slane %v5356, 7
        %v6549 = vsel %vm1265, %v6547, %v6548
        %v6550 = vrot.slane %v6548, 2
        %v6551 = vrot.slane %v5358, 7
        %v6552 = vsel %vm1265, %v6550, %v6551
        %v6553 = vrot.slane %v6551, 2
        %v6554 = vrot.slane %v5366, 7
        %v6555 = vsel %vm1265, %v6553, %v6554
        %v6556 = vrot.slane %v6554, 2
        %v6557 = vrot.slane %v5374, 7
        %v6558 = vsel %vm1265, %v6556, %v6557
        %v6559 = vrot.slane %v6557, 2
        %v6560 = vrot.slane %v5373, 7
        %v6561 = vsel %vm1265, %v6559, %v6560
        %v6562 = vrot.slane %v6560, 2
        %v6563 = vrot.slane %v5375, 7
        %v6564 = vsel %vm1265, %v6562, %v6563
        %v6565 = vrot.slane %v6563, 2
        %v6566 = vrot.slane %v5383, 7
        %v6567 = vsel %vm1265, %v6565, %v6566
        %v6568 = vcombine.low %v6546, %v6549
        %v6569 = vcombine.low %v6552, %v6555
        %v6571 = vunpack.c.l.s4 1983009808
        %v6572 = vunpack.c.0.s8 %v6571
        %v6573 = vlaneseq
        %v6574 = vshrl.u32 %v6573, 7
        %v6575 = vsub.s32 %v6572, %v6574
        %v6576 = vrot.slane %v6568, %v6575
        %v6578 = vunpack.c.l.s4 1983009808
        %v6579 = vunpack.c.0.s8 %v6578
        %v6580 = vlaneseq
        %v6581 = vshrl.u32 %v6580, 7
        %v6582 = vsub.s32 %v6579, %v6581
        %v6583 = vrot.slane %v6569, %v6582
        %v6584 = vcombine.low %v6576, %v6583
        %v6585 = vcombine.low %v6558, %v6561
        %v6586 = vcombine.low %v6564, %v6567
        %v6588 = vunpack.c.l.s4 1983009808
        %v6589 = vunpack.c.0.s8 %v6588
        %v6590 = vlaneseq
        %v6591 = vshrl.u32 %v6590, 7
        %v6592 = vsub.s32 %v6589, %v6591
        %v6593 = vrot.slane %v6585, %v6592
        %v6595 = vunpack.c.l.s4 1983009808
        %v6596 = vunpack.c.0.s8 %v6595
        %v6597 = vlaneseq
        %v6598 = vshrl.u32 %v6597, 7
        %v6599 = vsub.s32 %v6596, %v6598
        %v6600 = vrot.slane %v6586, %v6599
        %v6601 = vcombine.low %v6593, %v6600
        %v6604 = vpack.c.bf16 %v6601, %v6584
        %v6605 = vcombine.low %v5357, %v5356
        %v6606 = vcombine.low %v5358, %v5366
        %v6608 = vunpack.c.l.s4 1983009808
        %v6609 = vunpack.c.0.s8 %v6608
        %v6610 = vlaneseq
        %v6611 = vshrl.u32 %v6610, 7
        %v6612 = vsub.s32 %v6609, %v6611
        %v6613 = vrot.slane %v6605, %v6612
        %v6615 = vunpack.c.l.s4 1983009808
        %v6616 = vunpack.c.0.s8 %v6615
        %v6617 = vlaneseq
        %v6618 = vshrl.u32 %v6617, 7
        %v6619 = vsub.s32 %v6616, %v6618
        %v6620 = vrot.slane %v6606, %v6619
        %v6621 = vcombine.low %v6613, %v6620
        %v6622 = vcombine.low %v5374, %v5373
        %v6623 = vcombine.low %v5375, %v5383
        %v6625 = vunpack.c.l.s4 1983009808
        %v6626 = vunpack.c.0.s8 %v6625
        %v6627 = vlaneseq
        %v6628 = vshrl.u32 %v6627, 7
        %v6629 = vsub.s32 %v6626, %v6628
        %v6630 = vrot.slane %v6622, %v6629
        %v6632 = vunpack.c.l.s4 1983009808
        %v6633 = vunpack.c.0.s8 %v6632
        %v6634 = vlaneseq
        %v6635 = vshrl.u32 %v6634, 7
        %v6636 = vsub.s32 %v6633, %v6635
        %v6637 = vrot.slane %v6623, %v6636
        %v6638 = vcombine.low %v6630, %v6637
        %v6641 = vpack.c.bf16 %v6638, %v6621
        %v6642 = vcombine.low %v5391, %v5390
        %v6643 = vcombine.low %v5392, %v5400
        %v6645 = vunpack.c.l.s4 1983009808
        %v6646 = vunpack.c.0.s8 %v6645
        %v6647 = vlaneseq
        %v6648 = vshrl.u32 %v6647, 7
        %v6649 = vsub.s32 %v6646, %v6648
        %v6650 = vrot.slane %v6642, %v6649
        %v6652 = vunpack.c.l.s4 1983009808
        %v6653 = vunpack.c.0.s8 %v6652
        %v6654 = vlaneseq
        %v6655 = vshrl.u32 %v6654, 7
        %v6656 = vsub.s32 %v6653, %v6655
        %v6657 = vrot.slane %v6643, %v6656
        %v6658 = vcombine.low %v6650, %v6657
        %v6659 = vcombine.low %v5408, %v5407
        %v6660 = vcombine.low %v5409, %v5416
        %v6662 = vunpack.c.l.s4 1983009808
        %v6663 = vunpack.c.0.s8 %v6662
        %v6664 = vlaneseq
        %v6665 = vshrl.u32 %v6664, 7
        %v6666 = vsub.s32 %v6663, %v6665
        %v6667 = vrot.slane %v6659, %v6666
        %v6669 = vunpack.c.l.s4 1983009808
        %v6670 = vunpack.c.0.s8 %v6669
        %v6671 = vlaneseq
        %v6672 = vshrl.u32 %v6671, 7
        %v6673 = vsub.s32 %v6670, %v6672
        %v6674 = vrot.slane %v6660, %v6673
        %v6675 = vcombine.low %v6667, %v6674
        %v6678 = vpack.c.bf16 %v6675, %v6658
        %v6679 = vrot.slane %v5391, 7
        %v6680 = vrot.slane %v6679, 2
        %v6681 = vrot.slane %v5390, 7
        %v6682 = vsel %vm1265, %v6680, %v6681
        %v6683 = vrot.slane %v6681, 2
        %v6684 = vrot.slane %v5392, 7
        %v6685 = vsel %vm1265, %v6683, %v6684
        %v6686 = vrot.slane %v6684, 2
        %v6687 = vrot.slane %v5400, 7
        %v6688 = vsel %vm1265, %v6686, %v6687
        %v6689 = vrot.slane %v6687, 2
        %v6690 = vrot.slane %v5408, 7
        %v6691 = vsel %vm1265, %v6689, %v6690
        %v6692 = vrot.slane %v6690, 2
        %v6693 = vrot.slane %v5407, 7
        %v6694 = vsel %vm1265, %v6692, %v6693
        %v6695 = vrot.slane %v6693, 2
        %v6696 = vrot.slane %v5409, 7
        %v6697 = vsel %vm1265, %v6695, %v6696
        %v6698 = vrot.slane %v6696, 2
        %v6699 = vrot.slane %v5416, 7
        %v6700 = vsel %vm1265, %v6698, %v6699
        %v6701 = vrot.slane %v6699, 2
        %v6702 = vrot.slane %v5417, 7
        %v6703 = vsel %vm1265, %v6701, %v6702
        %v6704 = vcombine.low %v6682, %v6685
        %v6705 = vcombine.low %v6688, %v6691
        %v6707 = vunpack.c.l.s4 1983009808
        %v6708 = vunpack.c.0.s8 %v6707
        %v6709 = vlaneseq
        %v6710 = vshrl.u32 %v6709, 7
        %v6711 = vsub.s32 %v6708, %v6710
        %v6712 = vrot.slane %v6704, %v6711
        %v6714 = vunpack.c.l.s4 1983009808
        %v6715 = vunpack.c.0.s8 %v6714
        %v6716 = vlaneseq
        %v6717 = vshrl.u32 %v6716, 7
        %v6718 = vsub.s32 %v6715, %v6717
        %v6719 = vrot.slane %v6705, %v6718
        %v6720 = vcombine.low %v6712, %v6719
        %v6721 = vcombine.low %v6694, %v6697
        %v6722 = vcombine.low %v6700, %v6703
        %v6724 = vunpack.c.l.s4 1983009808
        %v6725 = vunpack.c.0.s8 %v6724
        %v6726 = vlaneseq
        %v6727 = vshrl.u32 %v6726, 7
        %v6728 = vsub.s32 %v6725, %v6727
        %v6729 = vrot.slane %v6721, %v6728
        %v6731 = vunpack.c.l.s4 1983009808
        %v6732 = vunpack.c.0.s8 %v6731
        %v6733 = vlaneseq
        %v6734 = vshrl.u32 %v6733, 7
        %v6735 = vsub.s32 %v6732, %v6734
        %v6736 = vrot.slane %v6722, %v6735
        %v6737 = vcombine.low %v6729, %v6736
        %v6740 = vpack.c.bf16 %v6737, %v6720
        %v6741 = vcombine.low %v5390, %v5392
        %v6742 = vcombine.low %v5400, %v5408
        %v6744 = vunpack.c.l.s4 1983009808
        %v6745 = vunpack.c.0.s8 %v6744
        %v6746 = vlaneseq
        %v6747 = vshrl.u32 %v6746, 7
        %v6748 = vsub.s32 %v6745, %v6747
        %v6749 = vrot.slane %v6741, %v6748
        %v6751 = vunpack.c.l.s4 1983009808
        %v6752 = vunpack.c.0.s8 %v6751
        %v6753 = vlaneseq
        %v6754 = vshrl.u32 %v6753, 7
        %v6755 = vsub.s32 %v6752, %v6754
        %v6756 = vrot.slane %v6742, %v6755
        %v6757 = vcombine.low %v6749, %v6756
        %v6758 = vcombine.low %v5407, %v5409
        %v6759 = vcombine.low %v5416, %v5417
        %v6761 = vunpack.c.l.s4 1983009808
        %v6762 = vunpack.c.0.s8 %v6761
        %v6763 = vlaneseq
        %v6764 = vshrl.u32 %v6763, 7
        %v6765 = vsub.s32 %v6762, %v6764
        %v6766 = vrot.slane %v6758, %v6765
        %v6768 = vunpack.c.l.s4 1983009808
        %v6769 = vunpack.c.0.s8 %v6768
        %v6770 = vlaneseq
        %v6771 = vshrl.u32 %v6770, 7
        %v6772 = vsub.s32 %v6769, %v6771
        %v6773 = vrot.slane %v6759, %v6772
        %v6774 = vcombine.low %v6766, %v6773
        %v6777 = vpack.c.bf16 %v6774, %v6757
        %v6778 = vld [vmem:[%s5] sm:$0xf]
        %v6779 = vld [vmem:[%s5 + $0x4] sm:$0xf]
        %v6780 = vld [vmem:[%s5 + $0x8] sm:$0xf]
        %v6781 = vld [vmem:[%s5 + $0xc] sm:$0xf]
        %v6782 = vld [vmem:[%s5 + $0x10] sm:$0xf]
        %v6783 = vld [vmem:[%s5 + $0x14] sm:$0xf]
        %v6784 = vld [vmem:[%s5 + $0x18] sm:$0xf]
        %v6785 = vld [vmem:[%s5 + $0x1c] sm:$0xf]
        %v6786 = vld [vmem:[%s5 + $0x20] sm:$0xf]
        %v6787 = vld [vmem:[%s5 + $0x24] sm:$0xf]
        %v6788 = vld [vmem:[%s5 + $0x28] sm:$0xf]
        %v6789 = vld [vmem:[%s5 + $0x2c] sm:$0xf]
        %v6790 = vld [vmem:[%s5 + $0x30] sm:$0xf]
        %v6791 = vld [vmem:[%s5 + $0x34] sm:$0xf]
        %v6792 = vld [vmem:[%s5 + $0x38] sm:$0xf]
        %v6793 = vld [vmem:[%s5 + $0x3c] sm:$0xf]
        %v6794 = vld [vmem:[%s5 + $0x40] sm:$0xf]
        %v6795 = vld [vmem:[%s5 + $0x44] sm:$0xf]
        %v6796 = vld [vmem:[%s5 + $0x48] sm:$0xf]
        %v6797 = vld [vmem:[%s5 + $0x4c] sm:$0xf]
        %v6798 = vld [vmem:[%s5 + $0x50] sm:$0xf]
        %v6799 = vld [vmem:[%s5 + $0x54] sm:$0xf]
        %v6800 = vld [vmem:[%s5 + $0x58] sm:$0xf]
        %v6801 = vld [vmem:[%s5 + $0x5c] sm:$0xf]
        %v6802 = vld [vmem:[%s5 + $0x60] sm:$0xf]
        %v6803 = vld [vmem:[%s5 + $0x64] sm:$0xf]
        %v6804 = vld [vmem:[%s5 + $0x68] sm:$0xf]
        %v6805 = vld [vmem:[%s5 + $0x6c] sm:$0xf]
        %v6806 = vld [vmem:[%s5 + $0x70] sm:$0xf]
        %v6807 = vld [vmem:[%s5 + $0x74] sm:$0xf]
        %v6808 = vld [vmem:[%s5 + $0x78] sm:$0xf]
        %v6809 = vld [vmem:[%s5 + $0x7c] sm:$0xf]
        %v6810 = vld [vmem:[%s5 + $0x80] sm:$0xf]
        %v6811 = vld [vmem:[%s5 + $0x84] sm:$0xf]
        %v6812 = vld [vmem:[%s5 + $0x88] sm:$0xf]
        %v6813 = vld [vmem:[%s5 + $0x8c] sm:$0xf]
        %v6814 = vld [vmem:[%s5 + $0x90] sm:$0xf]
        %v6815 = vld [vmem:[%s5 + $0x94] sm:$0xf]
        %v6816 = vld [vmem:[%s5 + $0x98] sm:$0xf]
        %v6817 = vld [vmem:[%s5 + $0x9c] sm:$0xf]
        %v6818 = vld [vmem:[%s5 + $0xa0] sm:$0xf]
        %v6819 = vld [vmem:[%s5 + $0xa4] sm:$0xf]
        %v6820 = vld [vmem:[%s5 + $0xa8] sm:$0xf]
        %v6821 = vld [vmem:[%s5 + $0xac] sm:$0xf]
        %v6822 = vld [vmem:[%s5 + $0xb0] sm:$0xf]
        %v6823 = vld [vmem:[%s5 + $0xb4] sm:$0xf]
        %v6824 = vld [vmem:[%s5 + $0xb8] sm:$0xf]
        %v6825 = vld [vmem:[%s5 + $0xbc] sm:$0xf]
        %v6826 = vld [vmem:[%s5 + $0xc0] sm:$0xf]
        %v6827 = vld [vmem:[%s5 + $0xc4] sm:$0xf]
        %v6828 = vld [vmem:[%s5 + $0xc8] sm:$0xf]
        %v6829 = vld [vmem:[%s5 + $0xcc] sm:$0xf]
        %v6830 = vld [vmem:[%s5 + $0xd0] sm:$0xf]
        %v6831 = vld [vmem:[%s5 + $0xd4] sm:$0xf]
        %v6832 = vld [vmem:[%s5 + $0xd8] sm:$0xf]
        %v6833 = vld [vmem:[%s5 + $0xdc] sm:$0xf]
        %v6834 = vld [vmem:[%s5 + $0xe0] sm:$0xf]
        %v6835 = vld [vmem:[%s5 + $0xe4] sm:$0xf]
        %v6836 = vld [vmem:[%s5 + $0xe8] sm:$0xf]
        %v6837 = vld [vmem:[%s5 + $0xec] sm:$0xf]
        %v6838 = vld [vmem:[%s5 + $0xf0] sm:$0xf]
        %v6839 = vld [vmem:[%s5 + $0xf4] sm:$0xf]
        %v6840 = vld [vmem:[%s5 + $0xf8] sm:$0xf]
        %v6841 = vld [vmem:[%s5 + $0xfc] sm:$0xf]
        %v6842 = vld [vmem:[%s5 + $0x100] sm:$0xf]
        %v6843 = vld [vmem:[%s5 + $0x104] sm:$0xf]
        %v6844 = vld [vmem:[%s5 + $0x108] sm:$0xf]
        %v6845 = vld [vmem:[%s5 + $0x10c] sm:$0xf]
        %v6846 = vld [vmem:[%s5 + $0x110] sm:$0xf]
        %v6847 = vld [vmem:[%s5 + $0x114] sm:$0xf]
        %v6848 = vld [vmem:[%s5 + $0x118] sm:$0xf]
        %v6849 = vld [vmem:[%s5 + $0x11c] sm:$0xf]
        %v6850 = vld [vmem:[%s5 + $0x120] sm:$0xf]
        %v6851 = vld [vmem:[%s5 + $0x124] sm:$0xf]
        %v6852 = vld [vmem:[%s5 + $0x128] sm:$0xf]
        %v6853 = vld [vmem:[%s5 + $0x12c] sm:$0xf]
        %v6854 = vld [vmem:[%s5 + $0x130] sm:$0xf]
        %v6855 = vld [vmem:[%s5 + $0x134] sm:$0xf]
        %v6856 = vld [vmem:[%s5 + $0x138] sm:$0xf]
        %v6857 = vld [vmem:[%s5 + $0x13c] sm:$0xf]
        %v6858 = vld [vmem:[%s5 + $0x140] sm:$0xf]
        %v6859 = vld [vmem:[%s5 + $0x144] sm:$0xf]
        %v6860 = vld [vmem:[%s5 + $0x148] sm:$0xf]
        %v6861 = vld [vmem:[%s5 + $0x14c] sm:$0xf]
        %v6862 = vld [vmem:[%s5 + $0x150] sm:$0xf]
        %v6863 = vld [vmem:[%s5 + $0x154] sm:$0xf]
        %v6864 = vld [vmem:[%s5 + $0x158] sm:$0xf]
        %v6865 = vld [vmem:[%s5 + $0x15c] sm:$0xf]
        %v6866 = vld [vmem:[%s5 + $0x160] sm:$0xf]
        %v6867 = vld [vmem:[%s5 + $0x164] sm:$0xf]
        %v6868 = vld [vmem:[%s5 + $0x168] sm:$0xf]
        %v6869 = vld [vmem:[%s5 + $0x16c] sm:$0xf]
        %v6870 = vld [vmem:[%s5 + $0x170] sm:$0xf]
        %v6871 = vld [vmem:[%s5 + $0x174] sm:$0xf]
        %v6872 = vld [vmem:[%s5 + $0x178] sm:$0xf]
        %v6873 = vld [vmem:[%s5 + $0x17c] sm:$0xf]
        %v6874 = vld [vmem:[%s5 + $0x180] sm:$0xf]
        %v6875 = vld [vmem:[%s5 + $0x184] sm:$0xf]
        %v6876 = vld [vmem:[%s5 + $0x188] sm:$0xf]
        %v6877 = vld [vmem:[%s5 + $0x18c] sm:$0xf]
        %v6878 = vld [vmem:[%s5 + $0x190] sm:$0xf]
        %v6879 = vld [vmem:[%s5 + $0x194] sm:$0xf]
        %v6880 = vld [vmem:[%s5 + $0x198] sm:$0xf]
        %v6881 = vld [vmem:[%s5 + $0x19c] sm:$0xf]
        %v6882 = vld [vmem:[%s5 + $0x1a0] sm:$0xf]
        %v6883 = vld [vmem:[%s5 + $0x1a4] sm:$0xf]
        %v6884 = vld [vmem:[%s5 + $0x1a8] sm:$0xf]
        %v6885 = vld [vmem:[%s5 + $0x1ac] sm:$0xf]
        %v6886 = vld [vmem:[%s5 + $0x1b0] sm:$0xf]
        %v6887 = vld [vmem:[%s5 + $0x1b4] sm:$0xf]
        %v6888 = vld [vmem:[%s5 + $0x1b8] sm:$0xf]
        %v6889 = vld [vmem:[%s5 + $0x1bc] sm:$0xf]
        %v6890 = vld [vmem:[%s5 + $0x1c0] sm:$0xf]
        %v6891 = vld [vmem:[%s5 + $0x1c4] sm:$0xf]
        %v6892 = vld [vmem:[%s5 + $0x1c8] sm:$0xf]
        %v6893 = vld [vmem:[%s5 + $0x1cc] sm:$0xf]
        %v6894 = vld [vmem:[%s5 + $0x1d0] sm:$0xf]
        %v6895 = vld [vmem:[%s5 + $0x1d4] sm:$0xf]
        %v6896 = vld [vmem:[%s5 + $0x1d8] sm:$0xf]
        %v6897 = vld [vmem:[%s5 + $0x1dc] sm:$0xf]
        %v6898 = vld [vmem:[%s5 + $0x1e0] sm:$0xf]
        %v6899 = vld [vmem:[%s5 + $0x1e4] sm:$0xf]
        %v6900 = vld [vmem:[%s5 + $0x1e8] sm:$0xf]
        %v6901 = vld [vmem:[%s5 + $0x1ec] sm:$0xf]
        %v6902 = vld [vmem:[%s5 + $0x1f0] sm:$0xf]
        %v6903 = vld [vmem:[%s5 + $0x1f4] sm:$0xf]
        %v6904 = vld [vmem:[%s5 + $0x1f8] sm:$0xf]
        %v6905 = vld [vmem:[%s5 + $0x1fc] sm:$0xf]
        %v6906 = vld [vmem:[%s5 + $0x200] sm:$0xf]
        %v6907 = vld [vmem:[%s5 + $0x204] sm:$0xf]
        %v6908 = vld [vmem:[%s5 + $0x208] sm:$0xf]
        %v6909 = vld [vmem:[%s5 + $0x20c] sm:$0xf]
        %v6910 = vld [vmem:[%s5 + $0x210] sm:$0xf]
        %v6911 = vld [vmem:[%s5 + $0x214] sm:$0xf]
        %v6912 = vld [vmem:[%s5 + $0x218] sm:$0xf]
        %v6913 = vld [vmem:[%s5 + $0x21c] sm:$0xf]
        %v6914 = vld [vmem:[%s5 + $0x220] sm:$0xf]
        %v6915 = vld [vmem:[%s5 + $0x224] sm:$0xf]
        %v6916 = vld [vmem:[%s5 + $0x228] sm:$0xf]
        %v6917 = vld [vmem:[%s5 + $0x22c] sm:$0xf]
        %v6918 = vld [vmem:[%s5 + $0x230] sm:$0xf]
        %v6919 = vld [vmem:[%s5 + $0x234] sm:$0xf]
        %v6920 = vld [vmem:[%s5 + $0x238] sm:$0xf]
        %v6921 = vld [vmem:[%s5 + $0x23c] sm:$0xf]
        %v6922 = vld [vmem:[%s6] sm:$0x1]
        %v6924 = vlaneseq
        %v6925 = vshrl.u32 %v6924, 7
        %v6926 = vsub.s32 0, %v6925
        %v6927 = vrot.slane %v6922, %v6926
        %v7073 = vunpack.c.l.b16 %v6778
        %v7074 = vunpack.c.l.b16 %v6779
        %v7075 = vunpack.c.l.b16 %v6780
        %v7076 = vunpack.c.l.b16 %v6781
        %v7077 = vunpack.c.l.b16 %v6782
        %v7078 = vunpack.c.l.b16 %v6783
        %v7079 = vunpack.c.l.b16 %v6784
        %v7080 = vunpack.c.l.b16 %v6785
        %v7081 = vunpack.c.l.b16 %v6786
        %v7082 = vunpack.c.l.b16 %v6787
        %v7083 = vunpack.c.l.b16 %v6788
        %v7084 = vunpack.c.l.b16 %v6789
        %v7085 = vunpack.c.l.b16 %v6790
        %v7086 = vunpack.c.l.b16 %v6791
        %v7087 = vunpack.c.l.b16 %v6792
        %v7088 = vunpack.c.l.b16 %v6793
        %v7089 = vunpack.c.l.b16 %v6794
        %v7090 = vunpack.c.l.b16 %v6795
        %v7091 = vunpack.c.l.b16 %v6796
        %v7092 = vunpack.c.l.b16 %v6797
        %v7093 = vunpack.c.l.b16 %v6798
        %v7094 = vunpack.c.l.b16 %v6799
        %v7095 = vunpack.c.l.b16 %v6800
        %v7096 = vunpack.c.l.b16 %v6801
        %v7097 = vunpack.c.l.b16 %v6802
        %v7098 = vunpack.c.l.b16 %v6803
        %v7099 = vunpack.c.l.b16 %v6804
        %v7100 = vunpack.c.l.b16 %v6805
        %v7101 = vunpack.c.l.b16 %v6806
        %v7102 = vunpack.c.l.b16 %v6807
        %v7103 = vunpack.c.l.b16 %v6808
        %v7104 = vunpack.c.l.b16 %v6809
        %v7105 = vunpack.c.l.b16 %v6810
        %v7106 = vunpack.c.l.b16 %v6811
        %v7107 = vunpack.c.l.b16 %v6812
        %v7108 = vunpack.c.l.b16 %v6813
        %v7109 = vunpack.c.l.b16 %v6814
        %v7110 = vunpack.c.l.b16 %v6815
        %v7111 = vunpack.c.l.b16 %v6816
        %v7112 = vunpack.c.l.b16 %v6817
        %v7113 = vunpack.c.l.b16 %v6818
        %v7114 = vunpack.c.l.b16 %v6819
        %v7115 = vunpack.c.l.b16 %v6820
        %v7116 = vunpack.c.l.b16 %v6821
        %v7117 = vunpack.c.l.b16 %v6822
        %v7118 = vunpack.c.l.b16 %v6823
        %v7119 = vunpack.c.l.b16 %v6824
        %v7120 = vunpack.c.l.b16 %v6825
        %v7121 = vunpack.c.l.b16 %v6826
        %v7122 = vunpack.c.l.b16 %v6827
        %v7123 = vunpack.c.l.b16 %v6828
        %v7124 = vunpack.c.l.b16 %v6829
        %v7125 = vunpack.c.l.b16 %v6830
        %v7126 = vunpack.c.l.b16 %v6831
        %v7127 = vunpack.c.l.b16 %v6832
        %v7128 = vunpack.c.l.b16 %v6833
        %v7129 = vunpack.c.l.b16 %v6834
        %v7130 = vunpack.c.l.b16 %v6835
        %v7131 = vunpack.c.l.b16 %v6836
        %v7132 = vunpack.c.l.b16 %v6837
        %v7133 = vunpack.c.l.b16 %v6838
        %v7134 = vunpack.c.l.b16 %v6839
        %v7135 = vunpack.c.l.b16 %v6840
        %v7136 = vunpack.c.l.b16 %v6841
        %v7137 = vunpack.c.l.b16 %v6842
        %v7138 = vunpack.c.l.b16 %v6843
        %v7139 = vunpack.c.l.b16 %v6844
        %v7140 = vunpack.c.l.b16 %v6845
        %v7141 = vunpack.c.l.b16 %v6846
        %v7142 = vunpack.c.l.b16 %v6847
        %v7143 = vunpack.c.l.b16 %v6848
        %v7144 = vunpack.c.l.b16 %v6849
        %v7145 = vunpack.c.l.b16 %v6850
        %v7146 = vunpack.c.l.b16 %v6851
        %v7147 = vunpack.c.l.b16 %v6852
        %v7148 = vunpack.c.l.b16 %v6853
        %v7149 = vunpack.c.l.b16 %v6854
        %v7150 = vunpack.c.l.b16 %v6855
        %v7151 = vunpack.c.l.b16 %v6856
        %v7152 = vunpack.c.l.b16 %v6857
        %v7153 = vunpack.c.l.b16 %v6858
        %v7154 = vunpack.c.l.b16 %v6859
        %v7155 = vunpack.c.l.b16 %v6860
        %v7156 = vunpack.c.l.b16 %v6861
        %v7157 = vunpack.c.l.b16 %v6862
        %v7158 = vunpack.c.l.b16 %v6863
        %v7159 = vunpack.c.l.b16 %v6864
        %v7160 = vunpack.c.l.b16 %v6865
        %v7161 = vunpack.c.l.b16 %v6866
        %v7162 = vunpack.c.l.b16 %v6867
        %v7163 = vunpack.c.l.b16 %v6868
        %v7164 = vunpack.c.l.b16 %v6869
        %v7165 = vunpack.c.l.b16 %v6870
        %v7166 = vunpack.c.l.b16 %v6871
        %v7167 = vunpack.c.l.b16 %v6872
        %v7168 = vunpack.c.l.b16 %v6873
        %v7169 = vunpack.c.l.b16 %v6874
        %v7170 = vunpack.c.l.b16 %v6875
        %v7171 = vunpack.c.l.b16 %v6876
        %v7172 = vunpack.c.l.b16 %v6877
        %v7173 = vunpack.c.l.b16 %v6878
        %v7174 = vunpack.c.l.b16 %v6879
        %v7175 = vunpack.c.l.b16 %v6880
        %v7176 = vunpack.c.l.b16 %v6881
        %v7177 = vunpack.c.l.b16 %v6882
        %v7178 = vunpack.c.l.b16 %v6883
        %v7179 = vunpack.c.l.b16 %v6884
        %v7180 = vunpack.c.l.b16 %v6885
        %v7181 = vunpack.c.l.b16 %v6886
        %v7182 = vunpack.c.l.b16 %v6887
        %v7183 = vunpack.c.l.b16 %v6888
        %v7184 = vunpack.c.l.b16 %v6889
        %v7185 = vunpack.c.l.b16 %v6890
        %v7186 = vunpack.c.l.b16 %v6891
        %v7187 = vunpack.c.l.b16 %v6892
        %v7188 = vunpack.c.l.b16 %v6893
        %v7189 = vunpack.c.l.b16 %v6894
        %v7190 = vunpack.c.l.b16 %v6895
        %v7191 = vunpack.c.l.b16 %v6896
        %v7192 = vunpack.c.l.b16 %v6897
        %v7193 = vunpack.c.l.b16 %v6898
        %v7194 = vunpack.c.l.b16 %v6899
        %v7195 = vunpack.c.l.b16 %v6900
        %v7196 = vunpack.c.l.b16 %v6901
        %v7197 = vunpack.c.l.b16 %v6902
        %v7198 = vunpack.c.l.b16 %v6903
        %v7199 = vunpack.c.l.b16 %v6904
        %v7200 = vunpack.c.l.b16 %v6905
        %v7201 = vunpack.c.l.b16 %v6906
        %v7202 = vunpack.c.l.b16 %v6907
        %v7203 = vunpack.c.l.b16 %v6908
        %v7204 = vunpack.c.l.b16 %v6909
        %v7205 = vunpack.c.l.b16 %v6910
        %v7206 = vunpack.c.l.b16 %v6911
        %v7207 = vunpack.c.l.b16 %v6912
        %v7208 = vunpack.c.l.b16 %v6913
        %v7209 = vunpack.c.l.b16 %v6914
        %v7210 = vunpack.c.l.b16 %v6915
        %v7211 = vunpack.c.l.b16 %v6916
        %v7212 = vunpack.c.l.b16 %v6917
        %v7213 = vunpack.c.l.b16 %v6918
        %v7214 = vunpack.c.l.b16 %v6919
        %v7215 = vunpack.c.l.b16 %v6920
        %v7216 = vunpack.c.l.b16 %v6921
        %v7217 = vpack.c.b16 %v7074, %v7073
        %v7218 = vpack.c.b16 %v7076, %v7075
        %v7219 = vpack.c.b16 %v7078, %v7077
        %v7220 = vpack.c.b16 %v7080, %v7079
        %v7221 = vpack.c.b16 %v7082, %v7081
        %v7222 = vpack.c.b16 %v7084, %v7083
        %v7223 = vpack.c.b16 %v7086, %v7085
        %v7224 = vpack.c.b16 %v7088, %v7087
        %v7225 = vpack.c.b16 %v7090, %v7089
        %v7226 = vpack.c.b16 %v7092, %v7091
        %v7227 = vpack.c.b16 %v7094, %v7093
        %v7228 = vpack.c.b16 %v7096, %v7095
        %v7229 = vpack.c.b16 %v7098, %v7097
        %v7230 = vpack.c.b16 %v7100, %v7099
        %v7231 = vpack.c.b16 %v7102, %v7101
        %v7232 = vpack.c.b16 %v7104, %v7103
        %v7233 = vpack.c.b16 %v7106, %v7105
        %v7234 = vpack.c.b16 %v7108, %v7107
        %v7235 = vpack.c.b16 %v7110, %v7109
        %v7236 = vpack.c.b16 %v7112, %v7111
        %v7237 = vpack.c.b16 %v7114, %v7113
        %v7238 = vpack.c.b16 %v7116, %v7115
        %v7239 = vpack.c.b16 %v7118, %v7117
        %v7240 = vpack.c.b16 %v7120, %v7119
        %v7241 = vpack.c.b16 %v7122, %v7121
        %v7242 = vpack.c.b16 %v7124, %v7123
        %v7243 = vpack.c.b16 %v7126, %v7125
        %v7244 = vpack.c.b16 %v7128, %v7127
        %v7245 = vpack.c.b16 %v7130, %v7129
        %v7246 = vpack.c.b16 %v7132, %v7131
        %v7247 = vpack.c.b16 %v7134, %v7133
        %v7248 = vpack.c.b16 %v7136, %v7135
        %v7249 = vpack.c.b16 %v7138, %v7137
        %v7250 = vpack.c.b16 %v7140, %v7139
        %v7251 = vpack.c.b16 %v7142, %v7141
        %v7252 = vpack.c.b16 %v7144, %v7143
        %v7253 = vpack.c.b16 %v7146, %v7145
        %v7254 = vpack.c.b16 %v7148, %v7147
        %v7255 = vpack.c.b16 %v7150, %v7149
        %v7256 = vpack.c.b16 %v7152, %v7151
        %v7257 = vpack.c.b16 %v7154, %v7153
        %v7258 = vpack.c.b16 %v7156, %v7155
        %v7259 = vpack.c.b16 %v7158, %v7157
        %v7260 = vpack.c.b16 %v7160, %v7159
        %v7261 = vpack.c.b16 %v7162, %v7161
        %v7262 = vpack.c.b16 %v7164, %v7163
        %v7263 = vpack.c.b16 %v7166, %v7165
        %v7264 = vpack.c.b16 %v7168, %v7167
        %v7265 = vpack.c.b16 %v7170, %v7169
        %v7266 = vpack.c.b16 %v7172, %v7171
        %v7267 = vpack.c.b16 %v7174, %v7173
        %v7268 = vpack.c.b16 %v7176, %v7175
        %v7269 = vpack.c.b16 %v7178, %v7177
        %v7270 = vpack.c.b16 %v7180, %v7179
        %v7271 = vpack.c.b16 %v7182, %v7181
        %v7272 = vpack.c.b16 %v7184, %v7183
        %v7273 = vpack.c.b16 %v7186, %v7185
        %v7274 = vpack.c.b16 %v7188, %v7187
        %v7275 = vpack.c.b16 %v7190, %v7189
        %v7276 = vpack.c.b16 %v7192, %v7191
        %v7277 = vpack.c.b16 %v7194, %v7193
        %v7278 = vpack.c.b16 %v7196, %v7195
        %v7279 = vpack.c.b16 %v7198, %v7197
        %v7280 = vpack.c.b16 %v7200, %v7199
        %v7281 = vpack.c.b16 %v7202, %v7201
        %v7282 = vpack.c.b16 %v7204, %v7203
        %v7283 = vpack.c.b16 %v7206, %v7205
        %v7284 = vpack.c.b16 %v7208, %v7207
        %v7285 = vpack.c.b16 %v7210, %v7209
        %v7286 = vpack.c.b16 %v7212, %v7211
        %v7287 = vpack.c.b16 %v7214, %v7213
        %v7288 = vpack.c.b16 %v7216, %v7215
        %7361 = vmatprep.subr.bf16.mxu0 0
        %7362 = vmatpush1.bf16.msra.mxu0 %v7224
        %7363 = vmatprep.subr.bf16.mxu0 0
        %7364 = vmatpush1.bf16.msra.mxu0 %v7223
        %7365 = vmatprep.subr.bf16.mxu0 0
        %7366 = vmatpush1.bf16.msra.mxu0 %v7222
        %7367 = vmatprep.subr.bf16.mxu0 0
        %7368 = vmatpush1.bf16.msra.mxu0 %v7221
        %7369 = vmatprep.subr.bf16.mxu0 0
        %7370 = vmatpush1.bf16.msra.mxu0 %v7220
        %7371 = vmatprep.subr.bf16.mxu0 0
        %7372 = vmatpush1.bf16.msra.mxu0 %v7219
        %7373 = vmatprep.subr.bf16.mxu0 0
        %7374 = vmatpush1.bf16.msra.mxu0 %v7218
        %7375 = vmatprep.subr.bf16.mxu0 0
        %7376 = vmatpush1.bf16.msra.mxu0 %v7217
        %7377 = vmatprep.subr.bf16.mxu0 0
        %7378 = vmatpush2.bf16.msra.mxu0 %v7232
        %7379 = vmatprep.subr.bf16.mxu0 0
        %7380 = vmatpush2.bf16.msra.mxu0 %v7231
        %7381 = vmatprep.subr.bf16.mxu0 0
        %7382 = vmatpush2.bf16.msra.mxu0 %v7230
        %7383 = vmatprep.subr.bf16.mxu0 0
        %7384 = vmatpush2.bf16.msra.mxu0 %v7229
        %7385 = vmatprep.subr.bf16.mxu0 0
        %7386 = vmatpush2.bf16.msra.mxu0 %v7228
        %7387 = vmatprep.subr.bf16.mxu0 0
        %7388 = vmatpush2.bf16.msra.mxu0 %v7227
        %7389 = vmatprep.subr.bf16.mxu0 0
        %7390 = vmatpush2.bf16.msra.mxu0 %v7226
        %7391 = vmatprep.subr.bf16.mxu0 0
        %7392 = vmatpush2.bf16.msra.mxu0 %v7225
        %7393 = vmatprep.mubr.bf16.mxu0 %v6202
        %7394 = vmatmul.mubr.bf16.gmra.mxu0 %v5706
        %v7395 = vpop.f32.mrf.mxu0
        %v7396 = vadd.f32 %v6927, %v7395
        %v7397 = vpop.f32.mrf.mxu0
        %v7398 = vpop.f32.mrf.mxu0
        %v7399 = vadd.f32 %v6927, %v7398
        %v7400 = vpop.f32.mrf.mxu0
        %7401 = vmatprep.mubr.bf16.mxu0 %v6203
        %7402 = vmatmul.mubr.bf16.gmra.mxu0 %v5707
        %v7403 = vpop.f32.mrf.mxu0
        %v7404 = vadd.f32 %v6927, %v7403
        %v7405 = vpop.f32.mrf.mxu0
        %v7406 = vpop.f32.mrf.mxu0
        %v7407 = vadd.f32 %v6927, %v7406
        %v7408 = vpop.f32.mrf.mxu0
        %7409 = vmatprep.mubr.bf16.mxu0 %v6204
        %7410 = vmatmul.mubr.bf16.gmra.mxu0 %v5708
        %v7411 = vpop.f32.mrf.mxu0
        %v7412 = vadd.f32 %v6927, %v7411
        %v7413 = vpop.f32.mrf.mxu0
        %v7414 = vpop.f32.mrf.mxu0
        %v7415 = vadd.f32 %v6927, %v7414
        %v7416 = vpop.f32.mrf.mxu0
        %7417 = vmatprep.mubr.bf16.mxu0 %v6205
        %7418 = vmatmul.mubr.bf16.gmra.mxu0 %v5709
        %v7419 = vpop.f32.mrf.mxu0
        %v7420 = vadd.f32 %v6927, %v7419
        %v7421 = vpop.f32.mrf.mxu0
        %v7422 = vpop.f32.mrf.mxu0
        %v7423 = vadd.f32 %v6927, %v7422
        %v7424 = vpop.f32.mrf.mxu0
        %7425 = vmatprep.mubr.bf16.mxu0 %v6206
        %7426 = vmatmul.mubr.bf16.gmra.mxu0 %v5710
        %v7427 = vpop.f32.mrf.mxu0
        %v7428 = vadd.f32 %v6927, %v7427
        %v7429 = vpop.f32.mrf.mxu0
        %v7430 = vpop.f32.mrf.mxu0
        %v7431 = vadd.f32 %v6927, %v7430
        %v7432 = vpop.f32.mrf.mxu0
        %7433 = vmatprep.mubr.bf16.mxu0 %v6207
        %7434 = vmatmul.mubr.bf16.gmra.mxu0 %v5711
        %v7435 = vpop.f32.mrf.mxu0
        %v7436 = vadd.f32 %v6927, %v7435
        %v7437 = vpop.f32.mrf.mxu0
        %v7438 = vpop.f32.mrf.mxu0
        %v7439 = vadd.f32 %v6927, %v7438
        %v7440 = vpop.f32.mrf.mxu0
        %7441 = vmatprep.mubr.bf16.mxu0 %v6208
        %7442 = vmatmul.mubr.bf16.gmra.mxu0 %v5712
        %v7443 = vpop.f32.mrf.mxu0
        %v7444 = vadd.f32 %v6927, %v7443
        %v7445 = vpop.f32.mrf.mxu0
        %v7446 = vpop.f32.mrf.mxu0
        %v7447 = vadd.f32 %v6927, %v7446
        %v7448 = vpop.f32.mrf.mxu0
        %7449 = vmatprep.mubr.bf16.mxu0 %v6209
        %7450 = vmatmul.mubr.bf16.gmra.mxu0 %v5713
        %v7451 = vpop.f32.mrf.mxu0
        %v7452 = vadd.f32 %v6927, %v7451
        %v7453 = vpop.f32.mrf.mxu0
        %v7454 = vpop.f32.mrf.mxu0
        %v7455 = vadd.f32 %v6927, %v7454
        %v7456 = vpop.f32.mrf.mxu0
        %7457 = vdwg.mxu0
        %7458 = vmatprep.subr.bf16.mxu0 0
        %7459 = vmatpush1.bf16.msra.mxu0 %v7240
        %7460 = vmatprep.subr.bf16.mxu0 0
        %7461 = vmatpush1.bf16.msra.mxu0 %v7239
        %7462 = vmatprep.subr.bf16.mxu0 0
        %7463 = vmatpush1.bf16.msra.mxu0 %v7238
        %7464 = vmatprep.subr.bf16.mxu0 0
        %7465 = vmatpush1.bf16.msra.mxu0 %v7237
        %7466 = vmatprep.subr.bf16.mxu0 0
        %7467 = vmatpush1.bf16.msra.mxu0 %v7236
        %7468 = vmatprep.subr.bf16.mxu0 0
        %7469 = vmatpush1.bf16.msra.mxu0 %v7235
        %7470 = vmatprep.subr.bf16.mxu0 0
        %7471 = vmatpush1.bf16.msra.mxu0 %v7234
        %7472 = vmatprep.subr.bf16.mxu0 0
        %7473 = vmatpush1.bf16.msra.mxu0 %v7233
        %7474 = vmatprep.subr.bf16.mxu0 0
        %7475 = vmatpush2.bf16.msra.mxu0 %v7248
        %7476 = vmatprep.subr.bf16.mxu0 0
        %7477 = vmatpush2.bf16.msra.mxu0 %v7247
        %7478 = vmatprep.subr.bf16.mxu0 0
        %7479 = vmatpush2.bf16.msra.mxu0 %v7246
        %7480 = vmatprep.subr.bf16.mxu0 0
        %7481 = vmatpush2.bf16.msra.mxu0 %v7245
        %7482 = vmatprep.subr.bf16.mxu0 0
        %7483 = vmatpush2.bf16.msra.mxu0 %v7244
        %7484 = vmatprep.subr.bf16.mxu0 0
        %7485 = vmatpush2.bf16.msra.mxu0 %v7243
        %7486 = vmatprep.subr.bf16.mxu0 0
        %7487 = vmatpush2.bf16.msra.mxu0 %v7242
        %7488 = vmatprep.subr.bf16.mxu0 0
        %7489 = vmatpush2.bf16.msra.mxu0 %v7241
        %7490 = vmatprep.mubr.bf16.mxu0 %v5707
        %7491 = vmatmul.mubr.bf16.gmra.mxu0 %v6498
        %v7492 = vpop.f32.mrf.mxu0
        %v7493 = vadd.f32 %v7396, %v7492
        %v7494 = vpop.f32.mrf.mxu0
        %v7495 = vpop.f32.mrf.mxu0
        %v7496 = vadd.f32 %v7399, %v7495
        %v7497 = vpop.f32.mrf.mxu0
        %7498 = vmatprep.mubr.bf16.mxu0 %v5708
        %7499 = vmatmul.mubr.bf16.gmra.mxu0 %v6499
        %v7500 = vpop.f32.mrf.mxu0
        %v7501 = vadd.f32 %v7404, %v7500
        %v7502 = vpop.f32.mrf.mxu0
        %v7503 = vpop.f32.mrf.mxu0
        %v7504 = vadd.f32 %v7407, %v7503
        %v7505 = vpop.f32.mrf.mxu0
        %7506 = vmatprep.mubr.bf16.mxu0 %v5709
        %7507 = vmatmul.mubr.bf16.gmra.mxu0 %v6500
        %v7508 = vpop.f32.mrf.mxu0
        %v7509 = vadd.f32 %v7412, %v7508
        %v7510 = vpop.f32.mrf.mxu0
        %v7511 = vpop.f32.mrf.mxu0
        %v7512 = vadd.f32 %v7415, %v7511
        %v7513 = vpop.f32.mrf.mxu0
        %7514 = vmatprep.mubr.bf16.mxu0 %v5710
        %7515 = vmatmul.mubr.bf16.gmra.mxu0 %v6501
        %v7516 = vpop.f32.mrf.mxu0
        %v7517 = vadd.f32 %v7420, %v7516
        %v7518 = vpop.f32.mrf.mxu0
        %v7519 = vpop.f32.mrf.mxu0
        %v7520 = vadd.f32 %v7423, %v7519
        %v7521 = vpop.f32.mrf.mxu0
        %7522 = vmatprep.mubr.bf16.mxu0 %v5711
        %7523 = vmatmul.mubr.bf16.gmra.mxu0 %v6502
        %v7524 = vpop.f32.mrf.mxu0
        %v7525 = vadd.f32 %v7428, %v7524
        %v7526 = vpop.f32.mrf.mxu0
        %v7527 = vpop.f32.mrf.mxu0
        %v7528 = vadd.f32 %v7431, %v7527
        %v7529 = vpop.f32.mrf.mxu0
        %7530 = vmatprep.mubr.bf16.mxu0 %v5712
        %7531 = vmatmul.mubr.bf16.gmra.mxu0 %v6503
        %v7532 = vpop.f32.mrf.mxu0
        %v7533 = vadd.f32 %v7436, %v7532
        %v7534 = vpop.f32.mrf.mxu0
        %v7535 = vpop.f32.mrf.mxu0
        %v7536 = vadd.f32 %v7439, %v7535
        %v7537 = vpop.f32.mrf.mxu0
        %7538 = vmatprep.mubr.bf16.mxu0 %v5713
        %7539 = vmatmul.mubr.bf16.gmra.mxu0 %v6504
        %v7540 = vpop.f32.mrf.mxu0
        %v7541 = vadd.f32 %v7444, %v7540
        %v7542 = vpop.f32.mrf.mxu0
        %v7543 = vpop.f32.mrf.mxu0
        %v7544 = vadd.f32 %v7447, %v7543
        %v7545 = vpop.f32.mrf.mxu0
        %7546 = vmatprep.mubr.bf16.mxu0 %v6542
        %7547 = vmatmul.mubr.bf16.gmra.mxu0 %v6505
        %v7548 = vpop.f32.mrf.mxu0
        %v7549 = vadd.f32 %v7452, %v7548
        %v7550 = vpop.f32.mrf.mxu0
        %v7551 = vpop.f32.mrf.mxu0
        %v7552 = vadd.f32 %v7455, %v7551
        %v7553 = vpop.f32.mrf.mxu0
        %7554 = vdwg.mxu0
        %7555 = vmatprep.subr.bf16.mxu0 0
        %7556 = vmatpush1.bf16.msra.mxu0 %v7256
        %7557 = vmatprep.subr.bf16.mxu0 0
        %7558 = vmatpush1.bf16.msra.mxu0 %v7255
        %7559 = vmatprep.subr.bf16.mxu0 0
        %7560 = vmatpush1.bf16.msra.mxu0 %v7254
        %7561 = vmatprep.subr.bf16.mxu0 0
        %7562 = vmatpush1.bf16.msra.mxu0 %v7253
        %7563 = vmatprep.subr.bf16.mxu0 0
        %7564 = vmatpush1.bf16.msra.mxu0 %v7252
        %7565 = vmatprep.subr.bf16.mxu0 0
        %7566 = vmatpush1.bf16.msra.mxu0 %v7251
        %7567 = vmatprep.subr.bf16.mxu0 0
        %7568 = vmatpush1.bf16.msra.mxu0 %v7250
        %7569 = vmatprep.subr.bf16.mxu0 0
        %7570 = vmatpush1.bf16.msra.mxu0 %v7249
        %7571 = vmatprep.subr.bf16.mxu0 0
        %7572 = vmatpush2.bf16.msra.mxu0 %v7264
        %7573 = vmatprep.subr.bf16.mxu0 0
        %7574 = vmatpush2.bf16.msra.mxu0 %v7263
        %7575 = vmatprep.subr.bf16.mxu0 0
        %7576 = vmatpush2.bf16.msra.mxu0 %v7262
        %7577 = vmatprep.subr.bf16.mxu0 0
        %7578 = vmatpush2.bf16.msra.mxu0 %v7261
        %7579 = vmatprep.subr.bf16.mxu0 0
        %7580 = vmatpush2.bf16.msra.mxu0 %v7260
        %7581 = vmatprep.subr.bf16.mxu0 0
        %7582 = vmatpush2.bf16.msra.mxu0 %v7259
        %7583 = vmatprep.subr.bf16.mxu0 0
        %7584 = vmatpush2.bf16.msra.mxu0 %v7258
        %7585 = vmatprep.subr.bf16.mxu0 0
        %7586 = vmatpush2.bf16.msra.mxu0 %v7257
        %7587 = vmatprep.mubr.bf16.mxu0 %v6499
        %7588 = vmatmul.mubr.bf16.gmra.mxu0 %v6203
        %v7589 = vpop.f32.mrf.mxu0
        %v7590 = vadd.f32 %v7493, %v7589
        %v7591 = vpop.f32.mrf.mxu0
        %v7592 = vpop.f32.mrf.mxu0
        %v7593 = vadd.f32 %v7496, %v7592
        %v7594 = vpop.f32.mrf.mxu0
        %7595 = vmatprep.mubr.bf16.mxu0 %v6500
        %7596 = vmatmul.mubr.bf16.gmra.mxu0 %v6204
        %v7597 = vpop.f32.mrf.mxu0
        %v7598 = vadd.f32 %v7501, %v7597
        %v7599 = vpop.f32.mrf.mxu0
        %v7600 = vpop.f32.mrf.mxu0
        %v7601 = vadd.f32 %v7504, %v7600
        %v7602 = vpop.f32.mrf.mxu0
        %7603 = vmatprep.mubr.bf16.mxu0 %v6501
        %7604 = vmatmul.mubr.bf16.gmra.mxu0 %v6205
        %v7605 = vpop.f32.mrf.mxu0
        %v7606 = vadd.f32 %v7509, %v7605
        %v7607 = vpop.f32.mrf.mxu0
        %v7608 = vpop.f32.mrf.mxu0
        %v7609 = vadd.f32 %v7512, %v7608
        %v7610 = vpop.f32.mrf.mxu0
        %7611 = vmatprep.mubr.bf16.mxu0 %v6502
        %7612 = vmatmul.mubr.bf16.gmra.mxu0 %v6206
        %v7613 = vpop.f32.mrf.mxu0
        %v7614 = vadd.f32 %v7517, %v7613
        %v7615 = vpop.f32.mrf.mxu0
        %v7616 = vpop.f32.mrf.mxu0
        %v7617 = vadd.f32 %v7520, %v7616
        %v7618 = vpop.f32.mrf.mxu0
        %7619 = vmatprep.mubr.bf16.mxu0 %v6503
        %7620 = vmatmul.mubr.bf16.gmra.mxu0 %v6207
        %v7621 = vpop.f32.mrf.mxu0
        %v7622 = vadd.f32 %v7525, %v7621
        %v7623 = vpop.f32.mrf.mxu0
        %v7624 = vpop.f32.mrf.mxu0
        %v7625 = vadd.f32 %v7528, %v7624
        %v7626 = vpop.f32.mrf.mxu0
        %7627 = vmatprep.mubr.bf16.mxu0 %v6504
        %7628 = vmatmul.mubr.bf16.gmra.mxu0 %v6208
        %v7629 = vpop.f32.mrf.mxu0
        %v7630 = vadd.f32 %v7533, %v7629
        %v7631 = vpop.f32.mrf.mxu0
        %v7632 = vpop.f32.mrf.mxu0
        %v7633 = vadd.f32 %v7536, %v7632
        %v7634 = vpop.f32.mrf.mxu0
        %7635 = vmatprep.mubr.bf16.mxu0 %v6505
        %7636 = vmatmul.mubr.bf16.gmra.mxu0 %v6209
        %v7637 = vpop.f32.mrf.mxu0
        %v7638 = vadd.f32 %v7541, %v7637
        %v7639 = vpop.f32.mrf.mxu0
        %v7640 = vpop.f32.mrf.mxu0
        %v7641 = vadd.f32 %v7544, %v7640
        %v7642 = vpop.f32.mrf.mxu0
        %7643 = vmatprep.mubr.bf16.mxu0 %v6641
        %7644 = vmatmul.mubr.bf16.gmra.mxu0 %v6604
        %v7645 = vpop.f32.mrf.mxu0
        %v7646 = vadd.f32 %v7549, %v7645
        %v7647 = vpop.f32.mrf.mxu0
        %v7648 = vpop.f32.mrf.mxu0
        %v7649 = vadd.f32 %v7552, %v7648
        %v7650 = vpop.f32.mrf.mxu0
        %7651 = vdwg.mxu0
        %7652 = vmatprep.subr.bf16.mxu0 0
        %7653 = vmatpush1.bf16.msra.mxu0 %v7272
        %7654 = vmatprep.subr.bf16.mxu0 0
        %7655 = vmatpush1.bf16.msra.mxu0 %v7271
        %7656 = vmatprep.subr.bf16.mxu0 0
        %7657 = vmatpush1.bf16.msra.mxu0 %v7270
        %7658 = vmatprep.subr.bf16.mxu0 0
        %7659 = vmatpush1.bf16.msra.mxu0 %v7269
        %7660 = vmatprep.subr.bf16.mxu0 0
        %7661 = vmatpush1.bf16.msra.mxu0 %v7268
        %7662 = vmatprep.subr.bf16.mxu0 0
        %7663 = vmatpush1.bf16.msra.mxu0 %v7267
        %7664 = vmatprep.subr.bf16.mxu0 0
        %7665 = vmatpush1.bf16.msra.mxu0 %v7266
        %7666 = vmatprep.subr.bf16.mxu0 0
        %7667 = vmatpush1.bf16.msra.mxu0 %v7265
        %7668 = vmatprep.subr.bf16.mxu0 0
        %7669 = vmatpush2.bf16.msra.mxu0 %v7280
        %7670 = vmatprep.subr.bf16.mxu0 0
        %7671 = vmatpush2.bf16.msra.mxu0 %v7279
        %7672 = vmatprep.subr.bf16.mxu0 0
        %7673 = vmatpush2.bf16.msra.mxu0 %v7278
        %7674 = vmatprep.subr.bf16.mxu0 0
        %7675 = vmatpush2.bf16.msra.mxu0 %v7277
        %7676 = vmatprep.subr.bf16.mxu0 0
        %7677 = vmatpush2.bf16.msra.mxu0 %v7276
        %7678 = vmatprep.subr.bf16.mxu0 0
        %7679 = vmatpush2.bf16.msra.mxu0 %v7275
        %7680 = vmatprep.subr.bf16.mxu0 0
        %7681 = vmatpush2.bf16.msra.mxu0 %v7274
        %7682 = vmatprep.subr.bf16.mxu0 0
        %7683 = vmatpush2.bf16.msra.mxu0 %v7273
        %7684 = vmatprep.mubr.bf16.mxu0 %v6204
        %7685 = vmatmul.mubr.bf16.gmra.mxu0 %v5708
        %v7686 = vpop.f32.mrf.mxu0
        %v7687 = vadd.f32 %v7590, %v7686
        %v7688 = vpop.f32.mrf.mxu0
        %v7689 = vpop.f32.mrf.mxu0
        %v7690 = vadd.f32 %v7593, %v7689
        %v7691 = vpop.f32.mrf.mxu0
        %7692 = vmatprep.mubr.bf16.mxu0 %v6205
        %7693 = vmatmul.mubr.bf16.gmra.mxu0 %v5709
        %v7694 = vpop.f32.mrf.mxu0
        %v7695 = vadd.f32 %v7598, %v7694
        %v7696 = vpop.f32.mrf.mxu0
        %v7697 = vpop.f32.mrf.mxu0
        %v7698 = vadd.f32 %v7601, %v7697
        %v7699 = vpop.f32.mrf.mxu0
        %7700 = vmatprep.mubr.bf16.mxu0 %v6206
        %7701 = vmatmul.mubr.bf16.gmra.mxu0 %v5710
        %v7702 = vpop.f32.mrf.mxu0
        %v7703 = vadd.f32 %v7606, %v7702
        %v7704 = vpop.f32.mrf.mxu0
        %v7705 = vpop.f32.mrf.mxu0
        %v7706 = vadd.f32 %v7609, %v7705
        %v7707 = vpop.f32.mrf.mxu0
        %7708 = vmatprep.mubr.bf16.mxu0 %v6207
        %7709 = vmatmul.mubr.bf16.gmra.mxu0 %v5711
        %v7710 = vpop.f32.mrf.mxu0
        %v7711 = vadd.f32 %v7614, %v7710
        %v7712 = vpop.f32.mrf.mxu0
        %v7713 = vpop.f32.mrf.mxu0
        %v7714 = vadd.f32 %v7617, %v7713
        %v7715 = vpop.f32.mrf.mxu0
        %7716 = vmatprep.mubr.bf16.mxu0 %v6208
        %7717 = vmatmul.mubr.bf16.gmra.mxu0 %v5712
        %v7718 = vpop.f32.mrf.mxu0
        %v7719 = vadd.f32 %v7622, %v7718
        %v7720 = vpop.f32.mrf.mxu0
        %v7721 = vpop.f32.mrf.mxu0
        %v7722 = vadd.f32 %v7625, %v7721
        %v7723 = vpop.f32.mrf.mxu0
        %7724 = vmatprep.mubr.bf16.mxu0 %v6209
        %7725 = vmatmul.mubr.bf16.gmra.mxu0 %v5713
        %v7726 = vpop.f32.mrf.mxu0
        %v7727 = vadd.f32 %v7630, %v7726
        %v7728 = vpop.f32.mrf.mxu0
        %v7729 = vpop.f32.mrf.mxu0
        %v7730 = vadd.f32 %v7633, %v7729
        %v7731 = vpop.f32.mrf.mxu0
        %7732 = vmatprep.mubr.bf16.mxu0 %v6604
        %7733 = vmatmul.mubr.bf16.gmra.mxu0 %v6542
        %v7734 = vpop.f32.mrf.mxu0
        %v7735 = vadd.f32 %v7638, %v7734
        %v7736 = vpop.f32.mrf.mxu0
        %v7737 = vpop.f32.mrf.mxu0
        %v7738 = vadd.f32 %v7641, %v7737
        %v7739 = vpop.f32.mrf.mxu0
        %7740 = vmatprep.mubr.bf16.mxu0 %v6740
        %7741 = vmatmul.mubr.bf16.gmra.mxu0 %v6678
        %v7742 = vpop.f32.mrf.mxu0
        %v7743 = vadd.f32 %v7646, %v7742
        %v7744 = vpop.f32.mrf.mxu0
        %v7745 = vpop.f32.mrf.mxu0
        %v7746 = vadd.f32 %v7649, %v7745
        %v7747 = vpop.f32.mrf.mxu0
        %7748 = vdwg.mxu0
        %7749 = vmatprep.subr.bf16.mxu0 0
        %7750 = vmatpush1.bf16.msra.mxu0 %v7288
        %7751 = vmatprep.subr.bf16.mxu0 0
        %7752 = vmatpush1.bf16.msra.mxu0 %v7287
        %7753 = vmatprep.subr.bf16.mxu0 0
        %7754 = vmatpush1.bf16.msra.mxu0 %v7286
        %7755 = vmatprep.subr.bf16.mxu0 0
        %7756 = vmatpush1.bf16.msra.mxu0 %v7285
        %7757 = vmatprep.subr.bf16.mxu0 0
        %7758 = vmatpush1.bf16.msra.mxu0 %v7284
        %7759 = vmatprep.subr.bf16.mxu0 0
        %7760 = vmatpush1.bf16.msra.mxu0 %v7283
        %7761 = vmatprep.subr.bf16.mxu0 0
        %7762 = vmatpush1.bf16.msra.mxu0 %v7282
        %7763 = vmatprep.subr.bf16.mxu0 0
        %7764 = vmatpush1.bf16.msra.mxu0 %v7281
        %7765 = vmatprep.subr.bf16.mxu0 0
        %7766 = vmatpush2.bf16.msra.mxu0 0
        %7767 = vmatprep.subr.bf16.mxu0 0
        %7768 = vmatpush2.bf16.msra.mxu0 0
        %7769 = vmatprep.subr.bf16.mxu0 0
        %7770 = vmatpush2.bf16.msra.mxu0 0
        %7771 = vmatprep.subr.bf16.mxu0 0
        %7772 = vmatpush2.bf16.msra.mxu0 0
        %7773 = vmatprep.subr.bf16.mxu0 0
        %7774 = vmatpush2.bf16.msra.mxu0 0
        %7775 = vmatprep.subr.bf16.mxu0 0
        %7776 = vmatpush2.bf16.msra.mxu0 0
        %7777 = vmatprep.subr.bf16.mxu0 0
        %7778 = vmatpush2.bf16.msra.mxu0 0
        %7779 = vmatprep.subr.bf16.mxu0 0
        %7780 = vmatpush2.bf16.msra.mxu0 0
        %7781 = vmatprep.mubr.bf16.mxu0 0
        %7782 = vmatmul.mubr.bf16.gmra.mxu0 %v6500
        %v7783 = vpop.f32.mrf.mxu0
        %v7784 = vadd.f32 %v7687, %v7783
        %v7785 = vpop.f32.mrf.mxu0
        %v7786 = vpop.f32.mrf.mxu0
        %v7787 = vadd.f32 %v7690, %v7786
        %v7788 = vpop.f32.mrf.mxu0
        %7789 = vmatprep.mubr.bf16.mxu0 0
        %7790 = vmatmul.mubr.bf16.gmra.mxu0 %v6501
        %v7791 = vpop.f32.mrf.mxu0
        %v7792 = vadd.f32 %v7695, %v7791
        %v7793 = vpop.f32.mrf.mxu0
        %v7794 = vpop.f32.mrf.mxu0
        %v7795 = vadd.f32 %v7698, %v7794
        %v7796 = vpop.f32.mrf.mxu0
        %7797 = vmatprep.mubr.bf16.mxu0 0
        %7798 = vmatmul.mubr.bf16.gmra.mxu0 %v6502
        %v7799 = vpop.f32.mrf.mxu0
        %v7800 = vadd.f32 %v7703, %v7799
        %v7801 = vpop.f32.mrf.mxu0
        %v7802 = vpop.f32.mrf.mxu0
        %v7803 = vadd.f32 %v7706, %v7802
        %v7804 = vpop.f32.mrf.mxu0
        %7805 = vmatprep.mubr.bf16.mxu0 0
        %7806 = vmatmul.mubr.bf16.gmra.mxu0 %v6503
        %v7807 = vpop.f32.mrf.mxu0
        %v7808 = vadd.f32 %v7711, %v7807
        %v7809 = vpop.f32.mrf.mxu0
        %v7810 = vpop.f32.mrf.mxu0
        %v7811 = vadd.f32 %v7714, %v7810
        %v7812 = vpop.f32.mrf.mxu0
        %7813 = vmatprep.mubr.bf16.mxu0 0
        %7814 = vmatmul.mubr.bf16.gmra.mxu0 %v6504
        %v7815 = vpop.f32.mrf.mxu0
        %v7816 = vadd.f32 %v7719, %v7815
        %v7817 = vpop.f32.mrf.mxu0
        %v7818 = vpop.f32.mrf.mxu0
        %v7819 = vadd.f32 %v7722, %v7818
        %v7820 = vpop.f32.mrf.mxu0
        %7821 = vmatprep.mubr.bf16.mxu0 0
        %7822 = vmatmul.mubr.bf16.gmra.mxu0 %v6505
        %v7823 = vpop.f32.mrf.mxu0
        %v7824 = vadd.f32 %v7727, %v7823
        %v7825 = vpop.f32.mrf.mxu0
        %v7826 = vpop.f32.mrf.mxu0
        %v7827 = vadd.f32 %v7730, %v7826
        %v7828 = vpop.f32.mrf.mxu0
        %7829 = vmatprep.mubr.bf16.mxu0 0
        %7830 = vmatmul.mubr.bf16.gmra.mxu0 %v6641
        %v7831 = vpop.f32.mrf.mxu0
        %v7832 = vadd.f32 %v7735, %v7831
        %v7833 = vpop.f32.mrf.mxu0
        %v7834 = vpop.f32.mrf.mxu0
        %v7835 = vadd.f32 %v7738, %v7834
        %v7836 = vpop.f32.mrf.mxu0
        %7837 = vmatprep.mubr.bf16.mxu0 0
        %7838 = vmatmul.mubr.bf16.gmra.mxu0 %v6777
        %v7839 = vpop.f32.mrf.mxu0
        %v7840 = vadd.f32 %v7743, %v7839
        %v7841 = vpop.f32.mrf.mxu0
        %v7842 = vpop.f32.mrf.mxu0
        %v7843 = vadd.f32 %v7746, %v7842
        %v7844 = vpop.f32.mrf.mxu0
        %7845 = vdwg.mxu0
        %s7846 = sld [smem:[#allocation3]]
        %vm7847 = vcmp.gt.f32.partialorder %v7784, 0.0
        %vm7848 = vcmp.gt.f32.partialorder %v7787, 0.0
        %vm7849 = vcmp.gt.f32.partialorder %v7792, 0.0
        %vm7850 = vcmp.gt.f32.partialorder %v7795, 0.0
        %vm7851 = vcmp.gt.f32.partialorder %v7800, 0.0
        %vm7852 = vcmp.gt.f32.partialorder %v7803, 0.0
        %vm7853 = vcmp.gt.f32.partialorder %v7808, 0.0
        %vm7854 = vcmp.gt.f32.partialorder %v7811, 0.0
        %vm7855 = vcmp.gt.f32.partialorder %v7816, 0.0
        %vm7856 = vcmp.gt.f32.partialorder %v7819, 0.0
        %vm7857 = vcmp.gt.f32.partialorder %v7824, 0.0
        %vm7858 = vcmp.gt.f32.partialorder %v7827, 0.0
        %vm7859 = vcmp.gt.f32.partialorder %v7832, 0.0
        %vm7860 = vcmp.gt.f32.partialorder %v7835, 0.0
        %vm7861 = vcmp.gt.f32.partialorder %v7840, 0.0
        %vm7862 = vcmp.gt.f32.partialorder %v7843, 0.0
        %v7863 = vstv %s7846
        %v7864 = vmul.f32 %v7863, %v7784
        %v7865 = vmul.f32 %v7863, %v7787
        %v7866 = vmul.f32 %v7863, %v7792
        %v7867 = vmul.f32 %v7863, %v7795
        %v7868 = vmul.f32 %v7863, %v7800
        %v7869 = vmul.f32 %v7863, %v7803
        %v7870 = vmul.f32 %v7863, %v7808
        %v7871 = vmul.f32 %v7863, %v7811
        %v7872 = vmul.f32 %v7863, %v7816
        %v7873 = vmul.f32 %v7863, %v7819
        %v7874 = vmul.f32 %v7863, %v7824
        %v7875 = vmul.f32 %v7863, %v7827
        %v7876 = vmul.f32 %v7863, %v7832
        %v7877 = vmul.f32 %v7863, %v7835
        %v7878 = vmul.f32 %v7863, %v7840
        %v7879 = vmul.f32 %v7863, %v7843
        %v7880 = vsel %vm7847, %v7784, %v7864
        %v7881 = vsel %vm7848, %v7787, %v7865
        %v7882 = vsel %vm7849, %v7792, %v7866
        %v7883 = vsel %vm7850, %v7795, %v7867
        %v7884 = vsel %vm7851, %v7800, %v7868
        %v7885 = vsel %vm7852, %v7803, %v7869
        %v7886 = vsel %vm7853, %v7808, %v7870
        %v7887 = vsel %vm7854, %v7811, %v7871
        %v7888 = vsel %vm7855, %v7816, %v7872
        %v7889 = vsel %vm7856, %v7819, %v7873
        %v7890 = vsel %vm7857, %v7824, %v7874
        %v7891 = vsel %vm7858, %v7827, %v7875
        %v7892 = vsel %vm7859, %v7832, %v7876
        %v7893 = vsel %vm7860, %v7835, %v7877
        %v7894 = vsel %vm7861, %v7840, %v7878
        %v7895 = vsel %vm7862, %v7843, %v7879
        %vm7896 = vcmask 1045504
        %v7897 = vrot.slane %v362, 2
        %v7898 = vrot.slane %v363, 2
        %v7899 = vsel %vm7896, %v7897, %v7898
        %v7900 = vrot.slane %v364, 2
        %v7901 = vsel %vm7896, %v7898, %v7900
        %v7902 = vrot.slane %v365, 2
        %v7903 = vrot.slane %v366, 2
        %v7904 = vsel %vm7896, %v7902, %v7903
        %v7905 = vrot.slane %v367, 2
        %v7906 = vsel %vm7896, %v7903, %v7905
        %v7907 = vrot.slane %v368, 2
        %v7908 = vrot.slane %v369, 2
        %v7909 = vsel %vm7896, %v7907, %v7908
        %v7910 = vrot.slane %v370, 2
        %v7911 = vsel %vm7896, %v7908, %v7910
        %v7912 = vrot.slane %v371, 2
        %v7913 = vrot.slane %v372, 2
        %v7914 = vsel %vm7896, %v7912, %v7913
        %v7915 = vrot.slane %v373, 2
        %v7916 = vsel %vm7896, %v7913, %v7915
        %v7917 = vrot.slane %v374, 2
        %v7918 = vrot.slane %v375, 2
        %v7919 = vsel %vm7896, %v7917, %v7918
        %v7920 = vrot.slane %v376, 2
        %v7921 = vsel %vm7896, %v7918, %v7920
        %v7922 = vrot.slane %v377, 2
        %v7923 = vrot.slane %v378, 2
        %v7924 = vsel %vm7896, %v7922, %v7923
        %v7925 = vrot.slane %v379, 2
        %v7926 = vsel %vm7896, %v7923, %v7925
        %v7927 = vrot.slane %v380, 2
        %v7928 = vrot.slane %v381, 2
        %v7929 = vsel %vm7896, %v7927, %v7928
        %v7930 = vrot.slane %v382, 2
        %v7931 = vsel %vm7896, %v7928, %v7930
        %v7932 = vrot.slane %v383, 2
        %v7933 = vrot.slane %v384, 2
        %v7934 = vsel %vm7896, %v7932, %v7933
        %v7935 = vrot.slane %v385, 2
        %v7936 = vsel %vm7896, %v7933, %v7935
        %v7953 = vadd.f32 %v7899, %v7880
        %v7954 = vadd.f32 %v7901, %v7881
        %v7955 = vadd.f32 %v7904, %v7882
        %v7956 = vadd.f32 %v7906, %v7883
        %v7957 = vadd.f32 %v7909, %v7884
        %v7958 = vadd.f32 %v7911, %v7885
        %v7959 = vadd.f32 %v7914, %v7886
        %v7960 = vadd.f32 %v7916, %v7887
        %v7961 = vadd.f32 %v7919, %v7888
        %v7962 = vadd.f32 %v7921, %v7889
        %v7963 = vadd.f32 %v7924, %v7890
        %v7964 = vadd.f32 %v7926, %v7891
        %v7965 = vadd.f32 %v7929, %v7892
        %v7966 = vadd.f32 %v7931, %v7893
        %v7967 = vadd.f32 %v7934, %v7894
        %v7968 = vadd.f32 %v7936, %v7895
        %7969 = vst [vmem:[%s339] sm:$0xff] %v7953
        %7970 = vst [vmem:[%s339 + $0x8] sm:$0xff] %v7954
        %7971 = vst [vmem:[%s339 + $0x10] sm:$0xff] %v7955
        %7972 = vst [vmem:[%s339 + $0x18] sm:$0xff] %v7956
        %7973 = vst [vmem:[%s339 + $0x20] sm:$0xff] %v7957
        %7974 = vst [vmem:[%s339 + $0x28] sm:$0xff] %v7958
        %7975 = vst [vmem:[%s339 + $0x30] sm:$0xff] %v7959
        %7976 = vst [vmem:[%s339 + $0x38] sm:$0xff] %v7960
        %7977 = vst [vmem:[%s339 + $0x40] sm:$0xff] %v7961
        %7978 = vst [vmem:[%s339 + $0x48] sm:$0xff] %v7962
        %7979 = vst [vmem:[%s339 + $0x50] sm:$0xff] %v7963
        %7980 = vst [vmem:[%s339 + $0x58] sm:$0xff] %v7964
        %7981 = vst [vmem:[%s339 + $0x60] sm:$0xff] %v7965
        %7982 = vst [vmem:[%s339 + $0x68] sm:$0xff] %v7966
        %7983 = vst [vmem:[%s339 + $0x70] sm:$0xff] %v7967
        %7984 = vst [vmem:[%s339 + $0x78] sm:$0xff] %v7968
        %s7985 = sand.u32 %s226, 1
        %s7986 = scalar_lea.sflag [#allocation5], %s7985
        %s7987 = sand.u32 %s226, 1
        %s7988 = smul.addr %s7987, 128
        %s7989 = scalar_lea.vmem [#allocation4], %s7988
        // Predicated region
        $region53: #{tpu_custom_call.1} parent=51 // pred_check
          %p7990 = pneg %p236
        $region54: #{tpu_custom_call.1} parent=51 // pred_check_branch
          %7992 = sbr.rel (%p7990) target = $region56
        $region55: #{tpu_custom_call.1} parent=51 // pred_region
          %s7993 = smul.u32 8, %s29
          %s7995 = ssub.s32 2048, 2048
          %7996 = vsyncadd %s7986, %s7995
          %s7997 = smul.addr %s7993, 2
          %s7998 = smul.addr %s28, 32
          %s7999 = sadd.s32 %s7997, %s7998
          %s8000 = smul.addr %s7999, 128
          %s8001 = scalar_lea.hbm %s8, %s8000
          %s8002 = sshll.u32 %s7989, 4
          %s8003 = int_to_ptr.vmem [resolvable:$true] %s8002
          %8008 = dma.vmem_to_hbm [thread:$0]  %s8003, 2048, %s8001, %s7986, 128, 128, 8
        $region56: #{tpu_custom_call.1} parent=51 // pred_fallthru
          _
      $region52: #{tpu_custom_call.1} parent=5 // pred_fallthru
        _
      %p8009 = scmp.le.s32.totalorder 2, %s19
      // Predicated region
      $region57: #{tpu_custom_call.1} parent=5 // pred_check
        %p8010 = pneg %p8009
      $region58: #{tpu_custom_call.1} parent=5 // pred_check_branch
        %8012 = sbr.rel (%p8010) target = $region60
      $region59: #{tpu_custom_call.1} parent=5 // pred_region
        %s8013 = ssub.s32 %s19, 2
        // Predicated region
        $region61: #{tpu_custom_call.1} parent=59 // pred_check
          %p8014 = pneg %p242
        $region62: #{tpu_custom_call.1} parent=59 // pred_check_branch
          %8016 = sbr.rel (%p8014) target = $region64
        $region63: #{tpu_custom_call.1} parent=59 // pred_region
          %s8017 = sand.u32 %s227, 1
          %s8018 = scalar_lea.sflag [#allocation5], %s8017
          %s8019 = sand.u32 %s227, 1
          %s8020 = smul.addr %s8019, 128
          %s8021 = scalar_lea.vmem [#allocation4], %s8020
          %8022 = dma.done %s8018, 2048
        $region64: #{tpu_custom_call.1} parent=59 // pred_fallthru
          _
      $region60: #{tpu_custom_call.1} parent=5 // pred_fallthru
        _
    $region6: #{tpu_custom_call.1} parent=1 // loop_footer
      %s23 = sadd.s32 1, %s19
    $region7: #{tpu_custom_call.1} parent=1 // loop_footer_branch
      %18 = sbr.rel target = $region3
    $region8: #{tpu_custom_call.1} parent=1 // loop_exit
      _
    %8023 = vsyncpa [#allocation5], 1
    %s8024 = scalar_lea.sflag [#allocation5], 1
    %8025 = vsyncpa %s8024, 1

</llo_original>
